<compile_context>
chip_gen: v7x
topology: tpu7x:2x2x1
jax: 0.10.0
libtpu: 0.0.40
codegen_flags: <defaults>
</compile_context>

<pallas_src>
import jax
import jax.numpy as jnp
from jax import lax
from jax.experimental import pallas as pl
from jax.experimental.pallas import tpu as pltpu

HIDDEN = 8
G4 = 4 * HIDDEN              # 32 packed gate columns per layer
NUM_LAYERS = 2
SEQ_LEN = 1024               # fixed by nn.Linear(8 * 1024, 256)
BATCH = 32                   # fixed by h0 = torch.randn(2, 32, 8)
FC_HIDDEN = 256
NUM_CLASSES = 4
CHUNK = 16                   # timesteps per unrolled inner block (16*8 = 128 lanes)
N_CHUNKS = SEQ_LEN // CHUNK

GATE_PERM = (0, 1, 3, 2)     # torch gate blocks (i,f,g,o) -> packed (i,f,o,g)


def _cell(pre, c_prev):
    """Packed-gate LSTM cell; pre columns are [i | f | o | g]."""
    sig = jax.nn.sigmoid(pre[:, :3 * HIDDEN])
    g = jnp.tanh(pre[:, 3 * HIDDEN:])
    c_new = sig[:, HIDDEN:2 * HIDDEN] * c_prev + sig[:, :HIDDEN] * g
    h_new = sig[:, 2 * HIDDEN:3 * HIDDEN] * jnp.tanh(c_new)
    return h_new, c_new


# ----------------------------------------------------------------------------
# Single fused kernel: 2-layer LSTM recurrence (interleaved) + FC head.
# ----------------------------------------------------------------------------
def _lstmclf_kernel(x_ch_ref, inp00_ref, wih0_ref, b0_ref, wcat_ref, whh1_ref,
                    b1_ref, w1_ref, bfc1_ref, w2_ref, bfc2_ref,
                    h_init_ref, c_init_ref, out_ref, stage_ref, acc_ref):
    """
    x_ch_ref:   (N_CHUNKS, B, CHUNK) raw x values for layer-0 steps 1..T
                (shifted by one; the final entry is a zero-padded dummy step)
    inp00_ref:  (B, 4H)   x[:,0]*W_ih0 + b0 for the layer-0 prologue step
    wih0_ref:   (1, 4H)   layer-0 input weights (input_size = 1)
    b0_ref:     (1, 4H)   layer-0 bias (b_ih + b_hh)
    wcat_ref:   (H, 8H)   [whh0 | wih1] fused recurrent RHS for the h0 state
    whh1_ref:   (H, 4H)   layer-1 recurrent weights
    b1_ref:     (1, 4H)   layer-1 bias (b_ih + b_hh)
    w1_ref:     (T*H, 256) bf16 first FC weights (rows in Flatten order t*H+h)
    bfc1_ref:   (1, 256)  first FC bias
    w2_ref:     (256, 4)  second FC weights
    bfc2_ref:   (1, 4)    second FC bias
    h_init_ref: (2, B, H) initial hidden state per layer
    c_init_ref: (2, B, H) initial cell state per layer
    out_ref:    (B, 4)    logits
    stage_ref:  (B, CHUNK*H) scratch: layer-1 hidden states of one chunk
    acc_ref:    (B, 256)  scratch: FC1 accumulator
    """
    B = stage_ref.shape[0]

    # Hoist weights / biases out of the time loop.
    wcat = wcat_ref[...]                                   # (H, 2*G4)
    whh1 = whh1_ref[...]                                   # (H, G4)
    wih0 = jnp.broadcast_to(wih0_ref[...], (B, G4))
    b0 = jnp.broadcast_to(b0_ref[...], (B, G4))
    b1 = jnp.broadcast_to(b1_ref[...], (B, G4))

    acc_ref[...] = jnp.zeros_like(acc_ref)

    # ---- prologue: layer-0 step 0 (layer-0 runs one step ahead of layer-1).
    h0 = h_init_ref[0]
    c0 = c_init_ref[0]
    d = jnp.dot(h0, wcat, preferred_element_type=jnp.float32)
    h0, c0 = _cell(inp00_ref[...] + d[:, :G4], c0)
    h1 = h_init_ref[1]
    c1 = c_init_ref[1]

    # TODO(synk): nn.LSTM inter-layer dropout (p=0.1) is a train-time stochastic
    # op; eval-mode (identity) semantics are implemented here.

    def chunk_body(c, carry):
        h0, c0, h1, c1 = carry
        xc = x_ch_ref[c]                                   # (B, CHUNK), steps c*CHUNK+1 ..
        for lt in range(CHUNK):
            # One fused dot on the layer-0 state:
            #   d[:, :G4] = h0_t @ whh0  (layer-0 recurrence for step t+1)
            #   d[:, G4:] = h0_t @ wih1  (layer-1 input projection for step t)
            d = jnp.dot(h0, wcat, preferred_element_type=jnp.float32)

            # layer-1 step t = c*CHUNK + lt  (uses previous iteration's h0).
            pre1 = d[:, G4:] + b1 + jnp.dot(h1, whh1,
                                            preferred_element_type=jnp.float32)
            h1, c1 = _cell(pre1, c1)
            stage_ref[:, lt * HIDDEN:(lt + 1) * HIDDEN] = h1

            # layer-0 step t + 1 (the very last one is a discarded zero-padded
            # dummy; its result is never consumed).
            inp0 = xc[:, lt:lt + 1] * wih0 + b0
            h0, c0 = _cell(inp0 + d[:, :G4], c0)

        # Fused FC1 partial sum for this chunk (off the recurrence chain):
        # (B, CHUNK*H) @ (CHUNK*H, 256), bf16 operands, f32 accumulation.
        row = pl.multiple_of(c * (CHUNK * HIDDEN), CHUNK * HIDDEN)
        w1_blk = w1_ref[pl.ds(row, CHUNK * HIDDEN), :]
        feat = stage_ref[...].astype(jnp.bfloat16)
        acc_ref[...] += jnp.dot(feat, w1_blk, preferred_element_type=jnp.float32)
        return (h0, c0, h1, c1)

    lax.fori_loop(0, N_CHUNKS, chunk_body, (h0, c0, h1, c1))

    # ---- classifier tail: bias + ReLU + Linear(256, 4).
    h = jnp.maximum(acc_ref[...] + bfc1_ref[...], 0.0)
    out_ref[...] = (jnp.dot(h, w2_ref[...], preferred_element_type=jnp.float32)
                    + bfc2_ref[...])


def lstmclf_pallas(x_ch, inp00, wih0, b0, wcat, whh1, b1, w1, bfc1, w2, bfc2,
                   h_init, c_init):
    B = inp00.shape[0]
    vmem_specs = [pl.BlockSpec(memory_space=pltpu.MemorySpace.VMEM)
                  for _ in range(13)]
    return pl.pallas_call(
        _lstmclf_kernel,
        out_shape=jax.ShapeDtypeStruct((B, NUM_CLASSES), jnp.float32),
        in_specs=vmem_specs,
        out_specs=pl.BlockSpec(memory_space=pltpu.MemorySpace.VMEM),
        scratch_shapes=[
            pltpu.VMEM((B, CHUNK * HIDDEN), jnp.float32),   # per-chunk h1 staging
            pltpu.VMEM((B, FC_HIDDEN), jnp.float32),        # FC1 accumulator
        ],
        compiler_params=pltpu.CompilerParams(vmem_limit_bytes=16 * 1024 * 1024),
    )(x_ch, inp00, wih0, b0, wcat, whh1, b1, w1, bfc1, w2, bfc2, h_init, c_init)


# ----------------------------------------------------------------------------
# Parameter init (deterministic, PyTorch-style uniform ranges), packed layout.
# ----------------------------------------------------------------------------
def init_params(key):
    ks = jax.random.split(key, 12)

    def u(k, shape, bound):
        return jax.random.uniform(k, shape, jnp.float32, -bound, bound)

    kval = HIDDEN ** -0.5
    # torch layout: weight_ih_l0 (4H, 1), weight_hh_l* (4H, H), biases (4H,)
    w_ih_l0 = u(ks[0], (4 * HIDDEN, 1), kval)
    w_hh_l0 = u(ks[1], (4 * HIDDEN, HIDDEN), kval)
    b_ih_l0 = u(ks[2], (4 * HIDDEN,), kval)
    b_hh_l0 = u(ks[3], (4 * HIDDEN,), kval)
    w_ih_l1 = u(ks[4], (4 * HIDDEN, HIDDEN), kval)
    w_hh_l1 = u(ks[5], (4 * HIDDEN, HIDDEN), kval)
    b_ih_l1 = u(ks[6], (4 * HIDDEN,), kval)
    b_hh_l1 = u(ks[7], (4 * HIDDEN,), kval)

    perm = jnp.array(GATE_PERM)

    def pack_w(w):
        # torch (4H, in), gate order (i,f,g,o)  ->  (in, 4H) packed (i,f,o,g)
        w4 = w.reshape(4, HIDDEN, -1)[perm]                  # (4, H, in)
        return jnp.transpose(w4, (2, 0, 1)).reshape(-1, 4 * HIDDEN)

    def pack_b(bi, bh):
        return (bi + bh).reshape(4, HIDDEN)[perm].reshape(1, 4 * HIDDEN)

    k1 = (HIDDEN * SEQ_LEN) ** -0.5
    w1 = u(ks[8], (HIDDEN * SEQ_LEN, FC_HIDDEN), k1).astype(jnp.bfloat16)
    bb1 = u(ks[9], (1, FC_HIDDEN), k1)
    k2 = FC_HIDDEN ** -0.5
    w2 = u(ks[10], (FC_HIDDEN, NUM_CLASSES), k2)
    bb2 = u(ks[11], (1, NUM_CLASSES), k2)

    return dict(
        wih0=pack_w(w_ih_l0), whh0=pack_w(w_hh_l0), b0=pack_b(b_ih_l0, b_hh_l0),
        wih1=pack_w(w_ih_l1), whh1=pack_w(w_hh_l1), b1=pack_b(b_ih_l1, b_hh_l1),
        w1=w1, bb1=bb1, w2=w2, bb2=bb2,
    )


# ----------------------------------------------------------------------------
# Full forward (Pallas) and a pure-JAX f32 reference for validation.
# ----------------------------------------------------------------------------
def lstmclf_forward(x, params, h_init, c_init):
    # x: (B, T, 1) batch-first, like the PyTorch module.
    B, T, _ = x.shape
    x2 = x[:, :, 0]                                               # (B, T)
    # Layer-0 inputs for steps 1..T, shifted by one and zero-padded at the end
    # (the kernel's last layer-0 step is a discarded dummy); chunked with the
    # time-chunk index leading for cheap dynamic indexing inside the kernel.
    x_sh = jnp.concatenate([x2[:, 1:], jnp.zeros((B, 1), x2.dtype)], axis=1)
    x_ch = jnp.transpose(x_sh.reshape(B, N_CHUNKS, CHUNK), (1, 0, 2))
    # Layer-0 step-0 input contribution (prologue), tiny (B, 4H).
    inp00 = x2[:, 0:1] * params['wih0'] + params['b0']
    # Fused recurrent RHS for the layer-0 state: [whh0 | wih1].
    wcat = jnp.concatenate([params['whh0'], params['wih1']], axis=1)
    return lstmclf_pallas(x_ch, inp00, params['wih0'], params['b0'], wcat,
                          params['whh1'], params['b1'], params['w1'],
                          params['bb1'], params['w2'], params['bb2'],
                          h_init, c_init)                          # (B, 4)


def lstmclf_reference(x, p, h_init, c_init):
    B, T, _ = x.shape

    def step(carry, x_t):                      # x_t: (B, 1)
        h0, c0, h1, c1 = carry
        pre0 = x_t * p['wih0'] + h0 @ p['whh0'] + p['b0']
        h0, c0 = _cell(pre0, c0)
        pre1 = h0 @ p['wih1'] + h1 @ p['whh1'] + p['b1']
        h1, c1 = _cell(pre1, c1)
        return (h0, c0, h1, c1), h1

    xs = jnp.transpose(x, (1, 0, 2))
    _, outs = lax.scan(step, (h_init[0], c_init[0], h_init[1], c_init[1]), xs)
    feat = jnp.transpose(outs, (1, 0, 2)).reshape(B, T * HIDDEN)
    h = jnp.maximum(feat @ p['w1'].astype(jnp.float32) + p['bb1'], 0.0)
    return h @ p['w2'] + p['bb2']


if __name__ == "__main__":
    key = jax.random.PRNGKey(0)
    k_param, k_x, k_h, k_c = jax.random.split(key, 4)

    params = init_params(k_param)
    x = jax.random.normal(k_x, (BATCH, SEQ_LEN, 1), jnp.float32)
    # The PyTorch forward draws h0/c0 = randn(2, 32, 8) each call; here they
    # are drawn deterministically once and passed in.
    h_init = jax.random.normal(k_h, (NUM_LAYERS, BATCH, HIDDEN), jnp.float32)
    c_init = jax.random.normal(k_c, (NUM_LAYERS, BATCH, HIDDEN), jnp.float32)

    y = jax.jit(lstmclf_forward)(x, params, h_init, c_init)
    y = jax.block_until_ready(y)
    assert y.shape == (BATCH, NUM_CLASSES), y.shape

    y_ref = jax.jit(lstmclf_reference)(x, params, h_init, c_init)
    y_ref = jax.block_until_ready(y_ref)
    err = float(jnp.max(jnp.abs(y - y_ref)))
    assert err < 5e-2, f"max abs err {err}"

    print("KERNEL_OK")
</pallas_src>

<mosaic_0001>
module attributes {stable_mosaic.version = 11 : i64} {
  func.func @_lstmclf_kernel(%arg0: memref<64x32x16xf32, #tpu.memory_space<vmem>>, %arg1: memref<32x32xf32, #tpu.memory_space<vmem>>, %arg2: memref<1x32xf32, #tpu.memory_space<vmem>>, %arg3: memref<1x32xf32, #tpu.memory_space<vmem>>, %arg4: memref<8x64xf32, #tpu.memory_space<vmem>>, %arg5: memref<8x32xf32, #tpu.memory_space<vmem>>, %arg6: memref<1x32xf32, #tpu.memory_space<vmem>>, %arg7: memref<8192x256xbf16, #tpu.memory_space<vmem>>, %arg8: memref<1x256xf32, #tpu.memory_space<vmem>>, %arg9: memref<256x4xf32, #tpu.memory_space<vmem>>, %arg10: memref<1x4xf32, #tpu.memory_space<vmem>>, %arg11: memref<2x32x8xf32, #tpu.memory_space<vmem>>, %arg12: memref<2x32x8xf32, #tpu.memory_space<vmem>>, %arg13: memref<32x4xf32, #tpu.memory_space<vmem>>, %arg14: memref<32x128xf32, #tpu.memory_space<vmem>>, %arg15: memref<32x256xf32, #tpu.memory_space<vmem>>) attributes {dimension_semantics = [], scalar_prefetch = 0 : i64, scratch_operands = 2 : i64, tpu.core_type = #tpu.core_type<tc>} {
    %c0 = arith.constant 0 : index
    %c0_0 = arith.constant 0 : index
    %0 = vector.load %arg4[%c0, %c0_0] : memref<8x64xf32, #tpu.memory_space<vmem>>, vector<8x64xf32>
    %c0_1 = arith.constant 0 : index
    %c0_2 = arith.constant 0 : index
    %1 = vector.load %arg5[%c0_1, %c0_2] : memref<8x32xf32, #tpu.memory_space<vmem>>, vector<8x32xf32>
    %c0_3 = arith.constant 0 : index
    %c0_4 = arith.constant 0 : index
    %2 = vector.load %arg2[%c0_3, %c0_4] : memref<1x32xf32, #tpu.memory_space<vmem>>, vector<1x32xf32>
    %3 = vector.shape_cast %2 : vector<1x32xf32> to vector<1x32xf32>
    %4 = vector.broadcast %3 : vector<1x32xf32> to vector<32x32xf32>
    %c0_5 = arith.constant 0 : index
    %c0_6 = arith.constant 0 : index
    %5 = vector.load %arg3[%c0_5, %c0_6] : memref<1x32xf32, #tpu.memory_space<vmem>>, vector<1x32xf32>
    %6 = vector.shape_cast %5 : vector<1x32xf32> to vector<1x32xf32>
    %7 = vector.broadcast %6 : vector<1x32xf32> to vector<32x32xf32>
    %c0_7 = arith.constant 0 : index
    %c0_8 = arith.constant 0 : index
    %8 = vector.load %arg6[%c0_7, %c0_8] : memref<1x32xf32, #tpu.memory_space<vmem>>, vector<1x32xf32>
    %9 = vector.shape_cast %8 : vector<1x32xf32> to vector<1x32xf32>
    %10 = vector.broadcast %9 : vector<1x32xf32> to vector<32x32xf32>
    %cst = arith.constant 0.000000e+00 : f32
    %11 = vector.broadcast %cst : f32 to vector<32x256xf32>
    %c0_9 = arith.constant 0 : index
    %c0_10 = arith.constant 0 : index
    %12 = vector.load %arg15[%c0_9, %c0_10] : memref<32x256xf32, #tpu.memory_space<vmem>>, vector<32x256xf32>
    tpu.vector_store %arg15[%c0_9, %c0_10], %11 {strides = array<i32>} : memref<32x256xf32, #tpu.memory_space<vmem>>, vector<32x256xf32>,
    %c0_11 = arith.constant 0 : index
    %c0_12 = arith.constant 0 : index
    %c0_13 = arith.constant 0 : index
    %13 = vector.load %arg11[%c0_11, %c0_12, %c0_13] : memref<2x32x8xf32, #tpu.memory_space<vmem>>, vector<1x32x8xf32>
    %14 = vector.shape_cast %13 : vector<1x32x8xf32> to vector<32x8xf32>
    %c0_14 = arith.constant 0 : index
    %c0_15 = arith.constant 0 : index
    %c0_16 = arith.constant 0 : index
    %15 = vector.load %arg12[%c0_14, %c0_15, %c0_16] : memref<2x32x8xf32, #tpu.memory_space<vmem>>, vector<1x32x8xf32>
    %16 = vector.shape_cast %15 : vector<1x32x8xf32> to vector<32x8xf32>
    %cst_17 = arith.constant dense<0.000000e+00> : vector<32x64xf32>
    %17 = tpu.matmul %14, %0, %cst_17 {dimension_numbers = #tpu.dot_dimension_numbers<[1], [0], [0], [1], [0, 0, 1, 1], [], []>} : vector<32x8xf32>, vector<8x64xf32>, vector<32x64xf32> -> vector<32x64xf32>
    %c0_18 = arith.constant 0 : index
    %c0_19 = arith.constant 0 : index
    %18 = vector.load %arg1[%c0_18, %c0_19] : memref<32x32xf32, #tpu.memory_space<vmem>>, vector<32x32xf32>
    %19 = vector.extract_strided_slice %17 {offsets = [0, 0], sizes = [32, 32], strides = [1, 1]} : vector<32x64xf32> to vector<32x32xf32>
    %20 = arith.addf %18, %19 : vector<32x32xf32>
    %21 = vector.extract_strided_slice %20 {offsets = [0, 0], sizes = [32, 24], strides = [1, 1]} : vector<32x32xf32> to vector<32x24xf32>
    %22 = arith.negf %21 : vector<32x24xf32>
    %23 = math.exp %22 : vector<32x24xf32>
    %cst_20 = arith.constant 1.000000e+00 : f32
    %24 = vector.broadcast %cst_20 : f32 to vector<32x24xf32>
    %25 = arith.addf %24, %23 : vector<32x24xf32>
    %26 = arith.divf %24, %25 : vector<32x24xf32>
    %27 = vector.extract_strided_slice %20 {offsets = [0, 24], sizes = [32, 8], strides = [1, 1]} : vector<32x32xf32> to vector<32x8xf32>
    %28 = math.tanh %27 : vector<32x8xf32>
    %29 = vector.extract_strided_slice %26 {offsets = [0, 8], sizes = [32, 8], strides = [1, 1]} : vector<32x24xf32> to vector<32x8xf32>
    %30 = arith.mulf %29, %16 : vector<32x8xf32>
    %31 = vector.extract_strided_slice %26 {offsets = [0, 0], sizes = [32, 8], strides = [1, 1]} : vector<32x24xf32> to vector<32x8xf32>
    %32 = arith.mulf %31, %28 : vector<32x8xf32>
    %33 = arith.addf %30, %32 : vector<32x8xf32>
    %34 = vector.extract_strided_slice %26 {offsets = [0, 16], sizes = [32, 8], strides = [1, 1]} : vector<32x24xf32> to vector<32x8xf32>
    %35 = math.tanh %33 : vector<32x8xf32>
    %36 = arith.mulf %34, %35 : vector<32x8xf32>
    %c1 = arith.constant 1 : index
    %c0_21 = arith.constant 0 : index
    %c0_22 = arith.constant 0 : index
    %37 = vector.load %arg11[%c1, %c0_21, %c0_22] : memref<2x32x8xf32, #tpu.memory_space<vmem>>, vector<1x32x8xf32>
    %38 = vector.shape_cast %37 : vector<1x32x8xf32> to vector<32x8xf32>
    %c1_23 = arith.constant 1 : index
    %c0_24 = arith.constant 0 : index
    %c0_25 = arith.constant 0 : index
    %39 = vector.load %arg12[%c1_23, %c0_24, %c0_25] : memref<2x32x8xf32, #tpu.memory_space<vmem>>, vector<1x32x8xf32>
    %40 = vector.shape_cast %39 : vector<1x32x8xf32> to vector<32x8xf32>
    %c0_i32 = arith.constant 0 : i32
    %c64_i32 = arith.constant 64 : i32
    %41 = arith.addi %c0_i32, %c64_i32 : i32
    %c1_i32 = arith.constant 1 : i32
    %42:4 = scf.for %arg16 = %c0_i32 to %41 step %c1_i32 iter_args(%arg17 = %36, %arg18 = %33, %arg19 = %38, %arg20 = %40) -> (vector<32x8xf32>, vector<32x8xf32>, vector<32x8xf32>, vector<32x8xf32>)  : i32 {
      %55 = arith.index_cast %arg16 : i32 to index
      %c0_39 = arith.constant 0 : index
      %c0_40 = arith.constant 0 : index
      %56 = vector.load %arg0[%55, %c0_39, %c0_40] : memref<64x32x16xf32, #tpu.memory_space<vmem>>, vector<1x32x16xf32>
      %57 = vector.shape_cast %56 : vector<1x32x16xf32> to vector<32x16xf32>
      %cst_41 = arith.constant dense<0.000000e+00> : vector<32x64xf32>
      %58 = tpu.matmul %arg17, %0, %cst_41 {dimension_numbers = #tpu.dot_dimension_numbers<[1], [0], [0], [1], [0, 0, 1, 1], [], []>} : vector<32x8xf32>, vector<8x64xf32>, vector<32x64xf32> -> vector<32x64xf32>
      %59 = vector.extract_strided_slice %58 {offsets = [0, 32], sizes = [32, 32], strides = [1, 1]} : vector<32x64xf32> to vector<32x32xf32>
      %60 = arith.addf %59, %10 : vector<32x32xf32>
      %cst_42 = arith.constant dense<0.000000e+00> : vector<32x32xf32>
      %61 = tpu.matmul %arg19, %1, %cst_42 {dimension_numbers = #tpu.dot_dimension_numbers<[1], [0], [0], [1], [0, 0, 1, 1], [], []>} : vector<32x8xf32>, vector<8x32xf32>, vector<32x32xf32> -> vector<32x32xf32>
      %62 = arith.addf %60, %61 : vector<32x32xf32>
      %63 = vector.extract_strided_slice %62 {offsets = [0, 0], sizes = [32, 24], strides = [1, 1]} : vector<32x32xf32> to vector<32x24xf32>
      %64 = arith.negf %63 : vector<32x24xf32>
      %65 = math.exp %64 : vector<32x24xf32>
      %cst_43 = arith.constant 1.000000e+00 : f32
      %66 = vector.broadcast %cst_43 : f32 to vector<32x24xf32>
      %67 = arith.addf %66, %65 : vector<32x24xf32>
      %68 = arith.divf %66, %67 : vector<32x24xf32>
      %69 = vector.extract_strided_slice %62 {offsets = [0, 24], sizes = [32, 8], strides = [1, 1]} : vector<32x32xf32> to vector<32x8xf32>
      %70 = math.tanh %69 : vector<32x8xf32>
      %71 = vector.extract_strided_slice %68 {offsets = [0, 8], sizes = [32, 8], strides = [1, 1]} : vector<32x24xf32> to vector<32x8xf32>
      %72 = arith.mulf %71, %arg20 : vector<32x8xf32>
      %73 = vector.extract_strided_slice %68 {offsets = [0, 0], sizes = [32, 8], strides = [1, 1]} : vector<32x24xf32> to vector<32x8xf32>
      %74 = arith.mulf %73, %70 : vector<32x8xf32>
      %75 = arith.addf %72, %74 : vector<32x8xf32>
      %76 = vector.extract_strided_slice %68 {offsets = [0, 16], sizes = [32, 8], strides = [1, 1]} : vector<32x24xf32> to vector<32x8xf32>
      %77 = math.tanh %75 : vector<32x8xf32>
      %78 = arith.mulf %76, %77 : vector<32x8xf32>
      %c0_44 = arith.constant 0 : index
      %c0_45 = arith.constant 0 : index
      %79 = vector.load %arg14[%c0_44, %c0_45] : memref<32x128xf32, #tpu.memory_space<vmem>>, vector<32x8xf32>
      tpu.vector_store %arg14[%c0_44, %c0_45], %78 {strides = array<i32>} : memref<32x128xf32, #tpu.memory_space<vmem>>, vector<32x8xf32>,
      %80 = vector.extract_strided_slice %57 {offsets = [0, 0], sizes = [32, 1], strides = [1, 1]} : vector<32x16xf32> to vector<32x1xf32>
      %81 = vector.broadcast %80 : vector<32x1xf32> to vector<32x32xf32>
      %82 = arith.mulf %81, %4 : vector<32x32xf32>
      %83 = arith.addf %82, %7 : vector<32x32xf32>
      %84 = vector.extract_strided_slice %58 {offsets = [0, 0], sizes = [32, 32], strides = [1, 1]} : vector<32x64xf32> to vector<32x32xf32>
      %85 = arith.addf %83, %84 : vector<32x32xf32>
      %86 = vector.extract_strided_slice %85 {offsets = [0, 0], sizes = [32, 24], strides = [1, 1]} : vector<32x32xf32> to vector<32x24xf32>
      %87 = arith.negf %86 : vector<32x24xf32>
      %88 = math.exp %87 : vector<32x24xf32>
      %cst_46 = arith.constant 1.000000e+00 : f32
      %89 = vector.broadcast %cst_46 : f32 to vector<32x24xf32>
      %90 = arith.addf %89, %88 : vector<32x24xf32>
      %91 = arith.divf %89, %90 : vector<32x24xf32>
      %92 = vector.extract_strided_slice %85 {offsets = [0, 24], sizes = [32, 8], strides = [1, 1]} : vector<32x32xf32> to vector<32x8xf32>
      %93 = math.tanh %92 : vector<32x8xf32>
      %94 = vector.extract_strided_slice %91 {offsets = [0, 8], sizes = [32, 8], strides = [1, 1]} : vector<32x24xf32> to vector<32x8xf32>
      %95 = arith.mulf %94, %arg18 : vector<32x8xf32>
      %96 = vector.extract_strided_slice %91 {offsets = [0, 0], sizes = [32, 8], strides = [1, 1]} : vector<32x24xf32> to vector<32x8xf32>
      %97 = arith.mulf %96, %93 : vector<32x8xf32>
      %98 = arith.addf %95, %97 : vector<32x8xf32>
      %99 = vector.extract_strided_slice %91 {offsets = [0, 16], sizes = [32, 8], strides = [1, 1]} : vector<32x24xf32> to vector<32x8xf32>
      %100 = math.tanh %98 : vector<32x8xf32>
      %101 = arith.mulf %99, %100 : vector<32x8xf32>
      %cst_47 = arith.constant dense<0.000000e+00> : vector<32x64xf32>
      %102 = tpu.matmul %101, %0, %cst_47 {dimension_numbers = #tpu.dot_dimension_numbers<[1], [0], [0], [1], [0, 0, 1, 1], [], []>} : vector<32x8xf32>, vector<8x64xf32>, vector<32x64xf32> -> vector<32x64xf32>
      %103 = vector.extract_strided_slice %102 {offsets = [0, 32], sizes = [32, 32], strides = [1, 1]} : vector<32x64xf32> to vector<32x32xf32>
      %104 = arith.addf %103, %10 : vector<32x32xf32>
      %cst_48 = arith.constant dense<0.000000e+00> : vector<32x32xf32>
      %105 = tpu.matmul %78, %1, %cst_48 {dimension_numbers = #tpu.dot_dimension_numbers<[1], [0], [0], [1], [0, 0, 1, 1], [], []>} : vector<32x8xf32>, vector<8x32xf32>, vector<32x32xf32> -> vector<32x32xf32>
      %106 = arith.addf %104, %105 : vector<32x32xf32>
      %107 = vector.extract_strided_slice %106 {offsets = [0, 0], sizes = [32, 24], strides = [1, 1]} : vector<32x32xf32> to vector<32x24xf32>
      %108 = arith.negf %107 : vector<32x24xf32>
      %109 = math.exp %108 : vector<32x24xf32>
      %cst_49 = arith.constant 1.000000e+00 : f32
      %110 = vector.broadcast %cst_49 : f32 to vector<32x24xf32>
      %111 = arith.addf %110, %109 : vector<32x24xf32>
      %112 = arith.divf %110, %111 : vector<32x24xf32>
      %113 = vector.extract_strided_slice %106 {offsets = [0, 24], sizes = [32, 8], strides = [1, 1]} : vector<32x32xf32> to vector<32x8xf32>
      %114 = math.tanh %113 : vector<32x8xf32>
      %115 = vector.extract_strided_slice %112 {offsets = [0, 8], sizes = [32, 8], strides = [1, 1]} : vector<32x24xf32> to vector<32x8xf32>
      %116 = arith.mulf %115, %75 : vector<32x8xf32>
      %117 = vector.extract_strided_slice %112 {offsets = [0, 0], sizes = [32, 8], strides = [1, 1]} : vector<32x24xf32> to vector<32x8xf32>
      %118 = arith.mulf %117, %114 : vector<32x8xf32>
      %119 = arith.addf %116, %118 : vector<32x8xf32>
      %120 = vector.extract_strided_slice %112 {offsets = [0, 16], sizes = [32, 8], strides = [1, 1]} : vector<32x24xf32> to vector<32x8xf32>
      %121 = math.tanh %119 : vector<32x8xf32>
      %122 = arith.mulf %120, %121 : vector<32x8xf32>
      %c0_50 = arith.constant 0 : index
      %c8 = arith.constant 8 : index
      %123 = vector.load %arg14[%c0_50, %c8] : memref<32x128xf32, #tpu.memory_space<vmem>>, vector<32x8xf32>
      tpu.vector_store %arg14[%c0_50, %c8], %122 {strides = array<i32>} : memref<32x128xf32, #tpu.memory_space<vmem>>, vector<32x8xf32>,
      %124 = vector.extract_strided_slice %57 {offsets = [0, 1], sizes = [32, 1], strides = [1, 1]} : vector<32x16xf32> to vector<32x1xf32>
      %125 = vector.broadcast %124 : vector<32x1xf32> to vector<32x32xf32>
      %126 = arith.mulf %125, %4 : vector<32x32xf32>
      %127 = arith.addf %126, %7 : vector<32x32xf32>
      %128 = vector.extract_strided_slice %102 {offsets = [0, 0], sizes = [32, 32], strides = [1, 1]} : vector<32x64xf32> to vector<32x32xf32>
      %129 = arith.addf %127, %128 : vector<32x32xf32>
      %130 = vector.extract_strided_slice %129 {offsets = [0, 0], sizes = [32, 24], strides = [1, 1]} : vector<32x32xf32> to vector<32x24xf32>
      %131 = arith.negf %130 : vector<32x24xf32>
      %132 = math.exp %131 : vector<32x24xf32>
      %cst_51 = arith.constant 1.000000e+00 : f32
      %133 = vector.broadcast %cst_51 : f32 to vector<32x24xf32>
      %134 = arith.addf %133, %132 : vector<32x24xf32>
      %135 = arith.divf %133, %134 : vector<32x24xf32>
      %136 = vector.extract_strided_slice %129 {offsets = [0, 24], sizes = [32, 8], strides = [1, 1]} : vector<32x32xf32> to vector<32x8xf32>
      %137 = math.tanh %136 : vector<32x8xf32>
      %138 = vector.extract_strided_slice %135 {offsets = [0, 8], sizes = [32, 8], strides = [1, 1]} : vector<32x24xf32> to vector<32x8xf32>
      %139 = arith.mulf %138, %98 : vector<32x8xf32>
      %140 = vector.extract_strided_slice %135 {offsets = [0, 0], sizes = [32, 8], strides = [1, 1]} : vector<32x24xf32> to vector<32x8xf32>
      %141 = arith.mulf %140, %137 : vector<32x8xf32>
      %142 = arith.addf %139, %141 : vector<32x8xf32>
      %143 = vector.extract_strided_slice %135 {offsets = [0, 16], sizes = [32, 8], strides = [1, 1]} : vector<32x24xf32> to vector<32x8xf32>
      %144 = math.tanh %142 : vector<32x8xf32>
      %145 = arith.mulf %143, %144 : vector<32x8xf32>
      %cst_52 = arith.constant dense<0.000000e+00> : vector<32x64xf32>
      %146 = tpu.matmul %145, %0, %cst_52 {dimension_numbers = #tpu.dot_dimension_numbers<[1], [0], [0], [1], [0, 0, 1, 1], [], []>} : vector<32x8xf32>, vector<8x64xf32>, vector<32x64xf32> -> vector<32x64xf32>
      %147 = vector.extract_strided_slice %146 {offsets = [0, 32], sizes = [32, 32], strides = [1, 1]} : vector<32x64xf32> to vector<32x32xf32>
      %148 = arith.addf %147, %10 : vector<32x32xf32>
      %cst_53 = arith.constant dense<0.000000e+00> : vector<32x32xf32>
      %149 = tpu.matmul %122, %1, %cst_53 {dimension_numbers = #tpu.dot_dimension_numbers<[1], [0], [0], [1], [0, 0, 1, 1], [], []>} : vector<32x8xf32>, vector<8x32xf32>, vector<32x32xf32> -> vector<32x32xf32>
      %150 = arith.addf %148, %149 : vector<32x32xf32>
      %151 = vector.extract_strided_slice %150 {offsets = [0, 0], sizes = [32, 24], strides = [1, 1]} : vector<32x32xf32> to vector<32x24xf32>
      %152 = arith.negf %151 : vector<32x24xf32>
      %153 = math.exp %152 : vector<32x24xf32>
      %cst_54 = arith.constant 1.000000e+00 : f32
      %154 = vector.broadcast %cst_54 : f32 to vector<32x24xf32>
      %155 = arith.addf %154, %153 : vector<32x24xf32>
      %156 = arith.divf %154, %155 : vector<32x24xf32>
      %157 = vector.extract_strided_slice %150 {offsets = [0, 24], sizes = [32, 8], strides = [1, 1]} : vector<32x32xf32> to vector<32x8xf32>
      %158 = math.tanh %157 : vector<32x8xf32>
      %159 = vector.extract_strided_slice %156 {offsets = [0, 8], sizes = [32, 8], strides = [1, 1]} : vector<32x24xf32> to vector<32x8xf32>
      %160 = arith.mulf %159, %119 : vector<32x8xf32>
      %161 = vector.extract_strided_slice %156 {offsets = [0, 0], sizes = [32, 8], strides = [1, 1]} : vector<32x24xf32> to vector<32x8xf32>
      %162 = arith.mulf %161, %158 : vector<32x8xf32>
      %163 = arith.addf %160, %162 : vector<32x8xf32>
      %164 = vector.extract_strided_slice %156 {offsets = [0, 16], sizes = [32, 8], strides = [1, 1]} : vector<32x24xf32> to vector<32x8xf32>
      %165 = math.tanh %163 : vector<32x8xf32>
      %166 = arith.mulf %164, %165 : vector<32x8xf32>
      %c0_55 = arith.constant 0 : index
      %c16 = arith.constant 16 : index
      %167 = vector.load %arg14[%c0_55, %c16] : memref<32x128xf32, #tpu.memory_space<vmem>>, vector<32x8xf32>
      tpu.vector_store %arg14[%c0_55, %c16], %166 {strides = array<i32>} : memref<32x128xf32, #tpu.memory_space<vmem>>, vector<32x8xf32>,
      %168 = vector.extract_strided_slice %57 {offsets = [0, 2], sizes = [32, 1], strides = [1, 1]} : vector<32x16xf32> to vector<32x1xf32>
      %169 = vector.broadcast %168 : vector<32x1xf32> to vector<32x32xf32>
      %170 = arith.mulf %169, %4 : vector<32x32xf32>
      %171 = arith.addf %170, %7 : vector<32x32xf32>
      %172 = vector.extract_strided_slice %146 {offsets = [0, 0], sizes = [32, 32], strides = [1, 1]} : vector<32x64xf32> to vector<32x32xf32>
      %173 = arith.addf %171, %172 : vector<32x32xf32>
      %174 = vector.extract_strided_slice %173 {offsets = [0, 0], sizes = [32, 24], strides = [1, 1]} : vector<32x32xf32> to vector<32x24xf32>
      %175 = arith.negf %174 : vector<32x24xf32>
      %176 = math.exp %175 : vector<32x24xf32>
      %cst_56 = arith.constant 1.000000e+00 : f32
      %177 = vector.broadcast %cst_56 : f32 to vector<32x24xf32>
      %178 = arith.addf %177, %176 : vector<32x24xf32>
      %179 = arith.divf %177, %178 : vector<32x24xf32>
      %180 = vector.extract_strided_slice %173 {offsets = [0, 24], sizes = [32, 8], strides = [1, 1]} : vector<32x32xf32> to vector<32x8xf32>
      %181 = math.tanh %180 : vector<32x8xf32>
      %182 = vector.extract_strided_slice %179 {offsets = [0, 8], sizes = [32, 8], strides = [1, 1]} : vector<32x24xf32> to vector<32x8xf32>
      %183 = arith.mulf %182, %142 : vector<32x8xf32>
      %184 = vector.extract_strided_slice %179 {offsets = [0, 0], sizes = [32, 8], strides = [1, 1]} : vector<32x24xf32> to vector<32x8xf32>
      %185 = arith.mulf %184, %181 : vector<32x8xf32>
      %186 = arith.addf %183, %185 : vector<32x8xf32>
      %187 = vector.extract_strided_slice %179 {offsets = [0, 16], sizes = [32, 8], strides = [1, 1]} : vector<32x24xf32> to vector<32x8xf32>
      %188 = math.tanh %186 : vector<32x8xf32>
      %189 = arith.mulf %187, %188 : vector<32x8xf32>
      %cst_57 = arith.constant dense<0.000000e+00> : vector<32x64xf32>
      %190 = tpu.matmul %189, %0, %cst_57 {dimension_numbers = #tpu.dot_dimension_numbers<[1], [0], [0], [1], [0, 0, 1, 1], [], []>} : vector<32x8xf32>, vector<8x64xf32>, vector<32x64xf32> -> vector<32x64xf32>
      %191 = vector.extract_strided_slice %190 {offsets = [0, 32], sizes = [32, 32], strides = [1, 1]} : vector<32x64xf32> to vector<32x32xf32>
      %192 = arith.addf %191, %10 : vector<32x32xf32>
      %cst_58 = arith.constant dense<0.000000e+00> : vector<32x32xf32>
      %193 = tpu.matmul %166, %1, %cst_58 {dimension_numbers = #tpu.dot_dimension_numbers<[1], [0], [0], [1], [0, 0, 1, 1], [], []>} : vector<32x8xf32>, vector<8x32xf32>, vector<32x32xf32> -> vector<32x32xf32>
      %194 = arith.addf %192, %193 : vector<32x32xf32>
      %195 = vector.extract_strided_slice %194 {offsets = [0, 0], sizes = [32, 24], strides = [1, 1]} : vector<32x32xf32> to vector<32x24xf32>
      %196 = arith.negf %195 : vector<32x24xf32>
      %197 = math.exp %196 : vector<32x24xf32>
      %cst_59 = arith.constant 1.000000e+00 : f32
      %198 = vector.broadcast %cst_59 : f32 to vector<32x24xf32>
      %199 = arith.addf %198, %197 : vector<32x24xf32>
      %200 = arith.divf %198, %199 : vector<32x24xf32>
      %201 = vector.extract_strided_slice %194 {offsets = [0, 24], sizes = [32, 8], strides = [1, 1]} : vector<32x32xf32> to vector<32x8xf32>
      %202 = math.tanh %201 : vector<32x8xf32>
      %203 = vector.extract_strided_slice %200 {offsets = [0, 8], sizes = [32, 8], strides = [1, 1]} : vector<32x24xf32> to vector<32x8xf32>
      %204 = arith.mulf %203, %163 : vector<32x8xf32>
      %205 = vector.extract_strided_slice %200 {offsets = [0, 0], sizes = [32, 8], strides = [1, 1]} : vector<32x24xf32> to vector<32x8xf32>
      %206 = arith.mulf %205, %202 : vector<32x8xf32>
      %207 = arith.addf %204, %206 : vector<32x8xf32>
      %208 = vector.extract_strided_slice %200 {offsets = [0, 16], sizes = [32, 8], strides = [1, 1]} : vector<32x24xf32> to vector<32x8xf32>
      %209 = math.tanh %207 : vector<32x8xf32>
      %210 = arith.mulf %208, %209 : vector<32x8xf32>
      %c0_60 = arith.constant 0 : index
      %c24 = arith.constant 24 : index
      %211 = vector.load %arg14[%c0_60, %c24] : memref<32x128xf32, #tpu.memory_space<vmem>>, vector<32x8xf32>
      tpu.vector_store %arg14[%c0_60, %c24], %210 {strides = array<i32>} : memref<32x128xf32, #tpu.memory_space<vmem>>, vector<32x8xf32>,
      %212 = vector.extract_strided_slice %57 {offsets = [0, 3], sizes = [32, 1], strides = [1, 1]} : vector<32x16xf32> to vector<32x1xf32>
      %213 = vector.broadcast %212 : vector<32x1xf32> to vector<32x32xf32>
      %214 = arith.mulf %213, %4 : vector<32x32xf32>
      %215 = arith.addf %214, %7 : vector<32x32xf32>
      %216 = vector.extract_strided_slice %190 {offsets = [0, 0], sizes = [32, 32], strides = [1, 1]} : vector<32x64xf32> to vector<32x32xf32>
      %217 = arith.addf %215, %216 : vector<32x32xf32>
      %218 = vector.extract_strided_slice %217 {offsets = [0, 0], sizes = [32, 24], strides = [1, 1]} : vector<32x32xf32> to vector<32x24xf32>
      %219 = arith.negf %218 : vector<32x24xf32>
      %220 = math.exp %219 : vector<32x24xf32>
      %cst_61 = arith.constant 1.000000e+00 : f32
      %221 = vector.broadcast %cst_61 : f32 to vector<32x24xf32>
      %222 = arith.addf %221, %220 : vector<32x24xf32>
      %223 = arith.divf %221, %222 : vector<32x24xf32>
      %224 = vector.extract_strided_slice %217 {offsets = [0, 24], sizes = [32, 8], strides = [1, 1]} : vector<32x32xf32> to vector<32x8xf32>
      %225 = math.tanh %224 : vector<32x8xf32>
      %226 = vector.extract_strided_slice %223 {offsets = [0, 8], sizes = [32, 8], strides = [1, 1]} : vector<32x24xf32> to vector<32x8xf32>
      %227 = arith.mulf %226, %186 : vector<32x8xf32>
      %228 = vector.extract_strided_slice %223 {offsets = [0, 0], sizes = [32, 8], strides = [1, 1]} : vector<32x24xf32> to vector<32x8xf32>
      %229 = arith.mulf %228, %225 : vector<32x8xf32>
      %230 = arith.addf %227, %229 : vector<32x8xf32>
      %231 = vector.extract_strided_slice %223 {offsets = [0, 16], sizes = [32, 8], strides = [1, 1]} : vector<32x24xf32> to vector<32x8xf32>
      %232 = math.tanh %230 : vector<32x8xf32>
      %233 = arith.mulf %231, %232 : vector<32x8xf32>
      %cst_62 = arith.constant dense<0.000000e+00> : vector<32x64xf32>
      %234 = tpu.matmul %233, %0, %cst_62 {dimension_numbers = #tpu.dot_dimension_numbers<[1], [0], [0], [1], [0, 0, 1, 1], [], []>} : vector<32x8xf32>, vector<8x64xf32>, vector<32x64xf32> -> vector<32x64xf32>
      %235 = vector.extract_strided_slice %234 {offsets = [0, 32], sizes = [32, 32], strides = [1, 1]} : vector<32x64xf32> to vector<32x32xf32>
      %236 = arith.addf %235, %10 : vector<32x32xf32>
      %cst_63 = arith.constant dense<0.000000e+00> : vector<32x32xf32>
      %237 = tpu.matmul %210, %1, %cst_63 {dimension_numbers = #tpu.dot_dimension_numbers<[1], [0], [0], [1], [0, 0, 1, 1], [], []>} : vector<32x8xf32>, vector<8x32xf32>, vector<32x32xf32> -> vector<32x32xf32>
      %238 = arith.addf %236, %237 : vector<32x32xf32>
      %239 = vector.extract_strided_slice %238 {offsets = [0, 0], sizes = [32, 24], strides = [1, 1]} : vector<32x32xf32> to vector<32x24xf32>
      %240 = arith.negf %239 : vector<32x24xf32>
      %241 = math.exp %240 : vector<32x24xf32>
      %cst_64 = arith.constant 1.000000e+00 : f32
      %242 = vector.broadcast %cst_64 : f32 to vector<32x24xf32>
      %243 = arith.addf %242, %241 : vector<32x24xf32>
      %244 = arith.divf %242, %243 : vector<32x24xf32>
      %245 = vector.extract_strided_slice %238 {offsets = [0, 24], sizes = [32, 8], strides = [1, 1]} : vector<32x32xf32> to vector<32x8xf32>
      %246 = math.tanh %245 : vector<32x8xf32>
      %247 = vector.extract_strided_slice %244 {offsets = [0, 8], sizes = [32, 8], strides = [1, 1]} : vector<32x24xf32> to vector<32x8xf32>
      %248 = arith.mulf %247, %207 : vector<32x8xf32>
      %249 = vector.extract_strided_slice %244 {offsets = [0, 0], sizes = [32, 8], strides = [1, 1]} : vector<32x24xf32> to vector<32x8xf32>
      %250 = arith.mulf %249, %246 : vector<32x8xf32>
      %251 = arith.addf %248, %250 : vector<32x8xf32>
      %252 = vector.extract_strided_slice %244 {offsets = [0, 16], sizes = [32, 8], strides = [1, 1]} : vector<32x24xf32> to vector<32x8xf32>
      %253 = math.tanh %251 : vector<32x8xf32>
      %254 = arith.mulf %252, %253 : vector<32x8xf32>
      %c0_65 = arith.constant 0 : index
      %c32 = arith.constant 32 : index
      %255 = vector.load %arg14[%c0_65, %c32] : memref<32x128xf32, #tpu.memory_space<vmem>>, vector<32x8xf32>
      tpu.vector_store %arg14[%c0_65, %c32], %254 {strides = array<i32>} : memref<32x128xf32, #tpu.memory_space<vmem>>, vector<32x8xf32>,
      %256 = vector.extract_strided_slice %57 {offsets = [0, 4], sizes = [32, 1], strides = [1, 1]} : vector<32x16xf32> to vector<32x1xf32>
      %257 = vector.broadcast %256 : vector<32x1xf32> to vector<32x32xf32>
      %258 = arith.mulf %257, %4 : vector<32x32xf32>
      %259 = arith.addf %258, %7 : vector<32x32xf32>
      %260 = vector.extract_strided_slice %234 {offsets = [0, 0], sizes = [32, 32], strides = [1, 1]} : vector<32x64xf32> to vector<32x32xf32>
      %261 = arith.addf %259, %260 : vector<32x32xf32>
      %262 = vector.extract_strided_slice %261 {offsets = [0, 0], sizes = [32, 24], strides = [1, 1]} : vector<32x32xf32> to vector<32x24xf32>
      %263 = arith.negf %262 : vector<32x24xf32>
      %264 = math.exp %263 : vector<32x24xf32>
      %cst_66 = arith.constant 1.000000e+00 : f32
      %265 = vector.broadcast %cst_66 : f32 to vector<32x24xf32>
      %266 = arith.addf %265, %264 : vector<32x24xf32>
      %267 = arith.divf %265, %266 : vector<32x24xf32>
      %268 = vector.extract_strided_slice %261 {offsets = [0, 24], sizes = [32, 8], strides = [1, 1]} : vector<32x32xf32> to vector<32x8xf32>
      %269 = math.tanh %268 : vector<32x8xf32>
      %270 = vector.extract_strided_slice %267 {offsets = [0, 8], sizes = [32, 8], strides = [1, 1]} : vector<32x24xf32> to vector<32x8xf32>
      %271 = arith.mulf %270, %230 : vector<32x8xf32>
      %272 = vector.extract_strided_slice %267 {offsets = [0, 0], sizes = [32, 8], strides = [1, 1]} : vector<32x24xf32> to vector<32x8xf32>
      %273 = arith.mulf %272, %269 : vector<32x8xf32>
      %274 = arith.addf %271, %273 : vector<32x8xf32>
      %275 = vector.extract_strided_slice %267 {offsets = [0, 16], sizes = [32, 8], strides = [1, 1]} : vector<32x24xf32> to vector<32x8xf32>
      %276 = math.tanh %274 : vector<32x8xf32>
      %277 = arith.mulf %275, %276 : vector<32x8xf32>
      %cst_67 = arith.constant dense<0.000000e+00> : vector<32x64xf32>
      %278 = tpu.matmul %277, %0, %cst_67 {dimension_numbers = #tpu.dot_dimension_numbers<[1], [0], [0], [1], [0, 0, 1, 1], [], []>} : vector<32x8xf32>, vector<8x64xf32>, vector<32x64xf32> -> vector<32x64xf32>
      %279 = vector.extract_strided_slice %278 {offsets = [0, 32], sizes = [32, 32], strides = [1, 1]} : vector<32x64xf32> to vector<32x32xf32>
      %280 = arith.addf %279, %10 : vector<32x32xf32>
      %cst_68 = arith.constant dense<0.000000e+00> : vector<32x32xf32>
      %281 = tpu.matmul %254, %1, %cst_68 {dimension_numbers = #tpu.dot_dimension_numbers<[1], [0], [0], [1], [0, 0, 1, 1], [], []>} : vector<32x8xf32>, vector<8x32xf32>, vector<32x32xf32> -> vector<32x32xf32>
      %282 = arith.addf %280, %281 : vector<32x32xf32>
      %283 = vector.extract_strided_slice %282 {offsets = [0, 0], sizes = [32, 24], strides = [1, 1]} : vector<32x32xf32> to vector<32x24xf32>
      %284 = arith.negf %283 : vector<32x24xf32>
      %285 = math.exp %284 : vector<32x24xf32>
      %cst_69 = arith.constant 1.000000e+00 : f32
      %286 = vector.broadcast %cst_69 : f32 to vector<32x24xf32>
      %287 = arith.addf %286, %285 : vector<32x24xf32>
      %288 = arith.divf %286, %287 : vector<32x24xf32>
      %289 = vector.extract_strided_slice %282 {offsets = [0, 24], sizes = [32, 8], strides = [1, 1]} : vector<32x32xf32> to vector<32x8xf32>
      %290 = math.tanh %289 : vector<32x8xf32>
      %291 = vector.extract_strided_slice %288 {offsets = [0, 8], sizes = [32, 8], strides = [1, 1]} : vector<32x24xf32> to vector<32x8xf32>
      %292 = arith.mulf %291, %251 : vector<32x8xf32>
      %293 = vector.extract_strided_slice %288 {offsets = [0, 0], sizes = [32, 8], strides = [1, 1]} : vector<32x24xf32> to vector<32x8xf32>
      %294 = arith.mulf %293, %290 : vector<32x8xf32>
      %295 = arith.addf %292, %294 : vector<32x8xf32>
      %296 = vector.extract_strided_slice %288 {offsets = [0, 16], sizes = [32, 8], strides = [1, 1]} : vector<32x24xf32> to vector<32x8xf32>
      %297 = math.tanh %295 : vector<32x8xf32>
      %298 = arith.mulf %296, %297 : vector<32x8xf32>
      %c0_70 = arith.constant 0 : index
      %c40 = arith.constant 40 : index
      %299 = vector.load %arg14[%c0_70, %c40] : memref<32x128xf32, #tpu.memory_space<vmem>>, vector<32x8xf32>
      tpu.vector_store %arg14[%c0_70, %c40], %298 {strides = array<i32>} : memref<32x128xf32, #tpu.memory_space<vmem>>, vector<32x8xf32>,
      %300 = vector.extract_strided_slice %57 {offsets = [0, 5], sizes = [32, 1], strides = [1, 1]} : vector<32x16xf32> to vector<32x1xf32>
      %301 = vector.broadcast %300 : vector<32x1xf32> to vector<32x32xf32>
      %302 = arith.mulf %301, %4 : vector<32x32xf32>
      %303 = arith.addf %302, %7 : vector<32x32xf32>
      %304 = vector.extract_strided_slice %278 {offsets = [0, 0], sizes = [32, 32], strides = [1, 1]} : vector<32x64xf32> to vector<32x32xf32>
      %305 = arith.addf %303, %304 : vector<32x32xf32>
      %306 = vector.extract_strided_slice %305 {offsets = [0, 0], sizes = [32, 24], strides = [1, 1]} : vector<32x32xf32> to vector<32x24xf32>
      %307 = arith.negf %306 : vector<32x24xf32>
      %308 = math.exp %307 : vector<32x24xf32>
      %cst_71 = arith.constant 1.000000e+00 : f32
      %309 = vector.broadcast %cst_71 : f32 to vector<32x24xf32>
      %310 = arith.addf %309, %308 : vector<32x24xf32>
      %311 = arith.divf %309, %310 : vector<32x24xf32>
      %312 = vector.extract_strided_slice %305 {offsets = [0, 24], sizes = [32, 8], strides = [1, 1]} : vector<32x32xf32> to vector<32x8xf32>
      %313 = math.tanh %312 : vector<32x8xf32>
      %314 = vector.extract_strided_slice %311 {offsets = [0, 8], sizes = [32, 8], strides = [1, 1]} : vector<32x24xf32> to vector<32x8xf32>
      %315 = arith.mulf %314, %274 : vector<32x8xf32>
      %316 = vector.extract_strided_slice %311 {offsets = [0, 0], sizes = [32, 8], strides = [1, 1]} : vector<32x24xf32> to vector<32x8xf32>
      %317 = arith.mulf %316, %313 : vector<32x8xf32>
      %318 = arith.addf %315, %317 : vector<32x8xf32>
      %319 = vector.extract_strided_slice %311 {offsets = [0, 16], sizes = [32, 8], strides = [1, 1]} : vector<32x24xf32> to vector<32x8xf32>
      %320 = math.tanh %318 : vector<32x8xf32>
      %321 = arith.mulf %319, %320 : vector<32x8xf32>
      %cst_72 = arith.constant dense<0.000000e+00> : vector<32x64xf32>
      %322 = tpu.matmul %321, %0, %cst_72 {dimension_numbers = #tpu.dot_dimension_numbers<[1], [0], [0], [1], [0, 0, 1, 1], [], []>} : vector<32x8xf32>, vector<8x64xf32>, vector<32x64xf32> -> vector<32x64xf32>
      %323 = vector.extract_strided_slice %322 {offsets = [0, 32], sizes = [32, 32], strides = [1, 1]} : vector<32x64xf32> to vector<32x32xf32>
      %324 = arith.addf %323, %10 : vector<32x32xf32>
      %cst_73 = arith.constant dense<0.000000e+00> : vector<32x32xf32>
      %325 = tpu.matmul %298, %1, %cst_73 {dimension_numbers = #tpu.dot_dimension_numbers<[1], [0], [0], [1], [0, 0, 1, 1], [], []>} : vector<32x8xf32>, vector<8x32xf32>, vector<32x32xf32> -> vector<32x32xf32>
      %326 = arith.addf %324, %325 : vector<32x32xf32>
      %327 = vector.extract_strided_slice %326 {offsets = [0, 0], sizes = [32, 24], strides = [1, 1]} : vector<32x32xf32> to vector<32x24xf32>
      %328 = arith.negf %327 : vector<32x24xf32>
      %329 = math.exp %328 : vector<32x24xf32>
      %cst_74 = arith.constant 1.000000e+00 : f32
      %330 = vector.broadcast %cst_74 : f32 to vector<32x24xf32>
      %331 = arith.addf %330, %329 : vector<32x24xf32>
      %332 = arith.divf %330, %331 : vector<32x24xf32>
      %333 = vector.extract_strided_slice %326 {offsets = [0, 24], sizes = [32, 8], strides = [1, 1]} : vector<32x32xf32> to vector<32x8xf32>
      %334 = math.tanh %333 : vector<32x8xf32>
      %335 = vector.extract_strided_slice %332 {offsets = [0, 8], sizes = [32, 8], strides = [1, 1]} : vector<32x24xf32> to vector<32x8xf32>
      %336 = arith.mulf %335, %295 : vector<32x8xf32>
      %337 = vector.extract_strided_slice %332 {offsets = [0, 0], sizes = [32, 8], strides = [1, 1]} : vector<32x24xf32> to vector<32x8xf32>
      %338 = arith.mulf %337, %334 : vector<32x8xf32>
      %339 = arith.addf %336, %338 : vector<32x8xf32>
      %340 = vector.extract_strided_slice %332 {offsets = [0, 16], sizes = [32, 8], strides = [1, 1]} : vector<32x24xf32> to vector<32x8xf32>
      %341 = math.tanh %339 : vector<32x8xf32>
      %342 = arith.mulf %340, %341 : vector<32x8xf32>
      %c0_75 = arith.constant 0 : index
      %c48 = arith.constant 48 : index
      %343 = vector.load %arg14[%c0_75, %c48] : memref<32x128xf32, #tpu.memory_space<vmem>>, vector<32x8xf32>
      tpu.vector_store %arg14[%c0_75, %c48], %342 {strides = array<i32>} : memref<32x128xf32, #tpu.memory_space<vmem>>, vector<32x8xf32>,
      %344 = vector.extract_strided_slice %57 {offsets = [0, 6], sizes = [32, 1], strides = [1, 1]} : vector<32x16xf32> to vector<32x1xf32>
      %345 = vector.broadcast %344 : vector<32x1xf32> to vector<32x32xf32>
      %346 = arith.mulf %345, %4 : vector<32x32xf32>
      %347 = arith.addf %346, %7 : vector<32x32xf32>
      %348 = vector.extract_strided_slice %322 {offsets = [0, 0], sizes = [32, 32], strides = [1, 1]} : vector<32x64xf32> to vector<32x32xf32>
      %349 = arith.addf %347, %348 : vector<32x32xf32>
      %350 = vector.extract_strided_slice %349 {offsets = [0, 0], sizes = [32, 24], strides = [1, 1]} : vector<32x32xf32> to vector<32x24xf32>
      %351 = arith.negf %350 : vector<32x24xf32>
      %352 = math.exp %351 : vector<32x24xf32>
      %cst_76 = arith.constant 1.000000e+00 : f32
      %353 = vector.broadcast %cst_76 : f32 to vector<32x24xf32>
      %354 = arith.addf %353, %352 : vector<32x24xf32>
      %355 = arith.divf %353, %354 : vector<32x24xf32>
      %356 = vector.extract_strided_slice %349 {offsets = [0, 24], sizes = [32, 8], strides = [1, 1]} : vector<32x32xf32> to vector<32x8xf32>
      %357 = math.tanh %356 : vector<32x8xf32>
      %358 = vector.extract_strided_slice %355 {offsets = [0, 8], sizes = [32, 8], strides = [1, 1]} : vector<32x24xf32> to vector<32x8xf32>
      %359 = arith.mulf %358, %318 : vector<32x8xf32>
      %360 = vector.extract_strided_slice %355 {offsets = [0, 0], sizes = [32, 8], strides = [1, 1]} : vector<32x24xf32> to vector<32x8xf32>
      %361 = arith.mulf %360, %357 : vector<32x8xf32>
      %362 = arith.addf %359, %361 : vector<32x8xf32>
      %363 = vector.extract_strided_slice %355 {offsets = [0, 16], sizes = [32, 8], strides = [1, 1]} : vector<32x24xf32> to vector<32x8xf32>
      %364 = math.tanh %362 : vector<32x8xf32>
      %365 = arith.mulf %363, %364 : vector<32x8xf32>
      %cst_77 = arith.constant dense<0.000000e+00> : vector<32x64xf32>
      %366 = tpu.matmul %365, %0, %cst_77 {dimension_numbers = #tpu.dot_dimension_numbers<[1], [0], [0], [1], [0, 0, 1, 1], [], []>} : vector<32x8xf32>, vector<8x64xf32>, vector<32x64xf32> -> vector<32x64xf32>
      %367 = vector.extract_strided_slice %366 {offsets = [0, 32], sizes = [32, 32], strides = [1, 1]} : vector<32x64xf32> to vector<32x32xf32>
      %368 = arith.addf %367, %10 : vector<32x32xf32>
      %cst_78 = arith.constant dense<0.000000e+00> : vector<32x32xf32>
      %369 = tpu.matmul %342, %1, %cst_78 {dimension_numbers = #tpu.dot_dimension_numbers<[1], [0], [0], [1], [0, 0, 1, 1], [], []>} : vector<32x8xf32>, vector<8x32xf32>, vector<32x32xf32> -> vector<32x32xf32>
      %370 = arith.addf %368, %369 : vector<32x32xf32>
      %371 = vector.extract_strided_slice %370 {offsets = [0, 0], sizes = [32, 24], strides = [1, 1]} : vector<32x32xf32> to vector<32x24xf32>
      %372 = arith.negf %371 : vector<32x24xf32>
      %373 = math.exp %372 : vector<32x24xf32>
      %cst_79 = arith.constant 1.000000e+00 : f32
      %374 = vector.broadcast %cst_79 : f32 to vector<32x24xf32>
      %375 = arith.addf %374, %373 : vector<32x24xf32>
      %376 = arith.divf %374, %375 : vector<32x24xf32>
      %377 = vector.extract_strided_slice %370 {offsets = [0, 24], sizes = [32, 8], strides = [1, 1]} : vector<32x32xf32> to vector<32x8xf32>
      %378 = math.tanh %377 : vector<32x8xf32>
      %379 = vector.extract_strided_slice %376 {offsets = [0, 8], sizes = [32, 8], strides = [1, 1]} : vector<32x24xf32> to vector<32x8xf32>
      %380 = arith.mulf %379, %339 : vector<32x8xf32>
      %381 = vector.extract_strided_slice %376 {offsets = [0, 0], sizes = [32, 8], strides = [1, 1]} : vector<32x24xf32> to vector<32x8xf32>
      %382 = arith.mulf %381, %378 : vector<32x8xf32>
      %383 = arith.addf %380, %382 : vector<32x8xf32>
      %384 = vector.extract_strided_slice %376 {offsets = [0, 16], sizes = [32, 8], strides = [1, 1]} : vector<32x24xf32> to vector<32x8xf32>
      %385 = math.tanh %383 : vector<32x8xf32>
      %386 = arith.mulf %384, %385 : vector<32x8xf32>
      %c0_80 = arith.constant 0 : index
      %c56 = arith.constant 56 : index
      %387 = vector.load %arg14[%c0_80, %c56] : memref<32x128xf32, #tpu.memory_space<vmem>>, vector<32x8xf32>
      tpu.vector_store %arg14[%c0_80, %c56], %386 {strides = array<i32>} : memref<32x128xf32, #tpu.memory_space<vmem>>, vector<32x8xf32>,
      %388 = vector.extract_strided_slice %57 {offsets = [0, 7], sizes = [32, 1], strides = [1, 1]} : vector<32x16xf32> to vector<32x1xf32>
      %389 = vector.broadcast %388 : vector<32x1xf32> to vector<32x32xf32>
      %390 = arith.mulf %389, %4 : vector<32x32xf32>
      %391 = arith.addf %390, %7 : vector<32x32xf32>
      %392 = vector.extract_strided_slice %366 {offsets = [0, 0], sizes = [32, 32], strides = [1, 1]} : vector<32x64xf32> to vector<32x32xf32>
      %393 = arith.addf %391, %392 : vector<32x32xf32>
      %394 = vector.extract_strided_slice %393 {offsets = [0, 0], sizes = [32, 24], strides = [1, 1]} : vector<32x32xf32> to vector<32x24xf32>
      %395 = arith.negf %394 : vector<32x24xf32>
      %396 = math.exp %395 : vector<32x24xf32>
      %cst_81 = arith.constant 1.000000e+00 : f32
      %397 = vector.broadcast %cst_81 : f32 to vector<32x24xf32>
      %398 = arith.addf %397, %396 : vector<32x24xf32>
      %399 = arith.divf %397, %398 : vector<32x24xf32>
      %400 = vector.extract_strided_slice %393 {offsets = [0, 24], sizes = [32, 8], strides = [1, 1]} : vector<32x32xf32> to vector<32x8xf32>
      %401 = math.tanh %400 : vector<32x8xf32>
      %402 = vector.extract_strided_slice %399 {offsets = [0, 8], sizes = [32, 8], strides = [1, 1]} : vector<32x24xf32> to vector<32x8xf32>
      %403 = arith.mulf %402, %362 : vector<32x8xf32>
      %404 = vector.extract_strided_slice %399 {offsets = [0, 0], sizes = [32, 8], strides = [1, 1]} : vector<32x24xf32> to vector<32x8xf32>
      %405 = arith.mulf %404, %401 : vector<32x8xf32>
      %406 = arith.addf %403, %405 : vector<32x8xf32>
      %407 = vector.extract_strided_slice %399 {offsets = [0, 16], sizes = [32, 8], strides = [1, 1]} : vector<32x24xf32> to vector<32x8xf32>
      %408 = math.tanh %406 : vector<32x8xf32>
      %409 = arith.mulf %407, %408 : vector<32x8xf32>
      %cst_82 = arith.constant dense<0.000000e+00> : vector<32x64xf32>
      %410 = tpu.matmul %409, %0, %cst_82 {dimension_numbers = #tpu.dot_dimension_numbers<[1], [0], [0], [1], [0, 0, 1, 1], [], []>} : vector<32x8xf32>, vector<8x64xf32>, vector<32x64xf32> -> vector<32x64xf32>
      %411 = vector.extract_strided_slice %410 {offsets = [0, 32], sizes = [32, 32], strides = [1, 1]} : vector<32x64xf32> to vector<32x32xf32>
      %412 = arith.addf %411, %10 : vector<32x32xf32>
      %cst_83 = arith.constant dense<0.000000e+00> : vector<32x32xf32>
      %413 = tpu.matmul %386, %1, %cst_83 {dimension_numbers = #tpu.dot_dimension_numbers<[1], [0], [0], [1], [0, 0, 1, 1], [], []>} : vector<32x8xf32>, vector<8x32xf32>, vector<32x32xf32> -> vector<32x32xf32>
      %414 = arith.addf %412, %413 : vector<32x32xf32>
      %415 = vector.extract_strided_slice %414 {offsets = [0, 0], sizes = [32, 24], strides = [1, 1]} : vector<32x32xf32> to vector<32x24xf32>
      %416 = arith.negf %415 : vector<32x24xf32>
      %417 = math.exp %416 : vector<32x24xf32>
      %cst_84 = arith.constant 1.000000e+00 : f32
      %418 = vector.broadcast %cst_84 : f32 to vector<32x24xf32>
      %419 = arith.addf %418, %417 : vector<32x24xf32>
      %420 = arith.divf %418, %419 : vector<32x24xf32>
      %421 = vector.extract_strided_slice %414 {offsets = [0, 24], sizes = [32, 8], strides = [1, 1]} : vector<32x32xf32> to vector<32x8xf32>
      %422 = math.tanh %421 : vector<32x8xf32>
      %423 = vector.extract_strided_slice %420 {offsets = [0, 8], sizes = [32, 8], strides = [1, 1]} : vector<32x24xf32> to vector<32x8xf32>
      %424 = arith.mulf %423, %383 : vector<32x8xf32>
      %425 = vector.extract_strided_slice %420 {offsets = [0, 0], sizes = [32, 8], strides = [1, 1]} : vector<32x24xf32> to vector<32x8xf32>
      %426 = arith.mulf %425, %422 : vector<32x8xf32>
      %427 = arith.addf %424, %426 : vector<32x8xf32>
      %428 = vector.extract_strided_slice %420 {offsets = [0, 16], sizes = [32, 8], strides = [1, 1]} : vector<32x24xf32> to vector<32x8xf32>
      %429 = math.tanh %427 : vector<32x8xf32>
      %430 = arith.mulf %428, %429 : vector<32x8xf32>
      %c0_85 = arith.constant 0 : index
      %c64 = arith.constant 64 : index
      %431 = vector.load %arg14[%c0_85, %c64] : memref<32x128xf32, #tpu.memory_space<vmem>>, vector<32x8xf32>
      tpu.vector_store %arg14[%c0_85, %c64], %430 {strides = array<i32>} : memref<32x128xf32, #tpu.memory_space<vmem>>, vector<32x8xf32>,
      %432 = vector.extract_strided_slice %57 {offsets = [0, 8], sizes = [32, 1], strides = [1, 1]} : vector<32x16xf32> to vector<32x1xf32>
      %433 = vector.broadcast %432 : vector<32x1xf32> to vector<32x32xf32>
      %434 = arith.mulf %433, %4 : vector<32x32xf32>
      %435 = arith.addf %434, %7 : vector<32x32xf32>
      %436 = vector.extract_strided_slice %410 {offsets = [0, 0], sizes = [32, 32], strides = [1, 1]} : vector<32x64xf32> to vector<32x32xf32>
      %437 = arith.addf %435, %436 : vector<32x32xf32>
      %438 = vector.extract_strided_slice %437 {offsets = [0, 0], sizes = [32, 24], strides = [1, 1]} : vector<32x32xf32> to vector<32x24xf32>
      %439 = arith.negf %438 : vector<32x24xf32>
      %440 = math.exp %439 : vector<32x24xf32>
      %cst_86 = arith.constant 1.000000e+00 : f32
      %441 = vector.broadcast %cst_86 : f32 to vector<32x24xf32>
      %442 = arith.addf %441, %440 : vector<32x24xf32>
      %443 = arith.divf %441, %442 : vector<32x24xf32>
      %444 = vector.extract_strided_slice %437 {offsets = [0, 24], sizes = [32, 8], strides = [1, 1]} : vector<32x32xf32> to vector<32x8xf32>
      %445 = math.tanh %444 : vector<32x8xf32>
      %446 = vector.extract_strided_slice %443 {offsets = [0, 8], sizes = [32, 8], strides = [1, 1]} : vector<32x24xf32> to vector<32x8xf32>
      %447 = arith.mulf %446, %406 : vector<32x8xf32>
      %448 = vector.extract_strided_slice %443 {offsets = [0, 0], sizes = [32, 8], strides = [1, 1]} : vector<32x24xf32> to vector<32x8xf32>
      %449 = arith.mulf %448, %445 : vector<32x8xf32>
      %450 = arith.addf %447, %449 : vector<32x8xf32>
      %451 = vector.extract_strided_slice %443 {offsets = [0, 16], sizes = [32, 8], strides = [1, 1]} : vector<32x24xf32> to vector<32x8xf32>
      %452 = math.tanh %450 : vector<32x8xf32>
      %453 = arith.mulf %451, %452 : vector<32x8xf32>
      %cst_87 = arith.constant dense<0.000000e+00> : vector<32x64xf32>
      %454 = tpu.matmul %453, %0, %cst_87 {dimension_numbers = #tpu.dot_dimension_numbers<[1], [0], [0], [1], [0, 0, 1, 1], [], []>} : vector<32x8xf32>, vector<8x64xf32>, vector<32x64xf32> -> vector<32x64xf32>
      %455 = vector.extract_strided_slice %454 {offsets = [0, 32], sizes = [32, 32], strides = [1, 1]} : vector<32x64xf32> to vector<32x32xf32>
      %456 = arith.addf %455, %10 : vector<32x32xf32>
      %cst_88 = arith.constant dense<0.000000e+00> : vector<32x32xf32>
      %457 = tpu.matmul %430, %1, %cst_88 {dimension_numbers = #tpu.dot_dimension_numbers<[1], [0], [0], [1], [0, 0, 1, 1], [], []>} : vector<32x8xf32>, vector<8x32xf32>, vector<32x32xf32> -> vector<32x32xf32>
      %458 = arith.addf %456, %457 : vector<32x32xf32>
      %459 = vector.extract_strided_slice %458 {offsets = [0, 0], sizes = [32, 24], strides = [1, 1]} : vector<32x32xf32> to vector<32x24xf32>
      %460 = arith.negf %459 : vector<32x24xf32>
      %461 = math.exp %460 : vector<32x24xf32>
      %cst_89 = arith.constant 1.000000e+00 : f32
      %462 = vector.broadcast %cst_89 : f32 to vector<32x24xf32>
      %463 = arith.addf %462, %461 : vector<32x24xf32>
      %464 = arith.divf %462, %463 : vector<32x24xf32>
      %465 = vector.extract_strided_slice %458 {offsets = [0, 24], sizes = [32, 8], strides = [1, 1]} : vector<32x32xf32> to vector<32x8xf32>
      %466 = math.tanh %465 : vector<32x8xf32>
      %467 = vector.extract_strided_slice %464 {offsets = [0, 8], sizes = [32, 8], strides = [1, 1]} : vector<32x24xf32> to vector<32x8xf32>
      %468 = arith.mulf %467, %427 : vector<32x8xf32>
      %469 = vector.extract_strided_slice %464 {offsets = [0, 0], sizes = [32, 8], strides = [1, 1]} : vector<32x24xf32> to vector<32x8xf32>
      %470 = arith.mulf %469, %466 : vector<32x8xf32>
      %471 = arith.addf %468, %470 : vector<32x8xf32>
      %472 = vector.extract_strided_slice %464 {offsets = [0, 16], sizes = [32, 8], strides = [1, 1]} : vector<32x24xf32> to vector<32x8xf32>
      %473 = math.tanh %471 : vector<32x8xf32>
      %474 = arith.mulf %472, %473 : vector<32x8xf32>
      %c0_90 = arith.constant 0 : index
      %c72 = arith.constant 72 : index
      %475 = vector.load %arg14[%c0_90, %c72] : memref<32x128xf32, #tpu.memory_space<vmem>>, vector<32x8xf32>
      tpu.vector_store %arg14[%c0_90, %c72], %474 {strides = array<i32>} : memref<32x128xf32, #tpu.memory_space<vmem>>, vector<32x8xf32>,
      %476 = vector.extract_strided_slice %57 {offsets = [0, 9], sizes = [32, 1], strides = [1, 1]} : vector<32x16xf32> to vector<32x1xf32>
      %477 = vector.broadcast %476 : vector<32x1xf32> to vector<32x32xf32>
      %478 = arith.mulf %477, %4 : vector<32x32xf32>
      %479 = arith.addf %478, %7 : vector<32x32xf32>
      %480 = vector.extract_strided_slice %454 {offsets = [0, 0], sizes = [32, 32], strides = [1, 1]} : vector<32x64xf32> to vector<32x32xf32>
      %481 = arith.addf %479, %480 : vector<32x32xf32>
      %482 = vector.extract_strided_slice %481 {offsets = [0, 0], sizes = [32, 24], strides = [1, 1]} : vector<32x32xf32> to vector<32x24xf32>
      %483 = arith.negf %482 : vector<32x24xf32>
      %484 = math.exp %483 : vector<32x24xf32>
      %cst_91 = arith.constant 1.000000e+00 : f32
      %485 = vector.broadcast %cst_91 : f32 to vector<32x24xf32>
      %486 = arith.addf %485, %484 : vector<32x24xf32>
      %487 = arith.divf %485, %486 : vector<32x24xf32>
      %488 = vector.extract_strided_slice %481 {offsets = [0, 24], sizes = [32, 8], strides = [1, 1]} : vector<32x32xf32> to vector<32x8xf32>
      %489 = math.tanh %488 : vector<32x8xf32>
      %490 = vector.extract_strided_slice %487 {offsets = [0, 8], sizes = [32, 8], strides = [1, 1]} : vector<32x24xf32> to vector<32x8xf32>
      %491 = arith.mulf %490, %450 : vector<32x8xf32>
      %492 = vector.extract_strided_slice %487 {offsets = [0, 0], sizes = [32, 8], strides = [1, 1]} : vector<32x24xf32> to vector<32x8xf32>
      %493 = arith.mulf %492, %489 : vector<32x8xf32>
      %494 = arith.addf %491, %493 : vector<32x8xf32>
      %495 = vector.extract_strided_slice %487 {offsets = [0, 16], sizes = [32, 8], strides = [1, 1]} : vector<32x24xf32> to vector<32x8xf32>
      %496 = math.tanh %494 : vector<32x8xf32>
      %497 = arith.mulf %495, %496 : vector<32x8xf32>
      %cst_92 = arith.constant dense<0.000000e+00> : vector<32x64xf32>
      %498 = tpu.matmul %497, %0, %cst_92 {dimension_numbers = #tpu.dot_dimension_numbers<[1], [0], [0], [1], [0, 0, 1, 1], [], []>} : vector<32x8xf32>, vector<8x64xf32>, vector<32x64xf32> -> vector<32x64xf32>
      %499 = vector.extract_strided_slice %498 {offsets = [0, 32], sizes = [32, 32], strides = [1, 1]} : vector<32x64xf32> to vector<32x32xf32>
      %500 = arith.addf %499, %10 : vector<32x32xf32>
      %cst_93 = arith.constant dense<0.000000e+00> : vector<32x32xf32>
      %501 = tpu.matmul %474, %1, %cst_93 {dimension_numbers = #tpu.dot_dimension_numbers<[1], [0], [0], [1], [0, 0, 1, 1], [], []>} : vector<32x8xf32>, vector<8x32xf32>, vector<32x32xf32> -> vector<32x32xf32>
      %502 = arith.addf %500, %501 : vector<32x32xf32>
      %503 = vector.extract_strided_slice %502 {offsets = [0, 0], sizes = [32, 24], strides = [1, 1]} : vector<32x32xf32> to vector<32x24xf32>
      %504 = arith.negf %503 : vector<32x24xf32>
      %505 = math.exp %504 : vector<32x24xf32>
      %cst_94 = arith.constant 1.000000e+00 : f32
      %506 = vector.broadcast %cst_94 : f32 to vector<32x24xf32>
      %507 = arith.addf %506, %505 : vector<32x24xf32>
      %508 = arith.divf %506, %507 : vector<32x24xf32>
      %509 = vector.extract_strided_slice %502 {offsets = [0, 24], sizes = [32, 8], strides = [1, 1]} : vector<32x32xf32> to vector<32x8xf32>
      %510 = math.tanh %509 : vector<32x8xf32>
      %511 = vector.extract_strided_slice %508 {offsets = [0, 8], sizes = [32, 8], strides = [1, 1]} : vector<32x24xf32> to vector<32x8xf32>
      %512 = arith.mulf %511, %471 : vector<32x8xf32>
      %513 = vector.extract_strided_slice %508 {offsets = [0, 0], sizes = [32, 8], strides = [1, 1]} : vector<32x24xf32> to vector<32x8xf32>
      %514 = arith.mulf %513, %510 : vector<32x8xf32>
      %515 = arith.addf %512, %514 : vector<32x8xf32>
      %516 = vector.extract_strided_slice %508 {offsets = [0, 16], sizes = [32, 8], strides = [1, 1]} : vector<32x24xf32> to vector<32x8xf32>
      %517 = math.tanh %515 : vector<32x8xf32>
      %518 = arith.mulf %516, %517 : vector<32x8xf32>
      %c0_95 = arith.constant 0 : index
      %c80 = arith.constant 80 : index
      %519 = vector.load %arg14[%c0_95, %c80] : memref<32x128xf32, #tpu.memory_space<vmem>>, vector<32x8xf32>
      tpu.vector_store %arg14[%c0_95, %c80], %518 {strides = array<i32>} : memref<32x128xf32, #tpu.memory_space<vmem>>, vector<32x8xf32>,
      %520 = vector.extract_strided_slice %57 {offsets = [0, 10], sizes = [32, 1], strides = [1, 1]} : vector<32x16xf32> to vector<32x1xf32>
      %521 = vector.broadcast %520 : vector<32x1xf32> to vector<32x32xf32>
      %522 = arith.mulf %521, %4 : vector<32x32xf32>
      %523 = arith.addf %522, %7 : vector<32x32xf32>
      %524 = vector.extract_strided_slice %498 {offsets = [0, 0], sizes = [32, 32], strides = [1, 1]} : vector<32x64xf32> to vector<32x32xf32>
      %525 = arith.addf %523, %524 : vector<32x32xf32>
      %526 = vector.extract_strided_slice %525 {offsets = [0, 0], sizes = [32, 24], strides = [1, 1]} : vector<32x32xf32> to vector<32x24xf32>
      %527 = arith.negf %526 : vector<32x24xf32>
      %528 = math.exp %527 : vector<32x24xf32>
      %cst_96 = arith.constant 1.000000e+00 : f32
      %529 = vector.broadcast %cst_96 : f32 to vector<32x24xf32>
      %530 = arith.addf %529, %528 : vector<32x24xf32>
      %531 = arith.divf %529, %530 : vector<32x24xf32>
      %532 = vector.extract_strided_slice %525 {offsets = [0, 24], sizes = [32, 8], strides = [1, 1]} : vector<32x32xf32> to vector<32x8xf32>
      %533 = math.tanh %532 : vector<32x8xf32>
      %534 = vector.extract_strided_slice %531 {offsets = [0, 8], sizes = [32, 8], strides = [1, 1]} : vector<32x24xf32> to vector<32x8xf32>
      %535 = arith.mulf %534, %494 : vector<32x8xf32>
      %536 = vector.extract_strided_slice %531 {offsets = [0, 0], sizes = [32, 8], strides = [1, 1]} : vector<32x24xf32> to vector<32x8xf32>
      %537 = arith.mulf %536, %533 : vector<32x8xf32>
      %538 = arith.addf %535, %537 : vector<32x8xf32>
      %539 = vector.extract_strided_slice %531 {offsets = [0, 16], sizes = [32, 8], strides = [1, 1]} : vector<32x24xf32> to vector<32x8xf32>
      %540 = math.tanh %538 : vector<32x8xf32>
      %541 = arith.mulf %539, %540 : vector<32x8xf32>
      %cst_97 = arith.constant dense<0.000000e+00> : vector<32x64xf32>
      %542 = tpu.matmul %541, %0, %cst_97 {dimension_numbers = #tpu.dot_dimension_numbers<[1], [0], [0], [1], [0, 0, 1, 1], [], []>} : vector<32x8xf32>, vector<8x64xf32>, vector<32x64xf32> -> vector<32x64xf32>
      %543 = vector.extract_strided_slice %542 {offsets = [0, 32], sizes = [32, 32], strides = [1, 1]} : vector<32x64xf32> to vector<32x32xf32>
      %544 = arith.addf %543, %10 : vector<32x32xf32>
      %cst_98 = arith.constant dense<0.000000e+00> : vector<32x32xf32>
      %545 = tpu.matmul %518, %1, %cst_98 {dimension_numbers = #tpu.dot_dimension_numbers<[1], [0], [0], [1], [0, 0, 1, 1], [], []>} : vector<32x8xf32>, vector<8x32xf32>, vector<32x32xf32> -> vector<32x32xf32>
      %546 = arith.addf %544, %545 : vector<32x32xf32>
      %547 = vector.extract_strided_slice %546 {offsets = [0, 0], sizes = [32, 24], strides = [1, 1]} : vector<32x32xf32> to vector<32x24xf32>
      %548 = arith.negf %547 : vector<32x24xf32>
      %549 = math.exp %548 : vector<32x24xf32>
      %cst_99 = arith.constant 1.000000e+00 : f32
      %550 = vector.broadcast %cst_99 : f32 to vector<32x24xf32>
      %551 = arith.addf %550, %549 : vector<32x24xf32>
      %552 = arith.divf %550, %551 : vector<32x24xf32>
      %553 = vector.extract_strided_slice %546 {offsets = [0, 24], sizes = [32, 8], strides = [1, 1]} : vector<32x32xf32> to vector<32x8xf32>
      %554 = math.tanh %553 : vector<32x8xf32>
      %555 = vector.extract_strided_slice %552 {offsets = [0, 8], sizes = [32, 8], strides = [1, 1]} : vector<32x24xf32> to vector<32x8xf32>
      %556 = arith.mulf %555, %515 : vector<32x8xf32>
      %557 = vector.extract_strided_slice %552 {offsets = [0, 0], sizes = [32, 8], strides = [1, 1]} : vector<32x24xf32> to vector<32x8xf32>
      %558 = arith.mulf %557, %554 : vector<32x8xf32>
      %559 = arith.addf %556, %558 : vector<32x8xf32>
      %560 = vector.extract_strided_slice %552 {offsets = [0, 16], sizes = [32, 8], strides = [1, 1]} : vector<32x24xf32> to vector<32x8xf32>
      %561 = math.tanh %559 : vector<32x8xf32>
      %562 = arith.mulf %560, %561 : vector<32x8xf32>
      %c0_100 = arith.constant 0 : index
      %c88 = arith.constant 88 : index
      %563 = vector.load %arg14[%c0_100, %c88] : memref<32x128xf32, #tpu.memory_space<vmem>>, vector<32x8xf32>
      tpu.vector_store %arg14[%c0_100, %c88], %562 {strides = array<i32>} : memref<32x128xf32, #tpu.memory_space<vmem>>, vector<32x8xf32>,
      %564 = vector.extract_strided_slice %57 {offsets = [0, 11], sizes = [32, 1], strides = [1, 1]} : vector<32x16xf32> to vector<32x1xf32>
      %565 = vector.broadcast %564 : vector<32x1xf32> to vector<32x32xf32>
      %566 = arith.mulf %565, %4 : vector<32x32xf32>
      %567 = arith.addf %566, %7 : vector<32x32xf32>
      %568 = vector.extract_strided_slice %542 {offsets = [0, 0], sizes = [32, 32], strides = [1, 1]} : vector<32x64xf32> to vector<32x32xf32>
      %569 = arith.addf %567, %568 : vector<32x32xf32>
      %570 = vector.extract_strided_slice %569 {offsets = [0, 0], sizes = [32, 24], strides = [1, 1]} : vector<32x32xf32> to vector<32x24xf32>
      %571 = arith.negf %570 : vector<32x24xf32>
      %572 = math.exp %571 : vector<32x24xf32>
      %cst_101 = arith.constant 1.000000e+00 : f32
      %573 = vector.broadcast %cst_101 : f32 to vector<32x24xf32>
      %574 = arith.addf %573, %572 : vector<32x24xf32>
      %575 = arith.divf %573, %574 : vector<32x24xf32>
      %576 = vector.extract_strided_slice %569 {offsets = [0, 24], sizes = [32, 8], strides = [1, 1]} : vector<32x32xf32> to vector<32x8xf32>
      %577 = math.tanh %576 : vector<32x8xf32>
      %578 = vector.extract_strided_slice %575 {offsets = [0, 8], sizes = [32, 8], strides = [1, 1]} : vector<32x24xf32> to vector<32x8xf32>
      %579 = arith.mulf %578, %538 : vector<32x8xf32>
      %580 = vector.extract_strided_slice %575 {offsets = [0, 0], sizes = [32, 8], strides = [1, 1]} : vector<32x24xf32> to vector<32x8xf32>
      %581 = arith.mulf %580, %577 : vector<32x8xf32>
      %582 = arith.addf %579, %581 : vector<32x8xf32>
      %583 = vector.extract_strided_slice %575 {offsets = [0, 16], sizes = [32, 8], strides = [1, 1]} : vector<32x24xf32> to vector<32x8xf32>
      %584 = math.tanh %582 : vector<32x8xf32>
      %585 = arith.mulf %583, %584 : vector<32x8xf32>
      %cst_102 = arith.constant dense<0.000000e+00> : vector<32x64xf32>
      %586 = tpu.matmul %585, %0, %cst_102 {dimension_numbers = #tpu.dot_dimension_numbers<[1], [0], [0], [1], [0, 0, 1, 1], [], []>} : vector<32x8xf32>, vector<8x64xf32>, vector<32x64xf32> -> vector<32x64xf32>
      %587 = vector.extract_strided_slice %586 {offsets = [0, 32], sizes = [32, 32], strides = [1, 1]} : vector<32x64xf32> to vector<32x32xf32>
      %588 = arith.addf %587, %10 : vector<32x32xf32>
      %cst_103 = arith.constant dense<0.000000e+00> : vector<32x32xf32>
      %589 = tpu.matmul %562, %1, %cst_103 {dimension_numbers = #tpu.dot_dimension_numbers<[1], [0], [0], [1], [0, 0, 1, 1], [], []>} : vector<32x8xf32>, vector<8x32xf32>, vector<32x32xf32> -> vector<32x32xf32>
      %590 = arith.addf %588, %589 : vector<32x32xf32>
      %591 = vector.extract_strided_slice %590 {offsets = [0, 0], sizes = [32, 24], strides = [1, 1]} : vector<32x32xf32> to vector<32x24xf32>
      %592 = arith.negf %591 : vector<32x24xf32>
      %593 = math.exp %592 : vector<32x24xf32>
      %cst_104 = arith.constant 1.000000e+00 : f32
      %594 = vector.broadcast %cst_104 : f32 to vector<32x24xf32>
      %595 = arith.addf %594, %593 : vector<32x24xf32>
      %596 = arith.divf %594, %595 : vector<32x24xf32>
      %597 = vector.extract_strided_slice %590 {offsets = [0, 24], sizes = [32, 8], strides = [1, 1]} : vector<32x32xf32> to vector<32x8xf32>
      %598 = math.tanh %597 : vector<32x8xf32>
      %599 = vector.extract_strided_slice %596 {offsets = [0, 8], sizes = [32, 8], strides = [1, 1]} : vector<32x24xf32> to vector<32x8xf32>
      %600 = arith.mulf %599, %559 : vector<32x8xf32>
      %601 = vector.extract_strided_slice %596 {offsets = [0, 0], sizes = [32, 8], strides = [1, 1]} : vector<32x24xf32> to vector<32x8xf32>
      %602 = arith.mulf %601, %598 : vector<32x8xf32>
      %603 = arith.addf %600, %602 : vector<32x8xf32>
      %604 = vector.extract_strided_slice %596 {offsets = [0, 16], sizes = [32, 8], strides = [1, 1]} : vector<32x24xf32> to vector<32x8xf32>
      %605 = math.tanh %603 : vector<32x8xf32>
      %606 = arith.mulf %604, %605 : vector<32x8xf32>
      %c0_105 = arith.constant 0 : index
      %c96 = arith.constant 96 : index
      %607 = vector.load %arg14[%c0_105, %c96] : memref<32x128xf32, #tpu.memory_space<vmem>>, vector<32x8xf32>
      tpu.vector_store %arg14[%c0_105, %c96], %606 {strides = array<i32>} : memref<32x128xf32, #tpu.memory_space<vmem>>, vector<32x8xf32>,
      %608 = vector.extract_strided_slice %57 {offsets = [0, 12], sizes = [32, 1], strides = [1, 1]} : vector<32x16xf32> to vector<32x1xf32>
      %609 = vector.broadcast %608 : vector<32x1xf32> to vector<32x32xf32>
      %610 = arith.mulf %609, %4 : vector<32x32xf32>
      %611 = arith.addf %610, %7 : vector<32x32xf32>
      %612 = vector.extract_strided_slice %586 {offsets = [0, 0], sizes = [32, 32], strides = [1, 1]} : vector<32x64xf32> to vector<32x32xf32>
      %613 = arith.addf %611, %612 : vector<32x32xf32>
      %614 = vector.extract_strided_slice %613 {offsets = [0, 0], sizes = [32, 24], strides = [1, 1]} : vector<32x32xf32> to vector<32x24xf32>
      %615 = arith.negf %614 : vector<32x24xf32>
      %616 = math.exp %615 : vector<32x24xf32>
      %cst_106 = arith.constant 1.000000e+00 : f32
      %617 = vector.broadcast %cst_106 : f32 to vector<32x24xf32>
      %618 = arith.addf %617, %616 : vector<32x24xf32>
      %619 = arith.divf %617, %618 : vector<32x24xf32>
      %620 = vector.extract_strided_slice %613 {offsets = [0, 24], sizes = [32, 8], strides = [1, 1]} : vector<32x32xf32> to vector<32x8xf32>
      %621 = math.tanh %620 : vector<32x8xf32>
      %622 = vector.extract_strided_slice %619 {offsets = [0, 8], sizes = [32, 8], strides = [1, 1]} : vector<32x24xf32> to vector<32x8xf32>
      %623 = arith.mulf %622, %582 : vector<32x8xf32>
      %624 = vector.extract_strided_slice %619 {offsets = [0, 0], sizes = [32, 8], strides = [1, 1]} : vector<32x24xf32> to vector<32x8xf32>
      %625 = arith.mulf %624, %621 : vector<32x8xf32>
      %626 = arith.addf %623, %625 : vector<32x8xf32>
      %627 = vector.extract_strided_slice %619 {offsets = [0, 16], sizes = [32, 8], strides = [1, 1]} : vector<32x24xf32> to vector<32x8xf32>
      %628 = math.tanh %626 : vector<32x8xf32>
      %629 = arith.mulf %627, %628 : vector<32x8xf32>
      %cst_107 = arith.constant dense<0.000000e+00> : vector<32x64xf32>
      %630 = tpu.matmul %629, %0, %cst_107 {dimension_numbers = #tpu.dot_dimension_numbers<[1], [0], [0], [1], [0, 0, 1, 1], [], []>} : vector<32x8xf32>, vector<8x64xf32>, vector<32x64xf32> -> vector<32x64xf32>
      %631 = vector.extract_strided_slice %630 {offsets = [0, 32], sizes = [32, 32], strides = [1, 1]} : vector<32x64xf32> to vector<32x32xf32>
      %632 = arith.addf %631, %10 : vector<32x32xf32>
      %cst_108 = arith.constant dense<0.000000e+00> : vector<32x32xf32>
      %633 = tpu.matmul %606, %1, %cst_108 {dimension_numbers = #tpu.dot_dimension_numbers<[1], [0], [0], [1], [0, 0, 1, 1], [], []>} : vector<32x8xf32>, vector<8x32xf32>, vector<32x32xf32> -> vector<32x32xf32>
      %634 = arith.addf %632, %633 : vector<32x32xf32>
      %635 = vector.extract_strided_slice %634 {offsets = [0, 0], sizes = [32, 24], strides = [1, 1]} : vector<32x32xf32> to vector<32x24xf32>
      %636 = arith.negf %635 : vector<32x24xf32>
      %637 = math.exp %636 : vector<32x24xf32>
      %cst_109 = arith.constant 1.000000e+00 : f32
      %638 = vector.broadcast %cst_109 : f32 to vector<32x24xf32>
      %639 = arith.addf %638, %637 : vector<32x24xf32>
      %640 = arith.divf %638, %639 : vector<32x24xf32>
      %641 = vector.extract_strided_slice %634 {offsets = [0, 24], sizes = [32, 8], strides = [1, 1]} : vector<32x32xf32> to vector<32x8xf32>
      %642 = math.tanh %641 : vector<32x8xf32>
      %643 = vector.extract_strided_slice %640 {offsets = [0, 8], sizes = [32, 8], strides = [1, 1]} : vector<32x24xf32> to vector<32x8xf32>
      %644 = arith.mulf %643, %603 : vector<32x8xf32>
      %645 = vector.extract_strided_slice %640 {offsets = [0, 0], sizes = [32, 8], strides = [1, 1]} : vector<32x24xf32> to vector<32x8xf32>
      %646 = arith.mulf %645, %642 : vector<32x8xf32>
      %647 = arith.addf %644, %646 : vector<32x8xf32>
      %648 = vector.extract_strided_slice %640 {offsets = [0, 16], sizes = [32, 8], strides = [1, 1]} : vector<32x24xf32> to vector<32x8xf32>
      %649 = math.tanh %647 : vector<32x8xf32>
      %650 = arith.mulf %648, %649 : vector<32x8xf32>
      %c0_110 = arith.constant 0 : index
      %c104 = arith.constant 104 : index
      %651 = vector.load %arg14[%c0_110, %c104] : memref<32x128xf32, #tpu.memory_space<vmem>>, vector<32x8xf32>
      tpu.vector_store %arg14[%c0_110, %c104], %650 {strides = array<i32>} : memref<32x128xf32, #tpu.memory_space<vmem>>, vector<32x8xf32>,
      %652 = vector.extract_strided_slice %57 {offsets = [0, 13], sizes = [32, 1], strides = [1, 1]} : vector<32x16xf32> to vector<32x1xf32>
      %653 = vector.broadcast %652 : vector<32x1xf32> to vector<32x32xf32>
      %654 = arith.mulf %653, %4 : vector<32x32xf32>
      %655 = arith.addf %654, %7 : vector<32x32xf32>
      %656 = vector.extract_strided_slice %630 {offsets = [0, 0], sizes = [32, 32], strides = [1, 1]} : vector<32x64xf32> to vector<32x32xf32>
      %657 = arith.addf %655, %656 : vector<32x32xf32>
      %658 = vector.extract_strided_slice %657 {offsets = [0, 0], sizes = [32, 24], strides = [1, 1]} : vector<32x32xf32> to vector<32x24xf32>
      %659 = arith.negf %658 : vector<32x24xf32>
      %660 = math.exp %659 : vector<32x24xf32>
      %cst_111 = arith.constant 1.000000e+00 : f32
      %661 = vector.broadcast %cst_111 : f32 to vector<32x24xf32>
      %662 = arith.addf %661, %660 : vector<32x24xf32>
      %663 = arith.divf %661, %662 : vector<32x24xf32>
      %664 = vector.extract_strided_slice %657 {offsets = [0, 24], sizes = [32, 8], strides = [1, 1]} : vector<32x32xf32> to vector<32x8xf32>
      %665 = math.tanh %664 : vector<32x8xf32>
      %666 = vector.extract_strided_slice %663 {offsets = [0, 8], sizes = [32, 8], strides = [1, 1]} : vector<32x24xf32> to vector<32x8xf32>
      %667 = arith.mulf %666, %626 : vector<32x8xf32>
      %668 = vector.extract_strided_slice %663 {offsets = [0, 0], sizes = [32, 8], strides = [1, 1]} : vector<32x24xf32> to vector<32x8xf32>
      %669 = arith.mulf %668, %665 : vector<32x8xf32>
      %670 = arith.addf %667, %669 : vector<32x8xf32>
      %671 = vector.extract_strided_slice %663 {offsets = [0, 16], sizes = [32, 8], strides = [1, 1]} : vector<32x24xf32> to vector<32x8xf32>
      %672 = math.tanh %670 : vector<32x8xf32>
      %673 = arith.mulf %671, %672 : vector<32x8xf32>
      %cst_112 = arith.constant dense<0.000000e+00> : vector<32x64xf32>
      %674 = tpu.matmul %673, %0, %cst_112 {dimension_numbers = #tpu.dot_dimension_numbers<[1], [0], [0], [1], [0, 0, 1, 1], [], []>} : vector<32x8xf32>, vector<8x64xf32>, vector<32x64xf32> -> vector<32x64xf32>
      %675 = vector.extract_strided_slice %674 {offsets = [0, 32], sizes = [32, 32], strides = [1, 1]} : vector<32x64xf32> to vector<32x32xf32>
      %676 = arith.addf %675, %10 : vector<32x32xf32>
      %cst_113 = arith.constant dense<0.000000e+00> : vector<32x32xf32>
      %677 = tpu.matmul %650, %1, %cst_113 {dimension_numbers = #tpu.dot_dimension_numbers<[1], [0], [0], [1], [0, 0, 1, 1], [], []>} : vector<32x8xf32>, vector<8x32xf32>, vector<32x32xf32> -> vector<32x32xf32>
      %678 = arith.addf %676, %677 : vector<32x32xf32>
      %679 = vector.extract_strided_slice %678 {offsets = [0, 0], sizes = [32, 24], strides = [1, 1]} : vector<32x32xf32> to vector<32x24xf32>
      %680 = arith.negf %679 : vector<32x24xf32>
      %681 = math.exp %680 : vector<32x24xf32>
      %cst_114 = arith.constant 1.000000e+00 : f32
      %682 = vector.broadcast %cst_114 : f32 to vector<32x24xf32>
      %683 = arith.addf %682, %681 : vector<32x24xf32>
      %684 = arith.divf %682, %683 : vector<32x24xf32>
      %685 = vector.extract_strided_slice %678 {offsets = [0, 24], sizes = [32, 8], strides = [1, 1]} : vector<32x32xf32> to vector<32x8xf32>
      %686 = math.tanh %685 : vector<32x8xf32>
      %687 = vector.extract_strided_slice %684 {offsets = [0, 8], sizes = [32, 8], strides = [1, 1]} : vector<32x24xf32> to vector<32x8xf32>
      %688 = arith.mulf %687, %647 : vector<32x8xf32>
      %689 = vector.extract_strided_slice %684 {offsets = [0, 0], sizes = [32, 8], strides = [1, 1]} : vector<32x24xf32> to vector<32x8xf32>
      %690 = arith.mulf %689, %686 : vector<32x8xf32>
      %691 = arith.addf %688, %690 : vector<32x8xf32>
      %692 = vector.extract_strided_slice %684 {offsets = [0, 16], sizes = [32, 8], strides = [1, 1]} : vector<32x24xf32> to vector<32x8xf32>
      %693 = math.tanh %691 : vector<32x8xf32>
      %694 = arith.mulf %692, %693 : vector<32x8xf32>
      %c0_115 = arith.constant 0 : index
      %c112 = arith.constant 112 : index
      %695 = vector.load %arg14[%c0_115, %c112] : memref<32x128xf32, #tpu.memory_space<vmem>>, vector<32x8xf32>
      tpu.vector_store %arg14[%c0_115, %c112], %694 {strides = array<i32>} : memref<32x128xf32, #tpu.memory_space<vmem>>, vector<32x8xf32>,
      %696 = vector.extract_strided_slice %57 {offsets = [0, 14], sizes = [32, 1], strides = [1, 1]} : vector<32x16xf32> to vector<32x1xf32>
      %697 = vector.broadcast %696 : vector<32x1xf32> to vector<32x32xf32>
      %698 = arith.mulf %697, %4 : vector<32x32xf32>
      %699 = arith.addf %698, %7 : vector<32x32xf32>
      %700 = vector.extract_strided_slice %674 {offsets = [0, 0], sizes = [32, 32], strides = [1, 1]} : vector<32x64xf32> to vector<32x32xf32>
      %701 = arith.addf %699, %700 : vector<32x32xf32>
      %702 = vector.extract_strided_slice %701 {offsets = [0, 0], sizes = [32, 24], strides = [1, 1]} : vector<32x32xf32> to vector<32x24xf32>
      %703 = arith.negf %702 : vector<32x24xf32>
      %704 = math.exp %703 : vector<32x24xf32>
      %cst_116 = arith.constant 1.000000e+00 : f32
      %705 = vector.broadcast %cst_116 : f32 to vector<32x24xf32>
      %706 = arith.addf %705, %704 : vector<32x24xf32>
      %707 = arith.divf %705, %706 : vector<32x24xf32>
      %708 = vector.extract_strided_slice %701 {offsets = [0, 24], sizes = [32, 8], strides = [1, 1]} : vector<32x32xf32> to vector<32x8xf32>
      %709 = math.tanh %708 : vector<32x8xf32>
      %710 = vector.extract_strided_slice %707 {offsets = [0, 8], sizes = [32, 8], strides = [1, 1]} : vector<32x24xf32> to vector<32x8xf32>
      %711 = arith.mulf %710, %670 : vector<32x8xf32>
      %712 = vector.extract_strided_slice %707 {offsets = [0, 0], sizes = [32, 8], strides = [1, 1]} : vector<32x24xf32> to vector<32x8xf32>
      %713 = arith.mulf %712, %709 : vector<32x8xf32>
      %714 = arith.addf %711, %713 : vector<32x8xf32>
      %715 = vector.extract_strided_slice %707 {offsets = [0, 16], sizes = [32, 8], strides = [1, 1]} : vector<32x24xf32> to vector<32x8xf32>
      %716 = math.tanh %714 : vector<32x8xf32>
      %717 = arith.mulf %715, %716 : vector<32x8xf32>
      %cst_117 = arith.constant dense<0.000000e+00> : vector<32x64xf32>
      %718 = tpu.matmul %717, %0, %cst_117 {dimension_numbers = #tpu.dot_dimension_numbers<[1], [0], [0], [1], [0, 0, 1, 1], [], []>} : vector<32x8xf32>, vector<8x64xf32>, vector<32x64xf32> -> vector<32x64xf32>
      %719 = vector.extract_strided_slice %718 {offsets = [0, 32], sizes = [32, 32], strides = [1, 1]} : vector<32x64xf32> to vector<32x32xf32>
      %720 = arith.addf %719, %10 : vector<32x32xf32>
      %cst_118 = arith.constant dense<0.000000e+00> : vector<32x32xf32>
      %721 = tpu.matmul %694, %1, %cst_118 {dimension_numbers = #tpu.dot_dimension_numbers<[1], [0], [0], [1], [0, 0, 1, 1], [], []>} : vector<32x8xf32>, vector<8x32xf32>, vector<32x32xf32> -> vector<32x32xf32>
      %722 = arith.addf %720, %721 : vector<32x32xf32>
      %723 = vector.extract_strided_slice %722 {offsets = [0, 0], sizes = [32, 24], strides = [1, 1]} : vector<32x32xf32> to vector<32x24xf32>
      %724 = arith.negf %723 : vector<32x24xf32>
      %725 = math.exp %724 : vector<32x24xf32>
      %cst_119 = arith.constant 1.000000e+00 : f32
      %726 = vector.broadcast %cst_119 : f32 to vector<32x24xf32>
      %727 = arith.addf %726, %725 : vector<32x24xf32>
      %728 = arith.divf %726, %727 : vector<32x24xf32>
      %729 = vector.extract_strided_slice %722 {offsets = [0, 24], sizes = [32, 8], strides = [1, 1]} : vector<32x32xf32> to vector<32x8xf32>
      %730 = math.tanh %729 : vector<32x8xf32>
      %731 = vector.extract_strided_slice %728 {offsets = [0, 8], sizes = [32, 8], strides = [1, 1]} : vector<32x24xf32> to vector<32x8xf32>
      %732 = arith.mulf %731, %691 : vector<32x8xf32>
      %733 = vector.extract_strided_slice %728 {offsets = [0, 0], sizes = [32, 8], strides = [1, 1]} : vector<32x24xf32> to vector<32x8xf32>
      %734 = arith.mulf %733, %730 : vector<32x8xf32>
      %735 = arith.addf %732, %734 : vector<32x8xf32>
      %736 = vector.extract_strided_slice %728 {offsets = [0, 16], sizes = [32, 8], strides = [1, 1]} : vector<32x24xf32> to vector<32x8xf32>
      %737 = math.tanh %735 : vector<32x8xf32>
      %738 = arith.mulf %736, %737 : vector<32x8xf32>
      %c0_120 = arith.constant 0 : index
      %c120 = arith.constant 120 : index
      %739 = vector.load %arg14[%c0_120, %c120] : memref<32x128xf32, #tpu.memory_space<vmem>>, vector<32x8xf32>
      tpu.vector_store %arg14[%c0_120, %c120], %738 {strides = array<i32>} : memref<32x128xf32, #tpu.memory_space<vmem>>, vector<32x8xf32>,
      %740 = vector.extract_strided_slice %57 {offsets = [0, 15], sizes = [32, 1], strides = [1, 1]} : vector<32x16xf32> to vector<32x1xf32>
      %741 = vector.broadcast %740 : vector<32x1xf32> to vector<32x32xf32>
      %742 = arith.mulf %741, %4 : vector<32x32xf32>
      %743 = arith.addf %742, %7 : vector<32x32xf32>
      %744 = vector.extract_strided_slice %718 {offsets = [0, 0], sizes = [32, 32], strides = [1, 1]} : vector<32x64xf32> to vector<32x32xf32>
      %745 = arith.addf %743, %744 : vector<32x32xf32>
      %746 = vector.extract_strided_slice %745 {offsets = [0, 0], sizes = [32, 24], strides = [1, 1]} : vector<32x32xf32> to vector<32x24xf32>
      %747 = arith.negf %746 : vector<32x24xf32>
      %748 = math.exp %747 : vector<32x24xf32>
      %cst_121 = arith.constant 1.000000e+00 : f32
      %749 = vector.broadcast %cst_121 : f32 to vector<32x24xf32>
      %750 = arith.addf %749, %748 : vector<32x24xf32>
      %751 = arith.divf %749, %750 : vector<32x24xf32>
      %752 = vector.extract_strided_slice %745 {offsets = [0, 24], sizes = [32, 8], strides = [1, 1]} : vector<32x32xf32> to vector<32x8xf32>
      %753 = math.tanh %752 : vector<32x8xf32>
      %754 = vector.extract_strided_slice %751 {offsets = [0, 8], sizes = [32, 8], strides = [1, 1]} : vector<32x24xf32> to vector<32x8xf32>
      %755 = arith.mulf %754, %714 : vector<32x8xf32>
      %756 = vector.extract_strided_slice %751 {offsets = [0, 0], sizes = [32, 8], strides = [1, 1]} : vector<32x24xf32> to vector<32x8xf32>
      %757 = arith.mulf %756, %753 : vector<32x8xf32>
      %758 = arith.addf %755, %757 : vector<32x8xf32>
      %759 = vector.extract_strided_slice %751 {offsets = [0, 16], sizes = [32, 8], strides = [1, 1]} : vector<32x24xf32> to vector<32x8xf32>
      %760 = math.tanh %758 : vector<32x8xf32>
      %761 = arith.mulf %759, %760 : vector<32x8xf32>
      %c128_i32 = arith.constant 128 : i32
      %762 = arith.muli %arg16, %c128_i32 : i32
      %763 = tpu.assume_multiple %762, 128 : i32
      %764 = arith.index_cast %763 : i32 to index
      %c0_122 = arith.constant 0 : index
      %765 = vector.load %arg7[%764, %c0_122] : memref<8192x256xbf16, #tpu.memory_space<vmem>>, vector<128x256xbf16>
      %c0_123 = arith.constant 0 : index
      %c0_124 = arith.constant 0 : index
      %766 = vector.load %arg14[%c0_123, %c0_124] : memref<32x128xf32, #tpu.memory_space<vmem>>, vector<32x128xf32>
      %767 = arith.truncf %766 : vector<32x128xf32> to vector<32x128xbf16>
      %c0_125 = arith.constant 0 : index
      %c0_126 = arith.constant 0 : index
      %768 = vector.load %arg15[%c0_125, %c0_126] : memref<32x256xf32, #tpu.memory_space<vmem>>, vector<32x256xf32>
      %cst_127 = arith.constant dense<0.000000e+00> : vector<32x256xf32>
      %769 = tpu.matmul %767, %765, %cst_127 {dimension_numbers = #tpu.dot_dimension_numbers<[1], [0], [0], [1], [0, 0, 1, 1], [], []>} : vector<32x128xbf16>, vector<128x256xbf16>, vector<32x256xf32> -> vector<32x256xf32>
      %770 = arith.addf %768, %769 : vector<32x256xf32>
      %c0_128 = arith.constant 0 : index
      %c0_129 = arith.constant 0 : index
      %771 = vector.load %arg15[%c0_128, %c0_129] : memref<32x256xf32, #tpu.memory_space<vmem>>, vector<32x256xf32>
      tpu.vector_store %arg15[%c0_128, %c0_129], %770 {strides = array<i32>} : memref<32x256xf32, #tpu.memory_space<vmem>>, vector<32x256xf32>,
      scf.yield %761, %758, %738, %735 : vector<32x8xf32>, vector<32x8xf32>, vector<32x8xf32>, vector<32x8xf32>
    }
    %c64_i32_26 = arith.constant 64 : i32
    %c0_27 = arith.constant 0 : index
    %c0_28 = arith.constant 0 : index
    %43 = vector.load %arg15[%c0_27, %c0_28] : memref<32x256xf32, #tpu.memory_space<vmem>>, vector<32x256xf32>
    %c0_29 = arith.constant 0 : index
    %c0_30 = arith.constant 0 : index
    %44 = vector.load %arg8[%c0_29, %c0_30] : memref<1x256xf32, #tpu.memory_space<vmem>>, vector<1x256xf32>
    %45 = vector.broadcast %44 : vector<1x256xf32> to vector<32x256xf32>
    %46 = arith.addf %43, %45 : vector<32x256xf32>
    %cst_31 = arith.constant 0.000000e+00 : f32
    %47 = vector.broadcast %cst_31 : f32 to vector<32x256xf32>
    %48 = arith.maximumf %46, %47 : vector<32x256xf32>
    %c0_32 = arith.constant 0 : index
    %c0_33 = arith.constant 0 : index
    %49 = vector.load %arg9[%c0_32, %c0_33] : memref<256x4xf32, #tpu.memory_space<vmem>>, vector<256x4xf32>
    %cst_34 = arith.constant dense<0.000000e+00> : vector<32x4xf32>
    %50 = tpu.matmul %48, %49, %cst_34 {dimension_numbers = #tpu.dot_dimension_numbers<[1], [0], [0], [1], [0, 0, 1, 1], [], []>} : vector<32x256xf32>, vector<256x4xf32>, vector<32x4xf32> -> vector<32x4xf32>
    %c0_35 = arith.constant 0 : index
    %c0_36 = arith.constant 0 : index
    %51 = vector.load %arg10[%c0_35, %c0_36] : memref<1x4xf32, #tpu.memory_space<vmem>>, vector<1x4xf32>
    %52 = vector.broadcast %51 : vector<1x4xf32> to vector<32x4xf32>
    %53 = arith.addf %50, %52 : vector<32x4xf32>
    %c0_37 = arith.constant 0 : index
    %c0_38 = arith.constant 0 : index
    %54 = vector.load %arg13[%c0_37, %c0_38] : memref<32x4xf32, #tpu.memory_space<vmem>>, vector<32x4xf32>
    tpu.vector_store %arg13[%c0_37, %c0_38], %53 {strides = array<i32>} : memref<32x4xf32, #tpu.memory_space<vmem>>, vector<32x4xf32>,
    return
  }
}

</mosaic_0001>

<llo_original>
// kernel: lstmclf_forward.1
$region0: #{lstmclf_forward.1}
  #allocation0 [shape = 'u32[]', space=smem, size = 0x4, offset = 0x4, fixed_abs, tag = 'smem constant byte address 0x4 - core index']
  #allocation1 [shape = 'u32[144,128]{1,0:T(1,128)}', space=vmem, size = 0x12000, scoped, tag = 'internal scratch']
  #allocation2 [shape = 'f32[32,128]{1,0:T(8,128)}', space=vmem, size = 0x4000, scoped, tag = 'scratch operand']
  #allocation3 [shape = 'f32[32,256]{1,0:T(8,128)}', space=vmem, size = 0x8000, scoped, tag = 'scratch operand']
  %s0 = inlined_call_operand.vmem [shape: f32[64,32,16], index: 0, kind: input, shape index: {}]
  %s1 = inlined_call_operand.vmem [shape: f32[32,32], index: 1, kind: input, shape index: {}]
  %s2 = inlined_call_operand.hbm [shape: f32[1,32], index: 2, kind: input, shape index: {}]
  %s3 = inlined_call_operand.hbm [shape: f32[1,32], index: 3, kind: input, shape index: {}]
  %s4 = inlined_call_operand.vmem [shape: f32[8,64], index: 4, kind: input, shape index: {}]
  %s5 = inlined_call_operand.hbm [shape: f32[8,32], index: 5, kind: input, shape index: {}]
  %s6 = inlined_call_operand.hbm [shape: f32[1,32], index: 6, kind: input, shape index: {}]
  %s7 = inlined_call_operand.hbm [shape: bf16[8192,256], index: 7, kind: input, shape index: {}]
  %s8 = inlined_call_operand.hbm [shape: f32[1,256], index: 8, kind: input, shape index: {}]
  %s9 = inlined_call_operand.vmem [shape: f32[256,4], index: 9, kind: input, shape index: {}]
  %s10 = inlined_call_operand.hbm [shape: f32[1,4], index: 10, kind: input, shape index: {}]
  %s11 = inlined_call_operand.vmem [shape: f32[2,32,8], index: 11, kind: input, shape index: {}]
  %s12 = inlined_call_operand.vmem [shape: f32[2,32,8], index: 12, kind: input, shape index: {}]
  %s13 = inlined_call_operand.vmem [shape: f32[32,4], index: 13, kind: output, shape index: {}]
  %s14 = sld [smem:[#allocation0]]
  $region97: #{lstmclf_forward.1} parent=0
    _
  %s16 = ssub.s32 1, %s14
  %s17 = scalar_select 0, %s16, %s14
  $region1: #{lstmclf_forward.1} parent=0
    #allocation4 [shape = 'u8[512]{0}', space=vmem, size = 0x400, scoped, tag = 'input window, operand 2, single buffered']
    #allocation5 [shape = 's32[1]{0}', space=sflag, size = 0x4, scoped, tag = 'scoped memory for lstmclf_forward.1']
    #allocation6 [shape = 'u8[512]{0}', space=vmem, size = 0x400, scoped, tag = 'input window, operand 3, single buffered']
    #allocation7 [shape = 's32[1]{0}', space=sflag, size = 0x4, scoped, tag = 'scoped memory for lstmclf_forward.1']
    #allocation8 [shape = 'u8[4096]{0}', space=vmem, size = 0x1000, scoped, tag = 'input window, operand 5, single buffered']
    #allocation9 [shape = 'u8[512]{0}', space=vmem, size = 0x400, scoped, tag = 'input window, operand 6, single buffered']
    #allocation10 [shape = 's32[1]{0}', space=sflag, size = 0x4, scoped, tag = 'scoped memory for lstmclf_forward.1']
    #allocation11 [shape = 'u8[4194304]{0}', space=vmem, size = 0x400000, scoped, tag = 'input window, operand 7, single buffered']
    #allocation12 [shape = 'u8[1024]{0}', space=vmem, size = 0x400, scoped, tag = 'input window, operand 8, single buffered']
    #allocation13 [shape = 's32[1]{0}', space=sflag, size = 0x4, scoped, tag = 'scoped memory for lstmclf_forward.1']
    #allocation14 [shape = 'u8[512]{0}', space=vmem, size = 0x400, scoped, tag = 'input window, operand 10, single buffered']
    %18 = vsyncpa [#allocation5], 0
    %19 = vsyncpa [#allocation7], 0
    %20 = vsyncpa [#allocation10], 0
    %21 = vsyncpa [#allocation13], 0
    // Predicated region
    $region2: #{lstmclf_forward.1} parent=1 // pred_check
      _
    $region3: #{lstmclf_forward.1} parent=1 // pred_check_branch
      %23 = sbr.rel (0) target = $region5
    $region4: #{lstmclf_forward.1} parent=1 // pred_region
      _
    $region5: #{lstmclf_forward.1} parent=1 // pred_fallthru
      _
    // Predicated region
    $region6: #{lstmclf_forward.1} parent=1 // pred_check
      _
    $region7: #{lstmclf_forward.1} parent=1 // pred_check_branch
      %25 = sbr.rel (0) target = $region9
    $region8: #{lstmclf_forward.1} parent=1 // pred_region
      _
    $region9: #{lstmclf_forward.1} parent=1 // pred_fallthru
      _
    // Predicated region
    $region10: #{lstmclf_forward.1} parent=1 // pred_check
      _
    $region11: #{lstmclf_forward.1} parent=1 // pred_check_branch
      %27 = sbr.rel (0) target = $region13
    $region12: #{lstmclf_forward.1} parent=1 // pred_region
      %s29 = ssub.s32 16, 16
      %30 = vsyncadd [#allocation5], %s29
      %s32 = sshll.u32 [#allocation4], 4
      %s33 = int_to_ptr.vmem [resolvable:$true] %s32
      %35 = dma.hbm_to_vmem [thread:$0]  %s2, 16, %s33, [#allocation5]
    $region13: #{lstmclf_forward.1} parent=1 // pred_fallthru
      _
    // Predicated region
    $region14: #{lstmclf_forward.1} parent=1 // pred_check
      _
    $region15: #{lstmclf_forward.1} parent=1 // pred_check_branch
      %37 = sbr.rel (0) target = $region17
    $region16: #{lstmclf_forward.1} parent=1 // pred_region
      %s39 = ssub.s32 16, 16
      %40 = vsyncadd [#allocation7], %s39
      %s42 = sshll.u32 [#allocation6], 4
      %s43 = int_to_ptr.vmem [resolvable:$true] %s42
      %45 = dma.hbm_to_vmem [thread:$0]  %s3, 16, %s43, [#allocation7]
    $region17: #{lstmclf_forward.1} parent=1 // pred_fallthru
      _
    // Predicated region
    $region18: #{lstmclf_forward.1} parent=1 // pred_check
      _
    $region19: #{lstmclf_forward.1} parent=1 // pred_check_branch
      %47 = sbr.rel (0) target = $region21
    $region20: #{lstmclf_forward.1} parent=1 // pred_region
      _
    $region21: #{lstmclf_forward.1} parent=1 // pred_fallthru
      _
    // Predicated region
    $region22: #{lstmclf_forward.1} parent=1 // pred_check
      _
    $region23: #{lstmclf_forward.1} parent=1 // pred_check_branch
      %49 = sbr.rel (0) target = $region25
    $region24: #{lstmclf_forward.1} parent=1 // pred_region
      %s51 = ssub.s32 128, 128
      %52 = vsyncadd [#allocation7], %s51
      %s54 = sshll.u32 [#allocation8], 4
      %s55 = int_to_ptr.vmem [resolvable:$true] %s54
      %57 = dma.hbm_to_vmem [thread:$0]  %s5, 128, %s55, [#allocation7]
    $region25: #{lstmclf_forward.1} parent=1 // pred_fallthru
      _
    // Predicated region
    $region26: #{lstmclf_forward.1} parent=1 // pred_check
      _
    $region27: #{lstmclf_forward.1} parent=1 // pred_check_branch
      %59 = sbr.rel (0) target = $region29
    $region28: #{lstmclf_forward.1} parent=1 // pred_region
      %s61 = ssub.s32 16, 16
      %62 = vsyncadd [#allocation10], %s61
      %s64 = sshll.u32 [#allocation9], 4
      %s65 = int_to_ptr.vmem [resolvable:$true] %s64
      %67 = dma.hbm_to_vmem [thread:$0]  %s6, 16, %s65, [#allocation10]
    $region29: #{lstmclf_forward.1} parent=1 // pred_fallthru
      _
    // Predicated region
    $region30: #{lstmclf_forward.1} parent=1 // pred_check
      _
    $region31: #{lstmclf_forward.1} parent=1 // pred_check_branch
      %69 = sbr.rel (0) target = $region33
    $region32: #{lstmclf_forward.1} parent=1 // pred_region
      %s71 = ssub.s32 131072, 131072
      %72 = vsyncadd [#allocation10], %s71
      %s73 = sshll.u32 [#allocation11], 4
      %s74 = int_to_ptr.vmem [resolvable:$true] %s73
      %79 = dma.hbm_to_vmem [thread:$0]  %s7, 131072, %s74, [#allocation10], 128, 128, 8
    $region33: #{lstmclf_forward.1} parent=1 // pred_fallthru
      _
    // Predicated region
    $region34: #{lstmclf_forward.1} parent=1 // pred_check
      _
    $region35: #{lstmclf_forward.1} parent=1 // pred_check_branch
      %81 = sbr.rel (0) target = $region37
    $region36: #{lstmclf_forward.1} parent=1 // pred_region
      %s83 = ssub.s32 32, 32
      %84 = vsyncadd [#allocation13], %s83
      %s86 = sshll.u32 [#allocation12], 4
      %s87 = int_to_ptr.vmem [resolvable:$true] %s86
      %89 = dma.hbm_to_vmem [thread:$0]  %s8, 32, %s87, [#allocation13]
    $region37: #{lstmclf_forward.1} parent=1 // pred_fallthru
      _
    // Predicated region
    $region38: #{lstmclf_forward.1} parent=1 // pred_check
      _
    $region39: #{lstmclf_forward.1} parent=1 // pred_check_branch
      %91 = sbr.rel (0) target = $region41
    $region40: #{lstmclf_forward.1} parent=1 // pred_region
      _
    $region41: #{lstmclf_forward.1} parent=1 // pred_fallthru
      _
    // Predicated region
    $region42: #{lstmclf_forward.1} parent=1 // pred_check
      _
    $region43: #{lstmclf_forward.1} parent=1 // pred_check_branch
      %93 = sbr.rel (0) target = $region45
    $region44: #{lstmclf_forward.1} parent=1 // pred_region
      %s95 = ssub.s32 16, 16
      %96 = vsyncadd [#allocation13], %s95
      %s98 = sshll.u32 [#allocation14], 4
      %s99 = int_to_ptr.vmem [resolvable:$true] %s98
      %101 = dma.hbm_to_vmem [thread:$0]  %s10, 16, %s99, [#allocation13]
    $region45: #{lstmclf_forward.1} parent=1 // pred_fallthru
      _
    // Predicated region
    $region46: #{lstmclf_forward.1} parent=1 // pred_check
      _
    $region47: #{lstmclf_forward.1} parent=1 // pred_check_branch
      %103 = sbr.rel (0) target = $region49
    $region48: #{lstmclf_forward.1} parent=1 // pred_region
      _
    $region49: #{lstmclf_forward.1} parent=1 // pred_fallthru
      _
    // Predicated region
    $region50: #{lstmclf_forward.1} parent=1 // pred_check
      _
    $region51: #{lstmclf_forward.1} parent=1 // pred_check_branch
      %105 = sbr.rel (0) target = $region53
    $region52: #{lstmclf_forward.1} parent=1 // pred_region
      _
    $region53: #{lstmclf_forward.1} parent=1 // pred_fallthru
      _
    // Predicated region
    $region54: #{lstmclf_forward.1} parent=1 // pred_check
      _
    $region55: #{lstmclf_forward.1} parent=1 // pred_check_branch
      %107 = sbr.rel (0) target = $region57
    $region56: #{lstmclf_forward.1} parent=1 // pred_region
      %108 = dma.done [#allocation5], 16
    $region57: #{lstmclf_forward.1} parent=1 // pred_fallthru
      _
    // Predicated region
    $region58: #{lstmclf_forward.1} parent=1 // pred_check
      _
    $region59: #{lstmclf_forward.1} parent=1 // pred_check_branch
      %110 = sbr.rel (0) target = $region61
    $region60: #{lstmclf_forward.1} parent=1 // pred_region
      %111 = dma.done [#allocation7], 16
    $region61: #{lstmclf_forward.1} parent=1 // pred_fallthru
      _
    // Predicated region
    $region62: #{lstmclf_forward.1} parent=1 // pred_check
      _
    $region63: #{lstmclf_forward.1} parent=1 // pred_check_branch
      %113 = sbr.rel (0) target = $region65
    $region64: #{lstmclf_forward.1} parent=1 // pred_region
      %114 = dma.done [#allocation7], 128
    $region65: #{lstmclf_forward.1} parent=1 // pred_fallthru
      _
    // Predicated region
    $region66: #{lstmclf_forward.1} parent=1 // pred_check
      _
    $region67: #{lstmclf_forward.1} parent=1 // pred_check_branch
      %116 = sbr.rel (0) target = $region69
    $region68: #{lstmclf_forward.1} parent=1 // pred_region
      %117 = dma.done [#allocation10], 16
    $region69: #{lstmclf_forward.1} parent=1 // pred_fallthru
      _
    // Predicated region
    $region70: #{lstmclf_forward.1} parent=1 // pred_check
      _
    $region71: #{lstmclf_forward.1} parent=1 // pred_check_branch
      %119 = sbr.rel (0) target = $region73
    $region72: #{lstmclf_forward.1} parent=1 // pred_region
      %120 = dma.done [#allocation10], 131072
    $region73: #{lstmclf_forward.1} parent=1 // pred_fallthru
      _
    // Predicated region
    $region74: #{lstmclf_forward.1} parent=1 // pred_check
      _
    $region75: #{lstmclf_forward.1} parent=1 // pred_check_branch
      %122 = sbr.rel (0) target = $region77
    $region76: #{lstmclf_forward.1} parent=1 // pred_region
      %123 = dma.done [#allocation13], 32
    $region77: #{lstmclf_forward.1} parent=1 // pred_fallthru
      _
    // Predicated region
    $region78: #{lstmclf_forward.1} parent=1 // pred_check
      _
    $region79: #{lstmclf_forward.1} parent=1 // pred_check_branch
      %125 = sbr.rel (0) target = $region81
    $region80: #{lstmclf_forward.1} parent=1 // pred_region
      %126 = dma.done [#allocation13], 16
    $region81: #{lstmclf_forward.1} parent=1 // pred_fallthru
      _
    %v128 = vld [vmem:[%s4] sm:$0xff]
    %v129 = vld [vmem:[#allocation8] sm:$0xff]
    %v130 = vld [vmem:[#allocation4] sm:$0x1]
    %v132 = vlaneseq
    %v133 = vshrl.u32 %v132, 7
    %v134 = vsub.s32 0, %v133
    %v135 = vrot.slane %v130, %v134
    %v137 = vld [vmem:[#allocation6] sm:$0x1]
    %v139 = vlaneseq
    %v140 = vshrl.u32 %v139, 7
    %v141 = vsub.s32 0, %v140
    %v142 = vrot.slane %v137, %v141
    %v144 = vld [vmem:[#allocation9] sm:$0x1]
    %v146 = vlaneseq
    %v147 = vshrl.u32 %v146, 7
    %v148 = vsub.s32 0, %v147
    %v149 = vrot.slane %v144, %v148
    %150 = vst [vmem:[#allocation3] sm:$0xff] 0.0
    %151 = vst [vmem:[#allocation3 + $0x8] sm:$0xff] 0.0
    %152 = vst [vmem:[#allocation3 + $0x10] sm:$0xff] 0.0
    %153 = vst [vmem:[#allocation3 + $0x18] sm:$0xff] 0.0
    %154 = vst [vmem:[#allocation3 + $0x20] sm:$0xff] 0.0
    %155 = vst [vmem:[#allocation3 + $0x28] sm:$0xff] 0.0
    %156 = vst [vmem:[#allocation3 + $0x30] sm:$0xff] 0.0
    %157 = vst [vmem:[#allocation3 + $0x38] sm:$0xff] 0.0
    %v158 = vld [vmem:[%s11] sm:$0xff]
    %v159 = vld [vmem:[%s11 + $0x8] sm:$0xff]
    %v160 = vld [vmem:[%s11 + $0x10] sm:$0xff]
    %v161 = vld [vmem:[%s11 + $0x18] sm:$0xff]
    %v162 = vld [vmem:[%s12] sm:$0xff]
    %v163 = vld [vmem:[%s12 + $0x8] sm:$0xff]
    %v164 = vld [vmem:[%s12 + $0x10] sm:$0xff]
    %v165 = vld [vmem:[%s12 + $0x18] sm:$0xff]
    %vm166 = vcmask 64512
    %v168 = vsel %vm166, %v158, 0
    %v171 = vsel %vm166, %v159, 0
    %v174 = vsel %vm166, %v160, 0
    %v177 = vsel %vm166, %v161, 0
    %179 = vmatprep.subr.mxu0 0.0
    %180 = vmatpush1.msra.mxu0 %v128
    %181 = vmatprep.subr.mxu0 0.0
    %182 = vmatpush1.msra.mxu0 0.0
    %183 = vmatprep.subr.mxu0 0.0
    %184 = vmatpush1.msra.mxu0 0.0
    %185 = vmatprep.subr.mxu0 0.0
    %186 = vmatpush1.msra.mxu0 0.0
    %187 = vmatprep.subr.mxu0 0.0
    %188 = vmatpush1.msra.mxu0 0.0
    %189 = vmatprep.subr.mxu0 0.0
    %190 = vmatpush1.msra.mxu0 0.0
    %191 = vmatprep.subr.mxu0 0.0
    %192 = vmatpush1.msra.mxu0 0.0
    %193 = vmatprep.subr.mxu0 0.0
    %194 = vmatpush1.msra.mxu0 0.0
    %195 = vmatprep.subr.mxu0 0.0
    %196 = vmatpush1.msra.mxu0 0.0
    %197 = vmatprep.subr.mxu0 0.0
    %198 = vmatpush1.msra.mxu0 0.0
    %199 = vmatprep.subr.mxu0 0.0
    %200 = vmatpush1.msra.mxu0 0.0
    %201 = vmatprep.subr.mxu0 0.0
    %202 = vmatpush1.msra.mxu0 0.0
    %203 = vmatprep.subr.mxu0 0.0
    %204 = vmatpush1.msra.mxu0 0.0
    %205 = vmatprep.subr.mxu0 0.0
    %206 = vmatpush1.msra.mxu0 0.0
    %207 = vmatprep.subr.mxu0 0.0
    %208 = vmatpush1.msra.mxu0 0.0
    %209 = vmatprep.subr.mxu0 0.0
    %210 = vmatpush1.msra.mxu0 0.0
    %211 = vmatprep.subr.mxu0 0.0
    %212 = vmatpush1.msra.mxu0 0.0
    %213 = vmatprep.subr.mxu0 0.0
    %214 = vmatpush1.msra.mxu0 0.0
    %215 = vmatprep.subr.mxu0 0.0
    %216 = vmatpush1.msra.mxu0 0.0
    %217 = vmatprep.subr.mxu0 0.0
    %218 = vmatpush1.msra.mxu0 0.0
    %219 = vmatprep.subr.mxu0 0.0
    %220 = vmatpush1.msra.mxu0 0.0
    %221 = vmatprep.subr.mxu0 0.0
    %222 = vmatpush1.msra.mxu0 0.0
    %223 = vmatprep.subr.mxu0 0.0
    %224 = vmatpush1.msra.mxu0 0.0
    %225 = vmatprep.subr.mxu0 0.0
    %226 = vmatpush1.msra.mxu0 0.0
    %227 = vmatprep.subr.mxu0 0.0
    %228 = vmatpush1.msra.mxu0 0.0
    %229 = vmatprep.subr.mxu0 0.0
    %230 = vmatpush1.msra.mxu0 0.0
    %231 = vmatprep.subr.mxu0 0.0
    %232 = vmatpush1.msra.mxu0 0.0
    %233 = vmatprep.subr.mxu0 0.0
    %234 = vmatpush1.msra.mxu0 0.0
    %235 = vmatprep.subr.mxu0 0.0
    %236 = vmatpush1.msra.mxu0 0.0
    %237 = vmatprep.subr.mxu0 0.0
    %238 = vmatpush1.msra.mxu0 0.0
    %239 = vmatprep.subr.mxu0 0.0
    %240 = vmatpush1.msra.mxu0 0.0
    %241 = vmatprep.subr.mxu0 0.0
    %242 = vmatpush1.msra.mxu0 0.0
    %243 = vmatprep.mubr.f32.mxu0 0.0
    %244 = vmatmul.mubr.f32.gmra.mrb[0].mxu0 %v168
    %v245 = vpop.f32.mrb[0].mxu0
    %v246 = vadd.f32 0.0, %v245
    %v247 = vpop.f32.mrb[0].mxu0
    %248 = vmatprep.mubr.f32.mxu0 0.0
    %249 = vmatmul.mubr.f32.gmra.mrb[0].mxu0 %v171
    %v250 = vpop.f32.mrb[0].mxu0
    %v251 = vadd.f32 0.0, %v250
    %v252 = vpop.f32.mrb[0].mxu0
    %253 = vmatprep.mubr.f32.mxu0 0.0
    %254 = vmatmul.mubr.f32.gmra.mrb[0].mxu0 %v174
    %v255 = vpop.f32.mrb[0].mxu0
    %v256 = vadd.f32 0.0, %v255
    %v257 = vpop.f32.mrb[0].mxu0
    %258 = vmatprep.mubr.f32.mxu0 0.0
    %259 = vmatmul.mubr.f32.gmra.mrb[0].mxu0 %v177
    %v260 = vpop.f32.mrb[0].mxu0
    %v261 = vadd.f32 0.0, %v260
    %v262 = vpop.f32.mrb[0].mxu0
    %263 = vdwg.mxu0
    %v264 = vld [vmem:[%s1] sm:$0xff]
    %v265 = vld [vmem:[%s1 + $0x8] sm:$0xff]
    %v266 = vld [vmem:[%s1 + $0x10] sm:$0xff]
    %v267 = vld [vmem:[%s1 + $0x18] sm:$0xff]
    %v268 = vadd.f32 %v264, %v246
    %v269 = vadd.f32 %v265, %v251
    %v270 = vadd.f32 %v266, %v256
    %v271 = vadd.f32 %v267, %v261
    %v272 = vxor.u32 %v268, 2147483648
    %v273 = vxor.u32 %v269, 2147483648
    %v274 = vxor.u32 %v270, 2147483648
    %v275 = vxor.u32 %v271, 2147483648
    %v276 = vmul.f32 %v272, 1.442695
    %v277 = vpow.pop %v276
    %v278 = vmul.f32 %v273, 1.442695
    %v279 = vpow.pop %v278
    %v280 = vmul.f32 %v274, 1.442695
    %v281 = vpow.pop %v280
    %v282 = vmul.f32 %v275, 1.442695
    %v283 = vpow.pop %v282
    %v284 = vadd.f32 %v277, 1.0
    %v285 = vadd.f32 %v279, 1.0
    %v286 = vadd.f32 %v281, 1.0
    %v287 = vadd.f32 %v283, 1.0
    %v288 = vrcp.pop %v284
    %v289 = vmul.f32 1.0, %v288
    %v290 = vrcp.pop %v285
    %v291 = vmul.f32 1.0, %v290
    %v292 = vrcp.pop %v286
    %v293 = vmul.f32 1.0, %v292
    %v294 = vrcp.pop %v287
    %v295 = vmul.f32 1.0, %v294
    %v296 = vtanh.pop %v268
    %v297 = vtanh.pop %v269
    %v298 = vtanh.pop %v270
    %v299 = vtanh.pop %v271
    %304 = vrot.lane.b32.xlu0 %v162, 8
    %v305 = vpop.permute.xlu0 %304
    %306 = vrot.lane.b32.xlu0 %v163, 8
    %v307 = vpop.permute.xlu0 %306
    %308 = vrot.lane.b32.xlu0 %v164, 8
    %v309 = vpop.permute.xlu0 %308
    %310 = vrot.lane.b32.xlu0 %v165, 8
    %v311 = vpop.permute.xlu0 %310
    %v316 = vmul.f32 %v289, %v305
    %v317 = vmul.f32 %v291, %v307
    %v318 = vmul.f32 %v293, %v309
    %v319 = vmul.f32 %v295, %v311
    %324 = vrot.lane.b32.xlu0 %v296, 104
    %v325 = vpop.permute.xlu0 %324
    %326 = vrot.lane.b32.xlu0 %v297, 104
    %v327 = vpop.permute.xlu0 %326
    %328 = vrot.lane.b32.xlu0 %v298, 104
    %v329 = vpop.permute.xlu0 %328
    %330 = vrot.lane.b32.xlu0 %v299, 104
    %v331 = vpop.permute.xlu0 %330
    %v336 = vmul.f32 %v289, %v325
    %v337 = vmul.f32 %v291, %v327
    %v338 = vmul.f32 %v293, %v329
    %v339 = vmul.f32 %v295, %v331
    %344 = vrot.lane.b32.xlu0 %v336, 8
    %v345 = vpop.permute.xlu0 %344
    %346 = vrot.lane.b32.xlu0 %v337, 8
    %v347 = vpop.permute.xlu0 %346
    %348 = vrot.lane.b32.xlu0 %v338, 8
    %v349 = vpop.permute.xlu0 %348
    %350 = vrot.lane.b32.xlu0 %v339, 8
    %v351 = vpop.permute.xlu0 %350
    %v356 = vadd.f32 %v316, %v345
    %v357 = vadd.f32 %v317, %v347
    %v358 = vadd.f32 %v318, %v349
    %v359 = vadd.f32 %v319, %v351
    %v360 = vtanh.pop %v356
    %v361 = vtanh.pop %v357
    %v362 = vtanh.pop %v358
    %v363 = vtanh.pop %v359
    %368 = vrot.lane.b32.xlu0 %v360, 8
    %v369 = vpop.permute.xlu0 %368
    %370 = vrot.lane.b32.xlu0 %v361, 8
    %v371 = vpop.permute.xlu0 %370
    %372 = vrot.lane.b32.xlu0 %v362, 8
    %v373 = vpop.permute.xlu0 %372
    %374 = vrot.lane.b32.xlu0 %v363, 8
    %v375 = vpop.permute.xlu0 %374
    %v380 = vmul.f32 %v289, %v369
    %v381 = vmul.f32 %v291, %v371
    %v382 = vmul.f32 %v293, %v373
    %v383 = vmul.f32 %v295, %v375
    %s384 = scalar_lea.vmem %s11, 32
    %v385 = vld [vmem:[%s384] sm:$0xff]
    %v386 = vld [vmem:[%s384 + $0x8] sm:$0xff]
    %v387 = vld [vmem:[%s384 + $0x10] sm:$0xff]
    %v388 = vld [vmem:[%s384 + $0x18] sm:$0xff]
    %s389 = scalar_lea.vmem %s12, 32
    %v390 = vld [vmem:[%s389] sm:$0xff]
    %v391 = vld [vmem:[%s389 + $0x8] sm:$0xff]
    %v392 = vld [vmem:[%s389 + $0x10] sm:$0xff]
    %v393 = vld [vmem:[%s389 + $0x18] sm:$0xff]
    loop: start=0, step=1, limit=64
    $region82: #{lstmclf_forward.1} parent=1 // loop_pre_header
      _
    $region83: #{lstmclf_forward.1} parent=1 // loop_header
      %s395 = sphi 0, %s399
      %p396 = scmp.ge.s32.totalorder %s395, 64
      %v400 = vphi %v380, %v7952
      %v401 = vphi %v381, %v7953
      %v402 = vphi %v382, %v7954
      %v403 = vphi %v383, %v7955
      %v404 = vphi %v356, %v7928
      %v405 = vphi %v357, %v7929
      %v406 = vphi %v358, %v7930
      %v407 = vphi %v359, %v7931
      %v408 = vphi %v385, %v8142
      %v409 = vphi %v386, %v8144
      %v410 = vphi %v387, %v8146
      %v411 = vphi %v388, %v8148
      %v412 = vphi %v390, %v8158
      %v413 = vphi %v391, %v8160
      %v414 = vphi %v392, %v8162
      %v415 = vphi %v393, %v8164
    $region84: #{lstmclf_forward.1} parent=1 // loop_header_branch
      %398 = sbr.rel (%p396) target = $region88
    $region85: #{lstmclf_forward.1} parent=1 // loop_body
      %s416 = smul.u32 %s395, 32
      %s417 = scalar_lea.vmem %s0, %s416
      %v418 = vld [vmem:[%s417] sm:$0xff]
      %v419 = vld [vmem:[%s417 + $0x8] sm:$0xff]
      %v420 = vld [vmem:[%s417 + $0x10] sm:$0xff]
      %v421 = vld [vmem:[%s417 + $0x18] sm:$0xff]
      %426 = vrot.lane.b32.xlu0 %v400, 112
      %v427 = vpop.permute.xlu0 %426
      %428 = vrot.lane.b32.xlu0 %v401, 112
      %v429 = vpop.permute.xlu0 %428
      %430 = vrot.lane.b32.xlu0 %v402, 112
      %v431 = vpop.permute.xlu0 %430
      %432 = vrot.lane.b32.xlu0 %v403, 112
      %v433 = vpop.permute.xlu0 %432
      %v434 = vsel %vm166, %v427, 0
      %v436 = vsel %vm166, %v429, 0
      %v438 = vsel %vm166, %v431, 0
      %v440 = vsel %vm166, %v433, 0
      %442 = vmatprep.subr.mxu0 0.0
      %443 = vmatpush1.msra.mxu0 %v128
      %444 = vmatprep.subr.mxu0 0.0
      %445 = vmatpush1.msra.mxu0 0.0
      %446 = vmatprep.subr.mxu0 0.0
      %447 = vmatpush1.msra.mxu0 0.0
      %448 = vmatprep.subr.mxu0 0.0
      %449 = vmatpush1.msra.mxu0 0.0
      %450 = vmatprep.subr.mxu0 0.0
      %451 = vmatpush1.msra.mxu0 0.0
      %452 = vmatprep.subr.mxu0 0.0
      %453 = vmatpush1.msra.mxu0 0.0
      %454 = vmatprep.subr.mxu0 0.0
      %455 = vmatpush1.msra.mxu0 0.0
      %456 = vmatprep.subr.mxu0 0.0
      %457 = vmatpush1.msra.mxu0 0.0
      %458 = vmatprep.subr.mxu0 0.0
      %459 = vmatpush1.msra.mxu0 0.0
      %460 = vmatprep.subr.mxu0 0.0
      %461 = vmatpush1.msra.mxu0 0.0
      %462 = vmatprep.subr.mxu0 0.0
      %463 = vmatpush1.msra.mxu0 0.0
      %464 = vmatprep.subr.mxu0 0.0
      %465 = vmatpush1.msra.mxu0 0.0
      %466 = vmatprep.subr.mxu0 0.0
      %467 = vmatpush1.msra.mxu0 0.0
      %468 = vmatprep.subr.mxu0 0.0
      %469 = vmatpush1.msra.mxu0 0.0
      %470 = vmatprep.subr.mxu0 0.0
      %471 = vmatpush1.msra.mxu0 0.0
      %472 = vmatprep.subr.mxu0 0.0
      %473 = vmatpush1.msra.mxu0 0.0
      %474 = vmatprep.subr.mxu0 0.0
      %475 = vmatpush1.msra.mxu0 0.0
      %476 = vmatprep.subr.mxu0 0.0
      %477 = vmatpush1.msra.mxu0 0.0
      %478 = vmatprep.subr.mxu0 0.0
      %479 = vmatpush1.msra.mxu0 0.0
      %480 = vmatprep.subr.mxu0 0.0
      %481 = vmatpush1.msra.mxu0 0.0
      %482 = vmatprep.subr.mxu0 0.0
      %483 = vmatpush1.msra.mxu0 0.0
      %484 = vmatprep.subr.mxu0 0.0
      %485 = vmatpush1.msra.mxu0 0.0
      %486 = vmatprep.subr.mxu0 0.0
      %487 = vmatpush1.msra.mxu0 0.0
      %488 = vmatprep.subr.mxu0 0.0
      %489 = vmatpush1.msra.mxu0 0.0
      %490 = vmatprep.subr.mxu0 0.0
      %491 = vmatpush1.msra.mxu0 0.0
      %492 = vmatprep.subr.mxu0 0.0
      %493 = vmatpush1.msra.mxu0 0.0
      %494 = vmatprep.subr.mxu0 0.0
      %495 = vmatpush1.msra.mxu0 0.0
      %496 = vmatprep.subr.mxu0 0.0
      %497 = vmatpush1.msra.mxu0 0.0
      %498 = vmatprep.subr.mxu0 0.0
      %499 = vmatpush1.msra.mxu0 0.0
      %500 = vmatprep.subr.mxu0 0.0
      %501 = vmatpush1.msra.mxu0 0.0
      %502 = vmatprep.subr.mxu0 0.0
      %503 = vmatpush1.msra.mxu0 0.0
      %504 = vmatprep.subr.mxu0 0.0
      %505 = vmatpush1.msra.mxu0 0.0
      %506 = vmatprep.mubr.f32.mxu0 0.0
      %507 = vmatmul.mubr.f32.gmra.mrb[0].mxu0 %v434
      %v508 = vpop.f32.mrb[0].mxu0
      %v509 = vadd.f32 0.0, %v508
      %v510 = vpop.f32.mrb[0].mxu0
      %511 = vmatprep.mubr.f32.mxu0 0.0
      %512 = vmatmul.mubr.f32.gmra.mrb[0].mxu0 %v436
      %v513 = vpop.f32.mrb[0].mxu0
      %v514 = vadd.f32 0.0, %v513
      %v515 = vpop.f32.mrb[0].mxu0
      %516 = vmatprep.mubr.f32.mxu0 0.0
      %517 = vmatmul.mubr.f32.gmra.mrb[0].mxu0 %v438
      %v518 = vpop.f32.mrb[0].mxu0
      %v519 = vadd.f32 0.0, %v518
      %v520 = vpop.f32.mrb[0].mxu0
      %521 = vmatprep.mubr.f32.mxu0 0.0
      %522 = vmatmul.mubr.f32.gmra.mrb[0].mxu0 %v440
      %v523 = vpop.f32.mrb[0].mxu0
      %v524 = vadd.f32 0.0, %v523
      %v525 = vpop.f32.mrb[0].mxu0
      %526 = vdwg.mxu0
      %527 = vrot.lane.b32.xlu0 %v149, 32
      %v528 = vpop.permute.xlu0 %527
      %v530 = vadd.f32 %v509, %v528
      %v531 = vadd.f32 %v514, %v528
      %v532 = vadd.f32 %v519, %v528
      %v533 = vadd.f32 %v524, %v528
      %v535 = vsel %vm166, %v408, 0
      %v538 = vsel %vm166, %v409, 0
      %v541 = vsel %vm166, %v410, 0
      %v544 = vsel %vm166, %v411, 0
      %546 = vmatprep.subr.mxu0 0.0
      %547 = vmatpush1.msra.mxu0 %v129
      %548 = vmatprep.subr.mxu0 0.0
      %549 = vmatpush1.msra.mxu0 0.0
      %550 = vmatprep.subr.mxu0 0.0
      %551 = vmatpush1.msra.mxu0 0.0
      %552 = vmatprep.subr.mxu0 0.0
      %553 = vmatpush1.msra.mxu0 0.0
      %554 = vmatprep.subr.mxu0 0.0
      %555 = vmatpush1.msra.mxu0 0.0
      %556 = vmatprep.subr.mxu0 0.0
      %557 = vmatpush1.msra.mxu0 0.0
      %558 = vmatprep.subr.mxu0 0.0
      %559 = vmatpush1.msra.mxu0 0.0
      %560 = vmatprep.subr.mxu0 0.0
      %561 = vmatpush1.msra.mxu0 0.0
      %562 = vmatprep.subr.mxu0 0.0
      %563 = vmatpush1.msra.mxu0 0.0
      %564 = vmatprep.subr.mxu0 0.0
      %565 = vmatpush1.msra.mxu0 0.0
      %566 = vmatprep.subr.mxu0 0.0
      %567 = vmatpush1.msra.mxu0 0.0
      %568 = vmatprep.subr.mxu0 0.0
      %569 = vmatpush1.msra.mxu0 0.0
      %570 = vmatprep.subr.mxu0 0.0
      %571 = vmatpush1.msra.mxu0 0.0
      %572 = vmatprep.subr.mxu0 0.0
      %573 = vmatpush1.msra.mxu0 0.0
      %574 = vmatprep.subr.mxu0 0.0
      %575 = vmatpush1.msra.mxu0 0.0
      %576 = vmatprep.subr.mxu0 0.0
      %577 = vmatpush1.msra.mxu0 0.0
      %578 = vmatprep.subr.mxu0 0.0
      %579 = vmatpush1.msra.mxu0 0.0
      %580 = vmatprep.subr.mxu0 0.0
      %581 = vmatpush1.msra.mxu0 0.0
      %582 = vmatprep.subr.mxu0 0.0
      %583 = vmatpush1.msra.mxu0 0.0
      %584 = vmatprep.subr.mxu0 0.0
      %585 = vmatpush1.msra.mxu0 0.0
      %586 = vmatprep.subr.mxu0 0.0
      %587 = vmatpush1.msra.mxu0 0.0
      %588 = vmatprep.subr.mxu0 0.0
      %589 = vmatpush1.msra.mxu0 0.0
      %590 = vmatprep.subr.mxu0 0.0
      %591 = vmatpush1.msra.mxu0 0.0
      %592 = vmatprep.subr.mxu0 0.0
      %593 = vmatpush1.msra.mxu0 0.0
      %594 = vmatprep.subr.mxu0 0.0
      %595 = vmatpush1.msra.mxu0 0.0
      %596 = vmatprep.subr.mxu0 0.0
      %597 = vmatpush1.msra.mxu0 0.0
      %598 = vmatprep.subr.mxu0 0.0
      %599 = vmatpush1.msra.mxu0 0.0
      %600 = vmatprep.subr.mxu0 0.0
      %601 = vmatpush1.msra.mxu0 0.0
      %602 = vmatprep.subr.mxu0 0.0
      %603 = vmatpush1.msra.mxu0 0.0
      %604 = vmatprep.subr.mxu0 0.0
      %605 = vmatpush1.msra.mxu0 0.0
      %606 = vmatprep.subr.mxu0 0.0
      %607 = vmatpush1.msra.mxu0 0.0
      %608 = vmatprep.subr.mxu0 0.0
      %609 = vmatpush1.msra.mxu0 0.0
      %610 = vmatprep.mubr.f32.mxu0 0.0
      %611 = vmatmul.mubr.f32.gmra.mrb[0].mxu0 %v535
      %v612 = vpop.f32.mrb[0].mxu0
      %v613 = vadd.f32 0.0, %v612
      %v614 = vpop.f32.mrb[0].mxu0
      %615 = vmatprep.mubr.f32.mxu0 0.0
      %616 = vmatmul.mubr.f32.gmra.mrb[0].mxu0 %v538
      %v617 = vpop.f32.mrb[0].mxu0
      %v618 = vadd.f32 0.0, %v617
      %v619 = vpop.f32.mrb[0].mxu0
      %620 = vmatprep.mubr.f32.mxu0 0.0
      %621 = vmatmul.mubr.f32.gmra.mrb[0].mxu0 %v541
      %v622 = vpop.f32.mrb[0].mxu0
      %v623 = vadd.f32 0.0, %v622
      %v624 = vpop.f32.mrb[0].mxu0
      %625 = vmatprep.mubr.f32.mxu0 0.0
      %626 = vmatmul.mubr.f32.gmra.mrb[0].mxu0 %v544
      %v627 = vpop.f32.mrb[0].mxu0
      %v628 = vadd.f32 0.0, %v627
      %v629 = vpop.f32.mrb[0].mxu0
      %630 = vdwg.mxu0
      %635 = vrot.lane.b32.xlu0 %v613, 32
      %v636 = vpop.permute.xlu0 %635
      %637 = vrot.lane.b32.xlu0 %v618, 32
      %v638 = vpop.permute.xlu0 %637
      %639 = vrot.lane.b32.xlu0 %v623, 32
      %v640 = vpop.permute.xlu0 %639
      %641 = vrot.lane.b32.xlu0 %v628, 32
      %v642 = vpop.permute.xlu0 %641
      %v647 = vadd.f32 %v530, %v636
      %v648 = vadd.f32 %v531, %v638
      %v649 = vadd.f32 %v532, %v640
      %v650 = vadd.f32 %v533, %v642
      %v651 = vxor.u32 %v647, 2147483648
      %v652 = vxor.u32 %v648, 2147483648
      %v653 = vxor.u32 %v649, 2147483648
      %v654 = vxor.u32 %v650, 2147483648
      %v655 = vmul.f32 %v651, 1.442695
      %v656 = vpow.pop %v655
      %v657 = vmul.f32 %v652, 1.442695
      %v658 = vpow.pop %v657
      %v659 = vmul.f32 %v653, 1.442695
      %v660 = vpow.pop %v659
      %v661 = vmul.f32 %v654, 1.442695
      %v662 = vpow.pop %v661
      %v663 = vadd.f32 %v656, 1.0
      %v664 = vadd.f32 %v658, 1.0
      %v665 = vadd.f32 %v660, 1.0
      %v666 = vadd.f32 %v662, 1.0
      %v667 = vrcp.pop %v663
      %v668 = vmul.f32 1.0, %v667
      %v669 = vrcp.pop %v664
      %v670 = vmul.f32 1.0, %v669
      %v671 = vrcp.pop %v665
      %v672 = vmul.f32 1.0, %v671
      %v673 = vrcp.pop %v666
      %v674 = vmul.f32 1.0, %v673
      %v675 = vtanh.pop %v647
      %v676 = vtanh.pop %v648
      %v677 = vtanh.pop %v649
      %v678 = vtanh.pop %v650
      %683 = vrot.lane.b32.xlu0 %v412, 40
      %v684 = vpop.permute.xlu0 %683
      %685 = vrot.lane.b32.xlu0 %v413, 40
      %v686 = vpop.permute.xlu0 %685
      %687 = vrot.lane.b32.xlu0 %v414, 40
      %v688 = vpop.permute.xlu0 %687
      %689 = vrot.lane.b32.xlu0 %v415, 40
      %v690 = vpop.permute.xlu0 %689
      %v695 = vmul.f32 %v668, %v684
      %v696 = vmul.f32 %v670, %v686
      %v697 = vmul.f32 %v672, %v688
      %v698 = vmul.f32 %v674, %v690
      %703 = vrot.lane.b32.xlu0 %v675, 104
      %v704 = vpop.permute.xlu0 %703
      %705 = vrot.lane.b32.xlu0 %v676, 104
      %v706 = vpop.permute.xlu0 %705
      %707 = vrot.lane.b32.xlu0 %v677, 104
      %v708 = vpop.permute.xlu0 %707
      %709 = vrot.lane.b32.xlu0 %v678, 104
      %v710 = vpop.permute.xlu0 %709
      %v715 = vmul.f32 %v668, %v704
      %v716 = vmul.f32 %v670, %v706
      %v717 = vmul.f32 %v672, %v708
      %v718 = vmul.f32 %v674, %v710
      %723 = vrot.lane.b32.xlu0 %v715, 8
      %v724 = vpop.permute.xlu0 %723
      %725 = vrot.lane.b32.xlu0 %v716, 8
      %v726 = vpop.permute.xlu0 %725
      %727 = vrot.lane.b32.xlu0 %v717, 8
      %v728 = vpop.permute.xlu0 %727
      %729 = vrot.lane.b32.xlu0 %v718, 8
      %v730 = vpop.permute.xlu0 %729
      %v735 = vadd.f32 %v695, %v724
      %v736 = vadd.f32 %v696, %v726
      %v737 = vadd.f32 %v697, %v728
      %v738 = vadd.f32 %v698, %v730
      %v739 = vtanh.pop %v735
      %v740 = vtanh.pop %v736
      %v741 = vtanh.pop %v737
      %v742 = vtanh.pop %v738
      %747 = vrot.lane.b32.xlu0 %v739, 8
      %v748 = vpop.permute.xlu0 %747
      %749 = vrot.lane.b32.xlu0 %v740, 8
      %v750 = vpop.permute.xlu0 %749
      %751 = vrot.lane.b32.xlu0 %v741, 8
      %v752 = vpop.permute.xlu0 %751
      %753 = vrot.lane.b32.xlu0 %v742, 8
      %v754 = vpop.permute.xlu0 %753
      %v759 = vmul.f32 %v668, %v748
      %v760 = vmul.f32 %v670, %v750
      %v761 = vmul.f32 %v672, %v752
      %v762 = vmul.f32 %v674, %v754
      %767 = vrot.lane.b32.xlu0 %v759, 80
      %v768 = vpop.permute.xlu0 %767
      %769 = vrot.lane.b32.xlu0 %v760, 80
      %v770 = vpop.permute.xlu0 %769
      %771 = vrot.lane.b32.xlu0 %v761, 80
      %v772 = vpop.permute.xlu0 %771
      %773 = vrot.lane.b32.xlu0 %v762, 80
      %v774 = vpop.permute.xlu0 %773
      %779 = vst.msk [vmem:[#allocation2] sm:$0xff] %vm166, %v768
      %780 = vst.msk [vmem:[#allocation2 + $0x8] sm:$0xff] %vm166, %v770
      %781 = vst.msk [vmem:[#allocation2 + $0x10] sm:$0xff] %vm166, %v772
      %782 = vst.msk [vmem:[#allocation2 + $0x18] sm:$0xff] %vm166, %v774
      %784 = vset.pattern.permute.xlu0 0
      %785 = vperm.xlu0 %784, %v418
      %v786 = vpop.permute.xlu0 %785
      %789 = vset.pattern.permute.xlu0 0
      %790 = vperm.xlu0 %789, %v419
      %v791 = vpop.permute.xlu0 %790
      %794 = vset.pattern.permute.xlu0 0
      %795 = vperm.xlu0 %794, %v420
      %v796 = vpop.permute.xlu0 %795
      %799 = vset.pattern.permute.xlu0 0
      %800 = vperm.xlu0 %799, %v421
      %v801 = vpop.permute.xlu0 %800
      %v803 = vmul.f32 %v786, %v135
      %v804 = vmul.f32 %v791, %v135
      %v805 = vmul.f32 %v796, %v135
      %v806 = vmul.f32 %v801, %v135
      %v807 = vadd.f32 %v803, %v142
      %v808 = vadd.f32 %v804, %v142
      %v809 = vadd.f32 %v805, %v142
      %v810 = vadd.f32 %v806, %v142
      %v811 = vadd.f32 %v807, %v509
      %v812 = vadd.f32 %v808, %v514
      %v813 = vadd.f32 %v809, %v519
      %v814 = vadd.f32 %v810, %v524
      %v815 = vxor.u32 %v811, 2147483648
      %v816 = vxor.u32 %v812, 2147483648
      %v817 = vxor.u32 %v813, 2147483648
      %v818 = vxor.u32 %v814, 2147483648
      %v819 = vmul.f32 %v815, 1.442695
      %v820 = vpow.pop %v819
      %v821 = vmul.f32 %v816, 1.442695
      %v822 = vpow.pop %v821
      %v823 = vmul.f32 %v817, 1.442695
      %v824 = vpow.pop %v823
      %v825 = vmul.f32 %v818, 1.442695
      %v826 = vpow.pop %v825
      %v827 = vadd.f32 %v820, 1.0
      %v828 = vadd.f32 %v822, 1.0
      %v829 = vadd.f32 %v824, 1.0
      %v830 = vadd.f32 %v826, 1.0
      %v831 = vrcp.pop %v827
      %v832 = vmul.f32 1.0, %v831
      %v833 = vrcp.pop %v828
      %v834 = vmul.f32 1.0, %v833
      %v835 = vrcp.pop %v829
      %v836 = vmul.f32 1.0, %v835
      %v837 = vrcp.pop %v830
      %v838 = vmul.f32 1.0, %v837
      %v839 = vtanh.pop %v811
      %v840 = vtanh.pop %v812
      %v841 = vtanh.pop %v813
      %v842 = vtanh.pop %v814
      %v843 = vmul.f32 %v832, %v404
      %v844 = vmul.f32 %v834, %v405
      %v845 = vmul.f32 %v836, %v406
      %v846 = vmul.f32 %v838, %v407
      %851 = vrot.lane.b32.xlu0 %v839, 104
      %v852 = vpop.permute.xlu0 %851
      %853 = vrot.lane.b32.xlu0 %v840, 104
      %v854 = vpop.permute.xlu0 %853
      %855 = vrot.lane.b32.xlu0 %v841, 104
      %v856 = vpop.permute.xlu0 %855
      %857 = vrot.lane.b32.xlu0 %v842, 104
      %v858 = vpop.permute.xlu0 %857
      %v863 = vmul.f32 %v832, %v852
      %v864 = vmul.f32 %v834, %v854
      %v865 = vmul.f32 %v836, %v856
      %v866 = vmul.f32 %v838, %v858
      %871 = vrot.lane.b32.xlu0 %v863, 8
      %v872 = vpop.permute.xlu0 %871
      %873 = vrot.lane.b32.xlu0 %v864, 8
      %v874 = vpop.permute.xlu0 %873
      %875 = vrot.lane.b32.xlu0 %v865, 8
      %v876 = vpop.permute.xlu0 %875
      %877 = vrot.lane.b32.xlu0 %v866, 8
      %v878 = vpop.permute.xlu0 %877
      %v883 = vadd.f32 %v843, %v872
      %v884 = vadd.f32 %v844, %v874
      %v885 = vadd.f32 %v845, %v876
      %v886 = vadd.f32 %v846, %v878
      %v887 = vtanh.pop %v883
      %v888 = vtanh.pop %v884
      %v889 = vtanh.pop %v885
      %v890 = vtanh.pop %v886
      %895 = vrot.lane.b32.xlu0 %v887, 8
      %v896 = vpop.permute.xlu0 %895
      %897 = vrot.lane.b32.xlu0 %v888, 8
      %v898 = vpop.permute.xlu0 %897
      %899 = vrot.lane.b32.xlu0 %v889, 8
      %v900 = vpop.permute.xlu0 %899
      %901 = vrot.lane.b32.xlu0 %v890, 8
      %v902 = vpop.permute.xlu0 %901
      %v907 = vmul.f32 %v832, %v896
      %v908 = vmul.f32 %v834, %v898
      %v909 = vmul.f32 %v836, %v900
      %v910 = vmul.f32 %v838, %v902
      %915 = vrot.lane.b32.xlu0 %v907, 112
      %v916 = vpop.permute.xlu0 %915
      %917 = vrot.lane.b32.xlu0 %v908, 112
      %v918 = vpop.permute.xlu0 %917
      %919 = vrot.lane.b32.xlu0 %v909, 112
      %v920 = vpop.permute.xlu0 %919
      %921 = vrot.lane.b32.xlu0 %v910, 112
      %v922 = vpop.permute.xlu0 %921
      %v923 = vsel %vm166, %v916, 0
      %v925 = vsel %vm166, %v918, 0
      %v927 = vsel %vm166, %v920, 0
      %v929 = vsel %vm166, %v922, 0
      %931 = vmatprep.subr.mxu0 0.0
      %932 = vmatpush1.msra.mxu0 %v128
      %933 = vmatprep.subr.mxu0 0.0
      %934 = vmatpush1.msra.mxu0 0.0
      %935 = vmatprep.subr.mxu0 0.0
      %936 = vmatpush1.msra.mxu0 0.0
      %937 = vmatprep.subr.mxu0 0.0
      %938 = vmatpush1.msra.mxu0 0.0
      %939 = vmatprep.subr.mxu0 0.0
      %940 = vmatpush1.msra.mxu0 0.0
      %941 = vmatprep.subr.mxu0 0.0
      %942 = vmatpush1.msra.mxu0 0.0
      %943 = vmatprep.subr.mxu0 0.0
      %944 = vmatpush1.msra.mxu0 0.0
      %945 = vmatprep.subr.mxu0 0.0
      %946 = vmatpush1.msra.mxu0 0.0
      %947 = vmatprep.subr.mxu0 0.0
      %948 = vmatpush1.msra.mxu0 0.0
      %949 = vmatprep.subr.mxu0 0.0
      %950 = vmatpush1.msra.mxu0 0.0
      %951 = vmatprep.subr.mxu0 0.0
      %952 = vmatpush1.msra.mxu0 0.0
      %953 = vmatprep.subr.mxu0 0.0
      %954 = vmatpush1.msra.mxu0 0.0
      %955 = vmatprep.subr.mxu0 0.0
      %956 = vmatpush1.msra.mxu0 0.0
      %957 = vmatprep.subr.mxu0 0.0
      %958 = vmatpush1.msra.mxu0 0.0
      %959 = vmatprep.subr.mxu0 0.0
      %960 = vmatpush1.msra.mxu0 0.0
      %961 = vmatprep.subr.mxu0 0.0
      %962 = vmatpush1.msra.mxu0 0.0
      %963 = vmatprep.subr.mxu0 0.0
      %964 = vmatpush1.msra.mxu0 0.0
      %965 = vmatprep.subr.mxu0 0.0
      %966 = vmatpush1.msra.mxu0 0.0
      %967 = vmatprep.subr.mxu0 0.0
      %968 = vmatpush1.msra.mxu0 0.0
      %969 = vmatprep.subr.mxu0 0.0
      %970 = vmatpush1.msra.mxu0 0.0
      %971 = vmatprep.subr.mxu0 0.0
      %972 = vmatpush1.msra.mxu0 0.0
      %973 = vmatprep.subr.mxu0 0.0
      %974 = vmatpush1.msra.mxu0 0.0
      %975 = vmatprep.subr.mxu0 0.0
      %976 = vmatpush1.msra.mxu0 0.0
      %977 = vmatprep.subr.mxu0 0.0
      %978 = vmatpush1.msra.mxu0 0.0
      %979 = vmatprep.subr.mxu0 0.0
      %980 = vmatpush1.msra.mxu0 0.0
      %981 = vmatprep.subr.mxu0 0.0
      %982 = vmatpush1.msra.mxu0 0.0
      %983 = vmatprep.subr.mxu0 0.0
      %984 = vmatpush1.msra.mxu0 0.0
      %985 = vmatprep.subr.mxu0 0.0
      %986 = vmatpush1.msra.mxu0 0.0
      %987 = vmatprep.subr.mxu0 0.0
      %988 = vmatpush1.msra.mxu0 0.0
      %989 = vmatprep.subr.mxu0 0.0
      %990 = vmatpush1.msra.mxu0 0.0
      %991 = vmatprep.subr.mxu0 0.0
      %992 = vmatpush1.msra.mxu0 0.0
      %993 = vmatprep.subr.mxu0 0.0
      %994 = vmatpush1.msra.mxu0 0.0
      %995 = vmatprep.mubr.f32.mxu0 0.0
      %996 = vmatmul.mubr.f32.gmra.mrb[0].mxu0 %v923
      %v997 = vpop.f32.mrb[0].mxu0
      %v998 = vadd.f32 0.0, %v997
      %v999 = vpop.f32.mrb[0].mxu0
      %1000 = vmatprep.mubr.f32.mxu0 0.0
      %1001 = vmatmul.mubr.f32.gmra.mrb[0].mxu0 %v925
      %v1002 = vpop.f32.mrb[0].mxu0
      %v1003 = vadd.f32 0.0, %v1002
      %v1004 = vpop.f32.mrb[0].mxu0
      %1005 = vmatprep.mubr.f32.mxu0 0.0
      %1006 = vmatmul.mubr.f32.gmra.mrb[0].mxu0 %v927
      %v1007 = vpop.f32.mrb[0].mxu0
      %v1008 = vadd.f32 0.0, %v1007
      %v1009 = vpop.f32.mrb[0].mxu0
      %1010 = vmatprep.mubr.f32.mxu0 0.0
      %1011 = vmatmul.mubr.f32.gmra.mrb[0].mxu0 %v929
      %v1012 = vpop.f32.mrb[0].mxu0
      %v1013 = vadd.f32 0.0, %v1012
      %v1014 = vpop.f32.mrb[0].mxu0
      %1015 = vdwg.mxu0
      %v1016 = vadd.f32 %v998, %v528
      %v1017 = vadd.f32 %v1003, %v528
      %v1018 = vadd.f32 %v1008, %v528
      %v1019 = vadd.f32 %v1013, %v528
      %v1020 = vsel %vm166, %v768, 0
      %v1022 = vsel %vm166, %v770, 0
      %v1024 = vsel %vm166, %v772, 0
      %v1026 = vsel %vm166, %v774, 0
      %1028 = vmatprep.subr.mxu0 0.0
      %1029 = vmatpush1.msra.mxu0 %v129
      %1030 = vmatprep.subr.mxu0 0.0
      %1031 = vmatpush1.msra.mxu0 0.0
      %1032 = vmatprep.subr.mxu0 0.0
      %1033 = vmatpush1.msra.mxu0 0.0
      %1034 = vmatprep.subr.mxu0 0.0
      %1035 = vmatpush1.msra.mxu0 0.0
      %1036 = vmatprep.subr.mxu0 0.0
      %1037 = vmatpush1.msra.mxu0 0.0
      %1038 = vmatprep.subr.mxu0 0.0
      %1039 = vmatpush1.msra.mxu0 0.0
      %1040 = vmatprep.subr.mxu0 0.0
      %1041 = vmatpush1.msra.mxu0 0.0
      %1042 = vmatprep.subr.mxu0 0.0
      %1043 = vmatpush1.msra.mxu0 0.0
      %1044 = vmatprep.subr.mxu0 0.0
      %1045 = vmatpush1.msra.mxu0 0.0
      %1046 = vmatprep.subr.mxu0 0.0
      %1047 = vmatpush1.msra.mxu0 0.0
      %1048 = vmatprep.subr.mxu0 0.0
      %1049 = vmatpush1.msra.mxu0 0.0
      %1050 = vmatprep.subr.mxu0 0.0
      %1051 = vmatpush1.msra.mxu0 0.0
      %1052 = vmatprep.subr.mxu0 0.0
      %1053 = vmatpush1.msra.mxu0 0.0
      %1054 = vmatprep.subr.mxu0 0.0
      %1055 = vmatpush1.msra.mxu0 0.0
      %1056 = vmatprep.subr.mxu0 0.0
      %1057 = vmatpush1.msra.mxu0 0.0
      %1058 = vmatprep.subr.mxu0 0.0
      %1059 = vmatpush1.msra.mxu0 0.0
      %1060 = vmatprep.subr.mxu0 0.0
      %1061 = vmatpush1.msra.mxu0 0.0
      %1062 = vmatprep.subr.mxu0 0.0
      %1063 = vmatpush1.msra.mxu0 0.0
      %1064 = vmatprep.subr.mxu0 0.0
      %1065 = vmatpush1.msra.mxu0 0.0
      %1066 = vmatprep.subr.mxu0 0.0
      %1067 = vmatpush1.msra.mxu0 0.0
      %1068 = vmatprep.subr.mxu0 0.0
      %1069 = vmatpush1.msra.mxu0 0.0
      %1070 = vmatprep.subr.mxu0 0.0
      %1071 = vmatpush1.msra.mxu0 0.0
      %1072 = vmatprep.subr.mxu0 0.0
      %1073 = vmatpush1.msra.mxu0 0.0
      %1074 = vmatprep.subr.mxu0 0.0
      %1075 = vmatpush1.msra.mxu0 0.0
      %1076 = vmatprep.subr.mxu0 0.0
      %1077 = vmatpush1.msra.mxu0 0.0
      %1078 = vmatprep.subr.mxu0 0.0
      %1079 = vmatpush1.msra.mxu0 0.0
      %1080 = vmatprep.subr.mxu0 0.0
      %1081 = vmatpush1.msra.mxu0 0.0
      %1082 = vmatprep.subr.mxu0 0.0
      %1083 = vmatpush1.msra.mxu0 0.0
      %1084 = vmatprep.subr.mxu0 0.0
      %1085 = vmatpush1.msra.mxu0 0.0
      %1086 = vmatprep.subr.mxu0 0.0
      %1087 = vmatpush1.msra.mxu0 0.0
      %1088 = vmatprep.subr.mxu0 0.0
      %1089 = vmatpush1.msra.mxu0 0.0
      %1090 = vmatprep.subr.mxu0 0.0
      %1091 = vmatpush1.msra.mxu0 0.0
      %1092 = vmatprep.mubr.f32.mxu0 0.0
      %1093 = vmatmul.mubr.f32.gmra.mrb[0].mxu0 %v1020
      %v1094 = vpop.f32.mrb[0].mxu0
      %v1095 = vadd.f32 0.0, %v1094
      %v1096 = vpop.f32.mrb[0].mxu0
      %1097 = vmatprep.mubr.f32.mxu0 0.0
      %1098 = vmatmul.mubr.f32.gmra.mrb[0].mxu0 %v1022
      %v1099 = vpop.f32.mrb[0].mxu0
      %v1100 = vadd.f32 0.0, %v1099
      %v1101 = vpop.f32.mrb[0].mxu0
      %1102 = vmatprep.mubr.f32.mxu0 0.0
      %1103 = vmatmul.mubr.f32.gmra.mrb[0].mxu0 %v1024
      %v1104 = vpop.f32.mrb[0].mxu0
      %v1105 = vadd.f32 0.0, %v1104
      %v1106 = vpop.f32.mrb[0].mxu0
      %1107 = vmatprep.mubr.f32.mxu0 0.0
      %1108 = vmatmul.mubr.f32.gmra.mrb[0].mxu0 %v1026
      %v1109 = vpop.f32.mrb[0].mxu0
      %v1110 = vadd.f32 0.0, %v1109
      %v1111 = vpop.f32.mrb[0].mxu0
      %1112 = vdwg.mxu0
      %1117 = vrot.lane.b32.xlu0 %v1095, 32
      %v1118 = vpop.permute.xlu0 %1117
      %1119 = vrot.lane.b32.xlu0 %v1100, 32
      %v1120 = vpop.permute.xlu0 %1119
      %1121 = vrot.lane.b32.xlu0 %v1105, 32
      %v1122 = vpop.permute.xlu0 %1121
      %1123 = vrot.lane.b32.xlu0 %v1110, 32
      %v1124 = vpop.permute.xlu0 %1123
      %v1129 = vadd.f32 %v1016, %v1118
      %v1130 = vadd.f32 %v1017, %v1120
      %v1131 = vadd.f32 %v1018, %v1122
      %v1132 = vadd.f32 %v1019, %v1124
      %v1133 = vxor.u32 %v1129, 2147483648
      %v1134 = vxor.u32 %v1130, 2147483648
      %v1135 = vxor.u32 %v1131, 2147483648
      %v1136 = vxor.u32 %v1132, 2147483648
      %v1137 = vmul.f32 %v1133, 1.442695
      %v1138 = vpow.pop %v1137
      %v1139 = vmul.f32 %v1134, 1.442695
      %v1140 = vpow.pop %v1139
      %v1141 = vmul.f32 %v1135, 1.442695
      %v1142 = vpow.pop %v1141
      %v1143 = vmul.f32 %v1136, 1.442695
      %v1144 = vpow.pop %v1143
      %v1145 = vadd.f32 %v1138, 1.0
      %v1146 = vadd.f32 %v1140, 1.0
      %v1147 = vadd.f32 %v1142, 1.0
      %v1148 = vadd.f32 %v1144, 1.0
      %v1149 = vrcp.pop %v1145
      %v1150 = vmul.f32 1.0, %v1149
      %v1151 = vrcp.pop %v1146
      %v1152 = vmul.f32 1.0, %v1151
      %v1153 = vrcp.pop %v1147
      %v1154 = vmul.f32 1.0, %v1153
      %v1155 = vrcp.pop %v1148
      %v1156 = vmul.f32 1.0, %v1155
      %v1157 = vtanh.pop %v1129
      %v1158 = vtanh.pop %v1130
      %v1159 = vtanh.pop %v1131
      %v1160 = vtanh.pop %v1132
      %v1161 = vmul.f32 %v1150, %v735
      %v1162 = vmul.f32 %v1152, %v736
      %v1163 = vmul.f32 %v1154, %v737
      %v1164 = vmul.f32 %v1156, %v738
      %1169 = vrot.lane.b32.xlu0 %v1157, 104
      %v1170 = vpop.permute.xlu0 %1169
      %1171 = vrot.lane.b32.xlu0 %v1158, 104
      %v1172 = vpop.permute.xlu0 %1171
      %1173 = vrot.lane.b32.xlu0 %v1159, 104
      %v1174 = vpop.permute.xlu0 %1173
      %1175 = vrot.lane.b32.xlu0 %v1160, 104
      %v1176 = vpop.permute.xlu0 %1175
      %v1181 = vmul.f32 %v1150, %v1170
      %v1182 = vmul.f32 %v1152, %v1172
      %v1183 = vmul.f32 %v1154, %v1174
      %v1184 = vmul.f32 %v1156, %v1176
      %1189 = vrot.lane.b32.xlu0 %v1181, 8
      %v1190 = vpop.permute.xlu0 %1189
      %1191 = vrot.lane.b32.xlu0 %v1182, 8
      %v1192 = vpop.permute.xlu0 %1191
      %1193 = vrot.lane.b32.xlu0 %v1183, 8
      %v1194 = vpop.permute.xlu0 %1193
      %1195 = vrot.lane.b32.xlu0 %v1184, 8
      %v1196 = vpop.permute.xlu0 %1195
      %v1201 = vadd.f32 %v1161, %v1190
      %v1202 = vadd.f32 %v1162, %v1192
      %v1203 = vadd.f32 %v1163, %v1194
      %v1204 = vadd.f32 %v1164, %v1196
      %v1205 = vtanh.pop %v1201
      %v1206 = vtanh.pop %v1202
      %v1207 = vtanh.pop %v1203
      %v1208 = vtanh.pop %v1204
      %1213 = vrot.lane.b32.xlu0 %v1205, 8
      %v1214 = vpop.permute.xlu0 %1213
      %1215 = vrot.lane.b32.xlu0 %v1206, 8
      %v1216 = vpop.permute.xlu0 %1215
      %1217 = vrot.lane.b32.xlu0 %v1207, 8
      %v1218 = vpop.permute.xlu0 %1217
      %1219 = vrot.lane.b32.xlu0 %v1208, 8
      %v1220 = vpop.permute.xlu0 %1219
      %v1225 = vmul.f32 %v1150, %v1214
      %v1226 = vmul.f32 %v1152, %v1216
      %v1227 = vmul.f32 %v1154, %v1218
      %v1228 = vmul.f32 %v1156, %v1220
      %1233 = vrot.lane.b32.xlu0 %v1225, 88
      %v1234 = vpop.permute.xlu0 %1233
      %1235 = vrot.lane.b32.xlu0 %v1226, 88
      %v1236 = vpop.permute.xlu0 %1235
      %1237 = vrot.lane.b32.xlu0 %v1227, 88
      %v1238 = vpop.permute.xlu0 %1237
      %1239 = vrot.lane.b32.xlu0 %v1228, 88
      %v1240 = vpop.permute.xlu0 %1239
      %vm1245 = vcmask 130112
      %1246 = vst.msk [vmem:[#allocation2] sm:$0xff] %vm1245, %v1234
      %1247 = vst.msk [vmem:[#allocation2 + $0x8] sm:$0xff] %vm1245, %v1236
      %1248 = vst.msk [vmem:[#allocation2 + $0x10] sm:$0xff] %vm1245, %v1238
      %1249 = vst.msk [vmem:[#allocation2 + $0x18] sm:$0xff] %vm1245, %v1240
      %1250 = vset.pattern.permute.xlu0 1
      %1251 = vperm.xlu0 %1250, %v418
      %v1252 = vpop.permute.xlu0 %1251
      %1254 = vset.pattern.permute.xlu0 1
      %1255 = vperm.xlu0 %1254, %v419
      %v1256 = vpop.permute.xlu0 %1255
      %1258 = vset.pattern.permute.xlu0 1
      %1259 = vperm.xlu0 %1258, %v420
      %v1260 = vpop.permute.xlu0 %1259
      %1262 = vset.pattern.permute.xlu0 1
      %1263 = vperm.xlu0 %1262, %v421
      %v1264 = vpop.permute.xlu0 %1263
      %v1266 = vmul.f32 %v1252, %v135
      %v1267 = vmul.f32 %v1256, %v135
      %v1268 = vmul.f32 %v1260, %v135
      %v1269 = vmul.f32 %v1264, %v135
      %v1270 = vadd.f32 %v1266, %v142
      %v1271 = vadd.f32 %v1267, %v142
      %v1272 = vadd.f32 %v1268, %v142
      %v1273 = vadd.f32 %v1269, %v142
      %v1274 = vadd.f32 %v1270, %v998
      %v1275 = vadd.f32 %v1271, %v1003
      %v1276 = vadd.f32 %v1272, %v1008
      %v1277 = vadd.f32 %v1273, %v1013
      %v1278 = vxor.u32 %v1274, 2147483648
      %v1279 = vxor.u32 %v1275, 2147483648
      %v1280 = vxor.u32 %v1276, 2147483648
      %v1281 = vxor.u32 %v1277, 2147483648
      %v1282 = vmul.f32 %v1278, 1.442695
      %v1283 = vpow.pop %v1282
      %v1284 = vmul.f32 %v1279, 1.442695
      %v1285 = vpow.pop %v1284
      %v1286 = vmul.f32 %v1280, 1.442695
      %v1287 = vpow.pop %v1286
      %v1288 = vmul.f32 %v1281, 1.442695
      %v1289 = vpow.pop %v1288
      %v1290 = vadd.f32 %v1283, 1.0
      %v1291 = vadd.f32 %v1285, 1.0
      %v1292 = vadd.f32 %v1287, 1.0
      %v1293 = vadd.f32 %v1289, 1.0
      %v1294 = vrcp.pop %v1290
      %v1295 = vmul.f32 1.0, %v1294
      %v1296 = vrcp.pop %v1291
      %v1297 = vmul.f32 1.0, %v1296
      %v1298 = vrcp.pop %v1292
      %v1299 = vmul.f32 1.0, %v1298
      %v1300 = vrcp.pop %v1293
      %v1301 = vmul.f32 1.0, %v1300
      %v1302 = vtanh.pop %v1274
      %v1303 = vtanh.pop %v1275
      %v1304 = vtanh.pop %v1276
      %v1305 = vtanh.pop %v1277
      %v1306 = vmul.f32 %v1295, %v883
      %v1307 = vmul.f32 %v1297, %v884
      %v1308 = vmul.f32 %v1299, %v885
      %v1309 = vmul.f32 %v1301, %v886
      %1314 = vrot.lane.b32.xlu0 %v1302, 104
      %v1315 = vpop.permute.xlu0 %1314
      %1316 = vrot.lane.b32.xlu0 %v1303, 104
      %v1317 = vpop.permute.xlu0 %1316
      %1318 = vrot.lane.b32.xlu0 %v1304, 104
      %v1319 = vpop.permute.xlu0 %1318
      %1320 = vrot.lane.b32.xlu0 %v1305, 104
      %v1321 = vpop.permute.xlu0 %1320
      %v1326 = vmul.f32 %v1295, %v1315
      %v1327 = vmul.f32 %v1297, %v1317
      %v1328 = vmul.f32 %v1299, %v1319
      %v1329 = vmul.f32 %v1301, %v1321
      %1334 = vrot.lane.b32.xlu0 %v1326, 8
      %v1335 = vpop.permute.xlu0 %1334
      %1336 = vrot.lane.b32.xlu0 %v1327, 8
      %v1337 = vpop.permute.xlu0 %1336
      %1338 = vrot.lane.b32.xlu0 %v1328, 8
      %v1339 = vpop.permute.xlu0 %1338
      %1340 = vrot.lane.b32.xlu0 %v1329, 8
      %v1341 = vpop.permute.xlu0 %1340
      %v1346 = vadd.f32 %v1306, %v1335
      %v1347 = vadd.f32 %v1307, %v1337
      %v1348 = vadd.f32 %v1308, %v1339
      %v1349 = vadd.f32 %v1309, %v1341
      %v1350 = vtanh.pop %v1346
      %v1351 = vtanh.pop %v1347
      %v1352 = vtanh.pop %v1348
      %v1353 = vtanh.pop %v1349
      %1358 = vrot.lane.b32.xlu0 %v1350, 8
      %v1359 = vpop.permute.xlu0 %1358
      %1360 = vrot.lane.b32.xlu0 %v1351, 8
      %v1361 = vpop.permute.xlu0 %1360
      %1362 = vrot.lane.b32.xlu0 %v1352, 8
      %v1363 = vpop.permute.xlu0 %1362
      %1364 = vrot.lane.b32.xlu0 %v1353, 8
      %v1365 = vpop.permute.xlu0 %1364
      %v1370 = vmul.f32 %v1295, %v1359
      %v1371 = vmul.f32 %v1297, %v1361
      %v1372 = vmul.f32 %v1299, %v1363
      %v1373 = vmul.f32 %v1301, %v1365
      %1378 = vrot.lane.b32.xlu0 %v1370, 112
      %v1379 = vpop.permute.xlu0 %1378
      %1380 = vrot.lane.b32.xlu0 %v1371, 112
      %v1381 = vpop.permute.xlu0 %1380
      %1382 = vrot.lane.b32.xlu0 %v1372, 112
      %v1383 = vpop.permute.xlu0 %1382
      %1384 = vrot.lane.b32.xlu0 %v1373, 112
      %v1385 = vpop.permute.xlu0 %1384
      %v1386 = vsel %vm166, %v1379, 0
      %v1388 = vsel %vm166, %v1381, 0
      %v1390 = vsel %vm166, %v1383, 0
      %v1392 = vsel %vm166, %v1385, 0
      %1394 = vmatprep.subr.mxu0 0.0
      %1395 = vmatpush1.msra.mxu0 %v128
      %1396 = vmatprep.subr.mxu0 0.0
      %1397 = vmatpush1.msra.mxu0 0.0
      %1398 = vmatprep.subr.mxu0 0.0
      %1399 = vmatpush1.msra.mxu0 0.0
      %1400 = vmatprep.subr.mxu0 0.0
      %1401 = vmatpush1.msra.mxu0 0.0
      %1402 = vmatprep.subr.mxu0 0.0
      %1403 = vmatpush1.msra.mxu0 0.0
      %1404 = vmatprep.subr.mxu0 0.0
      %1405 = vmatpush1.msra.mxu0 0.0
      %1406 = vmatprep.subr.mxu0 0.0
      %1407 = vmatpush1.msra.mxu0 0.0
      %1408 = vmatprep.subr.mxu0 0.0
      %1409 = vmatpush1.msra.mxu0 0.0
      %1410 = vmatprep.subr.mxu0 0.0
      %1411 = vmatpush1.msra.mxu0 0.0
      %1412 = vmatprep.subr.mxu0 0.0
      %1413 = vmatpush1.msra.mxu0 0.0
      %1414 = vmatprep.subr.mxu0 0.0
      %1415 = vmatpush1.msra.mxu0 0.0
      %1416 = vmatprep.subr.mxu0 0.0
      %1417 = vmatpush1.msra.mxu0 0.0
      %1418 = vmatprep.subr.mxu0 0.0
      %1419 = vmatpush1.msra.mxu0 0.0
      %1420 = vmatprep.subr.mxu0 0.0
      %1421 = vmatpush1.msra.mxu0 0.0
      %1422 = vmatprep.subr.mxu0 0.0
      %1423 = vmatpush1.msra.mxu0 0.0
      %1424 = vmatprep.subr.mxu0 0.0
      %1425 = vmatpush1.msra.mxu0 0.0
      %1426 = vmatprep.subr.mxu0 0.0
      %1427 = vmatpush1.msra.mxu0 0.0
      %1428 = vmatprep.subr.mxu0 0.0
      %1429 = vmatpush1.msra.mxu0 0.0
      %1430 = vmatprep.subr.mxu0 0.0
      %1431 = vmatpush1.msra.mxu0 0.0
      %1432 = vmatprep.subr.mxu0 0.0
      %1433 = vmatpush1.msra.mxu0 0.0
      %1434 = vmatprep.subr.mxu0 0.0
      %1435 = vmatpush1.msra.mxu0 0.0
      %1436 = vmatprep.subr.mxu0 0.0
      %1437 = vmatpush1.msra.mxu0 0.0
      %1438 = vmatprep.subr.mxu0 0.0
      %1439 = vmatpush1.msra.mxu0 0.0
      %1440 = vmatprep.subr.mxu0 0.0
      %1441 = vmatpush1.msra.mxu0 0.0
      %1442 = vmatprep.subr.mxu0 0.0
      %1443 = vmatpush1.msra.mxu0 0.0
      %1444 = vmatprep.subr.mxu0 0.0
      %1445 = vmatpush1.msra.mxu0 0.0
      %1446 = vmatprep.subr.mxu0 0.0
      %1447 = vmatpush1.msra.mxu0 0.0
      %1448 = vmatprep.subr.mxu0 0.0
      %1449 = vmatpush1.msra.mxu0 0.0
      %1450 = vmatprep.subr.mxu0 0.0
      %1451 = vmatpush1.msra.mxu0 0.0
      %1452 = vmatprep.subr.mxu0 0.0
      %1453 = vmatpush1.msra.mxu0 0.0
      %1454 = vmatprep.subr.mxu0 0.0
      %1455 = vmatpush1.msra.mxu0 0.0
      %1456 = vmatprep.subr.mxu0 0.0
      %1457 = vmatpush1.msra.mxu0 0.0
      %1458 = vmatprep.mubr.f32.mxu0 0.0
      %1459 = vmatmul.mubr.f32.gmra.mrb[0].mxu0 %v1386
      %v1460 = vpop.f32.mrb[0].mxu0
      %v1461 = vadd.f32 0.0, %v1460
      %v1462 = vpop.f32.mrb[0].mxu0
      %1463 = vmatprep.mubr.f32.mxu0 0.0
      %1464 = vmatmul.mubr.f32.gmra.mrb[0].mxu0 %v1388
      %v1465 = vpop.f32.mrb[0].mxu0
      %v1466 = vadd.f32 0.0, %v1465
      %v1467 = vpop.f32.mrb[0].mxu0
      %1468 = vmatprep.mubr.f32.mxu0 0.0
      %1469 = vmatmul.mubr.f32.gmra.mrb[0].mxu0 %v1390
      %v1470 = vpop.f32.mrb[0].mxu0
      %v1471 = vadd.f32 0.0, %v1470
      %v1472 = vpop.f32.mrb[0].mxu0
      %1473 = vmatprep.mubr.f32.mxu0 0.0
      %1474 = vmatmul.mubr.f32.gmra.mrb[0].mxu0 %v1392
      %v1475 = vpop.f32.mrb[0].mxu0
      %v1476 = vadd.f32 0.0, %v1475
      %v1477 = vpop.f32.mrb[0].mxu0
      %1478 = vdwg.mxu0
      %v1479 = vadd.f32 %v1461, %v528
      %v1480 = vadd.f32 %v1466, %v528
      %v1481 = vadd.f32 %v1471, %v528
      %v1482 = vadd.f32 %v1476, %v528
      %1483 = vrot.lane.b32.xlu0 %v1225, 80
      %v1484 = vpop.permute.xlu0 %1483
      %1485 = vrot.lane.b32.xlu0 %v1226, 80
      %v1486 = vpop.permute.xlu0 %1485
      %1487 = vrot.lane.b32.xlu0 %v1227, 80
      %v1488 = vpop.permute.xlu0 %1487
      %1489 = vrot.lane.b32.xlu0 %v1228, 80
      %v1490 = vpop.permute.xlu0 %1489
      %v1491 = vsel %vm166, %v1484, 0
      %v1493 = vsel %vm166, %v1486, 0
      %v1495 = vsel %vm166, %v1488, 0
      %v1497 = vsel %vm166, %v1490, 0
      %1499 = vmatprep.subr.mxu0 0.0
      %1500 = vmatpush1.msra.mxu0 %v129
      %1501 = vmatprep.subr.mxu0 0.0
      %1502 = vmatpush1.msra.mxu0 0.0
      %1503 = vmatprep.subr.mxu0 0.0
      %1504 = vmatpush1.msra.mxu0 0.0
      %1505 = vmatprep.subr.mxu0 0.0
      %1506 = vmatpush1.msra.mxu0 0.0
      %1507 = vmatprep.subr.mxu0 0.0
      %1508 = vmatpush1.msra.mxu0 0.0
      %1509 = vmatprep.subr.mxu0 0.0
      %1510 = vmatpush1.msra.mxu0 0.0
      %1511 = vmatprep.subr.mxu0 0.0
      %1512 = vmatpush1.msra.mxu0 0.0
      %1513 = vmatprep.subr.mxu0 0.0
      %1514 = vmatpush1.msra.mxu0 0.0
      %1515 = vmatprep.subr.mxu0 0.0
      %1516 = vmatpush1.msra.mxu0 0.0
      %1517 = vmatprep.subr.mxu0 0.0
      %1518 = vmatpush1.msra.mxu0 0.0
      %1519 = vmatprep.subr.mxu0 0.0
      %1520 = vmatpush1.msra.mxu0 0.0
      %1521 = vmatprep.subr.mxu0 0.0
      %1522 = vmatpush1.msra.mxu0 0.0
      %1523 = vmatprep.subr.mxu0 0.0
      %1524 = vmatpush1.msra.mxu0 0.0
      %1525 = vmatprep.subr.mxu0 0.0
      %1526 = vmatpush1.msra.mxu0 0.0
      %1527 = vmatprep.subr.mxu0 0.0
      %1528 = vmatpush1.msra.mxu0 0.0
      %1529 = vmatprep.subr.mxu0 0.0
      %1530 = vmatpush1.msra.mxu0 0.0
      %1531 = vmatprep.subr.mxu0 0.0
      %1532 = vmatpush1.msra.mxu0 0.0
      %1533 = vmatprep.subr.mxu0 0.0
      %1534 = vmatpush1.msra.mxu0 0.0
      %1535 = vmatprep.subr.mxu0 0.0
      %1536 = vmatpush1.msra.mxu0 0.0
      %1537 = vmatprep.subr.mxu0 0.0
      %1538 = vmatpush1.msra.mxu0 0.0
      %1539 = vmatprep.subr.mxu0 0.0
      %1540 = vmatpush1.msra.mxu0 0.0
      %1541 = vmatprep.subr.mxu0 0.0
      %1542 = vmatpush1.msra.mxu0 0.0
      %1543 = vmatprep.subr.mxu0 0.0
      %1544 = vmatpush1.msra.mxu0 0.0
      %1545 = vmatprep.subr.mxu0 0.0
      %1546 = vmatpush1.msra.mxu0 0.0
      %1547 = vmatprep.subr.mxu0 0.0
      %1548 = vmatpush1.msra.mxu0 0.0
      %1549 = vmatprep.subr.mxu0 0.0
      %1550 = vmatpush1.msra.mxu0 0.0
      %1551 = vmatprep.subr.mxu0 0.0
      %1552 = vmatpush1.msra.mxu0 0.0
      %1553 = vmatprep.subr.mxu0 0.0
      %1554 = vmatpush1.msra.mxu0 0.0
      %1555 = vmatprep.subr.mxu0 0.0
      %1556 = vmatpush1.msra.mxu0 0.0
      %1557 = vmatprep.subr.mxu0 0.0
      %1558 = vmatpush1.msra.mxu0 0.0
      %1559 = vmatprep.subr.mxu0 0.0
      %1560 = vmatpush1.msra.mxu0 0.0
      %1561 = vmatprep.subr.mxu0 0.0
      %1562 = vmatpush1.msra.mxu0 0.0
      %1563 = vmatprep.mubr.f32.mxu0 0.0
      %1564 = vmatmul.mubr.f32.gmra.mrb[0].mxu0 %v1491
      %v1565 = vpop.f32.mrb[0].mxu0
      %v1566 = vadd.f32 0.0, %v1565
      %v1567 = vpop.f32.mrb[0].mxu0
      %1568 = vmatprep.mubr.f32.mxu0 0.0
      %1569 = vmatmul.mubr.f32.gmra.mrb[0].mxu0 %v1493
      %v1570 = vpop.f32.mrb[0].mxu0
      %v1571 = vadd.f32 0.0, %v1570
      %v1572 = vpop.f32.mrb[0].mxu0
      %1573 = vmatprep.mubr.f32.mxu0 0.0
      %1574 = vmatmul.mubr.f32.gmra.mrb[0].mxu0 %v1495
      %v1575 = vpop.f32.mrb[0].mxu0
      %v1576 = vadd.f32 0.0, %v1575
      %v1577 = vpop.f32.mrb[0].mxu0
      %1578 = vmatprep.mubr.f32.mxu0 0.0
      %1579 = vmatmul.mubr.f32.gmra.mrb[0].mxu0 %v1497
      %v1580 = vpop.f32.mrb[0].mxu0
      %v1581 = vadd.f32 0.0, %v1580
      %v1582 = vpop.f32.mrb[0].mxu0
      %1583 = vdwg.mxu0
      %1588 = vrot.lane.b32.xlu0 %v1566, 32
      %v1589 = vpop.permute.xlu0 %1588
      %1590 = vrot.lane.b32.xlu0 %v1571, 32
      %v1591 = vpop.permute.xlu0 %1590
      %1592 = vrot.lane.b32.xlu0 %v1576, 32
      %v1593 = vpop.permute.xlu0 %1592
      %1594 = vrot.lane.b32.xlu0 %v1581, 32
      %v1595 = vpop.permute.xlu0 %1594
      %v1600 = vadd.f32 %v1479, %v1589
      %v1601 = vadd.f32 %v1480, %v1591
      %v1602 = vadd.f32 %v1481, %v1593
      %v1603 = vadd.f32 %v1482, %v1595
      %v1604 = vxor.u32 %v1600, 2147483648
      %v1605 = vxor.u32 %v1601, 2147483648
      %v1606 = vxor.u32 %v1602, 2147483648
      %v1607 = vxor.u32 %v1603, 2147483648
      %v1608 = vmul.f32 %v1604, 1.442695
      %v1609 = vpow.pop %v1608
      %v1610 = vmul.f32 %v1605, 1.442695
      %v1611 = vpow.pop %v1610
      %v1612 = vmul.f32 %v1606, 1.442695
      %v1613 = vpow.pop %v1612
      %v1614 = vmul.f32 %v1607, 1.442695
      %v1615 = vpow.pop %v1614
      %v1616 = vadd.f32 %v1609, 1.0
      %v1617 = vadd.f32 %v1611, 1.0
      %v1618 = vadd.f32 %v1613, 1.0
      %v1619 = vadd.f32 %v1615, 1.0
      %v1620 = vrcp.pop %v1616
      %v1621 = vmul.f32 1.0, %v1620
      %v1622 = vrcp.pop %v1617
      %v1623 = vmul.f32 1.0, %v1622
      %v1624 = vrcp.pop %v1618
      %v1625 = vmul.f32 1.0, %v1624
      %v1626 = vrcp.pop %v1619
      %v1627 = vmul.f32 1.0, %v1626
      %v1628 = vtanh.pop %v1600
      %v1629 = vtanh.pop %v1601
      %v1630 = vtanh.pop %v1602
      %v1631 = vtanh.pop %v1603
      %v1632 = vmul.f32 %v1621, %v1201
      %v1633 = vmul.f32 %v1623, %v1202
      %v1634 = vmul.f32 %v1625, %v1203
      %v1635 = vmul.f32 %v1627, %v1204
      %1640 = vrot.lane.b32.xlu0 %v1628, 104
      %v1641 = vpop.permute.xlu0 %1640
      %1642 = vrot.lane.b32.xlu0 %v1629, 104
      %v1643 = vpop.permute.xlu0 %1642
      %1644 = vrot.lane.b32.xlu0 %v1630, 104
      %v1645 = vpop.permute.xlu0 %1644
      %1646 = vrot.lane.b32.xlu0 %v1631, 104
      %v1647 = vpop.permute.xlu0 %1646
      %v1652 = vmul.f32 %v1621, %v1641
      %v1653 = vmul.f32 %v1623, %v1643
      %v1654 = vmul.f32 %v1625, %v1645
      %v1655 = vmul.f32 %v1627, %v1647
      %1660 = vrot.lane.b32.xlu0 %v1652, 8
      %v1661 = vpop.permute.xlu0 %1660
      %1662 = vrot.lane.b32.xlu0 %v1653, 8
      %v1663 = vpop.permute.xlu0 %1662
      %1664 = vrot.lane.b32.xlu0 %v1654, 8
      %v1665 = vpop.permute.xlu0 %1664
      %1666 = vrot.lane.b32.xlu0 %v1655, 8
      %v1667 = vpop.permute.xlu0 %1666
      %v1672 = vadd.f32 %v1632, %v1661
      %v1673 = vadd.f32 %v1633, %v1663
      %v1674 = vadd.f32 %v1634, %v1665
      %v1675 = vadd.f32 %v1635, %v1667
      %v1676 = vtanh.pop %v1672
      %v1677 = vtanh.pop %v1673
      %v1678 = vtanh.pop %v1674
      %v1679 = vtanh.pop %v1675
      %1684 = vrot.lane.b32.xlu0 %v1676, 8
      %v1685 = vpop.permute.xlu0 %1684
      %1686 = vrot.lane.b32.xlu0 %v1677, 8
      %v1687 = vpop.permute.xlu0 %1686
      %1688 = vrot.lane.b32.xlu0 %v1678, 8
      %v1689 = vpop.permute.xlu0 %1688
      %1690 = vrot.lane.b32.xlu0 %v1679, 8
      %v1691 = vpop.permute.xlu0 %1690
      %v1696 = vmul.f32 %v1621, %v1685
      %v1697 = vmul.f32 %v1623, %v1687
      %v1698 = vmul.f32 %v1625, %v1689
      %v1699 = vmul.f32 %v1627, %v1691
      %1704 = vrot.lane.b32.xlu0 %v1696, 96
      %v1705 = vpop.permute.xlu0 %1704
      %1706 = vrot.lane.b32.xlu0 %v1697, 96
      %v1707 = vpop.permute.xlu0 %1706
      %1708 = vrot.lane.b32.xlu0 %v1698, 96
      %v1709 = vpop.permute.xlu0 %1708
      %1710 = vrot.lane.b32.xlu0 %v1699, 96
      %v1711 = vpop.permute.xlu0 %1710
      %vm1716 = vcmask 195712
      %1717 = vst.msk [vmem:[#allocation2] sm:$0xff] %vm1716, %v1705
      %1718 = vst.msk [vmem:[#allocation2 + $0x8] sm:$0xff] %vm1716, %v1707
      %1719 = vst.msk [vmem:[#allocation2 + $0x10] sm:$0xff] %vm1716, %v1709
      %1720 = vst.msk [vmem:[#allocation2 + $0x18] sm:$0xff] %vm1716, %v1711
      %1721 = vset.pattern.permute.xlu0 2
      %1722 = vperm.xlu0 %1721, %v418
      %v1723 = vpop.permute.xlu0 %1722
      %1725 = vset.pattern.permute.xlu0 2
      %1726 = vperm.xlu0 %1725, %v419
      %v1727 = vpop.permute.xlu0 %1726
      %1729 = vset.pattern.permute.xlu0 2
      %1730 = vperm.xlu0 %1729, %v420
      %v1731 = vpop.permute.xlu0 %1730
      %1733 = vset.pattern.permute.xlu0 2
      %1734 = vperm.xlu0 %1733, %v421
      %v1735 = vpop.permute.xlu0 %1734
      %v1737 = vmul.f32 %v1723, %v135
      %v1738 = vmul.f32 %v1727, %v135
      %v1739 = vmul.f32 %v1731, %v135
      %v1740 = vmul.f32 %v1735, %v135
      %v1741 = vadd.f32 %v1737, %v142
      %v1742 = vadd.f32 %v1738, %v142
      %v1743 = vadd.f32 %v1739, %v142
      %v1744 = vadd.f32 %v1740, %v142
      %v1745 = vadd.f32 %v1741, %v1461
      %v1746 = vadd.f32 %v1742, %v1466
      %v1747 = vadd.f32 %v1743, %v1471
      %v1748 = vadd.f32 %v1744, %v1476
      %v1749 = vxor.u32 %v1745, 2147483648
      %v1750 = vxor.u32 %v1746, 2147483648
      %v1751 = vxor.u32 %v1747, 2147483648
      %v1752 = vxor.u32 %v1748, 2147483648
      %v1753 = vmul.f32 %v1749, 1.442695
      %v1754 = vpow.pop %v1753
      %v1755 = vmul.f32 %v1750, 1.442695
      %v1756 = vpow.pop %v1755
      %v1757 = vmul.f32 %v1751, 1.442695
      %v1758 = vpow.pop %v1757
      %v1759 = vmul.f32 %v1752, 1.442695
      %v1760 = vpow.pop %v1759
      %v1761 = vadd.f32 %v1754, 1.0
      %v1762 = vadd.f32 %v1756, 1.0
      %v1763 = vadd.f32 %v1758, 1.0
      %v1764 = vadd.f32 %v1760, 1.0
      %v1765 = vrcp.pop %v1761
      %v1766 = vmul.f32 1.0, %v1765
      %v1767 = vrcp.pop %v1762
      %v1768 = vmul.f32 1.0, %v1767
      %v1769 = vrcp.pop %v1763
      %v1770 = vmul.f32 1.0, %v1769
      %v1771 = vrcp.pop %v1764
      %v1772 = vmul.f32 1.0, %v1771
      %v1773 = vtanh.pop %v1745
      %v1774 = vtanh.pop %v1746
      %v1775 = vtanh.pop %v1747
      %v1776 = vtanh.pop %v1748
      %v1777 = vmul.f32 %v1766, %v1346
      %v1778 = vmul.f32 %v1768, %v1347
      %v1779 = vmul.f32 %v1770, %v1348
      %v1780 = vmul.f32 %v1772, %v1349
      %1785 = vrot.lane.b32.xlu0 %v1773, 104
      %v1786 = vpop.permute.xlu0 %1785
      %1787 = vrot.lane.b32.xlu0 %v1774, 104
      %v1788 = vpop.permute.xlu0 %1787
      %1789 = vrot.lane.b32.xlu0 %v1775, 104
      %v1790 = vpop.permute.xlu0 %1789
      %1791 = vrot.lane.b32.xlu0 %v1776, 104
      %v1792 = vpop.permute.xlu0 %1791
      %v1797 = vmul.f32 %v1766, %v1786
      %v1798 = vmul.f32 %v1768, %v1788
      %v1799 = vmul.f32 %v1770, %v1790
      %v1800 = vmul.f32 %v1772, %v1792
      %1805 = vrot.lane.b32.xlu0 %v1797, 8
      %v1806 = vpop.permute.xlu0 %1805
      %1807 = vrot.lane.b32.xlu0 %v1798, 8
      %v1808 = vpop.permute.xlu0 %1807
      %1809 = vrot.lane.b32.xlu0 %v1799, 8
      %v1810 = vpop.permute.xlu0 %1809
      %1811 = vrot.lane.b32.xlu0 %v1800, 8
      %v1812 = vpop.permute.xlu0 %1811
      %v1817 = vadd.f32 %v1777, %v1806
      %v1818 = vadd.f32 %v1778, %v1808
      %v1819 = vadd.f32 %v1779, %v1810
      %v1820 = vadd.f32 %v1780, %v1812
      %v1821 = vtanh.pop %v1817
      %v1822 = vtanh.pop %v1818
      %v1823 = vtanh.pop %v1819
      %v1824 = vtanh.pop %v1820
      %1829 = vrot.lane.b32.xlu0 %v1821, 8
      %v1830 = vpop.permute.xlu0 %1829
      %1831 = vrot.lane.b32.xlu0 %v1822, 8
      %v1832 = vpop.permute.xlu0 %1831
      %1833 = vrot.lane.b32.xlu0 %v1823, 8
      %v1834 = vpop.permute.xlu0 %1833
      %1835 = vrot.lane.b32.xlu0 %v1824, 8
      %v1836 = vpop.permute.xlu0 %1835
      %v1841 = vmul.f32 %v1766, %v1830
      %v1842 = vmul.f32 %v1768, %v1832
      %v1843 = vmul.f32 %v1770, %v1834
      %v1844 = vmul.f32 %v1772, %v1836
      %1849 = vrot.lane.b32.xlu0 %v1841, 112
      %v1850 = vpop.permute.xlu0 %1849
      %1851 = vrot.lane.b32.xlu0 %v1842, 112
      %v1852 = vpop.permute.xlu0 %1851
      %1853 = vrot.lane.b32.xlu0 %v1843, 112
      %v1854 = vpop.permute.xlu0 %1853
      %1855 = vrot.lane.b32.xlu0 %v1844, 112
      %v1856 = vpop.permute.xlu0 %1855
      %v1857 = vsel %vm166, %v1850, 0
      %v1859 = vsel %vm166, %v1852, 0
      %v1861 = vsel %vm166, %v1854, 0
      %v1863 = vsel %vm166, %v1856, 0
      %1865 = vmatprep.subr.mxu0 0.0
      %1866 = vmatpush1.msra.mxu0 %v128
      %1867 = vmatprep.subr.mxu0 0.0
      %1868 = vmatpush1.msra.mxu0 0.0
      %1869 = vmatprep.subr.mxu0 0.0
      %1870 = vmatpush1.msra.mxu0 0.0
      %1871 = vmatprep.subr.mxu0 0.0
      %1872 = vmatpush1.msra.mxu0 0.0
      %1873 = vmatprep.subr.mxu0 0.0
      %1874 = vmatpush1.msra.mxu0 0.0
      %1875 = vmatprep.subr.mxu0 0.0
      %1876 = vmatpush1.msra.mxu0 0.0
      %1877 = vmatprep.subr.mxu0 0.0
      %1878 = vmatpush1.msra.mxu0 0.0
      %1879 = vmatprep.subr.mxu0 0.0
      %1880 = vmatpush1.msra.mxu0 0.0
      %1881 = vmatprep.subr.mxu0 0.0
      %1882 = vmatpush1.msra.mxu0 0.0
      %1883 = vmatprep.subr.mxu0 0.0
      %1884 = vmatpush1.msra.mxu0 0.0
      %1885 = vmatprep.subr.mxu0 0.0
      %1886 = vmatpush1.msra.mxu0 0.0
      %1887 = vmatprep.subr.mxu0 0.0
      %1888 = vmatpush1.msra.mxu0 0.0
      %1889 = vmatprep.subr.mxu0 0.0
      %1890 = vmatpush1.msra.mxu0 0.0
      %1891 = vmatprep.subr.mxu0 0.0
      %1892 = vmatpush1.msra.mxu0 0.0
      %1893 = vmatprep.subr.mxu0 0.0
      %1894 = vmatpush1.msra.mxu0 0.0
      %1895 = vmatprep.subr.mxu0 0.0
      %1896 = vmatpush1.msra.mxu0 0.0
      %1897 = vmatprep.subr.mxu0 0.0
      %1898 = vmatpush1.msra.mxu0 0.0
      %1899 = vmatprep.subr.mxu0 0.0
      %1900 = vmatpush1.msra.mxu0 0.0
      %1901 = vmatprep.subr.mxu0 0.0
      %1902 = vmatpush1.msra.mxu0 0.0
      %1903 = vmatprep.subr.mxu0 0.0
      %1904 = vmatpush1.msra.mxu0 0.0
      %1905 = vmatprep.subr.mxu0 0.0
      %1906 = vmatpush1.msra.mxu0 0.0
      %1907 = vmatprep.subr.mxu0 0.0
      %1908 = vmatpush1.msra.mxu0 0.0
      %1909 = vmatprep.subr.mxu0 0.0
      %1910 = vmatpush1.msra.mxu0 0.0
      %1911 = vmatprep.subr.mxu0 0.0
      %1912 = vmatpush1.msra.mxu0 0.0
      %1913 = vmatprep.subr.mxu0 0.0
      %1914 = vmatpush1.msra.mxu0 0.0
      %1915 = vmatprep.subr.mxu0 0.0
      %1916 = vmatpush1.msra.mxu0 0.0
      %1917 = vmatprep.subr.mxu0 0.0
      %1918 = vmatpush1.msra.mxu0 0.0
      %1919 = vmatprep.subr.mxu0 0.0
      %1920 = vmatpush1.msra.mxu0 0.0
      %1921 = vmatprep.subr.mxu0 0.0
      %1922 = vmatpush1.msra.mxu0 0.0
      %1923 = vmatprep.subr.mxu0 0.0
      %1924 = vmatpush1.msra.mxu0 0.0
      %1925 = vmatprep.subr.mxu0 0.0
      %1926 = vmatpush1.msra.mxu0 0.0
      %1927 = vmatprep.subr.mxu0 0.0
      %1928 = vmatpush1.msra.mxu0 0.0
      %1929 = vmatprep.mubr.f32.mxu0 0.0
      %1930 = vmatmul.mubr.f32.gmra.mrb[0].mxu0 %v1857
      %v1931 = vpop.f32.mrb[0].mxu0
      %v1932 = vadd.f32 0.0, %v1931
      %v1933 = vpop.f32.mrb[0].mxu0
      %1934 = vmatprep.mubr.f32.mxu0 0.0
      %1935 = vmatmul.mubr.f32.gmra.mrb[0].mxu0 %v1859
      %v1936 = vpop.f32.mrb[0].mxu0
      %v1937 = vadd.f32 0.0, %v1936
      %v1938 = vpop.f32.mrb[0].mxu0
      %1939 = vmatprep.mubr.f32.mxu0 0.0
      %1940 = vmatmul.mubr.f32.gmra.mrb[0].mxu0 %v1861
      %v1941 = vpop.f32.mrb[0].mxu0
      %v1942 = vadd.f32 0.0, %v1941
      %v1943 = vpop.f32.mrb[0].mxu0
      %1944 = vmatprep.mubr.f32.mxu0 0.0
      %1945 = vmatmul.mubr.f32.gmra.mrb[0].mxu0 %v1863
      %v1946 = vpop.f32.mrb[0].mxu0
      %v1947 = vadd.f32 0.0, %v1946
      %v1948 = vpop.f32.mrb[0].mxu0
      %1949 = vdwg.mxu0
      %v1950 = vadd.f32 %v1932, %v528
      %v1951 = vadd.f32 %v1937, %v528
      %v1952 = vadd.f32 %v1942, %v528
      %v1953 = vadd.f32 %v1947, %v528
      %1954 = vrot.lane.b32.xlu0 %v1696, 80
      %v1955 = vpop.permute.xlu0 %1954
      %1956 = vrot.lane.b32.xlu0 %v1697, 80
      %v1957 = vpop.permute.xlu0 %1956
      %1958 = vrot.lane.b32.xlu0 %v1698, 80
      %v1959 = vpop.permute.xlu0 %1958
      %1960 = vrot.lane.b32.xlu0 %v1699, 80
      %v1961 = vpop.permute.xlu0 %1960
      %v1962 = vsel %vm166, %v1955, 0
      %v1964 = vsel %vm166, %v1957, 0
      %v1966 = vsel %vm166, %v1959, 0
      %v1968 = vsel %vm166, %v1961, 0
      %1970 = vmatprep.subr.mxu0 0.0
      %1971 = vmatpush1.msra.mxu0 %v129
      %1972 = vmatprep.subr.mxu0 0.0
      %1973 = vmatpush1.msra.mxu0 0.0
      %1974 = vmatprep.subr.mxu0 0.0
      %1975 = vmatpush1.msra.mxu0 0.0
      %1976 = vmatprep.subr.mxu0 0.0
      %1977 = vmatpush1.msra.mxu0 0.0
      %1978 = vmatprep.subr.mxu0 0.0
      %1979 = vmatpush1.msra.mxu0 0.0
      %1980 = vmatprep.subr.mxu0 0.0
      %1981 = vmatpush1.msra.mxu0 0.0
      %1982 = vmatprep.subr.mxu0 0.0
      %1983 = vmatpush1.msra.mxu0 0.0
      %1984 = vmatprep.subr.mxu0 0.0
      %1985 = vmatpush1.msra.mxu0 0.0
      %1986 = vmatprep.subr.mxu0 0.0
      %1987 = vmatpush1.msra.mxu0 0.0
      %1988 = vmatprep.subr.mxu0 0.0
      %1989 = vmatpush1.msra.mxu0 0.0
      %1990 = vmatprep.subr.mxu0 0.0
      %1991 = vmatpush1.msra.mxu0 0.0
      %1992 = vmatprep.subr.mxu0 0.0
      %1993 = vmatpush1.msra.mxu0 0.0
      %1994 = vmatprep.subr.mxu0 0.0
      %1995 = vmatpush1.msra.mxu0 0.0
      %1996 = vmatprep.subr.mxu0 0.0
      %1997 = vmatpush1.msra.mxu0 0.0
      %1998 = vmatprep.subr.mxu0 0.0
      %1999 = vmatpush1.msra.mxu0 0.0
      %2000 = vmatprep.subr.mxu0 0.0
      %2001 = vmatpush1.msra.mxu0 0.0
      %2002 = vmatprep.subr.mxu0 0.0
      %2003 = vmatpush1.msra.mxu0 0.0
      %2004 = vmatprep.subr.mxu0 0.0
      %2005 = vmatpush1.msra.mxu0 0.0
      %2006 = vmatprep.subr.mxu0 0.0
      %2007 = vmatpush1.msra.mxu0 0.0
      %2008 = vmatprep.subr.mxu0 0.0
      %2009 = vmatpush1.msra.mxu0 0.0
      %2010 = vmatprep.subr.mxu0 0.0
      %2011 = vmatpush1.msra.mxu0 0.0
      %2012 = vmatprep.subr.mxu0 0.0
      %2013 = vmatpush1.msra.mxu0 0.0
      %2014 = vmatprep.subr.mxu0 0.0
      %2015 = vmatpush1.msra.mxu0 0.0
      %2016 = vmatprep.subr.mxu0 0.0
      %2017 = vmatpush1.msra.mxu0 0.0
      %2018 = vmatprep.subr.mxu0 0.0
      %2019 = vmatpush1.msra.mxu0 0.0
      %2020 = vmatprep.subr.mxu0 0.0
      %2021 = vmatpush1.msra.mxu0 0.0
      %2022 = vmatprep.subr.mxu0 0.0
      %2023 = vmatpush1.msra.mxu0 0.0
      %2024 = vmatprep.subr.mxu0 0.0
      %2025 = vmatpush1.msra.mxu0 0.0
      %2026 = vmatprep.subr.mxu0 0.0
      %2027 = vmatpush1.msra.mxu0 0.0
      %2028 = vmatprep.subr.mxu0 0.0
      %2029 = vmatpush1.msra.mxu0 0.0
      %2030 = vmatprep.subr.mxu0 0.0
      %2031 = vmatpush1.msra.mxu0 0.0
      %2032 = vmatprep.subr.mxu0 0.0
      %2033 = vmatpush1.msra.mxu0 0.0
      %2034 = vmatprep.mubr.f32.mxu0 0.0
      %2035 = vmatmul.mubr.f32.gmra.mrb[0].mxu0 %v1962
      %v2036 = vpop.f32.mrb[0].mxu0
      %v2037 = vadd.f32 0.0, %v2036
      %v2038 = vpop.f32.mrb[0].mxu0
      %2039 = vmatprep.mubr.f32.mxu0 0.0
      %2040 = vmatmul.mubr.f32.gmra.mrb[0].mxu0 %v1964
      %v2041 = vpop.f32.mrb[0].mxu0
      %v2042 = vadd.f32 0.0, %v2041
      %v2043 = vpop.f32.mrb[0].mxu0
      %2044 = vmatprep.mubr.f32.mxu0 0.0
      %2045 = vmatmul.mubr.f32.gmra.mrb[0].mxu0 %v1966
      %v2046 = vpop.f32.mrb[0].mxu0
      %v2047 = vadd.f32 0.0, %v2046
      %v2048 = vpop.f32.mrb[0].mxu0
      %2049 = vmatprep.mubr.f32.mxu0 0.0
      %2050 = vmatmul.mubr.f32.gmra.mrb[0].mxu0 %v1968
      %v2051 = vpop.f32.mrb[0].mxu0
      %v2052 = vadd.f32 0.0, %v2051
      %v2053 = vpop.f32.mrb[0].mxu0
      %2054 = vdwg.mxu0
      %2059 = vrot.lane.b32.xlu0 %v2037, 32
      %v2060 = vpop.permute.xlu0 %2059
      %2061 = vrot.lane.b32.xlu0 %v2042, 32
      %v2062 = vpop.permute.xlu0 %2061
      %2063 = vrot.lane.b32.xlu0 %v2047, 32
      %v2064 = vpop.permute.xlu0 %2063
      %2065 = vrot.lane.b32.xlu0 %v2052, 32
      %v2066 = vpop.permute.xlu0 %2065
      %v2071 = vadd.f32 %v1950, %v2060
      %v2072 = vadd.f32 %v1951, %v2062
      %v2073 = vadd.f32 %v1952, %v2064
      %v2074 = vadd.f32 %v1953, %v2066
      %v2075 = vxor.u32 %v2071, 2147483648
      %v2076 = vxor.u32 %v2072, 2147483648
      %v2077 = vxor.u32 %v2073, 2147483648
      %v2078 = vxor.u32 %v2074, 2147483648
      %v2079 = vmul.f32 %v2075, 1.442695
      %v2080 = vpow.pop %v2079
      %v2081 = vmul.f32 %v2076, 1.442695
      %v2082 = vpow.pop %v2081
      %v2083 = vmul.f32 %v2077, 1.442695
      %v2084 = vpow.pop %v2083
      %v2085 = vmul.f32 %v2078, 1.442695
      %v2086 = vpow.pop %v2085
      %v2087 = vadd.f32 %v2080, 1.0
      %v2088 = vadd.f32 %v2082, 1.0
      %v2089 = vadd.f32 %v2084, 1.0
      %v2090 = vadd.f32 %v2086, 1.0
      %v2091 = vrcp.pop %v2087
      %v2092 = vmul.f32 1.0, %v2091
      %v2093 = vrcp.pop %v2088
      %v2094 = vmul.f32 1.0, %v2093
      %v2095 = vrcp.pop %v2089
      %v2096 = vmul.f32 1.0, %v2095
      %v2097 = vrcp.pop %v2090
      %v2098 = vmul.f32 1.0, %v2097
      %v2099 = vtanh.pop %v2071
      %v2100 = vtanh.pop %v2072
      %v2101 = vtanh.pop %v2073
      %v2102 = vtanh.pop %v2074
      %v2103 = vmul.f32 %v2092, %v1672
      %v2104 = vmul.f32 %v2094, %v1673
      %v2105 = vmul.f32 %v2096, %v1674
      %v2106 = vmul.f32 %v2098, %v1675
      %2111 = vrot.lane.b32.xlu0 %v2099, 104
      %v2112 = vpop.permute.xlu0 %2111
      %2113 = vrot.lane.b32.xlu0 %v2100, 104
      %v2114 = vpop.permute.xlu0 %2113
      %2115 = vrot.lane.b32.xlu0 %v2101, 104
      %v2116 = vpop.permute.xlu0 %2115
      %2117 = vrot.lane.b32.xlu0 %v2102, 104
      %v2118 = vpop.permute.xlu0 %2117
      %v2123 = vmul.f32 %v2092, %v2112
      %v2124 = vmul.f32 %v2094, %v2114
      %v2125 = vmul.f32 %v2096, %v2116
      %v2126 = vmul.f32 %v2098, %v2118
      %2131 = vrot.lane.b32.xlu0 %v2123, 8
      %v2132 = vpop.permute.xlu0 %2131
      %2133 = vrot.lane.b32.xlu0 %v2124, 8
      %v2134 = vpop.permute.xlu0 %2133
      %2135 = vrot.lane.b32.xlu0 %v2125, 8
      %v2136 = vpop.permute.xlu0 %2135
      %2137 = vrot.lane.b32.xlu0 %v2126, 8
      %v2138 = vpop.permute.xlu0 %2137
      %v2143 = vadd.f32 %v2103, %v2132
      %v2144 = vadd.f32 %v2104, %v2134
      %v2145 = vadd.f32 %v2105, %v2136
      %v2146 = vadd.f32 %v2106, %v2138
      %v2147 = vtanh.pop %v2143
      %v2148 = vtanh.pop %v2144
      %v2149 = vtanh.pop %v2145
      %v2150 = vtanh.pop %v2146
      %2155 = vrot.lane.b32.xlu0 %v2147, 8
      %v2156 = vpop.permute.xlu0 %2155
      %2157 = vrot.lane.b32.xlu0 %v2148, 8
      %v2158 = vpop.permute.xlu0 %2157
      %2159 = vrot.lane.b32.xlu0 %v2149, 8
      %v2160 = vpop.permute.xlu0 %2159
      %2161 = vrot.lane.b32.xlu0 %v2150, 8
      %v2162 = vpop.permute.xlu0 %2161
      %v2167 = vmul.f32 %v2092, %v2156
      %v2168 = vmul.f32 %v2094, %v2158
      %v2169 = vmul.f32 %v2096, %v2160
      %v2170 = vmul.f32 %v2098, %v2162
      %2175 = vrot.lane.b32.xlu0 %v2167, 104
      %v2176 = vpop.permute.xlu0 %2175
      %2177 = vrot.lane.b32.xlu0 %v2168, 104
      %v2178 = vpop.permute.xlu0 %2177
      %2179 = vrot.lane.b32.xlu0 %v2169, 104
      %v2180 = vpop.permute.xlu0 %2179
      %2181 = vrot.lane.b32.xlu0 %v2170, 104
      %v2182 = vpop.permute.xlu0 %2181
      %vm2187 = vcmask 261312
      %2188 = vst.msk [vmem:[#allocation2] sm:$0xff] %vm2187, %v2176
      %2189 = vst.msk [vmem:[#allocation2 + $0x8] sm:$0xff] %vm2187, %v2178
      %2190 = vst.msk [vmem:[#allocation2 + $0x10] sm:$0xff] %vm2187, %v2180
      %2191 = vst.msk [vmem:[#allocation2 + $0x18] sm:$0xff] %vm2187, %v2182
      %2192 = vset.pattern.permute.xlu0 3
      %2193 = vperm.xlu0 %2192, %v418
      %v2194 = vpop.permute.xlu0 %2193
      %2196 = vset.pattern.permute.xlu0 3
      %2197 = vperm.xlu0 %2196, %v419
      %v2198 = vpop.permute.xlu0 %2197
      %2200 = vset.pattern.permute.xlu0 3
      %2201 = vperm.xlu0 %2200, %v420
      %v2202 = vpop.permute.xlu0 %2201
      %2204 = vset.pattern.permute.xlu0 3
      %2205 = vperm.xlu0 %2204, %v421
      %v2206 = vpop.permute.xlu0 %2205
      %v2208 = vmul.f32 %v2194, %v135
      %v2209 = vmul.f32 %v2198, %v135
      %v2210 = vmul.f32 %v2202, %v135
      %v2211 = vmul.f32 %v2206, %v135
      %v2212 = vadd.f32 %v2208, %v142
      %v2213 = vadd.f32 %v2209, %v142
      %v2214 = vadd.f32 %v2210, %v142
      %v2215 = vadd.f32 %v2211, %v142
      %v2216 = vadd.f32 %v2212, %v1932
      %v2217 = vadd.f32 %v2213, %v1937
      %v2218 = vadd.f32 %v2214, %v1942
      %v2219 = vadd.f32 %v2215, %v1947
      %v2220 = vxor.u32 %v2216, 2147483648
      %v2221 = vxor.u32 %v2217, 2147483648
      %v2222 = vxor.u32 %v2218, 2147483648
      %v2223 = vxor.u32 %v2219, 2147483648
      %v2224 = vmul.f32 %v2220, 1.442695
      %v2225 = vpow.pop %v2224
      %v2226 = vmul.f32 %v2221, 1.442695
      %v2227 = vpow.pop %v2226
      %v2228 = vmul.f32 %v2222, 1.442695
      %v2229 = vpow.pop %v2228
      %v2230 = vmul.f32 %v2223, 1.442695
      %v2231 = vpow.pop %v2230
      %v2232 = vadd.f32 %v2225, 1.0
      %v2233 = vadd.f32 %v2227, 1.0
      %v2234 = vadd.f32 %v2229, 1.0
      %v2235 = vadd.f32 %v2231, 1.0
      %v2236 = vrcp.pop %v2232
      %v2237 = vmul.f32 1.0, %v2236
      %v2238 = vrcp.pop %v2233
      %v2239 = vmul.f32 1.0, %v2238
      %v2240 = vrcp.pop %v2234
      %v2241 = vmul.f32 1.0, %v2240
      %v2242 = vrcp.pop %v2235
      %v2243 = vmul.f32 1.0, %v2242
      %v2244 = vtanh.pop %v2216
      %v2245 = vtanh.pop %v2217
      %v2246 = vtanh.pop %v2218
      %v2247 = vtanh.pop %v2219
      %v2248 = vmul.f32 %v2237, %v1817
      %v2249 = vmul.f32 %v2239, %v1818
      %v2250 = vmul.f32 %v2241, %v1819
      %v2251 = vmul.f32 %v2243, %v1820
      %2256 = vrot.lane.b32.xlu0 %v2244, 104
      %v2257 = vpop.permute.xlu0 %2256
      %2258 = vrot.lane.b32.xlu0 %v2245, 104
      %v2259 = vpop.permute.xlu0 %2258
      %2260 = vrot.lane.b32.xlu0 %v2246, 104
      %v2261 = vpop.permute.xlu0 %2260
      %2262 = vrot.lane.b32.xlu0 %v2247, 104
      %v2263 = vpop.permute.xlu0 %2262
      %v2268 = vmul.f32 %v2237, %v2257
      %v2269 = vmul.f32 %v2239, %v2259
      %v2270 = vmul.f32 %v2241, %v2261
      %v2271 = vmul.f32 %v2243, %v2263
      %2276 = vrot.lane.b32.xlu0 %v2268, 8
      %v2277 = vpop.permute.xlu0 %2276
      %2278 = vrot.lane.b32.xlu0 %v2269, 8
      %v2279 = vpop.permute.xlu0 %2278
      %2280 = vrot.lane.b32.xlu0 %v2270, 8
      %v2281 = vpop.permute.xlu0 %2280
      %2282 = vrot.lane.b32.xlu0 %v2271, 8
      %v2283 = vpop.permute.xlu0 %2282
      %v2288 = vadd.f32 %v2248, %v2277
      %v2289 = vadd.f32 %v2249, %v2279
      %v2290 = vadd.f32 %v2250, %v2281
      %v2291 = vadd.f32 %v2251, %v2283
      %v2292 = vtanh.pop %v2288
      %v2293 = vtanh.pop %v2289
      %v2294 = vtanh.pop %v2290
      %v2295 = vtanh.pop %v2291
      %2300 = vrot.lane.b32.xlu0 %v2292, 8
      %v2301 = vpop.permute.xlu0 %2300
      %2302 = vrot.lane.b32.xlu0 %v2293, 8
      %v2303 = vpop.permute.xlu0 %2302
      %2304 = vrot.lane.b32.xlu0 %v2294, 8
      %v2305 = vpop.permute.xlu0 %2304
      %2306 = vrot.lane.b32.xlu0 %v2295, 8
      %v2307 = vpop.permute.xlu0 %2306
      %v2312 = vmul.f32 %v2237, %v2301
      %v2313 = vmul.f32 %v2239, %v2303
      %v2314 = vmul.f32 %v2241, %v2305
      %v2315 = vmul.f32 %v2243, %v2307
      %2320 = vrot.lane.b32.xlu0 %v2312, 112
      %v2321 = vpop.permute.xlu0 %2320
      %2322 = vrot.lane.b32.xlu0 %v2313, 112
      %v2323 = vpop.permute.xlu0 %2322
      %2324 = vrot.lane.b32.xlu0 %v2314, 112
      %v2325 = vpop.permute.xlu0 %2324
      %2326 = vrot.lane.b32.xlu0 %v2315, 112
      %v2327 = vpop.permute.xlu0 %2326
      %v2328 = vsel %vm166, %v2321, 0
      %v2330 = vsel %vm166, %v2323, 0
      %v2332 = vsel %vm166, %v2325, 0
      %v2334 = vsel %vm166, %v2327, 0
      %2336 = vmatprep.subr.mxu0 0.0
      %2337 = vmatpush1.msra.mxu0 %v128
      %2338 = vmatprep.subr.mxu0 0.0
      %2339 = vmatpush1.msra.mxu0 0.0
      %2340 = vmatprep.subr.mxu0 0.0
      %2341 = vmatpush1.msra.mxu0 0.0
      %2342 = vmatprep.subr.mxu0 0.0
      %2343 = vmatpush1.msra.mxu0 0.0
      %2344 = vmatprep.subr.mxu0 0.0
      %2345 = vmatpush1.msra.mxu0 0.0
      %2346 = vmatprep.subr.mxu0 0.0
      %2347 = vmatpush1.msra.mxu0 0.0
      %2348 = vmatprep.subr.mxu0 0.0
      %2349 = vmatpush1.msra.mxu0 0.0
      %2350 = vmatprep.subr.mxu0 0.0
      %2351 = vmatpush1.msra.mxu0 0.0
      %2352 = vmatprep.subr.mxu0 0.0
      %2353 = vmatpush1.msra.mxu0 0.0
      %2354 = vmatprep.subr.mxu0 0.0
      %2355 = vmatpush1.msra.mxu0 0.0
      %2356 = vmatprep.subr.mxu0 0.0
      %2357 = vmatpush1.msra.mxu0 0.0
      %2358 = vmatprep.subr.mxu0 0.0
      %2359 = vmatpush1.msra.mxu0 0.0
      %2360 = vmatprep.subr.mxu0 0.0
      %2361 = vmatpush1.msra.mxu0 0.0
      %2362 = vmatprep.subr.mxu0 0.0
      %2363 = vmatpush1.msra.mxu0 0.0
      %2364 = vmatprep.subr.mxu0 0.0
      %2365 = vmatpush1.msra.mxu0 0.0
      %2366 = vmatprep.subr.mxu0 0.0
      %2367 = vmatpush1.msra.mxu0 0.0
      %2368 = vmatprep.subr.mxu0 0.0
      %2369 = vmatpush1.msra.mxu0 0.0
      %2370 = vmatprep.subr.mxu0 0.0
      %2371 = vmatpush1.msra.mxu0 0.0
      %2372 = vmatprep.subr.mxu0 0.0
      %2373 = vmatpush1.msra.mxu0 0.0
      %2374 = vmatprep.subr.mxu0 0.0
      %2375 = vmatpush1.msra.mxu0 0.0
      %2376 = vmatprep.subr.mxu0 0.0
      %2377 = vmatpush1.msra.mxu0 0.0
      %2378 = vmatprep.subr.mxu0 0.0
      %2379 = vmatpush1.msra.mxu0 0.0
      %2380 = vmatprep.subr.mxu0 0.0
      %2381 = vmatpush1.msra.mxu0 0.0
      %2382 = vmatprep.subr.mxu0 0.0
      %2383 = vmatpush1.msra.mxu0 0.0
      %2384 = vmatprep.subr.mxu0 0.0
      %2385 = vmatpush1.msra.mxu0 0.0
      %2386 = vmatprep.subr.mxu0 0.0
      %2387 = vmatpush1.msra.mxu0 0.0
      %2388 = vmatprep.subr.mxu0 0.0
      %2389 = vmatpush1.msra.mxu0 0.0
      %2390 = vmatprep.subr.mxu0 0.0
      %2391 = vmatpush1.msra.mxu0 0.0
      %2392 = vmatprep.subr.mxu0 0.0
      %2393 = vmatpush1.msra.mxu0 0.0
      %2394 = vmatprep.subr.mxu0 0.0
      %2395 = vmatpush1.msra.mxu0 0.0
      %2396 = vmatprep.subr.mxu0 0.0
      %2397 = vmatpush1.msra.mxu0 0.0
      %2398 = vmatprep.subr.mxu0 0.0
      %2399 = vmatpush1.msra.mxu0 0.0
      %2400 = vmatprep.mubr.f32.mxu0 0.0
      %2401 = vmatmul.mubr.f32.gmra.mrb[0].mxu0 %v2328
      %v2402 = vpop.f32.mrb[0].mxu0
      %v2403 = vadd.f32 0.0, %v2402
      %v2404 = vpop.f32.mrb[0].mxu0
      %2405 = vmatprep.mubr.f32.mxu0 0.0
      %2406 = vmatmul.mubr.f32.gmra.mrb[0].mxu0 %v2330
      %v2407 = vpop.f32.mrb[0].mxu0
      %v2408 = vadd.f32 0.0, %v2407
      %v2409 = vpop.f32.mrb[0].mxu0
      %2410 = vmatprep.mubr.f32.mxu0 0.0
      %2411 = vmatmul.mubr.f32.gmra.mrb[0].mxu0 %v2332
      %v2412 = vpop.f32.mrb[0].mxu0
      %v2413 = vadd.f32 0.0, %v2412
      %v2414 = vpop.f32.mrb[0].mxu0
      %2415 = vmatprep.mubr.f32.mxu0 0.0
      %2416 = vmatmul.mubr.f32.gmra.mrb[0].mxu0 %v2334
      %v2417 = vpop.f32.mrb[0].mxu0
      %v2418 = vadd.f32 0.0, %v2417
      %v2419 = vpop.f32.mrb[0].mxu0
      %2420 = vdwg.mxu0
      %v2421 = vadd.f32 %v2403, %v528
      %v2422 = vadd.f32 %v2408, %v528
      %v2423 = vadd.f32 %v2413, %v528
      %v2424 = vadd.f32 %v2418, %v528
      %2425 = vrot.lane.b32.xlu0 %v2167, 80
      %v2426 = vpop.permute.xlu0 %2425
      %2427 = vrot.lane.b32.xlu0 %v2168, 80
      %v2428 = vpop.permute.xlu0 %2427
      %2429 = vrot.lane.b32.xlu0 %v2169, 80
      %v2430 = vpop.permute.xlu0 %2429
      %2431 = vrot.lane.b32.xlu0 %v2170, 80
      %v2432 = vpop.permute.xlu0 %2431
      %v2433 = vsel %vm166, %v2426, 0
      %v2435 = vsel %vm166, %v2428, 0
      %v2437 = vsel %vm166, %v2430, 0
      %v2439 = vsel %vm166, %v2432, 0
      %2441 = vmatprep.subr.mxu0 0.0
      %2442 = vmatpush1.msra.mxu0 %v129
      %2443 = vmatprep.subr.mxu0 0.0
      %2444 = vmatpush1.msra.mxu0 0.0
      %2445 = vmatprep.subr.mxu0 0.0
      %2446 = vmatpush1.msra.mxu0 0.0
      %2447 = vmatprep.subr.mxu0 0.0
      %2448 = vmatpush1.msra.mxu0 0.0
      %2449 = vmatprep.subr.mxu0 0.0
      %2450 = vmatpush1.msra.mxu0 0.0
      %2451 = vmatprep.subr.mxu0 0.0
      %2452 = vmatpush1.msra.mxu0 0.0
      %2453 = vmatprep.subr.mxu0 0.0
      %2454 = vmatpush1.msra.mxu0 0.0
      %2455 = vmatprep.subr.mxu0 0.0
      %2456 = vmatpush1.msra.mxu0 0.0
      %2457 = vmatprep.subr.mxu0 0.0
      %2458 = vmatpush1.msra.mxu0 0.0
      %2459 = vmatprep.subr.mxu0 0.0
      %2460 = vmatpush1.msra.mxu0 0.0
      %2461 = vmatprep.subr.mxu0 0.0
      %2462 = vmatpush1.msra.mxu0 0.0
      %2463 = vmatprep.subr.mxu0 0.0
      %2464 = vmatpush1.msra.mxu0 0.0
      %2465 = vmatprep.subr.mxu0 0.0
      %2466 = vmatpush1.msra.mxu0 0.0
      %2467 = vmatprep.subr.mxu0 0.0
      %2468 = vmatpush1.msra.mxu0 0.0
      %2469 = vmatprep.subr.mxu0 0.0
      %2470 = vmatpush1.msra.mxu0 0.0
      %2471 = vmatprep.subr.mxu0 0.0
      %2472 = vmatpush1.msra.mxu0 0.0
      %2473 = vmatprep.subr.mxu0 0.0
      %2474 = vmatpush1.msra.mxu0 0.0
      %2475 = vmatprep.subr.mxu0 0.0
      %2476 = vmatpush1.msra.mxu0 0.0
      %2477 = vmatprep.subr.mxu0 0.0
      %2478 = vmatpush1.msra.mxu0 0.0
      %2479 = vmatprep.subr.mxu0 0.0
      %2480 = vmatpush1.msra.mxu0 0.0
      %2481 = vmatprep.subr.mxu0 0.0
      %2482 = vmatpush1.msra.mxu0 0.0
      %2483 = vmatprep.subr.mxu0 0.0
      %2484 = vmatpush1.msra.mxu0 0.0
      %2485 = vmatprep.subr.mxu0 0.0
      %2486 = vmatpush1.msra.mxu0 0.0
      %2487 = vmatprep.subr.mxu0 0.0
      %2488 = vmatpush1.msra.mxu0 0.0
      %2489 = vmatprep.subr.mxu0 0.0
      %2490 = vmatpush1.msra.mxu0 0.0
      %2491 = vmatprep.subr.mxu0 0.0
      %2492 = vmatpush1.msra.mxu0 0.0
      %2493 = vmatprep.subr.mxu0 0.0
      %2494 = vmatpush1.msra.mxu0 0.0
      %2495 = vmatprep.subr.mxu0 0.0
      %2496 = vmatpush1.msra.mxu0 0.0
      %2497 = vmatprep.subr.mxu0 0.0
      %2498 = vmatpush1.msra.mxu0 0.0
      %2499 = vmatprep.subr.mxu0 0.0
      %2500 = vmatpush1.msra.mxu0 0.0
      %2501 = vmatprep.subr.mxu0 0.0
      %2502 = vmatpush1.msra.mxu0 0.0
      %2503 = vmatprep.subr.mxu0 0.0
      %2504 = vmatpush1.msra.mxu0 0.0
      %2505 = vmatprep.mubr.f32.mxu0 0.0
      %2506 = vmatmul.mubr.f32.gmra.mrb[0].mxu0 %v2433
      %v2507 = vpop.f32.mrb[0].mxu0
      %v2508 = vadd.f32 0.0, %v2507
      %v2509 = vpop.f32.mrb[0].mxu0
      %2510 = vmatprep.mubr.f32.mxu0 0.0
      %2511 = vmatmul.mubr.f32.gmra.mrb[0].mxu0 %v2435
      %v2512 = vpop.f32.mrb[0].mxu0
      %v2513 = vadd.f32 0.0, %v2512
      %v2514 = vpop.f32.mrb[0].mxu0
      %2515 = vmatprep.mubr.f32.mxu0 0.0
      %2516 = vmatmul.mubr.f32.gmra.mrb[0].mxu0 %v2437
      %v2517 = vpop.f32.mrb[0].mxu0
      %v2518 = vadd.f32 0.0, %v2517
      %v2519 = vpop.f32.mrb[0].mxu0
      %2520 = vmatprep.mubr.f32.mxu0 0.0
      %2521 = vmatmul.mubr.f32.gmra.mrb[0].mxu0 %v2439
      %v2522 = vpop.f32.mrb[0].mxu0
      %v2523 = vadd.f32 0.0, %v2522
      %v2524 = vpop.f32.mrb[0].mxu0
      %2525 = vdwg.mxu0
      %2530 = vrot.lane.b32.xlu0 %v2508, 32
      %v2531 = vpop.permute.xlu0 %2530
      %2532 = vrot.lane.b32.xlu0 %v2513, 32
      %v2533 = vpop.permute.xlu0 %2532
      %2534 = vrot.lane.b32.xlu0 %v2518, 32
      %v2535 = vpop.permute.xlu0 %2534
      %2536 = vrot.lane.b32.xlu0 %v2523, 32
      %v2537 = vpop.permute.xlu0 %2536
      %v2542 = vadd.f32 %v2421, %v2531
      %v2543 = vadd.f32 %v2422, %v2533
      %v2544 = vadd.f32 %v2423, %v2535
      %v2545 = vadd.f32 %v2424, %v2537
      %v2546 = vxor.u32 %v2542, 2147483648
      %v2547 = vxor.u32 %v2543, 2147483648
      %v2548 = vxor.u32 %v2544, 2147483648
      %v2549 = vxor.u32 %v2545, 2147483648
      %v2550 = vmul.f32 %v2546, 1.442695
      %v2551 = vpow.pop %v2550
      %v2552 = vmul.f32 %v2547, 1.442695
      %v2553 = vpow.pop %v2552
      %v2554 = vmul.f32 %v2548, 1.442695
      %v2555 = vpow.pop %v2554
      %v2556 = vmul.f32 %v2549, 1.442695
      %v2557 = vpow.pop %v2556
      %v2558 = vadd.f32 %v2551, 1.0
      %v2559 = vadd.f32 %v2553, 1.0
      %v2560 = vadd.f32 %v2555, 1.0
      %v2561 = vadd.f32 %v2557, 1.0
      %v2562 = vrcp.pop %v2558
      %v2563 = vmul.f32 1.0, %v2562
      %v2564 = vrcp.pop %v2559
      %v2565 = vmul.f32 1.0, %v2564
      %v2566 = vrcp.pop %v2560
      %v2567 = vmul.f32 1.0, %v2566
      %v2568 = vrcp.pop %v2561
      %v2569 = vmul.f32 1.0, %v2568
      %v2570 = vtanh.pop %v2542
      %v2571 = vtanh.pop %v2543
      %v2572 = vtanh.pop %v2544
      %v2573 = vtanh.pop %v2545
      %v2574 = vmul.f32 %v2563, %v2143
      %v2575 = vmul.f32 %v2565, %v2144
      %v2576 = vmul.f32 %v2567, %v2145
      %v2577 = vmul.f32 %v2569, %v2146
      %2582 = vrot.lane.b32.xlu0 %v2570, 104
      %v2583 = vpop.permute.xlu0 %2582
      %2584 = vrot.lane.b32.xlu0 %v2571, 104
      %v2585 = vpop.permute.xlu0 %2584
      %2586 = vrot.lane.b32.xlu0 %v2572, 104
      %v2587 = vpop.permute.xlu0 %2586
      %2588 = vrot.lane.b32.xlu0 %v2573, 104
      %v2589 = vpop.permute.xlu0 %2588
      %v2594 = vmul.f32 %v2563, %v2583
      %v2595 = vmul.f32 %v2565, %v2585
      %v2596 = vmul.f32 %v2567, %v2587
      %v2597 = vmul.f32 %v2569, %v2589
      %2602 = vrot.lane.b32.xlu0 %v2594, 8
      %v2603 = vpop.permute.xlu0 %2602
      %2604 = vrot.lane.b32.xlu0 %v2595, 8
      %v2605 = vpop.permute.xlu0 %2604
      %2606 = vrot.lane.b32.xlu0 %v2596, 8
      %v2607 = vpop.permute.xlu0 %2606
      %2608 = vrot.lane.b32.xlu0 %v2597, 8
      %v2609 = vpop.permute.xlu0 %2608
      %v2614 = vadd.f32 %v2574, %v2603
      %v2615 = vadd.f32 %v2575, %v2605
      %v2616 = vadd.f32 %v2576, %v2607
      %v2617 = vadd.f32 %v2577, %v2609
      %v2618 = vtanh.pop %v2614
      %v2619 = vtanh.pop %v2615
      %v2620 = vtanh.pop %v2616
      %v2621 = vtanh.pop %v2617
      %2626 = vrot.lane.b32.xlu0 %v2618, 8
      %v2627 = vpop.permute.xlu0 %2626
      %2628 = vrot.lane.b32.xlu0 %v2619, 8
      %v2629 = vpop.permute.xlu0 %2628
      %2630 = vrot.lane.b32.xlu0 %v2620, 8
      %v2631 = vpop.permute.xlu0 %2630
      %2632 = vrot.lane.b32.xlu0 %v2621, 8
      %v2633 = vpop.permute.xlu0 %2632
      %v2638 = vmul.f32 %v2563, %v2627
      %v2639 = vmul.f32 %v2565, %v2629
      %v2640 = vmul.f32 %v2567, %v2631
      %v2641 = vmul.f32 %v2569, %v2633
      %2646 = vrot.lane.b32.xlu0 %v2638, 112
      %v2647 = vpop.permute.xlu0 %2646
      %2648 = vrot.lane.b32.xlu0 %v2639, 112
      %v2649 = vpop.permute.xlu0 %2648
      %2650 = vrot.lane.b32.xlu0 %v2640, 112
      %v2651 = vpop.permute.xlu0 %2650
      %2652 = vrot.lane.b32.xlu0 %v2641, 112
      %v2653 = vpop.permute.xlu0 %2652
      %vm2658 = vcmask 326912
      %2659 = vst.msk [vmem:[#allocation2] sm:$0xff] %vm2658, %v2647
      %2660 = vst.msk [vmem:[#allocation2 + $0x8] sm:$0xff] %vm2658, %v2649
      %2661 = vst.msk [vmem:[#allocation2 + $0x10] sm:$0xff] %vm2658, %v2651
      %2662 = vst.msk [vmem:[#allocation2 + $0x18] sm:$0xff] %vm2658, %v2653
      %2663 = vset.pattern.permute.xlu0 4
      %2664 = vperm.xlu0 %2663, %v418
      %v2665 = vpop.permute.xlu0 %2664
      %2667 = vset.pattern.permute.xlu0 4
      %2668 = vperm.xlu0 %2667, %v419
      %v2669 = vpop.permute.xlu0 %2668
      %2671 = vset.pattern.permute.xlu0 4
      %2672 = vperm.xlu0 %2671, %v420
      %v2673 = vpop.permute.xlu0 %2672
      %2675 = vset.pattern.permute.xlu0 4
      %2676 = vperm.xlu0 %2675, %v421
      %v2677 = vpop.permute.xlu0 %2676
      %v2679 = vmul.f32 %v2665, %v135
      %v2680 = vmul.f32 %v2669, %v135
      %v2681 = vmul.f32 %v2673, %v135
      %v2682 = vmul.f32 %v2677, %v135
      %v2683 = vadd.f32 %v2679, %v142
      %v2684 = vadd.f32 %v2680, %v142
      %v2685 = vadd.f32 %v2681, %v142
      %v2686 = vadd.f32 %v2682, %v142
      %v2687 = vadd.f32 %v2683, %v2403
      %v2688 = vadd.f32 %v2684, %v2408
      %v2689 = vadd.f32 %v2685, %v2413
      %v2690 = vadd.f32 %v2686, %v2418
      %v2691 = vxor.u32 %v2687, 2147483648
      %v2692 = vxor.u32 %v2688, 2147483648
      %v2693 = vxor.u32 %v2689, 2147483648
      %v2694 = vxor.u32 %v2690, 2147483648
      %v2695 = vmul.f32 %v2691, 1.442695
      %v2696 = vpow.pop %v2695
      %v2697 = vmul.f32 %v2692, 1.442695
      %v2698 = vpow.pop %v2697
      %v2699 = vmul.f32 %v2693, 1.442695
      %v2700 = vpow.pop %v2699
      %v2701 = vmul.f32 %v2694, 1.442695
      %v2702 = vpow.pop %v2701
      %v2703 = vadd.f32 %v2696, 1.0
      %v2704 = vadd.f32 %v2698, 1.0
      %v2705 = vadd.f32 %v2700, 1.0
      %v2706 = vadd.f32 %v2702, 1.0
      %v2707 = vrcp.pop %v2703
      %v2708 = vmul.f32 1.0, %v2707
      %v2709 = vrcp.pop %v2704
      %v2710 = vmul.f32 1.0, %v2709
      %v2711 = vrcp.pop %v2705
      %v2712 = vmul.f32 1.0, %v2711
      %v2713 = vrcp.pop %v2706
      %v2714 = vmul.f32 1.0, %v2713
      %v2715 = vtanh.pop %v2687
      %v2716 = vtanh.pop %v2688
      %v2717 = vtanh.pop %v2689
      %v2718 = vtanh.pop %v2690
      %v2719 = vmul.f32 %v2708, %v2288
      %v2720 = vmul.f32 %v2710, %v2289
      %v2721 = vmul.f32 %v2712, %v2290
      %v2722 = vmul.f32 %v2714, %v2291
      %2727 = vrot.lane.b32.xlu0 %v2715, 104
      %v2728 = vpop.permute.xlu0 %2727
      %2729 = vrot.lane.b32.xlu0 %v2716, 104
      %v2730 = vpop.permute.xlu0 %2729
      %2731 = vrot.lane.b32.xlu0 %v2717, 104
      %v2732 = vpop.permute.xlu0 %2731
      %2733 = vrot.lane.b32.xlu0 %v2718, 104
      %v2734 = vpop.permute.xlu0 %2733
      %v2739 = vmul.f32 %v2708, %v2728
      %v2740 = vmul.f32 %v2710, %v2730
      %v2741 = vmul.f32 %v2712, %v2732
      %v2742 = vmul.f32 %v2714, %v2734
      %2747 = vrot.lane.b32.xlu0 %v2739, 8
      %v2748 = vpop.permute.xlu0 %2747
      %2749 = vrot.lane.b32.xlu0 %v2740, 8
      %v2750 = vpop.permute.xlu0 %2749
      %2751 = vrot.lane.b32.xlu0 %v2741, 8
      %v2752 = vpop.permute.xlu0 %2751
      %2753 = vrot.lane.b32.xlu0 %v2742, 8
      %v2754 = vpop.permute.xlu0 %2753
      %v2759 = vadd.f32 %v2719, %v2748
      %v2760 = vadd.f32 %v2720, %v2750
      %v2761 = vadd.f32 %v2721, %v2752
      %v2762 = vadd.f32 %v2722, %v2754
      %v2763 = vtanh.pop %v2759
      %v2764 = vtanh.pop %v2760
      %v2765 = vtanh.pop %v2761
      %v2766 = vtanh.pop %v2762
      %2771 = vrot.lane.b32.xlu0 %v2763, 8
      %v2772 = vpop.permute.xlu0 %2771
      %2773 = vrot.lane.b32.xlu0 %v2764, 8
      %v2774 = vpop.permute.xlu0 %2773
      %2775 = vrot.lane.b32.xlu0 %v2765, 8
      %v2776 = vpop.permute.xlu0 %2775
      %2777 = vrot.lane.b32.xlu0 %v2766, 8
      %v2778 = vpop.permute.xlu0 %2777
      %v2783 = vmul.f32 %v2708, %v2772
      %v2784 = vmul.f32 %v2710, %v2774
      %v2785 = vmul.f32 %v2712, %v2776
      %v2786 = vmul.f32 %v2714, %v2778
      %2791 = vrot.lane.b32.xlu0 %v2783, 112
      %v2792 = vpop.permute.xlu0 %2791
      %2793 = vrot.lane.b32.xlu0 %v2784, 112
      %v2794 = vpop.permute.xlu0 %2793
      %2795 = vrot.lane.b32.xlu0 %v2785, 112
      %v2796 = vpop.permute.xlu0 %2795
      %2797 = vrot.lane.b32.xlu0 %v2786, 112
      %v2798 = vpop.permute.xlu0 %2797
      %v2799 = vsel %vm166, %v2792, 0
      %v2801 = vsel %vm166, %v2794, 0
      %v2803 = vsel %vm166, %v2796, 0
      %v2805 = vsel %vm166, %v2798, 0
      %2807 = vmatprep.subr.mxu0 0.0
      %2808 = vmatpush1.msra.mxu0 %v128
      %2809 = vmatprep.subr.mxu0 0.0
      %2810 = vmatpush1.msra.mxu0 0.0
      %2811 = vmatprep.subr.mxu0 0.0
      %2812 = vmatpush1.msra.mxu0 0.0
      %2813 = vmatprep.subr.mxu0 0.0
      %2814 = vmatpush1.msra.mxu0 0.0
      %2815 = vmatprep.subr.mxu0 0.0
      %2816 = vmatpush1.msra.mxu0 0.0
      %2817 = vmatprep.subr.mxu0 0.0
      %2818 = vmatpush1.msra.mxu0 0.0
      %2819 = vmatprep.subr.mxu0 0.0
      %2820 = vmatpush1.msra.mxu0 0.0
      %2821 = vmatprep.subr.mxu0 0.0
      %2822 = vmatpush1.msra.mxu0 0.0
      %2823 = vmatprep.subr.mxu0 0.0
      %2824 = vmatpush1.msra.mxu0 0.0
      %2825 = vmatprep.subr.mxu0 0.0
      %2826 = vmatpush1.msra.mxu0 0.0
      %2827 = vmatprep.subr.mxu0 0.0
      %2828 = vmatpush1.msra.mxu0 0.0
      %2829 = vmatprep.subr.mxu0 0.0
      %2830 = vmatpush1.msra.mxu0 0.0
      %2831 = vmatprep.subr.mxu0 0.0
      %2832 = vmatpush1.msra.mxu0 0.0
      %2833 = vmatprep.subr.mxu0 0.0
      %2834 = vmatpush1.msra.mxu0 0.0
      %2835 = vmatprep.subr.mxu0 0.0
      %2836 = vmatpush1.msra.mxu0 0.0
      %2837 = vmatprep.subr.mxu0 0.0
      %2838 = vmatpush1.msra.mxu0 0.0
      %2839 = vmatprep.subr.mxu0 0.0
      %2840 = vmatpush1.msra.mxu0 0.0
      %2841 = vmatprep.subr.mxu0 0.0
      %2842 = vmatpush1.msra.mxu0 0.0
      %2843 = vmatprep.subr.mxu0 0.0
      %2844 = vmatpush1.msra.mxu0 0.0
      %2845 = vmatprep.subr.mxu0 0.0
      %2846 = vmatpush1.msra.mxu0 0.0
      %2847 = vmatprep.subr.mxu0 0.0
      %2848 = vmatpush1.msra.mxu0 0.0
      %2849 = vmatprep.subr.mxu0 0.0
      %2850 = vmatpush1.msra.mxu0 0.0
      %2851 = vmatprep.subr.mxu0 0.0
      %2852 = vmatpush1.msra.mxu0 0.0
      %2853 = vmatprep.subr.mxu0 0.0
      %2854 = vmatpush1.msra.mxu0 0.0
      %2855 = vmatprep.subr.mxu0 0.0
      %2856 = vmatpush1.msra.mxu0 0.0
      %2857 = vmatprep.subr.mxu0 0.0
      %2858 = vmatpush1.msra.mxu0 0.0
      %2859 = vmatprep.subr.mxu0 0.0
      %2860 = vmatpush1.msra.mxu0 0.0
      %2861 = vmatprep.subr.mxu0 0.0
      %2862 = vmatpush1.msra.mxu0 0.0
      %2863 = vmatprep.subr.mxu0 0.0
      %2864 = vmatpush1.msra.mxu0 0.0
      %2865 = vmatprep.subr.mxu0 0.0
      %2866 = vmatpush1.msra.mxu0 0.0
      %2867 = vmatprep.subr.mxu0 0.0
      %2868 = vmatpush1.msra.mxu0 0.0
      %2869 = vmatprep.subr.mxu0 0.0
      %2870 = vmatpush1.msra.mxu0 0.0
      %2871 = vmatprep.mubr.f32.mxu0 0.0
      %2872 = vmatmul.mubr.f32.gmra.mrb[0].mxu0 %v2799
      %v2873 = vpop.f32.mrb[0].mxu0
      %v2874 = vadd.f32 0.0, %v2873
      %v2875 = vpop.f32.mrb[0].mxu0
      %2876 = vmatprep.mubr.f32.mxu0 0.0
      %2877 = vmatmul.mubr.f32.gmra.mrb[0].mxu0 %v2801
      %v2878 = vpop.f32.mrb[0].mxu0
      %v2879 = vadd.f32 0.0, %v2878
      %v2880 = vpop.f32.mrb[0].mxu0
      %2881 = vmatprep.mubr.f32.mxu0 0.0
      %2882 = vmatmul.mubr.f32.gmra.mrb[0].mxu0 %v2803
      %v2883 = vpop.f32.mrb[0].mxu0
      %v2884 = vadd.f32 0.0, %v2883
      %v2885 = vpop.f32.mrb[0].mxu0
      %2886 = vmatprep.mubr.f32.mxu0 0.0
      %2887 = vmatmul.mubr.f32.gmra.mrb[0].mxu0 %v2805
      %v2888 = vpop.f32.mrb[0].mxu0
      %v2889 = vadd.f32 0.0, %v2888
      %v2890 = vpop.f32.mrb[0].mxu0
      %2891 = vdwg.mxu0
      %v2892 = vadd.f32 %v2874, %v528
      %v2893 = vadd.f32 %v2879, %v528
      %v2894 = vadd.f32 %v2884, %v528
      %v2895 = vadd.f32 %v2889, %v528
      %2896 = vrot.lane.b32.xlu0 %v2638, 80
      %v2897 = vpop.permute.xlu0 %2896
      %2898 = vrot.lane.b32.xlu0 %v2639, 80
      %v2899 = vpop.permute.xlu0 %2898
      %2900 = vrot.lane.b32.xlu0 %v2640, 80
      %v2901 = vpop.permute.xlu0 %2900
      %2902 = vrot.lane.b32.xlu0 %v2641, 80
      %v2903 = vpop.permute.xlu0 %2902
      %v2904 = vsel %vm166, %v2897, 0
      %v2906 = vsel %vm166, %v2899, 0
      %v2908 = vsel %vm166, %v2901, 0
      %v2910 = vsel %vm166, %v2903, 0
      %2912 = vmatprep.subr.mxu0 0.0
      %2913 = vmatpush1.msra.mxu0 %v129
      %2914 = vmatprep.subr.mxu0 0.0
      %2915 = vmatpush1.msra.mxu0 0.0
      %2916 = vmatprep.subr.mxu0 0.0
      %2917 = vmatpush1.msra.mxu0 0.0
      %2918 = vmatprep.subr.mxu0 0.0
      %2919 = vmatpush1.msra.mxu0 0.0
      %2920 = vmatprep.subr.mxu0 0.0
      %2921 = vmatpush1.msra.mxu0 0.0
      %2922 = vmatprep.subr.mxu0 0.0
      %2923 = vmatpush1.msra.mxu0 0.0
      %2924 = vmatprep.subr.mxu0 0.0
      %2925 = vmatpush1.msra.mxu0 0.0
      %2926 = vmatprep.subr.mxu0 0.0
      %2927 = vmatpush1.msra.mxu0 0.0
      %2928 = vmatprep.subr.mxu0 0.0
      %2929 = vmatpush1.msra.mxu0 0.0
      %2930 = vmatprep.subr.mxu0 0.0
      %2931 = vmatpush1.msra.mxu0 0.0
      %2932 = vmatprep.subr.mxu0 0.0
      %2933 = vmatpush1.msra.mxu0 0.0
      %2934 = vmatprep.subr.mxu0 0.0
      %2935 = vmatpush1.msra.mxu0 0.0
      %2936 = vmatprep.subr.mxu0 0.0
      %2937 = vmatpush1.msra.mxu0 0.0
      %2938 = vmatprep.subr.mxu0 0.0
      %2939 = vmatpush1.msra.mxu0 0.0
      %2940 = vmatprep.subr.mxu0 0.0
      %2941 = vmatpush1.msra.mxu0 0.0
      %2942 = vmatprep.subr.mxu0 0.0
      %2943 = vmatpush1.msra.mxu0 0.0
      %2944 = vmatprep.subr.mxu0 0.0
      %2945 = vmatpush1.msra.mxu0 0.0
      %2946 = vmatprep.subr.mxu0 0.0
      %2947 = vmatpush1.msra.mxu0 0.0
      %2948 = vmatprep.subr.mxu0 0.0
      %2949 = vmatpush1.msra.mxu0 0.0
      %2950 = vmatprep.subr.mxu0 0.0
      %2951 = vmatpush1.msra.mxu0 0.0
      %2952 = vmatprep.subr.mxu0 0.0
      %2953 = vmatpush1.msra.mxu0 0.0
      %2954 = vmatprep.subr.mxu0 0.0
      %2955 = vmatpush1.msra.mxu0 0.0
      %2956 = vmatprep.subr.mxu0 0.0
      %2957 = vmatpush1.msra.mxu0 0.0
      %2958 = vmatprep.subr.mxu0 0.0
      %2959 = vmatpush1.msra.mxu0 0.0
      %2960 = vmatprep.subr.mxu0 0.0
      %2961 = vmatpush1.msra.mxu0 0.0
      %2962 = vmatprep.subr.mxu0 0.0
      %2963 = vmatpush1.msra.mxu0 0.0
      %2964 = vmatprep.subr.mxu0 0.0
      %2965 = vmatpush1.msra.mxu0 0.0
      %2966 = vmatprep.subr.mxu0 0.0
      %2967 = vmatpush1.msra.mxu0 0.0
      %2968 = vmatprep.subr.mxu0 0.0
      %2969 = vmatpush1.msra.mxu0 0.0
      %2970 = vmatprep.subr.mxu0 0.0
      %2971 = vmatpush1.msra.mxu0 0.0
      %2972 = vmatprep.subr.mxu0 0.0
      %2973 = vmatpush1.msra.mxu0 0.0
      %2974 = vmatprep.subr.mxu0 0.0
      %2975 = vmatpush1.msra.mxu0 0.0
      %2976 = vmatprep.mubr.f32.mxu0 0.0
      %2977 = vmatmul.mubr.f32.gmra.mrb[0].mxu0 %v2904
      %v2978 = vpop.f32.mrb[0].mxu0
      %v2979 = vadd.f32 0.0, %v2978
      %v2980 = vpop.f32.mrb[0].mxu0
      %2981 = vmatprep.mubr.f32.mxu0 0.0
      %2982 = vmatmul.mubr.f32.gmra.mrb[0].mxu0 %v2906
      %v2983 = vpop.f32.mrb[0].mxu0
      %v2984 = vadd.f32 0.0, %v2983
      %v2985 = vpop.f32.mrb[0].mxu0
      %2986 = vmatprep.mubr.f32.mxu0 0.0
      %2987 = vmatmul.mubr.f32.gmra.mrb[0].mxu0 %v2908
      %v2988 = vpop.f32.mrb[0].mxu0
      %v2989 = vadd.f32 0.0, %v2988
      %v2990 = vpop.f32.mrb[0].mxu0
      %2991 = vmatprep.mubr.f32.mxu0 0.0
      %2992 = vmatmul.mubr.f32.gmra.mrb[0].mxu0 %v2910
      %v2993 = vpop.f32.mrb[0].mxu0
      %v2994 = vadd.f32 0.0, %v2993
      %v2995 = vpop.f32.mrb[0].mxu0
      %2996 = vdwg.mxu0
      %3001 = vrot.lane.b32.xlu0 %v2979, 32
      %v3002 = vpop.permute.xlu0 %3001
      %3003 = vrot.lane.b32.xlu0 %v2984, 32
      %v3004 = vpop.permute.xlu0 %3003
      %3005 = vrot.lane.b32.xlu0 %v2989, 32
      %v3006 = vpop.permute.xlu0 %3005
      %3007 = vrot.lane.b32.xlu0 %v2994, 32
      %v3008 = vpop.permute.xlu0 %3007
      %v3013 = vadd.f32 %v2892, %v3002
      %v3014 = vadd.f32 %v2893, %v3004
      %v3015 = vadd.f32 %v2894, %v3006
      %v3016 = vadd.f32 %v2895, %v3008
      %v3017 = vxor.u32 %v3013, 2147483648
      %v3018 = vxor.u32 %v3014, 2147483648
      %v3019 = vxor.u32 %v3015, 2147483648
      %v3020 = vxor.u32 %v3016, 2147483648
      %v3021 = vmul.f32 %v3017, 1.442695
      %v3022 = vpow.pop %v3021
      %v3023 = vmul.f32 %v3018, 1.442695
      %v3024 = vpow.pop %v3023
      %v3025 = vmul.f32 %v3019, 1.442695
      %v3026 = vpow.pop %v3025
      %v3027 = vmul.f32 %v3020, 1.442695
      %v3028 = vpow.pop %v3027
      %v3029 = vadd.f32 %v3022, 1.0
      %v3030 = vadd.f32 %v3024, 1.0
      %v3031 = vadd.f32 %v3026, 1.0
      %v3032 = vadd.f32 %v3028, 1.0
      %v3033 = vrcp.pop %v3029
      %v3034 = vmul.f32 1.0, %v3033
      %v3035 = vrcp.pop %v3030
      %v3036 = vmul.f32 1.0, %v3035
      %v3037 = vrcp.pop %v3031
      %v3038 = vmul.f32 1.0, %v3037
      %v3039 = vrcp.pop %v3032
      %v3040 = vmul.f32 1.0, %v3039
      %v3041 = vtanh.pop %v3013
      %v3042 = vtanh.pop %v3014
      %v3043 = vtanh.pop %v3015
      %v3044 = vtanh.pop %v3016
      %v3045 = vmul.f32 %v3034, %v2614
      %v3046 = vmul.f32 %v3036, %v2615
      %v3047 = vmul.f32 %v3038, %v2616
      %v3048 = vmul.f32 %v3040, %v2617
      %3053 = vrot.lane.b32.xlu0 %v3041, 104
      %v3054 = vpop.permute.xlu0 %3053
      %3055 = vrot.lane.b32.xlu0 %v3042, 104
      %v3056 = vpop.permute.xlu0 %3055
      %3057 = vrot.lane.b32.xlu0 %v3043, 104
      %v3058 = vpop.permute.xlu0 %3057
      %3059 = vrot.lane.b32.xlu0 %v3044, 104
      %v3060 = vpop.permute.xlu0 %3059
      %v3065 = vmul.f32 %v3034, %v3054
      %v3066 = vmul.f32 %v3036, %v3056
      %v3067 = vmul.f32 %v3038, %v3058
      %v3068 = vmul.f32 %v3040, %v3060
      %3073 = vrot.lane.b32.xlu0 %v3065, 8
      %v3074 = vpop.permute.xlu0 %3073
      %3075 = vrot.lane.b32.xlu0 %v3066, 8
      %v3076 = vpop.permute.xlu0 %3075
      %3077 = vrot.lane.b32.xlu0 %v3067, 8
      %v3078 = vpop.permute.xlu0 %3077
      %3079 = vrot.lane.b32.xlu0 %v3068, 8
      %v3080 = vpop.permute.xlu0 %3079
      %v3085 = vadd.f32 %v3045, %v3074
      %v3086 = vadd.f32 %v3046, %v3076
      %v3087 = vadd.f32 %v3047, %v3078
      %v3088 = vadd.f32 %v3048, %v3080
      %v3089 = vtanh.pop %v3085
      %v3090 = vtanh.pop %v3086
      %v3091 = vtanh.pop %v3087
      %v3092 = vtanh.pop %v3088
      %3097 = vrot.lane.b32.xlu0 %v3089, 8
      %v3098 = vpop.permute.xlu0 %3097
      %3099 = vrot.lane.b32.xlu0 %v3090, 8
      %v3100 = vpop.permute.xlu0 %3099
      %3101 = vrot.lane.b32.xlu0 %v3091, 8
      %v3102 = vpop.permute.xlu0 %3101
      %3103 = vrot.lane.b32.xlu0 %v3092, 8
      %v3104 = vpop.permute.xlu0 %3103
      %v3109 = vmul.f32 %v3034, %v3098
      %v3110 = vmul.f32 %v3036, %v3100
      %v3111 = vmul.f32 %v3038, %v3102
      %v3112 = vmul.f32 %v3040, %v3104
      %3117 = vrot.lane.b32.xlu0 %v3109, 120
      %v3118 = vpop.permute.xlu0 %3117
      %3119 = vrot.lane.b32.xlu0 %v3110, 120
      %v3120 = vpop.permute.xlu0 %3119
      %3121 = vrot.lane.b32.xlu0 %v3111, 120
      %v3122 = vpop.permute.xlu0 %3121
      %3123 = vrot.lane.b32.xlu0 %v3112, 120
      %v3124 = vpop.permute.xlu0 %3123
      %vm3129 = vcmask 392512
      %3130 = vst.msk [vmem:[#allocation2] sm:$0xff] %vm3129, %v3118
      %3131 = vst.msk [vmem:[#allocation2 + $0x8] sm:$0xff] %vm3129, %v3120
      %3132 = vst.msk [vmem:[#allocation2 + $0x10] sm:$0xff] %vm3129, %v3122
      %3133 = vst.msk [vmem:[#allocation2 + $0x18] sm:$0xff] %vm3129, %v3124
      %3134 = vset.pattern.permute.xlu0 5
      %3135 = vperm.xlu0 %3134, %v418
      %v3136 = vpop.permute.xlu0 %3135
      %3138 = vset.pattern.permute.xlu0 5
      %3139 = vperm.xlu0 %3138, %v419
      %v3140 = vpop.permute.xlu0 %3139
      %3142 = vset.pattern.permute.xlu0 5
      %3143 = vperm.xlu0 %3142, %v420
      %v3144 = vpop.permute.xlu0 %3143
      %3146 = vset.pattern.permute.xlu0 5
      %3147 = vperm.xlu0 %3146, %v421
      %v3148 = vpop.permute.xlu0 %3147
      %v3150 = vmul.f32 %v3136, %v135
      %v3151 = vmul.f32 %v3140, %v135
      %v3152 = vmul.f32 %v3144, %v135
      %v3153 = vmul.f32 %v3148, %v135
      %v3154 = vadd.f32 %v3150, %v142
      %v3155 = vadd.f32 %v3151, %v142
      %v3156 = vadd.f32 %v3152, %v142
      %v3157 = vadd.f32 %v3153, %v142
      %v3158 = vadd.f32 %v3154, %v2874
      %v3159 = vadd.f32 %v3155, %v2879
      %v3160 = vadd.f32 %v3156, %v2884
      %v3161 = vadd.f32 %v3157, %v2889
      %v3162 = vxor.u32 %v3158, 2147483648
      %v3163 = vxor.u32 %v3159, 2147483648
      %v3164 = vxor.u32 %v3160, 2147483648
      %v3165 = vxor.u32 %v3161, 2147483648
      %v3166 = vmul.f32 %v3162, 1.442695
      %v3167 = vpow.pop %v3166
      %v3168 = vmul.f32 %v3163, 1.442695
      %v3169 = vpow.pop %v3168
      %v3170 = vmul.f32 %v3164, 1.442695
      %v3171 = vpow.pop %v3170
      %v3172 = vmul.f32 %v3165, 1.442695
      %v3173 = vpow.pop %v3172
      %v3174 = vadd.f32 %v3167, 1.0
      %v3175 = vadd.f32 %v3169, 1.0
      %v3176 = vadd.f32 %v3171, 1.0
      %v3177 = vadd.f32 %v3173, 1.0
      %v3178 = vrcp.pop %v3174
      %v3179 = vmul.f32 1.0, %v3178
      %v3180 = vrcp.pop %v3175
      %v3181 = vmul.f32 1.0, %v3180
      %v3182 = vrcp.pop %v3176
      %v3183 = vmul.f32 1.0, %v3182
      %v3184 = vrcp.pop %v3177
      %v3185 = vmul.f32 1.0, %v3184
      %v3186 = vtanh.pop %v3158
      %v3187 = vtanh.pop %v3159
      %v3188 = vtanh.pop %v3160
      %v3189 = vtanh.pop %v3161
      %v3190 = vmul.f32 %v3179, %v2759
      %v3191 = vmul.f32 %v3181, %v2760
      %v3192 = vmul.f32 %v3183, %v2761
      %v3193 = vmul.f32 %v3185, %v2762
      %3198 = vrot.lane.b32.xlu0 %v3186, 104
      %v3199 = vpop.permute.xlu0 %3198
      %3200 = vrot.lane.b32.xlu0 %v3187, 104
      %v3201 = vpop.permute.xlu0 %3200
      %3202 = vrot.lane.b32.xlu0 %v3188, 104
      %v3203 = vpop.permute.xlu0 %3202
      %3204 = vrot.lane.b32.xlu0 %v3189, 104
      %v3205 = vpop.permute.xlu0 %3204
      %v3210 = vmul.f32 %v3179, %v3199
      %v3211 = vmul.f32 %v3181, %v3201
      %v3212 = vmul.f32 %v3183, %v3203
      %v3213 = vmul.f32 %v3185, %v3205
      %3218 = vrot.lane.b32.xlu0 %v3210, 8
      %v3219 = vpop.permute.xlu0 %3218
      %3220 = vrot.lane.b32.xlu0 %v3211, 8
      %v3221 = vpop.permute.xlu0 %3220
      %3222 = vrot.lane.b32.xlu0 %v3212, 8
      %v3223 = vpop.permute.xlu0 %3222
      %3224 = vrot.lane.b32.xlu0 %v3213, 8
      %v3225 = vpop.permute.xlu0 %3224
      %v3230 = vadd.f32 %v3190, %v3219
      %v3231 = vadd.f32 %v3191, %v3221
      %v3232 = vadd.f32 %v3192, %v3223
      %v3233 = vadd.f32 %v3193, %v3225
      %v3234 = vtanh.pop %v3230
      %v3235 = vtanh.pop %v3231
      %v3236 = vtanh.pop %v3232
      %v3237 = vtanh.pop %v3233
      %3242 = vrot.lane.b32.xlu0 %v3234, 8
      %v3243 = vpop.permute.xlu0 %3242
      %3244 = vrot.lane.b32.xlu0 %v3235, 8
      %v3245 = vpop.permute.xlu0 %3244
      %3246 = vrot.lane.b32.xlu0 %v3236, 8
      %v3247 = vpop.permute.xlu0 %3246
      %3248 = vrot.lane.b32.xlu0 %v3237, 8
      %v3249 = vpop.permute.xlu0 %3248
      %v3254 = vmul.f32 %v3179, %v3243
      %v3255 = vmul.f32 %v3181, %v3245
      %v3256 = vmul.f32 %v3183, %v3247
      %v3257 = vmul.f32 %v3185, %v3249
      %3262 = vrot.lane.b32.xlu0 %v3254, 112
      %v3263 = vpop.permute.xlu0 %3262
      %3264 = vrot.lane.b32.xlu0 %v3255, 112
      %v3265 = vpop.permute.xlu0 %3264
      %3266 = vrot.lane.b32.xlu0 %v3256, 112
      %v3267 = vpop.permute.xlu0 %3266
      %3268 = vrot.lane.b32.xlu0 %v3257, 112
      %v3269 = vpop.permute.xlu0 %3268
      %v3270 = vsel %vm166, %v3263, 0
      %v3272 = vsel %vm166, %v3265, 0
      %v3274 = vsel %vm166, %v3267, 0
      %v3276 = vsel %vm166, %v3269, 0
      %3278 = vmatprep.subr.mxu0 0.0
      %3279 = vmatpush1.msra.mxu0 %v128
      %3280 = vmatprep.subr.mxu0 0.0
      %3281 = vmatpush1.msra.mxu0 0.0
      %3282 = vmatprep.subr.mxu0 0.0
      %3283 = vmatpush1.msra.mxu0 0.0
      %3284 = vmatprep.subr.mxu0 0.0
      %3285 = vmatpush1.msra.mxu0 0.0
      %3286 = vmatprep.subr.mxu0 0.0
      %3287 = vmatpush1.msra.mxu0 0.0
      %3288 = vmatprep.subr.mxu0 0.0
      %3289 = vmatpush1.msra.mxu0 0.0
      %3290 = vmatprep.subr.mxu0 0.0
      %3291 = vmatpush1.msra.mxu0 0.0
      %3292 = vmatprep.subr.mxu0 0.0
      %3293 = vmatpush1.msra.mxu0 0.0
      %3294 = vmatprep.subr.mxu0 0.0
      %3295 = vmatpush1.msra.mxu0 0.0
      %3296 = vmatprep.subr.mxu0 0.0
      %3297 = vmatpush1.msra.mxu0 0.0
      %3298 = vmatprep.subr.mxu0 0.0
      %3299 = vmatpush1.msra.mxu0 0.0
      %3300 = vmatprep.subr.mxu0 0.0
      %3301 = vmatpush1.msra.mxu0 0.0
      %3302 = vmatprep.subr.mxu0 0.0
      %3303 = vmatpush1.msra.mxu0 0.0
      %3304 = vmatprep.subr.mxu0 0.0
      %3305 = vmatpush1.msra.mxu0 0.0
      %3306 = vmatprep.subr.mxu0 0.0
      %3307 = vmatpush1.msra.mxu0 0.0
      %3308 = vmatprep.subr.mxu0 0.0
      %3309 = vmatpush1.msra.mxu0 0.0
      %3310 = vmatprep.subr.mxu0 0.0
      %3311 = vmatpush1.msra.mxu0 0.0
      %3312 = vmatprep.subr.mxu0 0.0
      %3313 = vmatpush1.msra.mxu0 0.0
      %3314 = vmatprep.subr.mxu0 0.0
      %3315 = vmatpush1.msra.mxu0 0.0
      %3316 = vmatprep.subr.mxu0 0.0
      %3317 = vmatpush1.msra.mxu0 0.0
      %3318 = vmatprep.subr.mxu0 0.0
      %3319 = vmatpush1.msra.mxu0 0.0
      %3320 = vmatprep.subr.mxu0 0.0
      %3321 = vmatpush1.msra.mxu0 0.0
      %3322 = vmatprep.subr.mxu0 0.0
      %3323 = vmatpush1.msra.mxu0 0.0
      %3324 = vmatprep.subr.mxu0 0.0
      %3325 = vmatpush1.msra.mxu0 0.0
      %3326 = vmatprep.subr.mxu0 0.0
      %3327 = vmatpush1.msra.mxu0 0.0
      %3328 = vmatprep.subr.mxu0 0.0
      %3329 = vmatpush1.msra.mxu0 0.0
      %3330 = vmatprep.subr.mxu0 0.0
      %3331 = vmatpush1.msra.mxu0 0.0
      %3332 = vmatprep.subr.mxu0 0.0
      %3333 = vmatpush1.msra.mxu0 0.0
      %3334 = vmatprep.subr.mxu0 0.0
      %3335 = vmatpush1.msra.mxu0 0.0
      %3336 = vmatprep.subr.mxu0 0.0
      %3337 = vmatpush1.msra.mxu0 0.0
      %3338 = vmatprep.subr.mxu0 0.0
      %3339 = vmatpush1.msra.mxu0 0.0
      %3340 = vmatprep.subr.mxu0 0.0
      %3341 = vmatpush1.msra.mxu0 0.0
      %3342 = vmatprep.mubr.f32.mxu0 0.0
      %3343 = vmatmul.mubr.f32.gmra.mrb[0].mxu0 %v3270
      %v3344 = vpop.f32.mrb[0].mxu0
      %v3345 = vadd.f32 0.0, %v3344
      %v3346 = vpop.f32.mrb[0].mxu0
      %3347 = vmatprep.mubr.f32.mxu0 0.0
      %3348 = vmatmul.mubr.f32.gmra.mrb[0].mxu0 %v3272
      %v3349 = vpop.f32.mrb[0].mxu0
      %v3350 = vadd.f32 0.0, %v3349
      %v3351 = vpop.f32.mrb[0].mxu0
      %3352 = vmatprep.mubr.f32.mxu0 0.0
      %3353 = vmatmul.mubr.f32.gmra.mrb[0].mxu0 %v3274
      %v3354 = vpop.f32.mrb[0].mxu0
      %v3355 = vadd.f32 0.0, %v3354
      %v3356 = vpop.f32.mrb[0].mxu0
      %3357 = vmatprep.mubr.f32.mxu0 0.0
      %3358 = vmatmul.mubr.f32.gmra.mrb[0].mxu0 %v3276
      %v3359 = vpop.f32.mrb[0].mxu0
      %v3360 = vadd.f32 0.0, %v3359
      %v3361 = vpop.f32.mrb[0].mxu0
      %3362 = vdwg.mxu0
      %v3363 = vadd.f32 %v3345, %v528
      %v3364 = vadd.f32 %v3350, %v528
      %v3365 = vadd.f32 %v3355, %v528
      %v3366 = vadd.f32 %v3360, %v528
      %3367 = vrot.lane.b32.xlu0 %v3109, 80
      %v3368 = vpop.permute.xlu0 %3367
      %3369 = vrot.lane.b32.xlu0 %v3110, 80
      %v3370 = vpop.permute.xlu0 %3369
      %3371 = vrot.lane.b32.xlu0 %v3111, 80
      %v3372 = vpop.permute.xlu0 %3371
      %3373 = vrot.lane.b32.xlu0 %v3112, 80
      %v3374 = vpop.permute.xlu0 %3373
      %v3375 = vsel %vm166, %v3368, 0
      %v3377 = vsel %vm166, %v3370, 0
      %v3379 = vsel %vm166, %v3372, 0
      %v3381 = vsel %vm166, %v3374, 0
      %3383 = vmatprep.subr.mxu0 0.0
      %3384 = vmatpush1.msra.mxu0 %v129
      %3385 = vmatprep.subr.mxu0 0.0
      %3386 = vmatpush1.msra.mxu0 0.0
      %3387 = vmatprep.subr.mxu0 0.0
      %3388 = vmatpush1.msra.mxu0 0.0
      %3389 = vmatprep.subr.mxu0 0.0
      %3390 = vmatpush1.msra.mxu0 0.0
      %3391 = vmatprep.subr.mxu0 0.0
      %3392 = vmatpush1.msra.mxu0 0.0
      %3393 = vmatprep.subr.mxu0 0.0
      %3394 = vmatpush1.msra.mxu0 0.0
      %3395 = vmatprep.subr.mxu0 0.0
      %3396 = vmatpush1.msra.mxu0 0.0
      %3397 = vmatprep.subr.mxu0 0.0
      %3398 = vmatpush1.msra.mxu0 0.0
      %3399 = vmatprep.subr.mxu0 0.0
      %3400 = vmatpush1.msra.mxu0 0.0
      %3401 = vmatprep.subr.mxu0 0.0
      %3402 = vmatpush1.msra.mxu0 0.0
      %3403 = vmatprep.subr.mxu0 0.0
      %3404 = vmatpush1.msra.mxu0 0.0
      %3405 = vmatprep.subr.mxu0 0.0
      %3406 = vmatpush1.msra.mxu0 0.0
      %3407 = vmatprep.subr.mxu0 0.0
      %3408 = vmatpush1.msra.mxu0 0.0
      %3409 = vmatprep.subr.mxu0 0.0
      %3410 = vmatpush1.msra.mxu0 0.0
      %3411 = vmatprep.subr.mxu0 0.0
      %3412 = vmatpush1.msra.mxu0 0.0
      %3413 = vmatprep.subr.mxu0 0.0
      %3414 = vmatpush1.msra.mxu0 0.0
      %3415 = vmatprep.subr.mxu0 0.0
      %3416 = vmatpush1.msra.mxu0 0.0
      %3417 = vmatprep.subr.mxu0 0.0
      %3418 = vmatpush1.msra.mxu0 0.0
      %3419 = vmatprep.subr.mxu0 0.0
      %3420 = vmatpush1.msra.mxu0 0.0
      %3421 = vmatprep.subr.mxu0 0.0
      %3422 = vmatpush1.msra.mxu0 0.0
      %3423 = vmatprep.subr.mxu0 0.0
      %3424 = vmatpush1.msra.mxu0 0.0
      %3425 = vmatprep.subr.mxu0 0.0
      %3426 = vmatpush1.msra.mxu0 0.0
      %3427 = vmatprep.subr.mxu0 0.0
      %3428 = vmatpush1.msra.mxu0 0.0
      %3429 = vmatprep.subr.mxu0 0.0
      %3430 = vmatpush1.msra.mxu0 0.0
      %3431 = vmatprep.subr.mxu0 0.0
      %3432 = vmatpush1.msra.mxu0 0.0
      %3433 = vmatprep.subr.mxu0 0.0
      %3434 = vmatpush1.msra.mxu0 0.0
      %3435 = vmatprep.subr.mxu0 0.0
      %3436 = vmatpush1.msra.mxu0 0.0
      %3437 = vmatprep.subr.mxu0 0.0
      %3438 = vmatpush1.msra.mxu0 0.0
      %3439 = vmatprep.subr.mxu0 0.0
      %3440 = vmatpush1.msra.mxu0 0.0
      %3441 = vmatprep.subr.mxu0 0.0
      %3442 = vmatpush1.msra.mxu0 0.0
      %3443 = vmatprep.subr.mxu0 0.0
      %3444 = vmatpush1.msra.mxu0 0.0
      %3445 = vmatprep.subr.mxu0 0.0
      %3446 = vmatpush1.msra.mxu0 0.0
      %3447 = vmatprep.mubr.f32.mxu0 0.0
      %3448 = vmatmul.mubr.f32.gmra.mrb[0].mxu0 %v3375
      %v3449 = vpop.f32.mrb[0].mxu0
      %v3450 = vadd.f32 0.0, %v3449
      %v3451 = vpop.f32.mrb[0].mxu0
      %3452 = vmatprep.mubr.f32.mxu0 0.0
      %3453 = vmatmul.mubr.f32.gmra.mrb[0].mxu0 %v3377
      %v3454 = vpop.f32.mrb[0].mxu0
      %v3455 = vadd.f32 0.0, %v3454
      %v3456 = vpop.f32.mrb[0].mxu0
      %3457 = vmatprep.mubr.f32.mxu0 0.0
      %3458 = vmatmul.mubr.f32.gmra.mrb[0].mxu0 %v3379
      %v3459 = vpop.f32.mrb[0].mxu0
      %v3460 = vadd.f32 0.0, %v3459
      %v3461 = vpop.f32.mrb[0].mxu0
      %3462 = vmatprep.mubr.f32.mxu0 0.0
      %3463 = vmatmul.mubr.f32.gmra.mrb[0].mxu0 %v3381
      %v3464 = vpop.f32.mrb[0].mxu0
      %v3465 = vadd.f32 0.0, %v3464
      %v3466 = vpop.f32.mrb[0].mxu0
      %3467 = vdwg.mxu0
      %3472 = vrot.lane.b32.xlu0 %v3450, 32
      %v3473 = vpop.permute.xlu0 %3472
      %3474 = vrot.lane.b32.xlu0 %v3455, 32
      %v3475 = vpop.permute.xlu0 %3474
      %3476 = vrot.lane.b32.xlu0 %v3460, 32
      %v3477 = vpop.permute.xlu0 %3476
      %3478 = vrot.lane.b32.xlu0 %v3465, 32
      %v3479 = vpop.permute.xlu0 %3478
      %v3484 = vadd.f32 %v3363, %v3473
      %v3485 = vadd.f32 %v3364, %v3475
      %v3486 = vadd.f32 %v3365, %v3477
      %v3487 = vadd.f32 %v3366, %v3479
      %v3488 = vxor.u32 %v3484, 2147483648
      %v3489 = vxor.u32 %v3485, 2147483648
      %v3490 = vxor.u32 %v3486, 2147483648
      %v3491 = vxor.u32 %v3487, 2147483648
      %v3492 = vmul.f32 %v3488, 1.442695
      %v3493 = vpow.pop %v3492
      %v3494 = vmul.f32 %v3489, 1.442695
      %v3495 = vpow.pop %v3494
      %v3496 = vmul.f32 %v3490, 1.442695
      %v3497 = vpow.pop %v3496
      %v3498 = vmul.f32 %v3491, 1.442695
      %v3499 = vpow.pop %v3498
      %v3500 = vadd.f32 %v3493, 1.0
      %v3501 = vadd.f32 %v3495, 1.0
      %v3502 = vadd.f32 %v3497, 1.0
      %v3503 = vadd.f32 %v3499, 1.0
      %v3504 = vrcp.pop %v3500
      %v3505 = vmul.f32 1.0, %v3504
      %v3506 = vrcp.pop %v3501
      %v3507 = vmul.f32 1.0, %v3506
      %v3508 = vrcp.pop %v3502
      %v3509 = vmul.f32 1.0, %v3508
      %v3510 = vrcp.pop %v3503
      %v3511 = vmul.f32 1.0, %v3510
      %v3512 = vtanh.pop %v3484
      %v3513 = vtanh.pop %v3485
      %v3514 = vtanh.pop %v3486
      %v3515 = vtanh.pop %v3487
      %v3516 = vmul.f32 %v3505, %v3085
      %v3517 = vmul.f32 %v3507, %v3086
      %v3518 = vmul.f32 %v3509, %v3087
      %v3519 = vmul.f32 %v3511, %v3088
      %3524 = vrot.lane.b32.xlu0 %v3512, 104
      %v3525 = vpop.permute.xlu0 %3524
      %3526 = vrot.lane.b32.xlu0 %v3513, 104
      %v3527 = vpop.permute.xlu0 %3526
      %3528 = vrot.lane.b32.xlu0 %v3514, 104
      %v3529 = vpop.permute.xlu0 %3528
      %3530 = vrot.lane.b32.xlu0 %v3515, 104
      %v3531 = vpop.permute.xlu0 %3530
      %v3536 = vmul.f32 %v3505, %v3525
      %v3537 = vmul.f32 %v3507, %v3527
      %v3538 = vmul.f32 %v3509, %v3529
      %v3539 = vmul.f32 %v3511, %v3531
      %3544 = vrot.lane.b32.xlu0 %v3536, 8
      %v3545 = vpop.permute.xlu0 %3544
      %3546 = vrot.lane.b32.xlu0 %v3537, 8
      %v3547 = vpop.permute.xlu0 %3546
      %3548 = vrot.lane.b32.xlu0 %v3538, 8
      %v3549 = vpop.permute.xlu0 %3548
      %3550 = vrot.lane.b32.xlu0 %v3539, 8
      %v3551 = vpop.permute.xlu0 %3550
      %v3556 = vadd.f32 %v3516, %v3545
      %v3557 = vadd.f32 %v3517, %v3547
      %v3558 = vadd.f32 %v3518, %v3549
      %v3559 = vadd.f32 %v3519, %v3551
      %v3560 = vtanh.pop %v3556
      %v3561 = vtanh.pop %v3557
      %v3562 = vtanh.pop %v3558
      %v3563 = vtanh.pop %v3559
      %3568 = vrot.lane.b32.xlu0 %v3560, 8
      %v3569 = vpop.permute.xlu0 %3568
      %3570 = vrot.lane.b32.xlu0 %v3561, 8
      %v3571 = vpop.permute.xlu0 %3570
      %3572 = vrot.lane.b32.xlu0 %v3562, 8
      %v3573 = vpop.permute.xlu0 %3572
      %3574 = vrot.lane.b32.xlu0 %v3563, 8
      %v3575 = vpop.permute.xlu0 %3574
      %v3580 = vmul.f32 %v3505, %v3569
      %v3581 = vmul.f32 %v3507, %v3571
      %v3582 = vmul.f32 %v3509, %v3573
      %v3583 = vmul.f32 %v3511, %v3575
      %vm3584 = vcmask 458112
      %3585 = vst.msk [vmem:[#allocation2] sm:$0xff] %vm3584, %v3580
      %3586 = vst.msk [vmem:[#allocation2 + $0x8] sm:$0xff] %vm3584, %v3581
      %3587 = vst.msk [vmem:[#allocation2 + $0x10] sm:$0xff] %vm3584, %v3582
      %3588 = vst.msk [vmem:[#allocation2 + $0x18] sm:$0xff] %vm3584, %v3583
      %3589 = vset.pattern.permute.xlu0 6
      %3590 = vperm.xlu0 %3589, %v418
      %v3591 = vpop.permute.xlu0 %3590
      %3593 = vset.pattern.permute.xlu0 6
      %3594 = vperm.xlu0 %3593, %v419
      %v3595 = vpop.permute.xlu0 %3594
      %3597 = vset.pattern.permute.xlu0 6
      %3598 = vperm.xlu0 %3597, %v420
      %v3599 = vpop.permute.xlu0 %3598
      %3601 = vset.pattern.permute.xlu0 6
      %3602 = vperm.xlu0 %3601, %v421
      %v3603 = vpop.permute.xlu0 %3602
      %v3605 = vmul.f32 %v3591, %v135
      %v3606 = vmul.f32 %v3595, %v135
      %v3607 = vmul.f32 %v3599, %v135
      %v3608 = vmul.f32 %v3603, %v135
      %v3609 = vadd.f32 %v3605, %v142
      %v3610 = vadd.f32 %v3606, %v142
      %v3611 = vadd.f32 %v3607, %v142
      %v3612 = vadd.f32 %v3608, %v142
      %v3613 = vadd.f32 %v3609, %v3345
      %v3614 = vadd.f32 %v3610, %v3350
      %v3615 = vadd.f32 %v3611, %v3355
      %v3616 = vadd.f32 %v3612, %v3360
      %v3617 = vxor.u32 %v3613, 2147483648
      %v3618 = vxor.u32 %v3614, 2147483648
      %v3619 = vxor.u32 %v3615, 2147483648
      %v3620 = vxor.u32 %v3616, 2147483648
      %v3621 = vmul.f32 %v3617, 1.442695
      %v3622 = vpow.pop %v3621
      %v3623 = vmul.f32 %v3618, 1.442695
      %v3624 = vpow.pop %v3623
      %v3625 = vmul.f32 %v3619, 1.442695
      %v3626 = vpow.pop %v3625
      %v3627 = vmul.f32 %v3620, 1.442695
      %v3628 = vpow.pop %v3627
      %v3629 = vadd.f32 %v3622, 1.0
      %v3630 = vadd.f32 %v3624, 1.0
      %v3631 = vadd.f32 %v3626, 1.0
      %v3632 = vadd.f32 %v3628, 1.0
      %v3633 = vrcp.pop %v3629
      %v3634 = vmul.f32 1.0, %v3633
      %v3635 = vrcp.pop %v3630
      %v3636 = vmul.f32 1.0, %v3635
      %v3637 = vrcp.pop %v3631
      %v3638 = vmul.f32 1.0, %v3637
      %v3639 = vrcp.pop %v3632
      %v3640 = vmul.f32 1.0, %v3639
      %v3641 = vtanh.pop %v3613
      %v3642 = vtanh.pop %v3614
      %v3643 = vtanh.pop %v3615
      %v3644 = vtanh.pop %v3616
      %v3645 = vmul.f32 %v3634, %v3230
      %v3646 = vmul.f32 %v3636, %v3231
      %v3647 = vmul.f32 %v3638, %v3232
      %v3648 = vmul.f32 %v3640, %v3233
      %3653 = vrot.lane.b32.xlu0 %v3641, 104
      %v3654 = vpop.permute.xlu0 %3653
      %3655 = vrot.lane.b32.xlu0 %v3642, 104
      %v3656 = vpop.permute.xlu0 %3655
      %3657 = vrot.lane.b32.xlu0 %v3643, 104
      %v3658 = vpop.permute.xlu0 %3657
      %3659 = vrot.lane.b32.xlu0 %v3644, 104
      %v3660 = vpop.permute.xlu0 %3659
      %v3665 = vmul.f32 %v3634, %v3654
      %v3666 = vmul.f32 %v3636, %v3656
      %v3667 = vmul.f32 %v3638, %v3658
      %v3668 = vmul.f32 %v3640, %v3660
      %3673 = vrot.lane.b32.xlu0 %v3665, 8
      %v3674 = vpop.permute.xlu0 %3673
      %3675 = vrot.lane.b32.xlu0 %v3666, 8
      %v3676 = vpop.permute.xlu0 %3675
      %3677 = vrot.lane.b32.xlu0 %v3667, 8
      %v3678 = vpop.permute.xlu0 %3677
      %3679 = vrot.lane.b32.xlu0 %v3668, 8
      %v3680 = vpop.permute.xlu0 %3679
      %v3685 = vadd.f32 %v3645, %v3674
      %v3686 = vadd.f32 %v3646, %v3676
      %v3687 = vadd.f32 %v3647, %v3678
      %v3688 = vadd.f32 %v3648, %v3680
      %v3689 = vtanh.pop %v3685
      %v3690 = vtanh.pop %v3686
      %v3691 = vtanh.pop %v3687
      %v3692 = vtanh.pop %v3688
      %3697 = vrot.lane.b32.xlu0 %v3689, 8
      %v3698 = vpop.permute.xlu0 %3697
      %3699 = vrot.lane.b32.xlu0 %v3690, 8
      %v3700 = vpop.permute.xlu0 %3699
      %3701 = vrot.lane.b32.xlu0 %v3691, 8
      %v3702 = vpop.permute.xlu0 %3701
      %3703 = vrot.lane.b32.xlu0 %v3692, 8
      %v3704 = vpop.permute.xlu0 %3703
      %v3709 = vmul.f32 %v3634, %v3698
      %v3710 = vmul.f32 %v3636, %v3700
      %v3711 = vmul.f32 %v3638, %v3702
      %v3712 = vmul.f32 %v3640, %v3704
      %3717 = vrot.lane.b32.xlu0 %v3709, 112
      %v3718 = vpop.permute.xlu0 %3717
      %3719 = vrot.lane.b32.xlu0 %v3710, 112
      %v3720 = vpop.permute.xlu0 %3719
      %3721 = vrot.lane.b32.xlu0 %v3711, 112
      %v3722 = vpop.permute.xlu0 %3721
      %3723 = vrot.lane.b32.xlu0 %v3712, 112
      %v3724 = vpop.permute.xlu0 %3723
      %v3725 = vsel %vm166, %v3718, 0
      %v3727 = vsel %vm166, %v3720, 0
      %v3729 = vsel %vm166, %v3722, 0
      %v3731 = vsel %vm166, %v3724, 0
      %3733 = vmatprep.subr.mxu0 0.0
      %3734 = vmatpush1.msra.mxu0 %v128
      %3735 = vmatprep.subr.mxu0 0.0
      %3736 = vmatpush1.msra.mxu0 0.0
      %3737 = vmatprep.subr.mxu0 0.0
      %3738 = vmatpush1.msra.mxu0 0.0
      %3739 = vmatprep.subr.mxu0 0.0
      %3740 = vmatpush1.msra.mxu0 0.0
      %3741 = vmatprep.subr.mxu0 0.0
      %3742 = vmatpush1.msra.mxu0 0.0
      %3743 = vmatprep.subr.mxu0 0.0
      %3744 = vmatpush1.msra.mxu0 0.0
      %3745 = vmatprep.subr.mxu0 0.0
      %3746 = vmatpush1.msra.mxu0 0.0
      %3747 = vmatprep.subr.mxu0 0.0
      %3748 = vmatpush1.msra.mxu0 0.0
      %3749 = vmatprep.subr.mxu0 0.0
      %3750 = vmatpush1.msra.mxu0 0.0
      %3751 = vmatprep.subr.mxu0 0.0
      %3752 = vmatpush1.msra.mxu0 0.0
      %3753 = vmatprep.subr.mxu0 0.0
      %3754 = vmatpush1.msra.mxu0 0.0
      %3755 = vmatprep.subr.mxu0 0.0
      %3756 = vmatpush1.msra.mxu0 0.0
      %3757 = vmatprep.subr.mxu0 0.0
      %3758 = vmatpush1.msra.mxu0 0.0
      %3759 = vmatprep.subr.mxu0 0.0
      %3760 = vmatpush1.msra.mxu0 0.0
      %3761 = vmatprep.subr.mxu0 0.0
      %3762 = vmatpush1.msra.mxu0 0.0
      %3763 = vmatprep.subr.mxu0 0.0
      %3764 = vmatpush1.msra.mxu0 0.0
      %3765 = vmatprep.subr.mxu0 0.0
      %3766 = vmatpush1.msra.mxu0 0.0
      %3767 = vmatprep.subr.mxu0 0.0
      %3768 = vmatpush1.msra.mxu0 0.0
      %3769 = vmatprep.subr.mxu0 0.0
      %3770 = vmatpush1.msra.mxu0 0.0
      %3771 = vmatprep.subr.mxu0 0.0
      %3772 = vmatpush1.msra.mxu0 0.0
      %3773 = vmatprep.subr.mxu0 0.0
      %3774 = vmatpush1.msra.mxu0 0.0
      %3775 = vmatprep.subr.mxu0 0.0
      %3776 = vmatpush1.msra.mxu0 0.0
      %3777 = vmatprep.subr.mxu0 0.0
      %3778 = vmatpush1.msra.mxu0 0.0
      %3779 = vmatprep.subr.mxu0 0.0
      %3780 = vmatpush1.msra.mxu0 0.0
      %3781 = vmatprep.subr.mxu0 0.0
      %3782 = vmatpush1.msra.mxu0 0.0
      %3783 = vmatprep.subr.mxu0 0.0
      %3784 = vmatpush1.msra.mxu0 0.0
      %3785 = vmatprep.subr.mxu0 0.0
      %3786 = vmatpush1.msra.mxu0 0.0
      %3787 = vmatprep.subr.mxu0 0.0
      %3788 = vmatpush1.msra.mxu0 0.0
      %3789 = vmatprep.subr.mxu0 0.0
      %3790 = vmatpush1.msra.mxu0 0.0
      %3791 = vmatprep.subr.mxu0 0.0
      %3792 = vmatpush1.msra.mxu0 0.0
      %3793 = vmatprep.subr.mxu0 0.0
      %3794 = vmatpush1.msra.mxu0 0.0
      %3795 = vmatprep.subr.mxu0 0.0
      %3796 = vmatpush1.msra.mxu0 0.0
      %3797 = vmatprep.mubr.f32.mxu0 0.0
      %3798 = vmatmul.mubr.f32.gmra.mrb[0].mxu0 %v3725
      %v3799 = vpop.f32.mrb[0].mxu0
      %v3800 = vadd.f32 0.0, %v3799
      %v3801 = vpop.f32.mrb[0].mxu0
      %3802 = vmatprep.mubr.f32.mxu0 0.0
      %3803 = vmatmul.mubr.f32.gmra.mrb[0].mxu0 %v3727
      %v3804 = vpop.f32.mrb[0].mxu0
      %v3805 = vadd.f32 0.0, %v3804
      %v3806 = vpop.f32.mrb[0].mxu0
      %3807 = vmatprep.mubr.f32.mxu0 0.0
      %3808 = vmatmul.mubr.f32.gmra.mrb[0].mxu0 %v3729
      %v3809 = vpop.f32.mrb[0].mxu0
      %v3810 = vadd.f32 0.0, %v3809
      %v3811 = vpop.f32.mrb[0].mxu0
      %3812 = vmatprep.mubr.f32.mxu0 0.0
      %3813 = vmatmul.mubr.f32.gmra.mrb[0].mxu0 %v3731
      %v3814 = vpop.f32.mrb[0].mxu0
      %v3815 = vadd.f32 0.0, %v3814
      %v3816 = vpop.f32.mrb[0].mxu0
      %3817 = vdwg.mxu0
      %v3818 = vadd.f32 %v3800, %v528
      %v3819 = vadd.f32 %v3805, %v528
      %v3820 = vadd.f32 %v3810, %v528
      %v3821 = vadd.f32 %v3815, %v528
      %3826 = vrot.lane.b32.xlu0 %v3580, 80
      %v3827 = vpop.permute.xlu0 %3826
      %3828 = vrot.lane.b32.xlu0 %v3581, 80
      %v3829 = vpop.permute.xlu0 %3828
      %3830 = vrot.lane.b32.xlu0 %v3582, 80
      %v3831 = vpop.permute.xlu0 %3830
      %3832 = vrot.lane.b32.xlu0 %v3583, 80
      %v3833 = vpop.permute.xlu0 %3832
      %v3834 = vsel %vm166, %v3827, 0
      %v3836 = vsel %vm166, %v3829, 0
      %v3838 = vsel %vm166, %v3831, 0
      %v3840 = vsel %vm166, %v3833, 0
      %3842 = vmatprep.subr.mxu0 0.0
      %3843 = vmatpush1.msra.mxu0 %v129
      %3844 = vmatprep.subr.mxu0 0.0
      %3845 = vmatpush1.msra.mxu0 0.0
      %3846 = vmatprep.subr.mxu0 0.0
      %3847 = vmatpush1.msra.mxu0 0.0
      %3848 = vmatprep.subr.mxu0 0.0
      %3849 = vmatpush1.msra.mxu0 0.0
      %3850 = vmatprep.subr.mxu0 0.0
      %3851 = vmatpush1.msra.mxu0 0.0
      %3852 = vmatprep.subr.mxu0 0.0
      %3853 = vmatpush1.msra.mxu0 0.0
      %3854 = vmatprep.subr.mxu0 0.0
      %3855 = vmatpush1.msra.mxu0 0.0
      %3856 = vmatprep.subr.mxu0 0.0
      %3857 = vmatpush1.msra.mxu0 0.0
      %3858 = vmatprep.subr.mxu0 0.0
      %3859 = vmatpush1.msra.mxu0 0.0
      %3860 = vmatprep.subr.mxu0 0.0
      %3861 = vmatpush1.msra.mxu0 0.0
      %3862 = vmatprep.subr.mxu0 0.0
      %3863 = vmatpush1.msra.mxu0 0.0
      %3864 = vmatprep.subr.mxu0 0.0
      %3865 = vmatpush1.msra.mxu0 0.0
      %3866 = vmatprep.subr.mxu0 0.0
      %3867 = vmatpush1.msra.mxu0 0.0
      %3868 = vmatprep.subr.mxu0 0.0
      %3869 = vmatpush1.msra.mxu0 0.0
      %3870 = vmatprep.subr.mxu0 0.0
      %3871 = vmatpush1.msra.mxu0 0.0
      %3872 = vmatprep.subr.mxu0 0.0
      %3873 = vmatpush1.msra.mxu0 0.0
      %3874 = vmatprep.subr.mxu0 0.0
      %3875 = vmatpush1.msra.mxu0 0.0
      %3876 = vmatprep.subr.mxu0 0.0
      %3877 = vmatpush1.msra.mxu0 0.0
      %3878 = vmatprep.subr.mxu0 0.0
      %3879 = vmatpush1.msra.mxu0 0.0
      %3880 = vmatprep.subr.mxu0 0.0
      %3881 = vmatpush1.msra.mxu0 0.0
      %3882 = vmatprep.subr.mxu0 0.0
      %3883 = vmatpush1.msra.mxu0 0.0
      %3884 = vmatprep.subr.mxu0 0.0
      %3885 = vmatpush1.msra.mxu0 0.0
      %3886 = vmatprep.subr.mxu0 0.0
      %3887 = vmatpush1.msra.mxu0 0.0
      %3888 = vmatprep.subr.mxu0 0.0
      %3889 = vmatpush1.msra.mxu0 0.0
      %3890 = vmatprep.subr.mxu0 0.0
      %3891 = vmatpush1.msra.mxu0 0.0
      %3892 = vmatprep.subr.mxu0 0.0
      %3893 = vmatpush1.msra.mxu0 0.0
      %3894 = vmatprep.subr.mxu0 0.0
      %3895 = vmatpush1.msra.mxu0 0.0
      %3896 = vmatprep.subr.mxu0 0.0
      %3897 = vmatpush1.msra.mxu0 0.0
      %3898 = vmatprep.subr.mxu0 0.0
      %3899 = vmatpush1.msra.mxu0 0.0
      %3900 = vmatprep.subr.mxu0 0.0
      %3901 = vmatpush1.msra.mxu0 0.0
      %3902 = vmatprep.subr.mxu0 0.0
      %3903 = vmatpush1.msra.mxu0 0.0
      %3904 = vmatprep.subr.mxu0 0.0
      %3905 = vmatpush1.msra.mxu0 0.0
      %3906 = vmatprep.mubr.f32.mxu0 0.0
      %3907 = vmatmul.mubr.f32.gmra.mrb[0].mxu0 %v3834
      %v3908 = vpop.f32.mrb[0].mxu0
      %v3909 = vadd.f32 0.0, %v3908
      %v3910 = vpop.f32.mrb[0].mxu0
      %3911 = vmatprep.mubr.f32.mxu0 0.0
      %3912 = vmatmul.mubr.f32.gmra.mrb[0].mxu0 %v3836
      %v3913 = vpop.f32.mrb[0].mxu0
      %v3914 = vadd.f32 0.0, %v3913
      %v3915 = vpop.f32.mrb[0].mxu0
      %3916 = vmatprep.mubr.f32.mxu0 0.0
      %3917 = vmatmul.mubr.f32.gmra.mrb[0].mxu0 %v3838
      %v3918 = vpop.f32.mrb[0].mxu0
      %v3919 = vadd.f32 0.0, %v3918
      %v3920 = vpop.f32.mrb[0].mxu0
      %3921 = vmatprep.mubr.f32.mxu0 0.0
      %3922 = vmatmul.mubr.f32.gmra.mrb[0].mxu0 %v3840
      %v3923 = vpop.f32.mrb[0].mxu0
      %v3924 = vadd.f32 0.0, %v3923
      %v3925 = vpop.f32.mrb[0].mxu0
      %3926 = vdwg.mxu0
      %3931 = vrot.lane.b32.xlu0 %v3909, 32
      %v3932 = vpop.permute.xlu0 %3931
      %3933 = vrot.lane.b32.xlu0 %v3914, 32
      %v3934 = vpop.permute.xlu0 %3933
      %3935 = vrot.lane.b32.xlu0 %v3919, 32
      %v3936 = vpop.permute.xlu0 %3935
      %3937 = vrot.lane.b32.xlu0 %v3924, 32
      %v3938 = vpop.permute.xlu0 %3937
      %v3943 = vadd.f32 %v3818, %v3932
      %v3944 = vadd.f32 %v3819, %v3934
      %v3945 = vadd.f32 %v3820, %v3936
      %v3946 = vadd.f32 %v3821, %v3938
      %v3947 = vxor.u32 %v3943, 2147483648
      %v3948 = vxor.u32 %v3944, 2147483648
      %v3949 = vxor.u32 %v3945, 2147483648
      %v3950 = vxor.u32 %v3946, 2147483648
      %v3951 = vmul.f32 %v3947, 1.442695
      %v3952 = vpow.pop %v3951
      %v3953 = vmul.f32 %v3948, 1.442695
      %v3954 = vpow.pop %v3953
      %v3955 = vmul.f32 %v3949, 1.442695
      %v3956 = vpow.pop %v3955
      %v3957 = vmul.f32 %v3950, 1.442695
      %v3958 = vpow.pop %v3957
      %v3959 = vadd.f32 %v3952, 1.0
      %v3960 = vadd.f32 %v3954, 1.0
      %v3961 = vadd.f32 %v3956, 1.0
      %v3962 = vadd.f32 %v3958, 1.0
      %v3963 = vrcp.pop %v3959
      %v3964 = vmul.f32 1.0, %v3963
      %v3965 = vrcp.pop %v3960
      %v3966 = vmul.f32 1.0, %v3965
      %v3967 = vrcp.pop %v3961
      %v3968 = vmul.f32 1.0, %v3967
      %v3969 = vrcp.pop %v3962
      %v3970 = vmul.f32 1.0, %v3969
      %v3971 = vtanh.pop %v3943
      %v3972 = vtanh.pop %v3944
      %v3973 = vtanh.pop %v3945
      %v3974 = vtanh.pop %v3946
      %v3975 = vmul.f32 %v3964, %v3556
      %v3976 = vmul.f32 %v3966, %v3557
      %v3977 = vmul.f32 %v3968, %v3558
      %v3978 = vmul.f32 %v3970, %v3559
      %3983 = vrot.lane.b32.xlu0 %v3971, 104
      %v3984 = vpop.permute.xlu0 %3983
      %3985 = vrot.lane.b32.xlu0 %v3972, 104
      %v3986 = vpop.permute.xlu0 %3985
      %3987 = vrot.lane.b32.xlu0 %v3973, 104
      %v3988 = vpop.permute.xlu0 %3987
      %3989 = vrot.lane.b32.xlu0 %v3974, 104
      %v3990 = vpop.permute.xlu0 %3989
      %v3995 = vmul.f32 %v3964, %v3984
      %v3996 = vmul.f32 %v3966, %v3986
      %v3997 = vmul.f32 %v3968, %v3988
      %v3998 = vmul.f32 %v3970, %v3990
      %4003 = vrot.lane.b32.xlu0 %v3995, 8
      %v4004 = vpop.permute.xlu0 %4003
      %4005 = vrot.lane.b32.xlu0 %v3996, 8
      %v4006 = vpop.permute.xlu0 %4005
      %4007 = vrot.lane.b32.xlu0 %v3997, 8
      %v4008 = vpop.permute.xlu0 %4007
      %4009 = vrot.lane.b32.xlu0 %v3998, 8
      %v4010 = vpop.permute.xlu0 %4009
      %v4015 = vadd.f32 %v3975, %v4004
      %v4016 = vadd.f32 %v3976, %v4006
      %v4017 = vadd.f32 %v3977, %v4008
      %v4018 = vadd.f32 %v3978, %v4010
      %v4019 = vtanh.pop %v4015
      %v4020 = vtanh.pop %v4016
      %v4021 = vtanh.pop %v4017
      %v4022 = vtanh.pop %v4018
      %4027 = vrot.lane.b32.xlu0 %v4019, 8
      %v4028 = vpop.permute.xlu0 %4027
      %4029 = vrot.lane.b32.xlu0 %v4020, 8
      %v4030 = vpop.permute.xlu0 %4029
      %4031 = vrot.lane.b32.xlu0 %v4021, 8
      %v4032 = vpop.permute.xlu0 %4031
      %4033 = vrot.lane.b32.xlu0 %v4022, 8
      %v4034 = vpop.permute.xlu0 %4033
      %v4039 = vmul.f32 %v3964, %v4028
      %v4040 = vmul.f32 %v3966, %v4030
      %v4041 = vmul.f32 %v3968, %v4032
      %v4042 = vmul.f32 %v3970, %v4034
      %4047 = vrot.lane.b32.xlu0 %v4039, 8
      %v4048 = vpop.permute.xlu0 %4047
      %4049 = vrot.lane.b32.xlu0 %v4040, 8
      %v4050 = vpop.permute.xlu0 %4049
      %4051 = vrot.lane.b32.xlu0 %v4041, 8
      %v4052 = vpop.permute.xlu0 %4051
      %4053 = vrot.lane.b32.xlu0 %v4042, 8
      %v4054 = vpop.permute.xlu0 %4053
      %vm4059 = vcmask 523712
      %4060 = vst.msk [vmem:[#allocation2] sm:$0xff] %vm4059, %v4048
      %4061 = vst.msk [vmem:[#allocation2 + $0x8] sm:$0xff] %vm4059, %v4050
      %4062 = vst.msk [vmem:[#allocation2 + $0x10] sm:$0xff] %vm4059, %v4052
      %4063 = vst.msk [vmem:[#allocation2 + $0x18] sm:$0xff] %vm4059, %v4054
      %4064 = vset.pattern.permute.xlu0 7
      %4065 = vperm.xlu0 %4064, %v418
      %v4066 = vpop.permute.xlu0 %4065
      %4068 = vset.pattern.permute.xlu0 7
      %4069 = vperm.xlu0 %4068, %v419
      %v4070 = vpop.permute.xlu0 %4069
      %4072 = vset.pattern.permute.xlu0 7
      %4073 = vperm.xlu0 %4072, %v420
      %v4074 = vpop.permute.xlu0 %4073
      %4076 = vset.pattern.permute.xlu0 7
      %4077 = vperm.xlu0 %4076, %v421
      %v4078 = vpop.permute.xlu0 %4077
      %v4080 = vmul.f32 %v4066, %v135
      %v4081 = vmul.f32 %v4070, %v135
      %v4082 = vmul.f32 %v4074, %v135
      %v4083 = vmul.f32 %v4078, %v135
      %v4084 = vadd.f32 %v4080, %v142
      %v4085 = vadd.f32 %v4081, %v142
      %v4086 = vadd.f32 %v4082, %v142
      %v4087 = vadd.f32 %v4083, %v142
      %v4088 = vadd.f32 %v4084, %v3800
      %v4089 = vadd.f32 %v4085, %v3805
      %v4090 = vadd.f32 %v4086, %v3810
      %v4091 = vadd.f32 %v4087, %v3815
      %v4092 = vxor.u32 %v4088, 2147483648
      %v4093 = vxor.u32 %v4089, 2147483648
      %v4094 = vxor.u32 %v4090, 2147483648
      %v4095 = vxor.u32 %v4091, 2147483648
      %v4096 = vmul.f32 %v4092, 1.442695
      %v4097 = vpow.pop %v4096
      %v4098 = vmul.f32 %v4093, 1.442695
      %v4099 = vpow.pop %v4098
      %v4100 = vmul.f32 %v4094, 1.442695
      %v4101 = vpow.pop %v4100
      %v4102 = vmul.f32 %v4095, 1.442695
      %v4103 = vpow.pop %v4102
      %v4104 = vadd.f32 %v4097, 1.0
      %v4105 = vadd.f32 %v4099, 1.0
      %v4106 = vadd.f32 %v4101, 1.0
      %v4107 = vadd.f32 %v4103, 1.0
      %v4108 = vrcp.pop %v4104
      %v4109 = vmul.f32 1.0, %v4108
      %v4110 = vrcp.pop %v4105
      %v4111 = vmul.f32 1.0, %v4110
      %v4112 = vrcp.pop %v4106
      %v4113 = vmul.f32 1.0, %v4112
      %v4114 = vrcp.pop %v4107
      %v4115 = vmul.f32 1.0, %v4114
      %v4116 = vtanh.pop %v4088
      %v4117 = vtanh.pop %v4089
      %v4118 = vtanh.pop %v4090
      %v4119 = vtanh.pop %v4091
      %v4120 = vmul.f32 %v4109, %v3685
      %v4121 = vmul.f32 %v4111, %v3686
      %v4122 = vmul.f32 %v4113, %v3687
      %v4123 = vmul.f32 %v4115, %v3688
      %4128 = vrot.lane.b32.xlu0 %v4116, 104
      %v4129 = vpop.permute.xlu0 %4128
      %4130 = vrot.lane.b32.xlu0 %v4117, 104
      %v4131 = vpop.permute.xlu0 %4130
      %4132 = vrot.lane.b32.xlu0 %v4118, 104
      %v4133 = vpop.permute.xlu0 %4132
      %4134 = vrot.lane.b32.xlu0 %v4119, 104
      %v4135 = vpop.permute.xlu0 %4134
      %v4140 = vmul.f32 %v4109, %v4129
      %v4141 = vmul.f32 %v4111, %v4131
      %v4142 = vmul.f32 %v4113, %v4133
      %v4143 = vmul.f32 %v4115, %v4135
      %4148 = vrot.lane.b32.xlu0 %v4140, 8
      %v4149 = vpop.permute.xlu0 %4148
      %4150 = vrot.lane.b32.xlu0 %v4141, 8
      %v4151 = vpop.permute.xlu0 %4150
      %4152 = vrot.lane.b32.xlu0 %v4142, 8
      %v4153 = vpop.permute.xlu0 %4152
      %4154 = vrot.lane.b32.xlu0 %v4143, 8
      %v4155 = vpop.permute.xlu0 %4154
      %v4160 = vadd.f32 %v4120, %v4149
      %v4161 = vadd.f32 %v4121, %v4151
      %v4162 = vadd.f32 %v4122, %v4153
      %v4163 = vadd.f32 %v4123, %v4155
      %v4164 = vtanh.pop %v4160
      %v4165 = vtanh.pop %v4161
      %v4166 = vtanh.pop %v4162
      %v4167 = vtanh.pop %v4163
      %4172 = vrot.lane.b32.xlu0 %v4164, 8
      %v4173 = vpop.permute.xlu0 %4172
      %4174 = vrot.lane.b32.xlu0 %v4165, 8
      %v4175 = vpop.permute.xlu0 %4174
      %4176 = vrot.lane.b32.xlu0 %v4166, 8
      %v4177 = vpop.permute.xlu0 %4176
      %4178 = vrot.lane.b32.xlu0 %v4167, 8
      %v4179 = vpop.permute.xlu0 %4178
      %v4184 = vmul.f32 %v4109, %v4173
      %v4185 = vmul.f32 %v4111, %v4175
      %v4186 = vmul.f32 %v4113, %v4177
      %v4187 = vmul.f32 %v4115, %v4179
      %4192 = vrot.lane.b32.xlu0 %v4184, 112
      %v4193 = vpop.permute.xlu0 %4192
      %4194 = vrot.lane.b32.xlu0 %v4185, 112
      %v4195 = vpop.permute.xlu0 %4194
      %4196 = vrot.lane.b32.xlu0 %v4186, 112
      %v4197 = vpop.permute.xlu0 %4196
      %4198 = vrot.lane.b32.xlu0 %v4187, 112
      %v4199 = vpop.permute.xlu0 %4198
      %v4200 = vsel %vm166, %v4193, 0
      %v4202 = vsel %vm166, %v4195, 0
      %v4204 = vsel %vm166, %v4197, 0
      %v4206 = vsel %vm166, %v4199, 0
      %4208 = vmatprep.subr.mxu0 0.0
      %4209 = vmatpush1.msra.mxu0 %v128
      %4210 = vmatprep.subr.mxu0 0.0
      %4211 = vmatpush1.msra.mxu0 0.0
      %4212 = vmatprep.subr.mxu0 0.0
      %4213 = vmatpush1.msra.mxu0 0.0
      %4214 = vmatprep.subr.mxu0 0.0
      %4215 = vmatpush1.msra.mxu0 0.0
      %4216 = vmatprep.subr.mxu0 0.0
      %4217 = vmatpush1.msra.mxu0 0.0
      %4218 = vmatprep.subr.mxu0 0.0
      %4219 = vmatpush1.msra.mxu0 0.0
      %4220 = vmatprep.subr.mxu0 0.0
      %4221 = vmatpush1.msra.mxu0 0.0
      %4222 = vmatprep.subr.mxu0 0.0
      %4223 = vmatpush1.msra.mxu0 0.0
      %4224 = vmatprep.subr.mxu0 0.0
      %4225 = vmatpush1.msra.mxu0 0.0
      %4226 = vmatprep.subr.mxu0 0.0
      %4227 = vmatpush1.msra.mxu0 0.0
      %4228 = vmatprep.subr.mxu0 0.0
      %4229 = vmatpush1.msra.mxu0 0.0
      %4230 = vmatprep.subr.mxu0 0.0
      %4231 = vmatpush1.msra.mxu0 0.0
      %4232 = vmatprep.subr.mxu0 0.0
      %4233 = vmatpush1.msra.mxu0 0.0
      %4234 = vmatprep.subr.mxu0 0.0
      %4235 = vmatpush1.msra.mxu0 0.0
      %4236 = vmatprep.subr.mxu0 0.0
      %4237 = vmatpush1.msra.mxu0 0.0
      %4238 = vmatprep.subr.mxu0 0.0
      %4239 = vmatpush1.msra.mxu0 0.0
      %4240 = vmatprep.subr.mxu0 0.0
      %4241 = vmatpush1.msra.mxu0 0.0
      %4242 = vmatprep.subr.mxu0 0.0
      %4243 = vmatpush1.msra.mxu0 0.0
      %4244 = vmatprep.subr.mxu0 0.0
      %4245 = vmatpush1.msra.mxu0 0.0
      %4246 = vmatprep.subr.mxu0 0.0
      %4247 = vmatpush1.msra.mxu0 0.0
      %4248 = vmatprep.subr.mxu0 0.0
      %4249 = vmatpush1.msra.mxu0 0.0
      %4250 = vmatprep.subr.mxu0 0.0
      %4251 = vmatpush1.msra.mxu0 0.0
      %4252 = vmatprep.subr.mxu0 0.0
      %4253 = vmatpush1.msra.mxu0 0.0
      %4254 = vmatprep.subr.mxu0 0.0
      %4255 = vmatpush1.msra.mxu0 0.0
      %4256 = vmatprep.subr.mxu0 0.0
      %4257 = vmatpush1.msra.mxu0 0.0
      %4258 = vmatprep.subr.mxu0 0.0
      %4259 = vmatpush1.msra.mxu0 0.0
      %4260 = vmatprep.subr.mxu0 0.0
      %4261 = vmatpush1.msra.mxu0 0.0
      %4262 = vmatprep.subr.mxu0 0.0
      %4263 = vmatpush1.msra.mxu0 0.0
      %4264 = vmatprep.subr.mxu0 0.0
      %4265 = vmatpush1.msra.mxu0 0.0
      %4266 = vmatprep.subr.mxu0 0.0
      %4267 = vmatpush1.msra.mxu0 0.0
      %4268 = vmatprep.subr.mxu0 0.0
      %4269 = vmatpush1.msra.mxu0 0.0
      %4270 = vmatprep.subr.mxu0 0.0
      %4271 = vmatpush1.msra.mxu0 0.0
      %4272 = vmatprep.mubr.f32.mxu0 0.0
      %4273 = vmatmul.mubr.f32.gmra.mrb[0].mxu0 %v4200
      %v4274 = vpop.f32.mrb[0].mxu0
      %v4275 = vadd.f32 0.0, %v4274
      %v4276 = vpop.f32.mrb[0].mxu0
      %4277 = vmatprep.mubr.f32.mxu0 0.0
      %4278 = vmatmul.mubr.f32.gmra.mrb[0].mxu0 %v4202
      %v4279 = vpop.f32.mrb[0].mxu0
      %v4280 = vadd.f32 0.0, %v4279
      %v4281 = vpop.f32.mrb[0].mxu0
      %4282 = vmatprep.mubr.f32.mxu0 0.0
      %4283 = vmatmul.mubr.f32.gmra.mrb[0].mxu0 %v4204
      %v4284 = vpop.f32.mrb[0].mxu0
      %v4285 = vadd.f32 0.0, %v4284
      %v4286 = vpop.f32.mrb[0].mxu0
      %4287 = vmatprep.mubr.f32.mxu0 0.0
      %4288 = vmatmul.mubr.f32.gmra.mrb[0].mxu0 %v4206
      %v4289 = vpop.f32.mrb[0].mxu0
      %v4290 = vadd.f32 0.0, %v4289
      %v4291 = vpop.f32.mrb[0].mxu0
      %4292 = vdwg.mxu0
      %v4293 = vadd.f32 %v4275, %v528
      %v4294 = vadd.f32 %v4280, %v528
      %v4295 = vadd.f32 %v4285, %v528
      %v4296 = vadd.f32 %v4290, %v528
      %4297 = vrot.lane.b32.xlu0 %v4039, 80
      %v4298 = vpop.permute.xlu0 %4297
      %4299 = vrot.lane.b32.xlu0 %v4040, 80
      %v4300 = vpop.permute.xlu0 %4299
      %4301 = vrot.lane.b32.xlu0 %v4041, 80
      %v4302 = vpop.permute.xlu0 %4301
      %4303 = vrot.lane.b32.xlu0 %v4042, 80
      %v4304 = vpop.permute.xlu0 %4303
      %v4305 = vsel %vm166, %v4298, 0
      %v4307 = vsel %vm166, %v4300, 0
      %v4309 = vsel %vm166, %v4302, 0
      %v4311 = vsel %vm166, %v4304, 0
      %4313 = vmatprep.subr.mxu0 0.0
      %4314 = vmatpush1.msra.mxu0 %v129
      %4315 = vmatprep.subr.mxu0 0.0
      %4316 = vmatpush1.msra.mxu0 0.0
      %4317 = vmatprep.subr.mxu0 0.0
      %4318 = vmatpush1.msra.mxu0 0.0
      %4319 = vmatprep.subr.mxu0 0.0
      %4320 = vmatpush1.msra.mxu0 0.0
      %4321 = vmatprep.subr.mxu0 0.0
      %4322 = vmatpush1.msra.mxu0 0.0
      %4323 = vmatprep.subr.mxu0 0.0
      %4324 = vmatpush1.msra.mxu0 0.0
      %4325 = vmatprep.subr.mxu0 0.0
      %4326 = vmatpush1.msra.mxu0 0.0
      %4327 = vmatprep.subr.mxu0 0.0
      %4328 = vmatpush1.msra.mxu0 0.0
      %4329 = vmatprep.subr.mxu0 0.0
      %4330 = vmatpush1.msra.mxu0 0.0
      %4331 = vmatprep.subr.mxu0 0.0
      %4332 = vmatpush1.msra.mxu0 0.0
      %4333 = vmatprep.subr.mxu0 0.0
      %4334 = vmatpush1.msra.mxu0 0.0
      %4335 = vmatprep.subr.mxu0 0.0
      %4336 = vmatpush1.msra.mxu0 0.0
      %4337 = vmatprep.subr.mxu0 0.0
      %4338 = vmatpush1.msra.mxu0 0.0
      %4339 = vmatprep.subr.mxu0 0.0
      %4340 = vmatpush1.msra.mxu0 0.0
      %4341 = vmatprep.subr.mxu0 0.0
      %4342 = vmatpush1.msra.mxu0 0.0
      %4343 = vmatprep.subr.mxu0 0.0
      %4344 = vmatpush1.msra.mxu0 0.0
      %4345 = vmatprep.subr.mxu0 0.0
      %4346 = vmatpush1.msra.mxu0 0.0
      %4347 = vmatprep.subr.mxu0 0.0
      %4348 = vmatpush1.msra.mxu0 0.0
      %4349 = vmatprep.subr.mxu0 0.0
      %4350 = vmatpush1.msra.mxu0 0.0
      %4351 = vmatprep.subr.mxu0 0.0
      %4352 = vmatpush1.msra.mxu0 0.0
      %4353 = vmatprep.subr.mxu0 0.0
      %4354 = vmatpush1.msra.mxu0 0.0
      %4355 = vmatprep.subr.mxu0 0.0
      %4356 = vmatpush1.msra.mxu0 0.0
      %4357 = vmatprep.subr.mxu0 0.0
      %4358 = vmatpush1.msra.mxu0 0.0
      %4359 = vmatprep.subr.mxu0 0.0
      %4360 = vmatpush1.msra.mxu0 0.0
      %4361 = vmatprep.subr.mxu0 0.0
      %4362 = vmatpush1.msra.mxu0 0.0
      %4363 = vmatprep.subr.mxu0 0.0
      %4364 = vmatpush1.msra.mxu0 0.0
      %4365 = vmatprep.subr.mxu0 0.0
      %4366 = vmatpush1.msra.mxu0 0.0
      %4367 = vmatprep.subr.mxu0 0.0
      %4368 = vmatpush1.msra.mxu0 0.0
      %4369 = vmatprep.subr.mxu0 0.0
      %4370 = vmatpush1.msra.mxu0 0.0
      %4371 = vmatprep.subr.mxu0 0.0
      %4372 = vmatpush1.msra.mxu0 0.0
      %4373 = vmatprep.subr.mxu0 0.0
      %4374 = vmatpush1.msra.mxu0 0.0
      %4375 = vmatprep.subr.mxu0 0.0
      %4376 = vmatpush1.msra.mxu0 0.0
      %4377 = vmatprep.mubr.f32.mxu0 0.0
      %4378 = vmatmul.mubr.f32.gmra.mrb[0].mxu0 %v4305
      %v4379 = vpop.f32.mrb[0].mxu0
      %v4380 = vadd.f32 0.0, %v4379
      %v4381 = vpop.f32.mrb[0].mxu0
      %4382 = vmatprep.mubr.f32.mxu0 0.0
      %4383 = vmatmul.mubr.f32.gmra.mrb[0].mxu0 %v4307
      %v4384 = vpop.f32.mrb[0].mxu0
      %v4385 = vadd.f32 0.0, %v4384
      %v4386 = vpop.f32.mrb[0].mxu0
      %4387 = vmatprep.mubr.f32.mxu0 0.0
      %4388 = vmatmul.mubr.f32.gmra.mrb[0].mxu0 %v4309
      %v4389 = vpop.f32.mrb[0].mxu0
      %v4390 = vadd.f32 0.0, %v4389
      %v4391 = vpop.f32.mrb[0].mxu0
      %4392 = vmatprep.mubr.f32.mxu0 0.0
      %4393 = vmatmul.mubr.f32.gmra.mrb[0].mxu0 %v4311
      %v4394 = vpop.f32.mrb[0].mxu0
      %v4395 = vadd.f32 0.0, %v4394
      %v4396 = vpop.f32.mrb[0].mxu0
      %4397 = vdwg.mxu0
      %4402 = vrot.lane.b32.xlu0 %v4380, 32
      %v4403 = vpop.permute.xlu0 %4402
      %4404 = vrot.lane.b32.xlu0 %v4385, 32
      %v4405 = vpop.permute.xlu0 %4404
      %4406 = vrot.lane.b32.xlu0 %v4390, 32
      %v4407 = vpop.permute.xlu0 %4406
      %4408 = vrot.lane.b32.xlu0 %v4395, 32
      %v4409 = vpop.permute.xlu0 %4408
      %v4414 = vadd.f32 %v4293, %v4403
      %v4415 = vadd.f32 %v4294, %v4405
      %v4416 = vadd.f32 %v4295, %v4407
      %v4417 = vadd.f32 %v4296, %v4409
      %v4418 = vxor.u32 %v4414, 2147483648
      %v4419 = vxor.u32 %v4415, 2147483648
      %v4420 = vxor.u32 %v4416, 2147483648
      %v4421 = vxor.u32 %v4417, 2147483648
      %v4422 = vmul.f32 %v4418, 1.442695
      %v4423 = vpow.pop %v4422
      %v4424 = vmul.f32 %v4419, 1.442695
      %v4425 = vpow.pop %v4424
      %v4426 = vmul.f32 %v4420, 1.442695
      %v4427 = vpow.pop %v4426
      %v4428 = vmul.f32 %v4421, 1.442695
      %v4429 = vpow.pop %v4428
      %v4430 = vadd.f32 %v4423, 1.0
      %v4431 = vadd.f32 %v4425, 1.0
      %v4432 = vadd.f32 %v4427, 1.0
      %v4433 = vadd.f32 %v4429, 1.0
      %v4434 = vrcp.pop %v4430
      %v4435 = vmul.f32 1.0, %v4434
      %v4436 = vrcp.pop %v4431
      %v4437 = vmul.f32 1.0, %v4436
      %v4438 = vrcp.pop %v4432
      %v4439 = vmul.f32 1.0, %v4438
      %v4440 = vrcp.pop %v4433
      %v4441 = vmul.f32 1.0, %v4440
      %v4442 = vtanh.pop %v4414
      %v4443 = vtanh.pop %v4415
      %v4444 = vtanh.pop %v4416
      %v4445 = vtanh.pop %v4417
      %v4446 = vmul.f32 %v4435, %v4015
      %v4447 = vmul.f32 %v4437, %v4016
      %v4448 = vmul.f32 %v4439, %v4017
      %v4449 = vmul.f32 %v4441, %v4018
      %4454 = vrot.lane.b32.xlu0 %v4442, 104
      %v4455 = vpop.permute.xlu0 %4454
      %4456 = vrot.lane.b32.xlu0 %v4443, 104
      %v4457 = vpop.permute.xlu0 %4456
      %4458 = vrot.lane.b32.xlu0 %v4444, 104
      %v4459 = vpop.permute.xlu0 %4458
      %4460 = vrot.lane.b32.xlu0 %v4445, 104
      %v4461 = vpop.permute.xlu0 %4460
      %v4466 = vmul.f32 %v4435, %v4455
      %v4467 = vmul.f32 %v4437, %v4457
      %v4468 = vmul.f32 %v4439, %v4459
      %v4469 = vmul.f32 %v4441, %v4461
      %4474 = vrot.lane.b32.xlu0 %v4466, 8
      %v4475 = vpop.permute.xlu0 %4474
      %4476 = vrot.lane.b32.xlu0 %v4467, 8
      %v4477 = vpop.permute.xlu0 %4476
      %4478 = vrot.lane.b32.xlu0 %v4468, 8
      %v4479 = vpop.permute.xlu0 %4478
      %4480 = vrot.lane.b32.xlu0 %v4469, 8
      %v4481 = vpop.permute.xlu0 %4480
      %v4486 = vadd.f32 %v4446, %v4475
      %v4487 = vadd.f32 %v4447, %v4477
      %v4488 = vadd.f32 %v4448, %v4479
      %v4489 = vadd.f32 %v4449, %v4481
      %v4490 = vtanh.pop %v4486
      %v4491 = vtanh.pop %v4487
      %v4492 = vtanh.pop %v4488
      %v4493 = vtanh.pop %v4489
      %4498 = vrot.lane.b32.xlu0 %v4490, 8
      %v4499 = vpop.permute.xlu0 %4498
      %4500 = vrot.lane.b32.xlu0 %v4491, 8
      %v4501 = vpop.permute.xlu0 %4500
      %4502 = vrot.lane.b32.xlu0 %v4492, 8
      %v4503 = vpop.permute.xlu0 %4502
      %4504 = vrot.lane.b32.xlu0 %v4493, 8
      %v4505 = vpop.permute.xlu0 %4504
      %v4510 = vmul.f32 %v4435, %v4499
      %v4511 = vmul.f32 %v4437, %v4501
      %v4512 = vmul.f32 %v4439, %v4503
      %v4513 = vmul.f32 %v4441, %v4505
      %4518 = vrot.lane.b32.xlu0 %v4510, 16
      %v4519 = vpop.permute.xlu0 %4518
      %4520 = vrot.lane.b32.xlu0 %v4511, 16
      %v4521 = vpop.permute.xlu0 %4520
      %4522 = vrot.lane.b32.xlu0 %v4512, 16
      %v4523 = vpop.permute.xlu0 %4522
      %4524 = vrot.lane.b32.xlu0 %v4513, 16
      %v4525 = vpop.permute.xlu0 %4524
      %vm4530 = vcmask 589312
      %4531 = vst.msk [vmem:[#allocation2] sm:$0xff] %vm4530, %v4519
      %4532 = vst.msk [vmem:[#allocation2 + $0x8] sm:$0xff] %vm4530, %v4521
      %4533 = vst.msk [vmem:[#allocation2 + $0x10] sm:$0xff] %vm4530, %v4523
      %4534 = vst.msk [vmem:[#allocation2 + $0x18] sm:$0xff] %vm4530, %v4525
      %4535 = vset.pattern.permute.xlu0 8
      %4536 = vperm.xlu0 %4535, %v418
      %v4537 = vpop.permute.xlu0 %4536
      %4539 = vset.pattern.permute.xlu0 8
      %4540 = vperm.xlu0 %4539, %v419
      %v4541 = vpop.permute.xlu0 %4540
      %4543 = vset.pattern.permute.xlu0 8
      %4544 = vperm.xlu0 %4543, %v420
      %v4545 = vpop.permute.xlu0 %4544
      %4547 = vset.pattern.permute.xlu0 8
      %4548 = vperm.xlu0 %4547, %v421
      %v4549 = vpop.permute.xlu0 %4548
      %v4551 = vmul.f32 %v4537, %v135
      %v4552 = vmul.f32 %v4541, %v135
      %v4553 = vmul.f32 %v4545, %v135
      %v4554 = vmul.f32 %v4549, %v135
      %v4555 = vadd.f32 %v4551, %v142
      %v4556 = vadd.f32 %v4552, %v142
      %v4557 = vadd.f32 %v4553, %v142
      %v4558 = vadd.f32 %v4554, %v142
      %v4559 = vadd.f32 %v4555, %v4275
      %v4560 = vadd.f32 %v4556, %v4280
      %v4561 = vadd.f32 %v4557, %v4285
      %v4562 = vadd.f32 %v4558, %v4290
      %v4563 = vxor.u32 %v4559, 2147483648
      %v4564 = vxor.u32 %v4560, 2147483648
      %v4565 = vxor.u32 %v4561, 2147483648
      %v4566 = vxor.u32 %v4562, 2147483648
      %v4567 = vmul.f32 %v4563, 1.442695
      %v4568 = vpow.pop %v4567
      %v4569 = vmul.f32 %v4564, 1.442695
      %v4570 = vpow.pop %v4569
      %v4571 = vmul.f32 %v4565, 1.442695
      %v4572 = vpow.pop %v4571
      %v4573 = vmul.f32 %v4566, 1.442695
      %v4574 = vpow.pop %v4573
      %v4575 = vadd.f32 %v4568, 1.0
      %v4576 = vadd.f32 %v4570, 1.0
      %v4577 = vadd.f32 %v4572, 1.0
      %v4578 = vadd.f32 %v4574, 1.0
      %v4579 = vrcp.pop %v4575
      %v4580 = vmul.f32 1.0, %v4579
      %v4581 = vrcp.pop %v4576
      %v4582 = vmul.f32 1.0, %v4581
      %v4583 = vrcp.pop %v4577
      %v4584 = vmul.f32 1.0, %v4583
      %v4585 = vrcp.pop %v4578
      %v4586 = vmul.f32 1.0, %v4585
      %v4587 = vtanh.pop %v4559
      %v4588 = vtanh.pop %v4560
      %v4589 = vtanh.pop %v4561
      %v4590 = vtanh.pop %v4562
      %v4591 = vmul.f32 %v4580, %v4160
      %v4592 = vmul.f32 %v4582, %v4161
      %v4593 = vmul.f32 %v4584, %v4162
      %v4594 = vmul.f32 %v4586, %v4163
      %4599 = vrot.lane.b32.xlu0 %v4587, 104
      %v4600 = vpop.permute.xlu0 %4599
      %4601 = vrot.lane.b32.xlu0 %v4588, 104
      %v4602 = vpop.permute.xlu0 %4601
      %4603 = vrot.lane.b32.xlu0 %v4589, 104
      %v4604 = vpop.permute.xlu0 %4603
      %4605 = vrot.lane.b32.xlu0 %v4590, 104
      %v4606 = vpop.permute.xlu0 %4605
      %v4611 = vmul.f32 %v4580, %v4600
      %v4612 = vmul.f32 %v4582, %v4602
      %v4613 = vmul.f32 %v4584, %v4604
      %v4614 = vmul.f32 %v4586, %v4606
      %4619 = vrot.lane.b32.xlu0 %v4611, 8
      %v4620 = vpop.permute.xlu0 %4619
      %4621 = vrot.lane.b32.xlu0 %v4612, 8
      %v4622 = vpop.permute.xlu0 %4621
      %4623 = vrot.lane.b32.xlu0 %v4613, 8
      %v4624 = vpop.permute.xlu0 %4623
      %4625 = vrot.lane.b32.xlu0 %v4614, 8
      %v4626 = vpop.permute.xlu0 %4625
      %v4631 = vadd.f32 %v4591, %v4620
      %v4632 = vadd.f32 %v4592, %v4622
      %v4633 = vadd.f32 %v4593, %v4624
      %v4634 = vadd.f32 %v4594, %v4626
      %v4635 = vtanh.pop %v4631
      %v4636 = vtanh.pop %v4632
      %v4637 = vtanh.pop %v4633
      %v4638 = vtanh.pop %v4634
      %4643 = vrot.lane.b32.xlu0 %v4635, 8
      %v4644 = vpop.permute.xlu0 %4643
      %4645 = vrot.lane.b32.xlu0 %v4636, 8
      %v4646 = vpop.permute.xlu0 %4645
      %4647 = vrot.lane.b32.xlu0 %v4637, 8
      %v4648 = vpop.permute.xlu0 %4647
      %4649 = vrot.lane.b32.xlu0 %v4638, 8
      %v4650 = vpop.permute.xlu0 %4649
      %v4655 = vmul.f32 %v4580, %v4644
      %v4656 = vmul.f32 %v4582, %v4646
      %v4657 = vmul.f32 %v4584, %v4648
      %v4658 = vmul.f32 %v4586, %v4650
      %4663 = vrot.lane.b32.xlu0 %v4655, 112
      %v4664 = vpop.permute.xlu0 %4663
      %4665 = vrot.lane.b32.xlu0 %v4656, 112
      %v4666 = vpop.permute.xlu0 %4665
      %4667 = vrot.lane.b32.xlu0 %v4657, 112
      %v4668 = vpop.permute.xlu0 %4667
      %4669 = vrot.lane.b32.xlu0 %v4658, 112
      %v4670 = vpop.permute.xlu0 %4669
      %v4671 = vsel %vm166, %v4664, 0
      %v4673 = vsel %vm166, %v4666, 0
      %v4675 = vsel %vm166, %v4668, 0
      %v4677 = vsel %vm166, %v4670, 0
      %4679 = vmatprep.subr.mxu0 0.0
      %4680 = vmatpush1.msra.mxu0 %v128
      %4681 = vmatprep.subr.mxu0 0.0
      %4682 = vmatpush1.msra.mxu0 0.0
      %4683 = vmatprep.subr.mxu0 0.0
      %4684 = vmatpush1.msra.mxu0 0.0
      %4685 = vmatprep.subr.mxu0 0.0
      %4686 = vmatpush1.msra.mxu0 0.0
      %4687 = vmatprep.subr.mxu0 0.0
      %4688 = vmatpush1.msra.mxu0 0.0
      %4689 = vmatprep.subr.mxu0 0.0
      %4690 = vmatpush1.msra.mxu0 0.0
      %4691 = vmatprep.subr.mxu0 0.0
      %4692 = vmatpush1.msra.mxu0 0.0
      %4693 = vmatprep.subr.mxu0 0.0
      %4694 = vmatpush1.msra.mxu0 0.0
      %4695 = vmatprep.subr.mxu0 0.0
      %4696 = vmatpush1.msra.mxu0 0.0
      %4697 = vmatprep.subr.mxu0 0.0
      %4698 = vmatpush1.msra.mxu0 0.0
      %4699 = vmatprep.subr.mxu0 0.0
      %4700 = vmatpush1.msra.mxu0 0.0
      %4701 = vmatprep.subr.mxu0 0.0
      %4702 = vmatpush1.msra.mxu0 0.0
      %4703 = vmatprep.subr.mxu0 0.0
      %4704 = vmatpush1.msra.mxu0 0.0
      %4705 = vmatprep.subr.mxu0 0.0
      %4706 = vmatpush1.msra.mxu0 0.0
      %4707 = vmatprep.subr.mxu0 0.0
      %4708 = vmatpush1.msra.mxu0 0.0
      %4709 = vmatprep.subr.mxu0 0.0
      %4710 = vmatpush1.msra.mxu0 0.0
      %4711 = vmatprep.subr.mxu0 0.0
      %4712 = vmatpush1.msra.mxu0 0.0
      %4713 = vmatprep.subr.mxu0 0.0
      %4714 = vmatpush1.msra.mxu0 0.0
      %4715 = vmatprep.subr.mxu0 0.0
      %4716 = vmatpush1.msra.mxu0 0.0
      %4717 = vmatprep.subr.mxu0 0.0
      %4718 = vmatpush1.msra.mxu0 0.0
      %4719 = vmatprep.subr.mxu0 0.0
      %4720 = vmatpush1.msra.mxu0 0.0
      %4721 = vmatprep.subr.mxu0 0.0
      %4722 = vmatpush1.msra.mxu0 0.0
      %4723 = vmatprep.subr.mxu0 0.0
      %4724 = vmatpush1.msra.mxu0 0.0
      %4725 = vmatprep.subr.mxu0 0.0
      %4726 = vmatpush1.msra.mxu0 0.0
      %4727 = vmatprep.subr.mxu0 0.0
      %4728 = vmatpush1.msra.mxu0 0.0
      %4729 = vmatprep.subr.mxu0 0.0
      %4730 = vmatpush1.msra.mxu0 0.0
      %4731 = vmatprep.subr.mxu0 0.0
      %4732 = vmatpush1.msra.mxu0 0.0
      %4733 = vmatprep.subr.mxu0 0.0
      %4734 = vmatpush1.msra.mxu0 0.0
      %4735 = vmatprep.subr.mxu0 0.0
      %4736 = vmatpush1.msra.mxu0 0.0
      %4737 = vmatprep.subr.mxu0 0.0
      %4738 = vmatpush1.msra.mxu0 0.0
      %4739 = vmatprep.subr.mxu0 0.0
      %4740 = vmatpush1.msra.mxu0 0.0
      %4741 = vmatprep.subr.mxu0 0.0
      %4742 = vmatpush1.msra.mxu0 0.0
      %4743 = vmatprep.mubr.f32.mxu0 0.0
      %4744 = vmatmul.mubr.f32.gmra.mrb[0].mxu0 %v4671
      %v4745 = vpop.f32.mrb[0].mxu0
      %v4746 = vadd.f32 0.0, %v4745
      %v4747 = vpop.f32.mrb[0].mxu0
      %4748 = vmatprep.mubr.f32.mxu0 0.0
      %4749 = vmatmul.mubr.f32.gmra.mrb[0].mxu0 %v4673
      %v4750 = vpop.f32.mrb[0].mxu0
      %v4751 = vadd.f32 0.0, %v4750
      %v4752 = vpop.f32.mrb[0].mxu0
      %4753 = vmatprep.mubr.f32.mxu0 0.0
      %4754 = vmatmul.mubr.f32.gmra.mrb[0].mxu0 %v4675
      %v4755 = vpop.f32.mrb[0].mxu0
      %v4756 = vadd.f32 0.0, %v4755
      %v4757 = vpop.f32.mrb[0].mxu0
      %4758 = vmatprep.mubr.f32.mxu0 0.0
      %4759 = vmatmul.mubr.f32.gmra.mrb[0].mxu0 %v4677
      %v4760 = vpop.f32.mrb[0].mxu0
      %v4761 = vadd.f32 0.0, %v4760
      %v4762 = vpop.f32.mrb[0].mxu0
      %4763 = vdwg.mxu0
      %v4764 = vadd.f32 %v4746, %v528
      %v4765 = vadd.f32 %v4751, %v528
      %v4766 = vadd.f32 %v4756, %v528
      %v4767 = vadd.f32 %v4761, %v528
      %4768 = vrot.lane.b32.xlu0 %v4510, 80
      %v4769 = vpop.permute.xlu0 %4768
      %4770 = vrot.lane.b32.xlu0 %v4511, 80
      %v4771 = vpop.permute.xlu0 %4770
      %4772 = vrot.lane.b32.xlu0 %v4512, 80
      %v4773 = vpop.permute.xlu0 %4772
      %4774 = vrot.lane.b32.xlu0 %v4513, 80
      %v4775 = vpop.permute.xlu0 %4774
      %v4776 = vsel %vm166, %v4769, 0
      %v4778 = vsel %vm166, %v4771, 0
      %v4780 = vsel %vm166, %v4773, 0
      %v4782 = vsel %vm166, %v4775, 0
      %4784 = vmatprep.subr.mxu0 0.0
      %4785 = vmatpush1.msra.mxu0 %v129
      %4786 = vmatprep.subr.mxu0 0.0
      %4787 = vmatpush1.msra.mxu0 0.0
      %4788 = vmatprep.subr.mxu0 0.0
      %4789 = vmatpush1.msra.mxu0 0.0
      %4790 = vmatprep.subr.mxu0 0.0
      %4791 = vmatpush1.msra.mxu0 0.0
      %4792 = vmatprep.subr.mxu0 0.0
      %4793 = vmatpush1.msra.mxu0 0.0
      %4794 = vmatprep.subr.mxu0 0.0
      %4795 = vmatpush1.msra.mxu0 0.0
      %4796 = vmatprep.subr.mxu0 0.0
      %4797 = vmatpush1.msra.mxu0 0.0
      %4798 = vmatprep.subr.mxu0 0.0
      %4799 = vmatpush1.msra.mxu0 0.0
      %4800 = vmatprep.subr.mxu0 0.0
      %4801 = vmatpush1.msra.mxu0 0.0
      %4802 = vmatprep.subr.mxu0 0.0
      %4803 = vmatpush1.msra.mxu0 0.0
      %4804 = vmatprep.subr.mxu0 0.0
      %4805 = vmatpush1.msra.mxu0 0.0
      %4806 = vmatprep.subr.mxu0 0.0
      %4807 = vmatpush1.msra.mxu0 0.0
      %4808 = vmatprep.subr.mxu0 0.0
      %4809 = vmatpush1.msra.mxu0 0.0
      %4810 = vmatprep.subr.mxu0 0.0
      %4811 = vmatpush1.msra.mxu0 0.0
      %4812 = vmatprep.subr.mxu0 0.0
      %4813 = vmatpush1.msra.mxu0 0.0
      %4814 = vmatprep.subr.mxu0 0.0
      %4815 = vmatpush1.msra.mxu0 0.0
      %4816 = vmatprep.subr.mxu0 0.0
      %4817 = vmatpush1.msra.mxu0 0.0
      %4818 = vmatprep.subr.mxu0 0.0
      %4819 = vmatpush1.msra.mxu0 0.0
      %4820 = vmatprep.subr.mxu0 0.0
      %4821 = vmatpush1.msra.mxu0 0.0
      %4822 = vmatprep.subr.mxu0 0.0
      %4823 = vmatpush1.msra.mxu0 0.0
      %4824 = vmatprep.subr.mxu0 0.0
      %4825 = vmatpush1.msra.mxu0 0.0
      %4826 = vmatprep.subr.mxu0 0.0
      %4827 = vmatpush1.msra.mxu0 0.0
      %4828 = vmatprep.subr.mxu0 0.0
      %4829 = vmatpush1.msra.mxu0 0.0
      %4830 = vmatprep.subr.mxu0 0.0
      %4831 = vmatpush1.msra.mxu0 0.0
      %4832 = vmatprep.subr.mxu0 0.0
      %4833 = vmatpush1.msra.mxu0 0.0
      %4834 = vmatprep.subr.mxu0 0.0
      %4835 = vmatpush1.msra.mxu0 0.0
      %4836 = vmatprep.subr.mxu0 0.0
      %4837 = vmatpush1.msra.mxu0 0.0
      %4838 = vmatprep.subr.mxu0 0.0
      %4839 = vmatpush1.msra.mxu0 0.0
      %4840 = vmatprep.subr.mxu0 0.0
      %4841 = vmatpush1.msra.mxu0 0.0
      %4842 = vmatprep.subr.mxu0 0.0
      %4843 = vmatpush1.msra.mxu0 0.0
      %4844 = vmatprep.subr.mxu0 0.0
      %4845 = vmatpush1.msra.mxu0 0.0
      %4846 = vmatprep.subr.mxu0 0.0
      %4847 = vmatpush1.msra.mxu0 0.0
      %4848 = vmatprep.mubr.f32.mxu0 0.0
      %4849 = vmatmul.mubr.f32.gmra.mrb[0].mxu0 %v4776
      %v4850 = vpop.f32.mrb[0].mxu0
      %v4851 = vadd.f32 0.0, %v4850
      %v4852 = vpop.f32.mrb[0].mxu0
      %4853 = vmatprep.mubr.f32.mxu0 0.0
      %4854 = vmatmul.mubr.f32.gmra.mrb[0].mxu0 %v4778
      %v4855 = vpop.f32.mrb[0].mxu0
      %v4856 = vadd.f32 0.0, %v4855
      %v4857 = vpop.f32.mrb[0].mxu0
      %4858 = vmatprep.mubr.f32.mxu0 0.0
      %4859 = vmatmul.mubr.f32.gmra.mrb[0].mxu0 %v4780
      %v4860 = vpop.f32.mrb[0].mxu0
      %v4861 = vadd.f32 0.0, %v4860
      %v4862 = vpop.f32.mrb[0].mxu0
      %4863 = vmatprep.mubr.f32.mxu0 0.0
      %4864 = vmatmul.mubr.f32.gmra.mrb[0].mxu0 %v4782
      %v4865 = vpop.f32.mrb[0].mxu0
      %v4866 = vadd.f32 0.0, %v4865
      %v4867 = vpop.f32.mrb[0].mxu0
      %4868 = vdwg.mxu0
      %4873 = vrot.lane.b32.xlu0 %v4851, 32
      %v4874 = vpop.permute.xlu0 %4873
      %4875 = vrot.lane.b32.xlu0 %v4856, 32
      %v4876 = vpop.permute.xlu0 %4875
      %4877 = vrot.lane.b32.xlu0 %v4861, 32
      %v4878 = vpop.permute.xlu0 %4877
      %4879 = vrot.lane.b32.xlu0 %v4866, 32
      %v4880 = vpop.permute.xlu0 %4879
      %v4885 = vadd.f32 %v4764, %v4874
      %v4886 = vadd.f32 %v4765, %v4876
      %v4887 = vadd.f32 %v4766, %v4878
      %v4888 = vadd.f32 %v4767, %v4880
      %v4889 = vxor.u32 %v4885, 2147483648
      %v4890 = vxor.u32 %v4886, 2147483648
      %v4891 = vxor.u32 %v4887, 2147483648
      %v4892 = vxor.u32 %v4888, 2147483648
      %v4893 = vmul.f32 %v4889, 1.442695
      %v4894 = vpow.pop %v4893
      %v4895 = vmul.f32 %v4890, 1.442695
      %v4896 = vpow.pop %v4895
      %v4897 = vmul.f32 %v4891, 1.442695
      %v4898 = vpow.pop %v4897
      %v4899 = vmul.f32 %v4892, 1.442695
      %v4900 = vpow.pop %v4899
      %v4901 = vadd.f32 %v4894, 1.0
      %v4902 = vadd.f32 %v4896, 1.0
      %v4903 = vadd.f32 %v4898, 1.0
      %v4904 = vadd.f32 %v4900, 1.0
      %v4905 = vrcp.pop %v4901
      %v4906 = vmul.f32 1.0, %v4905
      %v4907 = vrcp.pop %v4902
      %v4908 = vmul.f32 1.0, %v4907
      %v4909 = vrcp.pop %v4903
      %v4910 = vmul.f32 1.0, %v4909
      %v4911 = vrcp.pop %v4904
      %v4912 = vmul.f32 1.0, %v4911
      %v4913 = vtanh.pop %v4885
      %v4914 = vtanh.pop %v4886
      %v4915 = vtanh.pop %v4887
      %v4916 = vtanh.pop %v4888
      %v4917 = vmul.f32 %v4906, %v4486
      %v4918 = vmul.f32 %v4908, %v4487
      %v4919 = vmul.f32 %v4910, %v4488
      %v4920 = vmul.f32 %v4912, %v4489
      %4925 = vrot.lane.b32.xlu0 %v4913, 104
      %v4926 = vpop.permute.xlu0 %4925
      %4927 = vrot.lane.b32.xlu0 %v4914, 104
      %v4928 = vpop.permute.xlu0 %4927
      %4929 = vrot.lane.b32.xlu0 %v4915, 104
      %v4930 = vpop.permute.xlu0 %4929
      %4931 = vrot.lane.b32.xlu0 %v4916, 104
      %v4932 = vpop.permute.xlu0 %4931
      %v4937 = vmul.f32 %v4906, %v4926
      %v4938 = vmul.f32 %v4908, %v4928
      %v4939 = vmul.f32 %v4910, %v4930
      %v4940 = vmul.f32 %v4912, %v4932
      %4945 = vrot.lane.b32.xlu0 %v4937, 8
      %v4946 = vpop.permute.xlu0 %4945
      %4947 = vrot.lane.b32.xlu0 %v4938, 8
      %v4948 = vpop.permute.xlu0 %4947
      %4949 = vrot.lane.b32.xlu0 %v4939, 8
      %v4950 = vpop.permute.xlu0 %4949
      %4951 = vrot.lane.b32.xlu0 %v4940, 8
      %v4952 = vpop.permute.xlu0 %4951
      %v4957 = vadd.f32 %v4917, %v4946
      %v4958 = vadd.f32 %v4918, %v4948
      %v4959 = vadd.f32 %v4919, %v4950
      %v4960 = vadd.f32 %v4920, %v4952
      %v4961 = vtanh.pop %v4957
      %v4962 = vtanh.pop %v4958
      %v4963 = vtanh.pop %v4959
      %v4964 = vtanh.pop %v4960
      %4969 = vrot.lane.b32.xlu0 %v4961, 8
      %v4970 = vpop.permute.xlu0 %4969
      %4971 = vrot.lane.b32.xlu0 %v4962, 8
      %v4972 = vpop.permute.xlu0 %4971
      %4973 = vrot.lane.b32.xlu0 %v4963, 8
      %v4974 = vpop.permute.xlu0 %4973
      %4975 = vrot.lane.b32.xlu0 %v4964, 8
      %v4976 = vpop.permute.xlu0 %4975
      %v4981 = vmul.f32 %v4906, %v4970
      %v4982 = vmul.f32 %v4908, %v4972
      %v4983 = vmul.f32 %v4910, %v4974
      %v4984 = vmul.f32 %v4912, %v4976
      %4989 = vrot.lane.b32.xlu0 %v4981, 24
      %v4990 = vpop.permute.xlu0 %4989
      %4991 = vrot.lane.b32.xlu0 %v4982, 24
      %v4992 = vpop.permute.xlu0 %4991
      %4993 = vrot.lane.b32.xlu0 %v4983, 24
      %v4994 = vpop.permute.xlu0 %4993
      %4995 = vrot.lane.b32.xlu0 %v4984, 24
      %v4996 = vpop.permute.xlu0 %4995
      %vm5001 = vcmask 654912
      %5002 = vst.msk [vmem:[#allocation2] sm:$0xff] %vm5001, %v4990
      %5003 = vst.msk [vmem:[#allocation2 + $0x8] sm:$0xff] %vm5001, %v4992
      %5004 = vst.msk [vmem:[#allocation2 + $0x10] sm:$0xff] %vm5001, %v4994
      %5005 = vst.msk [vmem:[#allocation2 + $0x18] sm:$0xff] %vm5001, %v4996
      %5006 = vset.pattern.permute.xlu0 9
      %5007 = vperm.xlu0 %5006, %v418
      %v5008 = vpop.permute.xlu0 %5007
      %5010 = vset.pattern.permute.xlu0 9
      %5011 = vperm.xlu0 %5010, %v419
      %v5012 = vpop.permute.xlu0 %5011
      %5014 = vset.pattern.permute.xlu0 9
      %5015 = vperm.xlu0 %5014, %v420
      %v5016 = vpop.permute.xlu0 %5015
      %5018 = vset.pattern.permute.xlu0 9
      %5019 = vperm.xlu0 %5018, %v421
      %v5020 = vpop.permute.xlu0 %5019
      %v5022 = vmul.f32 %v5008, %v135
      %v5023 = vmul.f32 %v5012, %v135
      %v5024 = vmul.f32 %v5016, %v135
      %v5025 = vmul.f32 %v5020, %v135
      %v5026 = vadd.f32 %v5022, %v142
      %v5027 = vadd.f32 %v5023, %v142
      %v5028 = vadd.f32 %v5024, %v142
      %v5029 = vadd.f32 %v5025, %v142
      %v5030 = vadd.f32 %v5026, %v4746
      %v5031 = vadd.f32 %v5027, %v4751
      %v5032 = vadd.f32 %v5028, %v4756
      %v5033 = vadd.f32 %v5029, %v4761
      %v5034 = vxor.u32 %v5030, 2147483648
      %v5035 = vxor.u32 %v5031, 2147483648
      %v5036 = vxor.u32 %v5032, 2147483648
      %v5037 = vxor.u32 %v5033, 2147483648
      %v5038 = vmul.f32 %v5034, 1.442695
      %v5039 = vpow.pop %v5038
      %v5040 = vmul.f32 %v5035, 1.442695
      %v5041 = vpow.pop %v5040
      %v5042 = vmul.f32 %v5036, 1.442695
      %v5043 = vpow.pop %v5042
      %v5044 = vmul.f32 %v5037, 1.442695
      %v5045 = vpow.pop %v5044
      %v5046 = vadd.f32 %v5039, 1.0
      %v5047 = vadd.f32 %v5041, 1.0
      %v5048 = vadd.f32 %v5043, 1.0
      %v5049 = vadd.f32 %v5045, 1.0
      %v5050 = vrcp.pop %v5046
      %v5051 = vmul.f32 1.0, %v5050
      %v5052 = vrcp.pop %v5047
      %v5053 = vmul.f32 1.0, %v5052
      %v5054 = vrcp.pop %v5048
      %v5055 = vmul.f32 1.0, %v5054
      %v5056 = vrcp.pop %v5049
      %v5057 = vmul.f32 1.0, %v5056
      %v5058 = vtanh.pop %v5030
      %v5059 = vtanh.pop %v5031
      %v5060 = vtanh.pop %v5032
      %v5061 = vtanh.pop %v5033
      %v5062 = vmul.f32 %v5051, %v4631
      %v5063 = vmul.f32 %v5053, %v4632
      %v5064 = vmul.f32 %v5055, %v4633
      %v5065 = vmul.f32 %v5057, %v4634
      %5070 = vrot.lane.b32.xlu0 %v5058, 104
      %v5071 = vpop.permute.xlu0 %5070
      %5072 = vrot.lane.b32.xlu0 %v5059, 104
      %v5073 = vpop.permute.xlu0 %5072
      %5074 = vrot.lane.b32.xlu0 %v5060, 104
      %v5075 = vpop.permute.xlu0 %5074
      %5076 = vrot.lane.b32.xlu0 %v5061, 104
      %v5077 = vpop.permute.xlu0 %5076
      %v5082 = vmul.f32 %v5051, %v5071
      %v5083 = vmul.f32 %v5053, %v5073
      %v5084 = vmul.f32 %v5055, %v5075
      %v5085 = vmul.f32 %v5057, %v5077
      %5090 = vrot.lane.b32.xlu0 %v5082, 8
      %v5091 = vpop.permute.xlu0 %5090
      %5092 = vrot.lane.b32.xlu0 %v5083, 8
      %v5093 = vpop.permute.xlu0 %5092
      %5094 = vrot.lane.b32.xlu0 %v5084, 8
      %v5095 = vpop.permute.xlu0 %5094
      %5096 = vrot.lane.b32.xlu0 %v5085, 8
      %v5097 = vpop.permute.xlu0 %5096
      %v5102 = vadd.f32 %v5062, %v5091
      %v5103 = vadd.f32 %v5063, %v5093
      %v5104 = vadd.f32 %v5064, %v5095
      %v5105 = vadd.f32 %v5065, %v5097
      %v5106 = vtanh.pop %v5102
      %v5107 = vtanh.pop %v5103
      %v5108 = vtanh.pop %v5104
      %v5109 = vtanh.pop %v5105
      %5114 = vrot.lane.b32.xlu0 %v5106, 8
      %v5115 = vpop.permute.xlu0 %5114
      %5116 = vrot.lane.b32.xlu0 %v5107, 8
      %v5117 = vpop.permute.xlu0 %5116
      %5118 = vrot.lane.b32.xlu0 %v5108, 8
      %v5119 = vpop.permute.xlu0 %5118
      %5120 = vrot.lane.b32.xlu0 %v5109, 8
      %v5121 = vpop.permute.xlu0 %5120
      %v5126 = vmul.f32 %v5051, %v5115
      %v5127 = vmul.f32 %v5053, %v5117
      %v5128 = vmul.f32 %v5055, %v5119
      %v5129 = vmul.f32 %v5057, %v5121
      %5134 = vrot.lane.b32.xlu0 %v5126, 112
      %v5135 = vpop.permute.xlu0 %5134
      %5136 = vrot.lane.b32.xlu0 %v5127, 112
      %v5137 = vpop.permute.xlu0 %5136
      %5138 = vrot.lane.b32.xlu0 %v5128, 112
      %v5139 = vpop.permute.xlu0 %5138
      %5140 = vrot.lane.b32.xlu0 %v5129, 112
      %v5141 = vpop.permute.xlu0 %5140
      %v5142 = vsel %vm166, %v5135, 0
      %v5144 = vsel %vm166, %v5137, 0
      %v5146 = vsel %vm166, %v5139, 0
      %v5148 = vsel %vm166, %v5141, 0
      %5150 = vmatprep.subr.mxu0 0.0
      %5151 = vmatpush1.msra.mxu0 %v128
      %5152 = vmatprep.subr.mxu0 0.0
      %5153 = vmatpush1.msra.mxu0 0.0
      %5154 = vmatprep.subr.mxu0 0.0
      %5155 = vmatpush1.msra.mxu0 0.0
      %5156 = vmatprep.subr.mxu0 0.0
      %5157 = vmatpush1.msra.mxu0 0.0
      %5158 = vmatprep.subr.mxu0 0.0
      %5159 = vmatpush1.msra.mxu0 0.0
      %5160 = vmatprep.subr.mxu0 0.0
      %5161 = vmatpush1.msra.mxu0 0.0
      %5162 = vmatprep.subr.mxu0 0.0
      %5163 = vmatpush1.msra.mxu0 0.0
      %5164 = vmatprep.subr.mxu0 0.0
      %5165 = vmatpush1.msra.mxu0 0.0
      %5166 = vmatprep.subr.mxu0 0.0
      %5167 = vmatpush1.msra.mxu0 0.0
      %5168 = vmatprep.subr.mxu0 0.0
      %5169 = vmatpush1.msra.mxu0 0.0
      %5170 = vmatprep.subr.mxu0 0.0
      %5171 = vmatpush1.msra.mxu0 0.0
      %5172 = vmatprep.subr.mxu0 0.0
      %5173 = vmatpush1.msra.mxu0 0.0
      %5174 = vmatprep.subr.mxu0 0.0
      %5175 = vmatpush1.msra.mxu0 0.0
      %5176 = vmatprep.subr.mxu0 0.0
      %5177 = vmatpush1.msra.mxu0 0.0
      %5178 = vmatprep.subr.mxu0 0.0
      %5179 = vmatpush1.msra.mxu0 0.0
      %5180 = vmatprep.subr.mxu0 0.0
      %5181 = vmatpush1.msra.mxu0 0.0
      %5182 = vmatprep.subr.mxu0 0.0
      %5183 = vmatpush1.msra.mxu0 0.0
      %5184 = vmatprep.subr.mxu0 0.0
      %5185 = vmatpush1.msra.mxu0 0.0
      %5186 = vmatprep.subr.mxu0 0.0
      %5187 = vmatpush1.msra.mxu0 0.0
      %5188 = vmatprep.subr.mxu0 0.0
      %5189 = vmatpush1.msra.mxu0 0.0
      %5190 = vmatprep.subr.mxu0 0.0
      %5191 = vmatpush1.msra.mxu0 0.0
      %5192 = vmatprep.subr.mxu0 0.0
      %5193 = vmatpush1.msra.mxu0 0.0
      %5194 = vmatprep.subr.mxu0 0.0
      %5195 = vmatpush1.msra.mxu0 0.0
      %5196 = vmatprep.subr.mxu0 0.0
      %5197 = vmatpush1.msra.mxu0 0.0
      %5198 = vmatprep.subr.mxu0 0.0
      %5199 = vmatpush1.msra.mxu0 0.0
      %5200 = vmatprep.subr.mxu0 0.0
      %5201 = vmatpush1.msra.mxu0 0.0
      %5202 = vmatprep.subr.mxu0 0.0
      %5203 = vmatpush1.msra.mxu0 0.0
      %5204 = vmatprep.subr.mxu0 0.0
      %5205 = vmatpush1.msra.mxu0 0.0
      %5206 = vmatprep.subr.mxu0 0.0
      %5207 = vmatpush1.msra.mxu0 0.0
      %5208 = vmatprep.subr.mxu0 0.0
      %5209 = vmatpush1.msra.mxu0 0.0
      %5210 = vmatprep.subr.mxu0 0.0
      %5211 = vmatpush1.msra.mxu0 0.0
      %5212 = vmatprep.subr.mxu0 0.0
      %5213 = vmatpush1.msra.mxu0 0.0
      %5214 = vmatprep.mubr.f32.mxu0 0.0
      %5215 = vmatmul.mubr.f32.gmra.mrb[0].mxu0 %v5142
      %v5216 = vpop.f32.mrb[0].mxu0
      %v5217 = vadd.f32 0.0, %v5216
      %v5218 = vpop.f32.mrb[0].mxu0
      %5219 = vmatprep.mubr.f32.mxu0 0.0
      %5220 = vmatmul.mubr.f32.gmra.mrb[0].mxu0 %v5144
      %v5221 = vpop.f32.mrb[0].mxu0
      %v5222 = vadd.f32 0.0, %v5221
      %v5223 = vpop.f32.mrb[0].mxu0
      %5224 = vmatprep.mubr.f32.mxu0 0.0
      %5225 = vmatmul.mubr.f32.gmra.mrb[0].mxu0 %v5146
      %v5226 = vpop.f32.mrb[0].mxu0
      %v5227 = vadd.f32 0.0, %v5226
      %v5228 = vpop.f32.mrb[0].mxu0
      %5229 = vmatprep.mubr.f32.mxu0 0.0
      %5230 = vmatmul.mubr.f32.gmra.mrb[0].mxu0 %v5148
      %v5231 = vpop.f32.mrb[0].mxu0
      %v5232 = vadd.f32 0.0, %v5231
      %v5233 = vpop.f32.mrb[0].mxu0
      %5234 = vdwg.mxu0
      %v5235 = vadd.f32 %v5217, %v528
      %v5236 = vadd.f32 %v5222, %v528
      %v5237 = vadd.f32 %v5227, %v528
      %v5238 = vadd.f32 %v5232, %v528
      %5239 = vrot.lane.b32.xlu0 %v4981, 80
      %v5240 = vpop.permute.xlu0 %5239
      %5241 = vrot.lane.b32.xlu0 %v4982, 80
      %v5242 = vpop.permute.xlu0 %5241
      %5243 = vrot.lane.b32.xlu0 %v4983, 80
      %v5244 = vpop.permute.xlu0 %5243
      %5245 = vrot.lane.b32.xlu0 %v4984, 80
      %v5246 = vpop.permute.xlu0 %5245
      %v5247 = vsel %vm166, %v5240, 0
      %v5249 = vsel %vm166, %v5242, 0
      %v5251 = vsel %vm166, %v5244, 0
      %v5253 = vsel %vm166, %v5246, 0
      %5255 = vmatprep.subr.mxu0 0.0
      %5256 = vmatpush1.msra.mxu0 %v129
      %5257 = vmatprep.subr.mxu0 0.0
      %5258 = vmatpush1.msra.mxu0 0.0
      %5259 = vmatprep.subr.mxu0 0.0
      %5260 = vmatpush1.msra.mxu0 0.0
      %5261 = vmatprep.subr.mxu0 0.0
      %5262 = vmatpush1.msra.mxu0 0.0
      %5263 = vmatprep.subr.mxu0 0.0
      %5264 = vmatpush1.msra.mxu0 0.0
      %5265 = vmatprep.subr.mxu0 0.0
      %5266 = vmatpush1.msra.mxu0 0.0
      %5267 = vmatprep.subr.mxu0 0.0
      %5268 = vmatpush1.msra.mxu0 0.0
      %5269 = vmatprep.subr.mxu0 0.0
      %5270 = vmatpush1.msra.mxu0 0.0
      %5271 = vmatprep.subr.mxu0 0.0
      %5272 = vmatpush1.msra.mxu0 0.0
      %5273 = vmatprep.subr.mxu0 0.0
      %5274 = vmatpush1.msra.mxu0 0.0
      %5275 = vmatprep.subr.mxu0 0.0
      %5276 = vmatpush1.msra.mxu0 0.0
      %5277 = vmatprep.subr.mxu0 0.0
      %5278 = vmatpush1.msra.mxu0 0.0
      %5279 = vmatprep.subr.mxu0 0.0
      %5280 = vmatpush1.msra.mxu0 0.0
      %5281 = vmatprep.subr.mxu0 0.0
      %5282 = vmatpush1.msra.mxu0 0.0
      %5283 = vmatprep.subr.mxu0 0.0
      %5284 = vmatpush1.msra.mxu0 0.0
      %5285 = vmatprep.subr.mxu0 0.0
      %5286 = vmatpush1.msra.mxu0 0.0
      %5287 = vmatprep.subr.mxu0 0.0
      %5288 = vmatpush1.msra.mxu0 0.0
      %5289 = vmatprep.subr.mxu0 0.0
      %5290 = vmatpush1.msra.mxu0 0.0
      %5291 = vmatprep.subr.mxu0 0.0
      %5292 = vmatpush1.msra.mxu0 0.0
      %5293 = vmatprep.subr.mxu0 0.0
      %5294 = vmatpush1.msra.mxu0 0.0
      %5295 = vmatprep.subr.mxu0 0.0
      %5296 = vmatpush1.msra.mxu0 0.0
      %5297 = vmatprep.subr.mxu0 0.0
      %5298 = vmatpush1.msra.mxu0 0.0
      %5299 = vmatprep.subr.mxu0 0.0
      %5300 = vmatpush1.msra.mxu0 0.0
      %5301 = vmatprep.subr.mxu0 0.0
      %5302 = vmatpush1.msra.mxu0 0.0
      %5303 = vmatprep.subr.mxu0 0.0
      %5304 = vmatpush1.msra.mxu0 0.0
      %5305 = vmatprep.subr.mxu0 0.0
      %5306 = vmatpush1.msra.mxu0 0.0
      %5307 = vmatprep.subr.mxu0 0.0
      %5308 = vmatpush1.msra.mxu0 0.0
      %5309 = vmatprep.subr.mxu0 0.0
      %5310 = vmatpush1.msra.mxu0 0.0
      %5311 = vmatprep.subr.mxu0 0.0
      %5312 = vmatpush1.msra.mxu0 0.0
      %5313 = vmatprep.subr.mxu0 0.0
      %5314 = vmatpush1.msra.mxu0 0.0
      %5315 = vmatprep.subr.mxu0 0.0
      %5316 = vmatpush1.msra.mxu0 0.0
      %5317 = vmatprep.subr.mxu0 0.0
      %5318 = vmatpush1.msra.mxu0 0.0
      %5319 = vmatprep.mubr.f32.mxu0 0.0
      %5320 = vmatmul.mubr.f32.gmra.mrb[0].mxu0 %v5247
      %v5321 = vpop.f32.mrb[0].mxu0
      %v5322 = vadd.f32 0.0, %v5321
      %v5323 = vpop.f32.mrb[0].mxu0
      %5324 = vmatprep.mubr.f32.mxu0 0.0
      %5325 = vmatmul.mubr.f32.gmra.mrb[0].mxu0 %v5249
      %v5326 = vpop.f32.mrb[0].mxu0
      %v5327 = vadd.f32 0.0, %v5326
      %v5328 = vpop.f32.mrb[0].mxu0
      %5329 = vmatprep.mubr.f32.mxu0 0.0
      %5330 = vmatmul.mubr.f32.gmra.mrb[0].mxu0 %v5251
      %v5331 = vpop.f32.mrb[0].mxu0
      %v5332 = vadd.f32 0.0, %v5331
      %v5333 = vpop.f32.mrb[0].mxu0
      %5334 = vmatprep.mubr.f32.mxu0 0.0
      %5335 = vmatmul.mubr.f32.gmra.mrb[0].mxu0 %v5253
      %v5336 = vpop.f32.mrb[0].mxu0
      %v5337 = vadd.f32 0.0, %v5336
      %v5338 = vpop.f32.mrb[0].mxu0
      %5339 = vdwg.mxu0
      %5344 = vrot.lane.b32.xlu0 %v5322, 32
      %v5345 = vpop.permute.xlu0 %5344
      %5346 = vrot.lane.b32.xlu0 %v5327, 32
      %v5347 = vpop.permute.xlu0 %5346
      %5348 = vrot.lane.b32.xlu0 %v5332, 32
      %v5349 = vpop.permute.xlu0 %5348
      %5350 = vrot.lane.b32.xlu0 %v5337, 32
      %v5351 = vpop.permute.xlu0 %5350
      %v5356 = vadd.f32 %v5235, %v5345
      %v5357 = vadd.f32 %v5236, %v5347
      %v5358 = vadd.f32 %v5237, %v5349
      %v5359 = vadd.f32 %v5238, %v5351
      %v5360 = vxor.u32 %v5356, 2147483648
      %v5361 = vxor.u32 %v5357, 2147483648
      %v5362 = vxor.u32 %v5358, 2147483648
      %v5363 = vxor.u32 %v5359, 2147483648
      %v5364 = vmul.f32 %v5360, 1.442695
      %v5365 = vpow.pop %v5364
      %v5366 = vmul.f32 %v5361, 1.442695
      %v5367 = vpow.pop %v5366
      %v5368 = vmul.f32 %v5362, 1.442695
      %v5369 = vpow.pop %v5368
      %v5370 = vmul.f32 %v5363, 1.442695
      %v5371 = vpow.pop %v5370
      %v5372 = vadd.f32 %v5365, 1.0
      %v5373 = vadd.f32 %v5367, 1.0
      %v5374 = vadd.f32 %v5369, 1.0
      %v5375 = vadd.f32 %v5371, 1.0
      %v5376 = vrcp.pop %v5372
      %v5377 = vmul.f32 1.0, %v5376
      %v5378 = vrcp.pop %v5373
      %v5379 = vmul.f32 1.0, %v5378
      %v5380 = vrcp.pop %v5374
      %v5381 = vmul.f32 1.0, %v5380
      %v5382 = vrcp.pop %v5375
      %v5383 = vmul.f32 1.0, %v5382
      %v5384 = vtanh.pop %v5356
      %v5385 = vtanh.pop %v5357
      %v5386 = vtanh.pop %v5358
      %v5387 = vtanh.pop %v5359
      %v5388 = vmul.f32 %v5377, %v4957
      %v5389 = vmul.f32 %v5379, %v4958
      %v5390 = vmul.f32 %v5381, %v4959
      %v5391 = vmul.f32 %v5383, %v4960
      %5396 = vrot.lane.b32.xlu0 %v5384, 104
      %v5397 = vpop.permute.xlu0 %5396
      %5398 = vrot.lane.b32.xlu0 %v5385, 104
      %v5399 = vpop.permute.xlu0 %5398
      %5400 = vrot.lane.b32.xlu0 %v5386, 104
      %v5401 = vpop.permute.xlu0 %5400
      %5402 = vrot.lane.b32.xlu0 %v5387, 104
      %v5403 = vpop.permute.xlu0 %5402
      %v5408 = vmul.f32 %v5377, %v5397
      %v5409 = vmul.f32 %v5379, %v5399
      %v5410 = vmul.f32 %v5381, %v5401
      %v5411 = vmul.f32 %v5383, %v5403
      %5416 = vrot.lane.b32.xlu0 %v5408, 8
      %v5417 = vpop.permute.xlu0 %5416
      %5418 = vrot.lane.b32.xlu0 %v5409, 8
      %v5419 = vpop.permute.xlu0 %5418
      %5420 = vrot.lane.b32.xlu0 %v5410, 8
      %v5421 = vpop.permute.xlu0 %5420
      %5422 = vrot.lane.b32.xlu0 %v5411, 8
      %v5423 = vpop.permute.xlu0 %5422
      %v5428 = vadd.f32 %v5388, %v5417
      %v5429 = vadd.f32 %v5389, %v5419
      %v5430 = vadd.f32 %v5390, %v5421
      %v5431 = vadd.f32 %v5391, %v5423
      %v5432 = vtanh.pop %v5428
      %v5433 = vtanh.pop %v5429
      %v5434 = vtanh.pop %v5430
      %v5435 = vtanh.pop %v5431
      %5440 = vrot.lane.b32.xlu0 %v5432, 8
      %v5441 = vpop.permute.xlu0 %5440
      %5442 = vrot.lane.b32.xlu0 %v5433, 8
      %v5443 = vpop.permute.xlu0 %5442
      %5444 = vrot.lane.b32.xlu0 %v5434, 8
      %v5445 = vpop.permute.xlu0 %5444
      %5446 = vrot.lane.b32.xlu0 %v5435, 8
      %v5447 = vpop.permute.xlu0 %5446
      %v5452 = vmul.f32 %v5377, %v5441
      %v5453 = vmul.f32 %v5379, %v5443
      %v5454 = vmul.f32 %v5381, %v5445
      %v5455 = vmul.f32 %v5383, %v5447
      %5460 = vrot.lane.b32.xlu0 %v5452, 32
      %v5461 = vpop.permute.xlu0 %5460
      %5462 = vrot.lane.b32.xlu0 %v5453, 32
      %v5463 = vpop.permute.xlu0 %5462
      %5464 = vrot.lane.b32.xlu0 %v5454, 32
      %v5465 = vpop.permute.xlu0 %5464
      %5466 = vrot.lane.b32.xlu0 %v5455, 32
      %v5467 = vpop.permute.xlu0 %5466
      %vm5472 = vcmask 720512
      %5473 = vst.msk [vmem:[#allocation2] sm:$0xff] %vm5472, %v5461
      %5474 = vst.msk [vmem:[#allocation2 + $0x8] sm:$0xff] %vm5472, %v5463
      %5475 = vst.msk [vmem:[#allocation2 + $0x10] sm:$0xff] %vm5472, %v5465
      %5476 = vst.msk [vmem:[#allocation2 + $0x18] sm:$0xff] %vm5472, %v5467
      %5477 = vset.pattern.permute.xlu0 10
      %5478 = vperm.xlu0 %5477, %v418
      %v5479 = vpop.permute.xlu0 %5478
      %5481 = vset.pattern.permute.xlu0 10
      %5482 = vperm.xlu0 %5481, %v419
      %v5483 = vpop.permute.xlu0 %5482
      %5485 = vset.pattern.permute.xlu0 10
      %5486 = vperm.xlu0 %5485, %v420
      %v5487 = vpop.permute.xlu0 %5486
      %5489 = vset.pattern.permute.xlu0 10
      %5490 = vperm.xlu0 %5489, %v421
      %v5491 = vpop.permute.xlu0 %5490
      %v5493 = vmul.f32 %v5479, %v135
      %v5494 = vmul.f32 %v5483, %v135
      %v5495 = vmul.f32 %v5487, %v135
      %v5496 = vmul.f32 %v5491, %v135
      %v5497 = vadd.f32 %v5493, %v142
      %v5498 = vadd.f32 %v5494, %v142
      %v5499 = vadd.f32 %v5495, %v142
      %v5500 = vadd.f32 %v5496, %v142
      %v5501 = vadd.f32 %v5497, %v5217
      %v5502 = vadd.f32 %v5498, %v5222
      %v5503 = vadd.f32 %v5499, %v5227
      %v5504 = vadd.f32 %v5500, %v5232
      %v5505 = vxor.u32 %v5501, 2147483648
      %v5506 = vxor.u32 %v5502, 2147483648
      %v5507 = vxor.u32 %v5503, 2147483648
      %v5508 = vxor.u32 %v5504, 2147483648
      %v5509 = vmul.f32 %v5505, 1.442695
      %v5510 = vpow.pop %v5509
      %v5511 = vmul.f32 %v5506, 1.442695
      %v5512 = vpow.pop %v5511
      %v5513 = vmul.f32 %v5507, 1.442695
      %v5514 = vpow.pop %v5513
      %v5515 = vmul.f32 %v5508, 1.442695
      %v5516 = vpow.pop %v5515
      %v5517 = vadd.f32 %v5510, 1.0
      %v5518 = vadd.f32 %v5512, 1.0
      %v5519 = vadd.f32 %v5514, 1.0
      %v5520 = vadd.f32 %v5516, 1.0
      %v5521 = vrcp.pop %v5517
      %v5522 = vmul.f32 1.0, %v5521
      %v5523 = vrcp.pop %v5518
      %v5524 = vmul.f32 1.0, %v5523
      %v5525 = vrcp.pop %v5519
      %v5526 = vmul.f32 1.0, %v5525
      %v5527 = vrcp.pop %v5520
      %v5528 = vmul.f32 1.0, %v5527
      %v5529 = vtanh.pop %v5501
      %v5530 = vtanh.pop %v5502
      %v5531 = vtanh.pop %v5503
      %v5532 = vtanh.pop %v5504
      %v5533 = vmul.f32 %v5522, %v5102
      %v5534 = vmul.f32 %v5524, %v5103
      %v5535 = vmul.f32 %v5526, %v5104
      %v5536 = vmul.f32 %v5528, %v5105
      %5541 = vrot.lane.b32.xlu0 %v5529, 104
      %v5542 = vpop.permute.xlu0 %5541
      %5543 = vrot.lane.b32.xlu0 %v5530, 104
      %v5544 = vpop.permute.xlu0 %5543
      %5545 = vrot.lane.b32.xlu0 %v5531, 104
      %v5546 = vpop.permute.xlu0 %5545
      %5547 = vrot.lane.b32.xlu0 %v5532, 104
      %v5548 = vpop.permute.xlu0 %5547
      %v5553 = vmul.f32 %v5522, %v5542
      %v5554 = vmul.f32 %v5524, %v5544
      %v5555 = vmul.f32 %v5526, %v5546
      %v5556 = vmul.f32 %v5528, %v5548
      %5561 = vrot.lane.b32.xlu0 %v5553, 8
      %v5562 = vpop.permute.xlu0 %5561
      %5563 = vrot.lane.b32.xlu0 %v5554, 8
      %v5564 = vpop.permute.xlu0 %5563
      %5565 = vrot.lane.b32.xlu0 %v5555, 8
      %v5566 = vpop.permute.xlu0 %5565
      %5567 = vrot.lane.b32.xlu0 %v5556, 8
      %v5568 = vpop.permute.xlu0 %5567
      %v5573 = vadd.f32 %v5533, %v5562
      %v5574 = vadd.f32 %v5534, %v5564
      %v5575 = vadd.f32 %v5535, %v5566
      %v5576 = vadd.f32 %v5536, %v5568
      %v5577 = vtanh.pop %v5573
      %v5578 = vtanh.pop %v5574
      %v5579 = vtanh.pop %v5575
      %v5580 = vtanh.pop %v5576
      %5585 = vrot.lane.b32.xlu0 %v5577, 8
      %v5586 = vpop.permute.xlu0 %5585
      %5587 = vrot.lane.b32.xlu0 %v5578, 8
      %v5588 = vpop.permute.xlu0 %5587
      %5589 = vrot.lane.b32.xlu0 %v5579, 8
      %v5590 = vpop.permute.xlu0 %5589
      %5591 = vrot.lane.b32.xlu0 %v5580, 8
      %v5592 = vpop.permute.xlu0 %5591
      %v5597 = vmul.f32 %v5522, %v5586
      %v5598 = vmul.f32 %v5524, %v5588
      %v5599 = vmul.f32 %v5526, %v5590
      %v5600 = vmul.f32 %v5528, %v5592
      %5605 = vrot.lane.b32.xlu0 %v5597, 112
      %v5606 = vpop.permute.xlu0 %5605
      %5607 = vrot.lane.b32.xlu0 %v5598, 112
      %v5608 = vpop.permute.xlu0 %5607
      %5609 = vrot.lane.b32.xlu0 %v5599, 112
      %v5610 = vpop.permute.xlu0 %5609
      %5611 = vrot.lane.b32.xlu0 %v5600, 112
      %v5612 = vpop.permute.xlu0 %5611
      %v5613 = vsel %vm166, %v5606, 0
      %v5615 = vsel %vm166, %v5608, 0
      %v5617 = vsel %vm166, %v5610, 0
      %v5619 = vsel %vm166, %v5612, 0
      %5621 = vmatprep.subr.mxu0 0.0
      %5622 = vmatpush1.msra.mxu0 %v128
      %5623 = vmatprep.subr.mxu0 0.0
      %5624 = vmatpush1.msra.mxu0 0.0
      %5625 = vmatprep.subr.mxu0 0.0
      %5626 = vmatpush1.msra.mxu0 0.0
      %5627 = vmatprep.subr.mxu0 0.0
      %5628 = vmatpush1.msra.mxu0 0.0
      %5629 = vmatprep.subr.mxu0 0.0
      %5630 = vmatpush1.msra.mxu0 0.0
      %5631 = vmatprep.subr.mxu0 0.0
      %5632 = vmatpush1.msra.mxu0 0.0
      %5633 = vmatprep.subr.mxu0 0.0
      %5634 = vmatpush1.msra.mxu0 0.0
      %5635 = vmatprep.subr.mxu0 0.0
      %5636 = vmatpush1.msra.mxu0 0.0
      %5637 = vmatprep.subr.mxu0 0.0
      %5638 = vmatpush1.msra.mxu0 0.0
      %5639 = vmatprep.subr.mxu0 0.0
      %5640 = vmatpush1.msra.mxu0 0.0
      %5641 = vmatprep.subr.mxu0 0.0
      %5642 = vmatpush1.msra.mxu0 0.0
      %5643 = vmatprep.subr.mxu0 0.0
      %5644 = vmatpush1.msra.mxu0 0.0
      %5645 = vmatprep.subr.mxu0 0.0
      %5646 = vmatpush1.msra.mxu0 0.0
      %5647 = vmatprep.subr.mxu0 0.0
      %5648 = vmatpush1.msra.mxu0 0.0
      %5649 = vmatprep.subr.mxu0 0.0
      %5650 = vmatpush1.msra.mxu0 0.0
      %5651 = vmatprep.subr.mxu0 0.0
      %5652 = vmatpush1.msra.mxu0 0.0
      %5653 = vmatprep.subr.mxu0 0.0
      %5654 = vmatpush1.msra.mxu0 0.0
      %5655 = vmatprep.subr.mxu0 0.0
      %5656 = vmatpush1.msra.mxu0 0.0
      %5657 = vmatprep.subr.mxu0 0.0
      %5658 = vmatpush1.msra.mxu0 0.0
      %5659 = vmatprep.subr.mxu0 0.0
      %5660 = vmatpush1.msra.mxu0 0.0
      %5661 = vmatprep.subr.mxu0 0.0
      %5662 = vmatpush1.msra.mxu0 0.0
      %5663 = vmatprep.subr.mxu0 0.0
      %5664 = vmatpush1.msra.mxu0 0.0
      %5665 = vmatprep.subr.mxu0 0.0
      %5666 = vmatpush1.msra.mxu0 0.0
      %5667 = vmatprep.subr.mxu0 0.0
      %5668 = vmatpush1.msra.mxu0 0.0
      %5669 = vmatprep.subr.mxu0 0.0
      %5670 = vmatpush1.msra.mxu0 0.0
      %5671 = vmatprep.subr.mxu0 0.0
      %5672 = vmatpush1.msra.mxu0 0.0
      %5673 = vmatprep.subr.mxu0 0.0
      %5674 = vmatpush1.msra.mxu0 0.0
      %5675 = vmatprep.subr.mxu0 0.0
      %5676 = vmatpush1.msra.mxu0 0.0
      %5677 = vmatprep.subr.mxu0 0.0
      %5678 = vmatpush1.msra.mxu0 0.0
      %5679 = vmatprep.subr.mxu0 0.0
      %5680 = vmatpush1.msra.mxu0 0.0
      %5681 = vmatprep.subr.mxu0 0.0
      %5682 = vmatpush1.msra.mxu0 0.0
      %5683 = vmatprep.subr.mxu0 0.0
      %5684 = vmatpush1.msra.mxu0 0.0
      %5685 = vmatprep.mubr.f32.mxu0 0.0
      %5686 = vmatmul.mubr.f32.gmra.mrb[0].mxu0 %v5613
      %v5687 = vpop.f32.mrb[0].mxu0
      %v5688 = vadd.f32 0.0, %v5687
      %v5689 = vpop.f32.mrb[0].mxu0
      %5690 = vmatprep.mubr.f32.mxu0 0.0
      %5691 = vmatmul.mubr.f32.gmra.mrb[0].mxu0 %v5615
      %v5692 = vpop.f32.mrb[0].mxu0
      %v5693 = vadd.f32 0.0, %v5692
      %v5694 = vpop.f32.mrb[0].mxu0
      %5695 = vmatprep.mubr.f32.mxu0 0.0
      %5696 = vmatmul.mubr.f32.gmra.mrb[0].mxu0 %v5617
      %v5697 = vpop.f32.mrb[0].mxu0
      %v5698 = vadd.f32 0.0, %v5697
      %v5699 = vpop.f32.mrb[0].mxu0
      %5700 = vmatprep.mubr.f32.mxu0 0.0
      %5701 = vmatmul.mubr.f32.gmra.mrb[0].mxu0 %v5619
      %v5702 = vpop.f32.mrb[0].mxu0
      %v5703 = vadd.f32 0.0, %v5702
      %v5704 = vpop.f32.mrb[0].mxu0
      %5705 = vdwg.mxu0
      %v5706 = vadd.f32 %v5688, %v528
      %v5707 = vadd.f32 %v5693, %v528
      %v5708 = vadd.f32 %v5698, %v528
      %v5709 = vadd.f32 %v5703, %v528
      %5710 = vrot.lane.b32.xlu0 %v5452, 80
      %v5711 = vpop.permute.xlu0 %5710
      %5712 = vrot.lane.b32.xlu0 %v5453, 80
      %v5713 = vpop.permute.xlu0 %5712
      %5714 = vrot.lane.b32.xlu0 %v5454, 80
      %v5715 = vpop.permute.xlu0 %5714
      %5716 = vrot.lane.b32.xlu0 %v5455, 80
      %v5717 = vpop.permute.xlu0 %5716
      %v5718 = vsel %vm166, %v5711, 0
      %v5720 = vsel %vm166, %v5713, 0
      %v5722 = vsel %vm166, %v5715, 0
      %v5724 = vsel %vm166, %v5717, 0
      %5726 = vmatprep.subr.mxu0 0.0
      %5727 = vmatpush1.msra.mxu0 %v129
      %5728 = vmatprep.subr.mxu0 0.0
      %5729 = vmatpush1.msra.mxu0 0.0
      %5730 = vmatprep.subr.mxu0 0.0
      %5731 = vmatpush1.msra.mxu0 0.0
      %5732 = vmatprep.subr.mxu0 0.0
      %5733 = vmatpush1.msra.mxu0 0.0
      %5734 = vmatprep.subr.mxu0 0.0
      %5735 = vmatpush1.msra.mxu0 0.0
      %5736 = vmatprep.subr.mxu0 0.0
      %5737 = vmatpush1.msra.mxu0 0.0
      %5738 = vmatprep.subr.mxu0 0.0
      %5739 = vmatpush1.msra.mxu0 0.0
      %5740 = vmatprep.subr.mxu0 0.0
      %5741 = vmatpush1.msra.mxu0 0.0
      %5742 = vmatprep.subr.mxu0 0.0
      %5743 = vmatpush1.msra.mxu0 0.0
      %5744 = vmatprep.subr.mxu0 0.0
      %5745 = vmatpush1.msra.mxu0 0.0
      %5746 = vmatprep.subr.mxu0 0.0
      %5747 = vmatpush1.msra.mxu0 0.0
      %5748 = vmatprep.subr.mxu0 0.0
      %5749 = vmatpush1.msra.mxu0 0.0
      %5750 = vmatprep.subr.mxu0 0.0
      %5751 = vmatpush1.msra.mxu0 0.0
      %5752 = vmatprep.subr.mxu0 0.0
      %5753 = vmatpush1.msra.mxu0 0.0
      %5754 = vmatprep.subr.mxu0 0.0
      %5755 = vmatpush1.msra.mxu0 0.0
      %5756 = vmatprep.subr.mxu0 0.0
      %5757 = vmatpush1.msra.mxu0 0.0
      %5758 = vmatprep.subr.mxu0 0.0
      %5759 = vmatpush1.msra.mxu0 0.0
      %5760 = vmatprep.subr.mxu0 0.0
      %5761 = vmatpush1.msra.mxu0 0.0
      %5762 = vmatprep.subr.mxu0 0.0
      %5763 = vmatpush1.msra.mxu0 0.0
      %5764 = vmatprep.subr.mxu0 0.0
      %5765 = vmatpush1.msra.mxu0 0.0
      %5766 = vmatprep.subr.mxu0 0.0
      %5767 = vmatpush1.msra.mxu0 0.0
      %5768 = vmatprep.subr.mxu0 0.0
      %5769 = vmatpush1.msra.mxu0 0.0
      %5770 = vmatprep.subr.mxu0 0.0
      %5771 = vmatpush1.msra.mxu0 0.0
      %5772 = vmatprep.subr.mxu0 0.0
      %5773 = vmatpush1.msra.mxu0 0.0
      %5774 = vmatprep.subr.mxu0 0.0
      %5775 = vmatpush1.msra.mxu0 0.0
      %5776 = vmatprep.subr.mxu0 0.0
      %5777 = vmatpush1.msra.mxu0 0.0
      %5778 = vmatprep.subr.mxu0 0.0
      %5779 = vmatpush1.msra.mxu0 0.0
      %5780 = vmatprep.subr.mxu0 0.0
      %5781 = vmatpush1.msra.mxu0 0.0
      %5782 = vmatprep.subr.mxu0 0.0
      %5783 = vmatpush1.msra.mxu0 0.0
      %5784 = vmatprep.subr.mxu0 0.0
      %5785 = vmatpush1.msra.mxu0 0.0
      %5786 = vmatprep.subr.mxu0 0.0
      %5787 = vmatpush1.msra.mxu0 0.0
      %5788 = vmatprep.subr.mxu0 0.0
      %5789 = vmatpush1.msra.mxu0 0.0
      %5790 = vmatprep.mubr.f32.mxu0 0.0
      %5791 = vmatmul.mubr.f32.gmra.mrb[0].mxu0 %v5718
      %v5792 = vpop.f32.mrb[0].mxu0
      %v5793 = vadd.f32 0.0, %v5792
      %v5794 = vpop.f32.mrb[0].mxu0
      %5795 = vmatprep.mubr.f32.mxu0 0.0
      %5796 = vmatmul.mubr.f32.gmra.mrb[0].mxu0 %v5720
      %v5797 = vpop.f32.mrb[0].mxu0
      %v5798 = vadd.f32 0.0, %v5797
      %v5799 = vpop.f32.mrb[0].mxu0
      %5800 = vmatprep.mubr.f32.mxu0 0.0
      %5801 = vmatmul.mubr.f32.gmra.mrb[0].mxu0 %v5722
      %v5802 = vpop.f32.mrb[0].mxu0
      %v5803 = vadd.f32 0.0, %v5802
      %v5804 = vpop.f32.mrb[0].mxu0
      %5805 = vmatprep.mubr.f32.mxu0 0.0
      %5806 = vmatmul.mubr.f32.gmra.mrb[0].mxu0 %v5724
      %v5807 = vpop.f32.mrb[0].mxu0
      %v5808 = vadd.f32 0.0, %v5807
      %v5809 = vpop.f32.mrb[0].mxu0
      %5810 = vdwg.mxu0
      %5815 = vrot.lane.b32.xlu0 %v5793, 32
      %v5816 = vpop.permute.xlu0 %5815
      %5817 = vrot.lane.b32.xlu0 %v5798, 32
      %v5818 = vpop.permute.xlu0 %5817
      %5819 = vrot.lane.b32.xlu0 %v5803, 32
      %v5820 = vpop.permute.xlu0 %5819
      %5821 = vrot.lane.b32.xlu0 %v5808, 32
      %v5822 = vpop.permute.xlu0 %5821
      %v5827 = vadd.f32 %v5706, %v5816
      %v5828 = vadd.f32 %v5707, %v5818
      %v5829 = vadd.f32 %v5708, %v5820
      %v5830 = vadd.f32 %v5709, %v5822
      %v5831 = vxor.u32 %v5827, 2147483648
      %v5832 = vxor.u32 %v5828, 2147483648
      %v5833 = vxor.u32 %v5829, 2147483648
      %v5834 = vxor.u32 %v5830, 2147483648
      %v5835 = vmul.f32 %v5831, 1.442695
      %v5836 = vpow.pop %v5835
      %v5837 = vmul.f32 %v5832, 1.442695
      %v5838 = vpow.pop %v5837
      %v5839 = vmul.f32 %v5833, 1.442695
      %v5840 = vpow.pop %v5839
      %v5841 = vmul.f32 %v5834, 1.442695
      %v5842 = vpow.pop %v5841
      %v5843 = vadd.f32 %v5836, 1.0
      %v5844 = vadd.f32 %v5838, 1.0
      %v5845 = vadd.f32 %v5840, 1.0
      %v5846 = vadd.f32 %v5842, 1.0
      %v5847 = vrcp.pop %v5843
      %v5848 = vmul.f32 1.0, %v5847
      %v5849 = vrcp.pop %v5844
      %v5850 = vmul.f32 1.0, %v5849
      %v5851 = vrcp.pop %v5845
      %v5852 = vmul.f32 1.0, %v5851
      %v5853 = vrcp.pop %v5846
      %v5854 = vmul.f32 1.0, %v5853
      %v5855 = vtanh.pop %v5827
      %v5856 = vtanh.pop %v5828
      %v5857 = vtanh.pop %v5829
      %v5858 = vtanh.pop %v5830
      %v5859 = vmul.f32 %v5848, %v5428
      %v5860 = vmul.f32 %v5850, %v5429
      %v5861 = vmul.f32 %v5852, %v5430
      %v5862 = vmul.f32 %v5854, %v5431
      %5867 = vrot.lane.b32.xlu0 %v5855, 104
      %v5868 = vpop.permute.xlu0 %5867
      %5869 = vrot.lane.b32.xlu0 %v5856, 104
      %v5870 = vpop.permute.xlu0 %5869
      %5871 = vrot.lane.b32.xlu0 %v5857, 104
      %v5872 = vpop.permute.xlu0 %5871
      %5873 = vrot.lane.b32.xlu0 %v5858, 104
      %v5874 = vpop.permute.xlu0 %5873
      %v5879 = vmul.f32 %v5848, %v5868
      %v5880 = vmul.f32 %v5850, %v5870
      %v5881 = vmul.f32 %v5852, %v5872
      %v5882 = vmul.f32 %v5854, %v5874
      %5887 = vrot.lane.b32.xlu0 %v5879, 8
      %v5888 = vpop.permute.xlu0 %5887
      %5889 = vrot.lane.b32.xlu0 %v5880, 8
      %v5890 = vpop.permute.xlu0 %5889
      %5891 = vrot.lane.b32.xlu0 %v5881, 8
      %v5892 = vpop.permute.xlu0 %5891
      %5893 = vrot.lane.b32.xlu0 %v5882, 8
      %v5894 = vpop.permute.xlu0 %5893
      %v5899 = vadd.f32 %v5859, %v5888
      %v5900 = vadd.f32 %v5860, %v5890
      %v5901 = vadd.f32 %v5861, %v5892
      %v5902 = vadd.f32 %v5862, %v5894
      %v5903 = vtanh.pop %v5899
      %v5904 = vtanh.pop %v5900
      %v5905 = vtanh.pop %v5901
      %v5906 = vtanh.pop %v5902
      %5911 = vrot.lane.b32.xlu0 %v5903, 8
      %v5912 = vpop.permute.xlu0 %5911
      %5913 = vrot.lane.b32.xlu0 %v5904, 8
      %v5914 = vpop.permute.xlu0 %5913
      %5915 = vrot.lane.b32.xlu0 %v5905, 8
      %v5916 = vpop.permute.xlu0 %5915
      %5917 = vrot.lane.b32.xlu0 %v5906, 8
      %v5918 = vpop.permute.xlu0 %5917
      %v5923 = vmul.f32 %v5848, %v5912
      %v5924 = vmul.f32 %v5850, %v5914
      %v5925 = vmul.f32 %v5852, %v5916
      %v5926 = vmul.f32 %v5854, %v5918
      %5931 = vrot.lane.b32.xlu0 %v5923, 40
      %v5932 = vpop.permute.xlu0 %5931
      %5933 = vrot.lane.b32.xlu0 %v5924, 40
      %v5934 = vpop.permute.xlu0 %5933
      %5935 = vrot.lane.b32.xlu0 %v5925, 40
      %v5936 = vpop.permute.xlu0 %5935
      %5937 = vrot.lane.b32.xlu0 %v5926, 40
      %v5938 = vpop.permute.xlu0 %5937
      %vm5943 = vcmask 786112
      %5944 = vst.msk [vmem:[#allocation2] sm:$0xff] %vm5943, %v5932
      %5945 = vst.msk [vmem:[#allocation2 + $0x8] sm:$0xff] %vm5943, %v5934
      %5946 = vst.msk [vmem:[#allocation2 + $0x10] sm:$0xff] %vm5943, %v5936
      %5947 = vst.msk [vmem:[#allocation2 + $0x18] sm:$0xff] %vm5943, %v5938
      %5948 = vset.pattern.permute.xlu0 11
      %5949 = vperm.xlu0 %5948, %v418
      %v5950 = vpop.permute.xlu0 %5949
      %5952 = vset.pattern.permute.xlu0 11
      %5953 = vperm.xlu0 %5952, %v419
      %v5954 = vpop.permute.xlu0 %5953
      %5956 = vset.pattern.permute.xlu0 11
      %5957 = vperm.xlu0 %5956, %v420
      %v5958 = vpop.permute.xlu0 %5957
      %5960 = vset.pattern.permute.xlu0 11
      %5961 = vperm.xlu0 %5960, %v421
      %v5962 = vpop.permute.xlu0 %5961
      %v5964 = vmul.f32 %v5950, %v135
      %v5965 = vmul.f32 %v5954, %v135
      %v5966 = vmul.f32 %v5958, %v135
      %v5967 = vmul.f32 %v5962, %v135
      %v5968 = vadd.f32 %v5964, %v142
      %v5969 = vadd.f32 %v5965, %v142
      %v5970 = vadd.f32 %v5966, %v142
      %v5971 = vadd.f32 %v5967, %v142
      %v5972 = vadd.f32 %v5968, %v5688
      %v5973 = vadd.f32 %v5969, %v5693
      %v5974 = vadd.f32 %v5970, %v5698
      %v5975 = vadd.f32 %v5971, %v5703
      %v5976 = vxor.u32 %v5972, 2147483648
      %v5977 = vxor.u32 %v5973, 2147483648
      %v5978 = vxor.u32 %v5974, 2147483648
      %v5979 = vxor.u32 %v5975, 2147483648
      %v5980 = vmul.f32 %v5976, 1.442695
      %v5981 = vpow.pop %v5980
      %v5982 = vmul.f32 %v5977, 1.442695
      %v5983 = vpow.pop %v5982
      %v5984 = vmul.f32 %v5978, 1.442695
      %v5985 = vpow.pop %v5984
      %v5986 = vmul.f32 %v5979, 1.442695
      %v5987 = vpow.pop %v5986
      %v5988 = vadd.f32 %v5981, 1.0
      %v5989 = vadd.f32 %v5983, 1.0
      %v5990 = vadd.f32 %v5985, 1.0
      %v5991 = vadd.f32 %v5987, 1.0
      %v5992 = vrcp.pop %v5988
      %v5993 = vmul.f32 1.0, %v5992
      %v5994 = vrcp.pop %v5989
      %v5995 = vmul.f32 1.0, %v5994
      %v5996 = vrcp.pop %v5990
      %v5997 = vmul.f32 1.0, %v5996
      %v5998 = vrcp.pop %v5991
      %v5999 = vmul.f32 1.0, %v5998
      %v6000 = vtanh.pop %v5972
      %v6001 = vtanh.pop %v5973
      %v6002 = vtanh.pop %v5974
      %v6003 = vtanh.pop %v5975
      %v6004 = vmul.f32 %v5993, %v5573
      %v6005 = vmul.f32 %v5995, %v5574
      %v6006 = vmul.f32 %v5997, %v5575
      %v6007 = vmul.f32 %v5999, %v5576
      %6012 = vrot.lane.b32.xlu0 %v6000, 104
      %v6013 = vpop.permute.xlu0 %6012
      %6014 = vrot.lane.b32.xlu0 %v6001, 104
      %v6015 = vpop.permute.xlu0 %6014
      %6016 = vrot.lane.b32.xlu0 %v6002, 104
      %v6017 = vpop.permute.xlu0 %6016
      %6018 = vrot.lane.b32.xlu0 %v6003, 104
      %v6019 = vpop.permute.xlu0 %6018
      %v6024 = vmul.f32 %v5993, %v6013
      %v6025 = vmul.f32 %v5995, %v6015
      %v6026 = vmul.f32 %v5997, %v6017
      %v6027 = vmul.f32 %v5999, %v6019
      %6032 = vrot.lane.b32.xlu0 %v6024, 8
      %v6033 = vpop.permute.xlu0 %6032
      %6034 = vrot.lane.b32.xlu0 %v6025, 8
      %v6035 = vpop.permute.xlu0 %6034
      %6036 = vrot.lane.b32.xlu0 %v6026, 8
      %v6037 = vpop.permute.xlu0 %6036
      %6038 = vrot.lane.b32.xlu0 %v6027, 8
      %v6039 = vpop.permute.xlu0 %6038
      %v6044 = vadd.f32 %v6004, %v6033
      %v6045 = vadd.f32 %v6005, %v6035
      %v6046 = vadd.f32 %v6006, %v6037
      %v6047 = vadd.f32 %v6007, %v6039
      %v6048 = vtanh.pop %v6044
      %v6049 = vtanh.pop %v6045
      %v6050 = vtanh.pop %v6046
      %v6051 = vtanh.pop %v6047
      %6056 = vrot.lane.b32.xlu0 %v6048, 8
      %v6057 = vpop.permute.xlu0 %6056
      %6058 = vrot.lane.b32.xlu0 %v6049, 8
      %v6059 = vpop.permute.xlu0 %6058
      %6060 = vrot.lane.b32.xlu0 %v6050, 8
      %v6061 = vpop.permute.xlu0 %6060
      %6062 = vrot.lane.b32.xlu0 %v6051, 8
      %v6063 = vpop.permute.xlu0 %6062
      %v6068 = vmul.f32 %v5993, %v6057
      %v6069 = vmul.f32 %v5995, %v6059
      %v6070 = vmul.f32 %v5997, %v6061
      %v6071 = vmul.f32 %v5999, %v6063
      %6076 = vrot.lane.b32.xlu0 %v6068, 112
      %v6077 = vpop.permute.xlu0 %6076
      %6078 = vrot.lane.b32.xlu0 %v6069, 112
      %v6079 = vpop.permute.xlu0 %6078
      %6080 = vrot.lane.b32.xlu0 %v6070, 112
      %v6081 = vpop.permute.xlu0 %6080
      %6082 = vrot.lane.b32.xlu0 %v6071, 112
      %v6083 = vpop.permute.xlu0 %6082
      %v6084 = vsel %vm166, %v6077, 0
      %v6086 = vsel %vm166, %v6079, 0
      %v6088 = vsel %vm166, %v6081, 0
      %v6090 = vsel %vm166, %v6083, 0
      %6092 = vmatprep.subr.mxu0 0.0
      %6093 = vmatpush1.msra.mxu0 %v128
      %6094 = vmatprep.subr.mxu0 0.0
      %6095 = vmatpush1.msra.mxu0 0.0
      %6096 = vmatprep.subr.mxu0 0.0
      %6097 = vmatpush1.msra.mxu0 0.0
      %6098 = vmatprep.subr.mxu0 0.0
      %6099 = vmatpush1.msra.mxu0 0.0
      %6100 = vmatprep.subr.mxu0 0.0
      %6101 = vmatpush1.msra.mxu0 0.0
      %6102 = vmatprep.subr.mxu0 0.0
      %6103 = vmatpush1.msra.mxu0 0.0
      %6104 = vmatprep.subr.mxu0 0.0
      %6105 = vmatpush1.msra.mxu0 0.0
      %6106 = vmatprep.subr.mxu0 0.0
      %6107 = vmatpush1.msra.mxu0 0.0
      %6108 = vmatprep.subr.mxu0 0.0
      %6109 = vmatpush1.msra.mxu0 0.0
      %6110 = vmatprep.subr.mxu0 0.0
      %6111 = vmatpush1.msra.mxu0 0.0
      %6112 = vmatprep.subr.mxu0 0.0
      %6113 = vmatpush1.msra.mxu0 0.0
      %6114 = vmatprep.subr.mxu0 0.0
      %6115 = vmatpush1.msra.mxu0 0.0
      %6116 = vmatprep.subr.mxu0 0.0
      %6117 = vmatpush1.msra.mxu0 0.0
      %6118 = vmatprep.subr.mxu0 0.0
      %6119 = vmatpush1.msra.mxu0 0.0
      %6120 = vmatprep.subr.mxu0 0.0
      %6121 = vmatpush1.msra.mxu0 0.0
      %6122 = vmatprep.subr.mxu0 0.0
      %6123 = vmatpush1.msra.mxu0 0.0
      %6124 = vmatprep.subr.mxu0 0.0
      %6125 = vmatpush1.msra.mxu0 0.0
      %6126 = vmatprep.subr.mxu0 0.0
      %6127 = vmatpush1.msra.mxu0 0.0
      %6128 = vmatprep.subr.mxu0 0.0
      %6129 = vmatpush1.msra.mxu0 0.0
      %6130 = vmatprep.subr.mxu0 0.0
      %6131 = vmatpush1.msra.mxu0 0.0
      %6132 = vmatprep.subr.mxu0 0.0
      %6133 = vmatpush1.msra.mxu0 0.0
      %6134 = vmatprep.subr.mxu0 0.0
      %6135 = vmatpush1.msra.mxu0 0.0
      %6136 = vmatprep.subr.mxu0 0.0
      %6137 = vmatpush1.msra.mxu0 0.0
      %6138 = vmatprep.subr.mxu0 0.0
      %6139 = vmatpush1.msra.mxu0 0.0
      %6140 = vmatprep.subr.mxu0 0.0
      %6141 = vmatpush1.msra.mxu0 0.0
      %6142 = vmatprep.subr.mxu0 0.0
      %6143 = vmatpush1.msra.mxu0 0.0
      %6144 = vmatprep.subr.mxu0 0.0
      %6145 = vmatpush1.msra.mxu0 0.0
      %6146 = vmatprep.subr.mxu0 0.0
      %6147 = vmatpush1.msra.mxu0 0.0
      %6148 = vmatprep.subr.mxu0 0.0
      %6149 = vmatpush1.msra.mxu0 0.0
      %6150 = vmatprep.subr.mxu0 0.0
      %6151 = vmatpush1.msra.mxu0 0.0
      %6152 = vmatprep.subr.mxu0 0.0
      %6153 = vmatpush1.msra.mxu0 0.0
      %6154 = vmatprep.subr.mxu0 0.0
      %6155 = vmatpush1.msra.mxu0 0.0
      %6156 = vmatprep.mubr.f32.mxu0 0.0
      %6157 = vmatmul.mubr.f32.gmra.mrb[0].mxu0 %v6084
      %v6158 = vpop.f32.mrb[0].mxu0
      %v6159 = vadd.f32 0.0, %v6158
      %v6160 = vpop.f32.mrb[0].mxu0
      %6161 = vmatprep.mubr.f32.mxu0 0.0
      %6162 = vmatmul.mubr.f32.gmra.mrb[0].mxu0 %v6086
      %v6163 = vpop.f32.mrb[0].mxu0
      %v6164 = vadd.f32 0.0, %v6163
      %v6165 = vpop.f32.mrb[0].mxu0
      %6166 = vmatprep.mubr.f32.mxu0 0.0
      %6167 = vmatmul.mubr.f32.gmra.mrb[0].mxu0 %v6088
      %v6168 = vpop.f32.mrb[0].mxu0
      %v6169 = vadd.f32 0.0, %v6168
      %v6170 = vpop.f32.mrb[0].mxu0
      %6171 = vmatprep.mubr.f32.mxu0 0.0
      %6172 = vmatmul.mubr.f32.gmra.mrb[0].mxu0 %v6090
      %v6173 = vpop.f32.mrb[0].mxu0
      %v6174 = vadd.f32 0.0, %v6173
      %v6175 = vpop.f32.mrb[0].mxu0
      %6176 = vdwg.mxu0
      %v6177 = vadd.f32 %v6159, %v528
      %v6178 = vadd.f32 %v6164, %v528
      %v6179 = vadd.f32 %v6169, %v528
      %v6180 = vadd.f32 %v6174, %v528
      %6181 = vrot.lane.b32.xlu0 %v5923, 80
      %v6182 = vpop.permute.xlu0 %6181
      %6183 = vrot.lane.b32.xlu0 %v5924, 80
      %v6184 = vpop.permute.xlu0 %6183
      %6185 = vrot.lane.b32.xlu0 %v5925, 80
      %v6186 = vpop.permute.xlu0 %6185
      %6187 = vrot.lane.b32.xlu0 %v5926, 80
      %v6188 = vpop.permute.xlu0 %6187
      %v6189 = vsel %vm166, %v6182, 0
      %v6191 = vsel %vm166, %v6184, 0
      %v6193 = vsel %vm166, %v6186, 0
      %v6195 = vsel %vm166, %v6188, 0
      %6197 = vmatprep.subr.mxu0 0.0
      %6198 = vmatpush1.msra.mxu0 %v129
      %6199 = vmatprep.subr.mxu0 0.0
      %6200 = vmatpush1.msra.mxu0 0.0
      %6201 = vmatprep.subr.mxu0 0.0
      %6202 = vmatpush1.msra.mxu0 0.0
      %6203 = vmatprep.subr.mxu0 0.0
      %6204 = vmatpush1.msra.mxu0 0.0
      %6205 = vmatprep.subr.mxu0 0.0
      %6206 = vmatpush1.msra.mxu0 0.0
      %6207 = vmatprep.subr.mxu0 0.0
      %6208 = vmatpush1.msra.mxu0 0.0
      %6209 = vmatprep.subr.mxu0 0.0
      %6210 = vmatpush1.msra.mxu0 0.0
      %6211 = vmatprep.subr.mxu0 0.0
      %6212 = vmatpush1.msra.mxu0 0.0
      %6213 = vmatprep.subr.mxu0 0.0
      %6214 = vmatpush1.msra.mxu0 0.0
      %6215 = vmatprep.subr.mxu0 0.0
      %6216 = vmatpush1.msra.mxu0 0.0
      %6217 = vmatprep.subr.mxu0 0.0
      %6218 = vmatpush1.msra.mxu0 0.0
      %6219 = vmatprep.subr.mxu0 0.0
      %6220 = vmatpush1.msra.mxu0 0.0
      %6221 = vmatprep.subr.mxu0 0.0
      %6222 = vmatpush1.msra.mxu0 0.0
      %6223 = vmatprep.subr.mxu0 0.0
      %6224 = vmatpush1.msra.mxu0 0.0
      %6225 = vmatprep.subr.mxu0 0.0
      %6226 = vmatpush1.msra.mxu0 0.0
      %6227 = vmatprep.subr.mxu0 0.0
      %6228 = vmatpush1.msra.mxu0 0.0
      %6229 = vmatprep.subr.mxu0 0.0
      %6230 = vmatpush1.msra.mxu0 0.0
      %6231 = vmatprep.subr.mxu0 0.0
      %6232 = vmatpush1.msra.mxu0 0.0
      %6233 = vmatprep.subr.mxu0 0.0
      %6234 = vmatpush1.msra.mxu0 0.0
      %6235 = vmatprep.subr.mxu0 0.0
      %6236 = vmatpush1.msra.mxu0 0.0
      %6237 = vmatprep.subr.mxu0 0.0
      %6238 = vmatpush1.msra.mxu0 0.0
      %6239 = vmatprep.subr.mxu0 0.0
      %6240 = vmatpush1.msra.mxu0 0.0
      %6241 = vmatprep.subr.mxu0 0.0
      %6242 = vmatpush1.msra.mxu0 0.0
      %6243 = vmatprep.subr.mxu0 0.0
      %6244 = vmatpush1.msra.mxu0 0.0
      %6245 = vmatprep.subr.mxu0 0.0
      %6246 = vmatpush1.msra.mxu0 0.0
      %6247 = vmatprep.subr.mxu0 0.0
      %6248 = vmatpush1.msra.mxu0 0.0
      %6249 = vmatprep.subr.mxu0 0.0
      %6250 = vmatpush1.msra.mxu0 0.0
      %6251 = vmatprep.subr.mxu0 0.0
      %6252 = vmatpush1.msra.mxu0 0.0
      %6253 = vmatprep.subr.mxu0 0.0
      %6254 = vmatpush1.msra.mxu0 0.0
      %6255 = vmatprep.subr.mxu0 0.0
      %6256 = vmatpush1.msra.mxu0 0.0
      %6257 = vmatprep.subr.mxu0 0.0
      %6258 = vmatpush1.msra.mxu0 0.0
      %6259 = vmatprep.subr.mxu0 0.0
      %6260 = vmatpush1.msra.mxu0 0.0
      %6261 = vmatprep.mubr.f32.mxu0 0.0
      %6262 = vmatmul.mubr.f32.gmra.mrb[0].mxu0 %v6189
      %v6263 = vpop.f32.mrb[0].mxu0
      %v6264 = vadd.f32 0.0, %v6263
      %v6265 = vpop.f32.mrb[0].mxu0
      %6266 = vmatprep.mubr.f32.mxu0 0.0
      %6267 = vmatmul.mubr.f32.gmra.mrb[0].mxu0 %v6191
      %v6268 = vpop.f32.mrb[0].mxu0
      %v6269 = vadd.f32 0.0, %v6268
      %v6270 = vpop.f32.mrb[0].mxu0
      %6271 = vmatprep.mubr.f32.mxu0 0.0
      %6272 = vmatmul.mubr.f32.gmra.mrb[0].mxu0 %v6193
      %v6273 = vpop.f32.mrb[0].mxu0
      %v6274 = vadd.f32 0.0, %v6273
      %v6275 = vpop.f32.mrb[0].mxu0
      %6276 = vmatprep.mubr.f32.mxu0 0.0
      %6277 = vmatmul.mubr.f32.gmra.mrb[0].mxu0 %v6195
      %v6278 = vpop.f32.mrb[0].mxu0
      %v6279 = vadd.f32 0.0, %v6278
      %v6280 = vpop.f32.mrb[0].mxu0
      %6281 = vdwg.mxu0
      %6286 = vrot.lane.b32.xlu0 %v6264, 32
      %v6287 = vpop.permute.xlu0 %6286
      %6288 = vrot.lane.b32.xlu0 %v6269, 32
      %v6289 = vpop.permute.xlu0 %6288
      %6290 = vrot.lane.b32.xlu0 %v6274, 32
      %v6291 = vpop.permute.xlu0 %6290
      %6292 = vrot.lane.b32.xlu0 %v6279, 32
      %v6293 = vpop.permute.xlu0 %6292
      %v6298 = vadd.f32 %v6177, %v6287
      %v6299 = vadd.f32 %v6178, %v6289
      %v6300 = vadd.f32 %v6179, %v6291
      %v6301 = vadd.f32 %v6180, %v6293
      %v6302 = vxor.u32 %v6298, 2147483648
      %v6303 = vxor.u32 %v6299, 2147483648
      %v6304 = vxor.u32 %v6300, 2147483648
      %v6305 = vxor.u32 %v6301, 2147483648
      %v6306 = vmul.f32 %v6302, 1.442695
      %v6307 = vpow.pop %v6306
      %v6308 = vmul.f32 %v6303, 1.442695
      %v6309 = vpow.pop %v6308
      %v6310 = vmul.f32 %v6304, 1.442695
      %v6311 = vpow.pop %v6310
      %v6312 = vmul.f32 %v6305, 1.442695
      %v6313 = vpow.pop %v6312
      %v6314 = vadd.f32 %v6307, 1.0
      %v6315 = vadd.f32 %v6309, 1.0
      %v6316 = vadd.f32 %v6311, 1.0
      %v6317 = vadd.f32 %v6313, 1.0
      %v6318 = vrcp.pop %v6314
      %v6319 = vmul.f32 1.0, %v6318
      %v6320 = vrcp.pop %v6315
      %v6321 = vmul.f32 1.0, %v6320
      %v6322 = vrcp.pop %v6316
      %v6323 = vmul.f32 1.0, %v6322
      %v6324 = vrcp.pop %v6317
      %v6325 = vmul.f32 1.0, %v6324
      %v6326 = vtanh.pop %v6298
      %v6327 = vtanh.pop %v6299
      %v6328 = vtanh.pop %v6300
      %v6329 = vtanh.pop %v6301
      %v6330 = vmul.f32 %v6319, %v5899
      %v6331 = vmul.f32 %v6321, %v5900
      %v6332 = vmul.f32 %v6323, %v5901
      %v6333 = vmul.f32 %v6325, %v5902
      %6338 = vrot.lane.b32.xlu0 %v6326, 104
      %v6339 = vpop.permute.xlu0 %6338
      %6340 = vrot.lane.b32.xlu0 %v6327, 104
      %v6341 = vpop.permute.xlu0 %6340
      %6342 = vrot.lane.b32.xlu0 %v6328, 104
      %v6343 = vpop.permute.xlu0 %6342
      %6344 = vrot.lane.b32.xlu0 %v6329, 104
      %v6345 = vpop.permute.xlu0 %6344
      %v6350 = vmul.f32 %v6319, %v6339
      %v6351 = vmul.f32 %v6321, %v6341
      %v6352 = vmul.f32 %v6323, %v6343
      %v6353 = vmul.f32 %v6325, %v6345
      %6358 = vrot.lane.b32.xlu0 %v6350, 8
      %v6359 = vpop.permute.xlu0 %6358
      %6360 = vrot.lane.b32.xlu0 %v6351, 8
      %v6361 = vpop.permute.xlu0 %6360
      %6362 = vrot.lane.b32.xlu0 %v6352, 8
      %v6363 = vpop.permute.xlu0 %6362
      %6364 = vrot.lane.b32.xlu0 %v6353, 8
      %v6365 = vpop.permute.xlu0 %6364
      %v6370 = vadd.f32 %v6330, %v6359
      %v6371 = vadd.f32 %v6331, %v6361
      %v6372 = vadd.f32 %v6332, %v6363
      %v6373 = vadd.f32 %v6333, %v6365
      %v6374 = vtanh.pop %v6370
      %v6375 = vtanh.pop %v6371
      %v6376 = vtanh.pop %v6372
      %v6377 = vtanh.pop %v6373
      %6382 = vrot.lane.b32.xlu0 %v6374, 8
      %v6383 = vpop.permute.xlu0 %6382
      %6384 = vrot.lane.b32.xlu0 %v6375, 8
      %v6385 = vpop.permute.xlu0 %6384
      %6386 = vrot.lane.b32.xlu0 %v6376, 8
      %v6387 = vpop.permute.xlu0 %6386
      %6388 = vrot.lane.b32.xlu0 %v6377, 8
      %v6389 = vpop.permute.xlu0 %6388
      %v6394 = vmul.f32 %v6319, %v6383
      %v6395 = vmul.f32 %v6321, %v6385
      %v6396 = vmul.f32 %v6323, %v6387
      %v6397 = vmul.f32 %v6325, %v6389
      %6402 = vrot.lane.b32.xlu0 %v6394, 48
      %v6403 = vpop.permute.xlu0 %6402
      %6404 = vrot.lane.b32.xlu0 %v6395, 48
      %v6405 = vpop.permute.xlu0 %6404
      %6406 = vrot.lane.b32.xlu0 %v6396, 48
      %v6407 = vpop.permute.xlu0 %6406
      %6408 = vrot.lane.b32.xlu0 %v6397, 48
      %v6409 = vpop.permute.xlu0 %6408
      %vm6414 = vcmask 851712
      %6415 = vst.msk [vmem:[#allocation2] sm:$0xff] %vm6414, %v6403
      %6416 = vst.msk [vmem:[#allocation2 + $0x8] sm:$0xff] %vm6414, %v6405
      %6417 = vst.msk [vmem:[#allocation2 + $0x10] sm:$0xff] %vm6414, %v6407
      %6418 = vst.msk [vmem:[#allocation2 + $0x18] sm:$0xff] %vm6414, %v6409
      %6419 = vset.pattern.permute.xlu0 12
      %6420 = vperm.xlu0 %6419, %v418
      %v6421 = vpop.permute.xlu0 %6420
      %6423 = vset.pattern.permute.xlu0 12
      %6424 = vperm.xlu0 %6423, %v419
      %v6425 = vpop.permute.xlu0 %6424
      %6427 = vset.pattern.permute.xlu0 12
      %6428 = vperm.xlu0 %6427, %v420
      %v6429 = vpop.permute.xlu0 %6428
      %6431 = vset.pattern.permute.xlu0 12
      %6432 = vperm.xlu0 %6431, %v421
      %v6433 = vpop.permute.xlu0 %6432
      %v6435 = vmul.f32 %v6421, %v135
      %v6436 = vmul.f32 %v6425, %v135
      %v6437 = vmul.f32 %v6429, %v135
      %v6438 = vmul.f32 %v6433, %v135
      %v6439 = vadd.f32 %v6435, %v142
      %v6440 = vadd.f32 %v6436, %v142
      %v6441 = vadd.f32 %v6437, %v142
      %v6442 = vadd.f32 %v6438, %v142
      %v6443 = vadd.f32 %v6439, %v6159
      %v6444 = vadd.f32 %v6440, %v6164
      %v6445 = vadd.f32 %v6441, %v6169
      %v6446 = vadd.f32 %v6442, %v6174
      %v6447 = vxor.u32 %v6443, 2147483648
      %v6448 = vxor.u32 %v6444, 2147483648
      %v6449 = vxor.u32 %v6445, 2147483648
      %v6450 = vxor.u32 %v6446, 2147483648
      %v6451 = vmul.f32 %v6447, 1.442695
      %v6452 = vpow.pop %v6451
      %v6453 = vmul.f32 %v6448, 1.442695
      %v6454 = vpow.pop %v6453
      %v6455 = vmul.f32 %v6449, 1.442695
      %v6456 = vpow.pop %v6455
      %v6457 = vmul.f32 %v6450, 1.442695
      %v6458 = vpow.pop %v6457
      %v6459 = vadd.f32 %v6452, 1.0
      %v6460 = vadd.f32 %v6454, 1.0
      %v6461 = vadd.f32 %v6456, 1.0
      %v6462 = vadd.f32 %v6458, 1.0
      %v6463 = vrcp.pop %v6459
      %v6464 = vmul.f32 1.0, %v6463
      %v6465 = vrcp.pop %v6460
      %v6466 = vmul.f32 1.0, %v6465
      %v6467 = vrcp.pop %v6461
      %v6468 = vmul.f32 1.0, %v6467
      %v6469 = vrcp.pop %v6462
      %v6470 = vmul.f32 1.0, %v6469
      %v6471 = vtanh.pop %v6443
      %v6472 = vtanh.pop %v6444
      %v6473 = vtanh.pop %v6445
      %v6474 = vtanh.pop %v6446
      %v6475 = vmul.f32 %v6464, %v6044
      %v6476 = vmul.f32 %v6466, %v6045
      %v6477 = vmul.f32 %v6468, %v6046
      %v6478 = vmul.f32 %v6470, %v6047
      %6483 = vrot.lane.b32.xlu0 %v6471, 104
      %v6484 = vpop.permute.xlu0 %6483
      %6485 = vrot.lane.b32.xlu0 %v6472, 104
      %v6486 = vpop.permute.xlu0 %6485
      %6487 = vrot.lane.b32.xlu0 %v6473, 104
      %v6488 = vpop.permute.xlu0 %6487
      %6489 = vrot.lane.b32.xlu0 %v6474, 104
      %v6490 = vpop.permute.xlu0 %6489
      %v6495 = vmul.f32 %v6464, %v6484
      %v6496 = vmul.f32 %v6466, %v6486
      %v6497 = vmul.f32 %v6468, %v6488
      %v6498 = vmul.f32 %v6470, %v6490
      %6503 = vrot.lane.b32.xlu0 %v6495, 8
      %v6504 = vpop.permute.xlu0 %6503
      %6505 = vrot.lane.b32.xlu0 %v6496, 8
      %v6506 = vpop.permute.xlu0 %6505
      %6507 = vrot.lane.b32.xlu0 %v6497, 8
      %v6508 = vpop.permute.xlu0 %6507
      %6509 = vrot.lane.b32.xlu0 %v6498, 8
      %v6510 = vpop.permute.xlu0 %6509
      %v6515 = vadd.f32 %v6475, %v6504
      %v6516 = vadd.f32 %v6476, %v6506
      %v6517 = vadd.f32 %v6477, %v6508
      %v6518 = vadd.f32 %v6478, %v6510
      %v6519 = vtanh.pop %v6515
      %v6520 = vtanh.pop %v6516
      %v6521 = vtanh.pop %v6517
      %v6522 = vtanh.pop %v6518
      %6527 = vrot.lane.b32.xlu0 %v6519, 8
      %v6528 = vpop.permute.xlu0 %6527
      %6529 = vrot.lane.b32.xlu0 %v6520, 8
      %v6530 = vpop.permute.xlu0 %6529
      %6531 = vrot.lane.b32.xlu0 %v6521, 8
      %v6532 = vpop.permute.xlu0 %6531
      %6533 = vrot.lane.b32.xlu0 %v6522, 8
      %v6534 = vpop.permute.xlu0 %6533
      %v6539 = vmul.f32 %v6464, %v6528
      %v6540 = vmul.f32 %v6466, %v6530
      %v6541 = vmul.f32 %v6468, %v6532
      %v6542 = vmul.f32 %v6470, %v6534
      %6547 = vrot.lane.b32.xlu0 %v6539, 112
      %v6548 = vpop.permute.xlu0 %6547
      %6549 = vrot.lane.b32.xlu0 %v6540, 112
      %v6550 = vpop.permute.xlu0 %6549
      %6551 = vrot.lane.b32.xlu0 %v6541, 112
      %v6552 = vpop.permute.xlu0 %6551
      %6553 = vrot.lane.b32.xlu0 %v6542, 112
      %v6554 = vpop.permute.xlu0 %6553
      %v6555 = vsel %vm166, %v6548, 0
      %v6557 = vsel %vm166, %v6550, 0
      %v6559 = vsel %vm166, %v6552, 0
      %v6561 = vsel %vm166, %v6554, 0
      %6563 = vmatprep.subr.mxu0 0.0
      %6564 = vmatpush1.msra.mxu0 %v128
      %6565 = vmatprep.subr.mxu0 0.0
      %6566 = vmatpush1.msra.mxu0 0.0
      %6567 = vmatprep.subr.mxu0 0.0
      %6568 = vmatpush1.msra.mxu0 0.0
      %6569 = vmatprep.subr.mxu0 0.0
      %6570 = vmatpush1.msra.mxu0 0.0
      %6571 = vmatprep.subr.mxu0 0.0
      %6572 = vmatpush1.msra.mxu0 0.0
      %6573 = vmatprep.subr.mxu0 0.0
      %6574 = vmatpush1.msra.mxu0 0.0
      %6575 = vmatprep.subr.mxu0 0.0
      %6576 = vmatpush1.msra.mxu0 0.0
      %6577 = vmatprep.subr.mxu0 0.0
      %6578 = vmatpush1.msra.mxu0 0.0
      %6579 = vmatprep.subr.mxu0 0.0
      %6580 = vmatpush1.msra.mxu0 0.0
      %6581 = vmatprep.subr.mxu0 0.0
      %6582 = vmatpush1.msra.mxu0 0.0
      %6583 = vmatprep.subr.mxu0 0.0
      %6584 = vmatpush1.msra.mxu0 0.0
      %6585 = vmatprep.subr.mxu0 0.0
      %6586 = vmatpush1.msra.mxu0 0.0
      %6587 = vmatprep.subr.mxu0 0.0
      %6588 = vmatpush1.msra.mxu0 0.0
      %6589 = vmatprep.subr.mxu0 0.0
      %6590 = vmatpush1.msra.mxu0 0.0
      %6591 = vmatprep.subr.mxu0 0.0
      %6592 = vmatpush1.msra.mxu0 0.0
      %6593 = vmatprep.subr.mxu0 0.0
      %6594 = vmatpush1.msra.mxu0 0.0
      %6595 = vmatprep.subr.mxu0 0.0
      %6596 = vmatpush1.msra.mxu0 0.0
      %6597 = vmatprep.subr.mxu0 0.0
      %6598 = vmatpush1.msra.mxu0 0.0
      %6599 = vmatprep.subr.mxu0 0.0
      %6600 = vmatpush1.msra.mxu0 0.0
      %6601 = vmatprep.subr.mxu0 0.0
      %6602 = vmatpush1.msra.mxu0 0.0
      %6603 = vmatprep.subr.mxu0 0.0
      %6604 = vmatpush1.msra.mxu0 0.0
      %6605 = vmatprep.subr.mxu0 0.0
      %6606 = vmatpush1.msra.mxu0 0.0
      %6607 = vmatprep.subr.mxu0 0.0
      %6608 = vmatpush1.msra.mxu0 0.0
      %6609 = vmatprep.subr.mxu0 0.0
      %6610 = vmatpush1.msra.mxu0 0.0
      %6611 = vmatprep.subr.mxu0 0.0
      %6612 = vmatpush1.msra.mxu0 0.0
      %6613 = vmatprep.subr.mxu0 0.0
      %6614 = vmatpush1.msra.mxu0 0.0
      %6615 = vmatprep.subr.mxu0 0.0
      %6616 = vmatpush1.msra.mxu0 0.0
      %6617 = vmatprep.subr.mxu0 0.0
      %6618 = vmatpush1.msra.mxu0 0.0
      %6619 = vmatprep.subr.mxu0 0.0
      %6620 = vmatpush1.msra.mxu0 0.0
      %6621 = vmatprep.subr.mxu0 0.0
      %6622 = vmatpush1.msra.mxu0 0.0
      %6623 = vmatprep.subr.mxu0 0.0
      %6624 = vmatpush1.msra.mxu0 0.0
      %6625 = vmatprep.subr.mxu0 0.0
      %6626 = vmatpush1.msra.mxu0 0.0
      %6627 = vmatprep.mubr.f32.mxu0 0.0
      %6628 = vmatmul.mubr.f32.gmra.mrb[0].mxu0 %v6555
      %v6629 = vpop.f32.mrb[0].mxu0
      %v6630 = vadd.f32 0.0, %v6629
      %v6631 = vpop.f32.mrb[0].mxu0
      %6632 = vmatprep.mubr.f32.mxu0 0.0
      %6633 = vmatmul.mubr.f32.gmra.mrb[0].mxu0 %v6557
      %v6634 = vpop.f32.mrb[0].mxu0
      %v6635 = vadd.f32 0.0, %v6634
      %v6636 = vpop.f32.mrb[0].mxu0
      %6637 = vmatprep.mubr.f32.mxu0 0.0
      %6638 = vmatmul.mubr.f32.gmra.mrb[0].mxu0 %v6559
      %v6639 = vpop.f32.mrb[0].mxu0
      %v6640 = vadd.f32 0.0, %v6639
      %v6641 = vpop.f32.mrb[0].mxu0
      %6642 = vmatprep.mubr.f32.mxu0 0.0
      %6643 = vmatmul.mubr.f32.gmra.mrb[0].mxu0 %v6561
      %v6644 = vpop.f32.mrb[0].mxu0
      %v6645 = vadd.f32 0.0, %v6644
      %v6646 = vpop.f32.mrb[0].mxu0
      %6647 = vdwg.mxu0
      %v6648 = vadd.f32 %v6630, %v528
      %v6649 = vadd.f32 %v6635, %v528
      %v6650 = vadd.f32 %v6640, %v528
      %v6651 = vadd.f32 %v6645, %v528
      %6652 = vrot.lane.b32.xlu0 %v6394, 80
      %v6653 = vpop.permute.xlu0 %6652
      %6654 = vrot.lane.b32.xlu0 %v6395, 80
      %v6655 = vpop.permute.xlu0 %6654
      %6656 = vrot.lane.b32.xlu0 %v6396, 80
      %v6657 = vpop.permute.xlu0 %6656
      %6658 = vrot.lane.b32.xlu0 %v6397, 80
      %v6659 = vpop.permute.xlu0 %6658
      %v6660 = vsel %vm166, %v6653, 0
      %v6662 = vsel %vm166, %v6655, 0
      %v6664 = vsel %vm166, %v6657, 0
      %v6666 = vsel %vm166, %v6659, 0
      %6668 = vmatprep.subr.mxu0 0.0
      %6669 = vmatpush1.msra.mxu0 %v129
      %6670 = vmatprep.subr.mxu0 0.0
      %6671 = vmatpush1.msra.mxu0 0.0
      %6672 = vmatprep.subr.mxu0 0.0
      %6673 = vmatpush1.msra.mxu0 0.0
      %6674 = vmatprep.subr.mxu0 0.0
      %6675 = vmatpush1.msra.mxu0 0.0
      %6676 = vmatprep.subr.mxu0 0.0
      %6677 = vmatpush1.msra.mxu0 0.0
      %6678 = vmatprep.subr.mxu0 0.0
      %6679 = vmatpush1.msra.mxu0 0.0
      %6680 = vmatprep.subr.mxu0 0.0
      %6681 = vmatpush1.msra.mxu0 0.0
      %6682 = vmatprep.subr.mxu0 0.0
      %6683 = vmatpush1.msra.mxu0 0.0
      %6684 = vmatprep.subr.mxu0 0.0
      %6685 = vmatpush1.msra.mxu0 0.0
      %6686 = vmatprep.subr.mxu0 0.0
      %6687 = vmatpush1.msra.mxu0 0.0
      %6688 = vmatprep.subr.mxu0 0.0
      %6689 = vmatpush1.msra.mxu0 0.0
      %6690 = vmatprep.subr.mxu0 0.0
      %6691 = vmatpush1.msra.mxu0 0.0
      %6692 = vmatprep.subr.mxu0 0.0
      %6693 = vmatpush1.msra.mxu0 0.0
      %6694 = vmatprep.subr.mxu0 0.0
      %6695 = vmatpush1.msra.mxu0 0.0
      %6696 = vmatprep.subr.mxu0 0.0
      %6697 = vmatpush1.msra.mxu0 0.0
      %6698 = vmatprep.subr.mxu0 0.0
      %6699 = vmatpush1.msra.mxu0 0.0
      %6700 = vmatprep.subr.mxu0 0.0
      %6701 = vmatpush1.msra.mxu0 0.0
      %6702 = vmatprep.subr.mxu0 0.0
      %6703 = vmatpush1.msra.mxu0 0.0
      %6704 = vmatprep.subr.mxu0 0.0
      %6705 = vmatpush1.msra.mxu0 0.0
      %6706 = vmatprep.subr.mxu0 0.0
      %6707 = vmatpush1.msra.mxu0 0.0
      %6708 = vmatprep.subr.mxu0 0.0
      %6709 = vmatpush1.msra.mxu0 0.0
      %6710 = vmatprep.subr.mxu0 0.0
      %6711 = vmatpush1.msra.mxu0 0.0
      %6712 = vmatprep.subr.mxu0 0.0
      %6713 = vmatpush1.msra.mxu0 0.0
      %6714 = vmatprep.subr.mxu0 0.0
      %6715 = vmatpush1.msra.mxu0 0.0
      %6716 = vmatprep.subr.mxu0 0.0
      %6717 = vmatpush1.msra.mxu0 0.0
      %6718 = vmatprep.subr.mxu0 0.0
      %6719 = vmatpush1.msra.mxu0 0.0
      %6720 = vmatprep.subr.mxu0 0.0
      %6721 = vmatpush1.msra.mxu0 0.0
      %6722 = vmatprep.subr.mxu0 0.0
      %6723 = vmatpush1.msra.mxu0 0.0
      %6724 = vmatprep.subr.mxu0 0.0
      %6725 = vmatpush1.msra.mxu0 0.0
      %6726 = vmatprep.subr.mxu0 0.0
      %6727 = vmatpush1.msra.mxu0 0.0
      %6728 = vmatprep.subr.mxu0 0.0
      %6729 = vmatpush1.msra.mxu0 0.0
      %6730 = vmatprep.subr.mxu0 0.0
      %6731 = vmatpush1.msra.mxu0 0.0
      %6732 = vmatprep.mubr.f32.mxu0 0.0
      %6733 = vmatmul.mubr.f32.gmra.mrb[0].mxu0 %v6660
      %v6734 = vpop.f32.mrb[0].mxu0
      %v6735 = vadd.f32 0.0, %v6734
      %v6736 = vpop.f32.mrb[0].mxu0
      %6737 = vmatprep.mubr.f32.mxu0 0.0
      %6738 = vmatmul.mubr.f32.gmra.mrb[0].mxu0 %v6662
      %v6739 = vpop.f32.mrb[0].mxu0
      %v6740 = vadd.f32 0.0, %v6739
      %v6741 = vpop.f32.mrb[0].mxu0
      %6742 = vmatprep.mubr.f32.mxu0 0.0
      %6743 = vmatmul.mubr.f32.gmra.mrb[0].mxu0 %v6664
      %v6744 = vpop.f32.mrb[0].mxu0
      %v6745 = vadd.f32 0.0, %v6744
      %v6746 = vpop.f32.mrb[0].mxu0
      %6747 = vmatprep.mubr.f32.mxu0 0.0
      %6748 = vmatmul.mubr.f32.gmra.mrb[0].mxu0 %v6666
      %v6749 = vpop.f32.mrb[0].mxu0
      %v6750 = vadd.f32 0.0, %v6749
      %v6751 = vpop.f32.mrb[0].mxu0
      %6752 = vdwg.mxu0
      %6757 = vrot.lane.b32.xlu0 %v6735, 32
      %v6758 = vpop.permute.xlu0 %6757
      %6759 = vrot.lane.b32.xlu0 %v6740, 32
      %v6760 = vpop.permute.xlu0 %6759
      %6761 = vrot.lane.b32.xlu0 %v6745, 32
      %v6762 = vpop.permute.xlu0 %6761
      %6763 = vrot.lane.b32.xlu0 %v6750, 32
      %v6764 = vpop.permute.xlu0 %6763
      %v6769 = vadd.f32 %v6648, %v6758
      %v6770 = vadd.f32 %v6649, %v6760
      %v6771 = vadd.f32 %v6650, %v6762
      %v6772 = vadd.f32 %v6651, %v6764
      %v6773 = vxor.u32 %v6769, 2147483648
      %v6774 = vxor.u32 %v6770, 2147483648
      %v6775 = vxor.u32 %v6771, 2147483648
      %v6776 = vxor.u32 %v6772, 2147483648
      %v6777 = vmul.f32 %v6773, 1.442695
      %v6778 = vpow.pop %v6777
      %v6779 = vmul.f32 %v6774, 1.442695
      %v6780 = vpow.pop %v6779
      %v6781 = vmul.f32 %v6775, 1.442695
      %v6782 = vpow.pop %v6781
      %v6783 = vmul.f32 %v6776, 1.442695
      %v6784 = vpow.pop %v6783
      %v6785 = vadd.f32 %v6778, 1.0
      %v6786 = vadd.f32 %v6780, 1.0
      %v6787 = vadd.f32 %v6782, 1.0
      %v6788 = vadd.f32 %v6784, 1.0
      %v6789 = vrcp.pop %v6785
      %v6790 = vmul.f32 1.0, %v6789
      %v6791 = vrcp.pop %v6786
      %v6792 = vmul.f32 1.0, %v6791
      %v6793 = vrcp.pop %v6787
      %v6794 = vmul.f32 1.0, %v6793
      %v6795 = vrcp.pop %v6788
      %v6796 = vmul.f32 1.0, %v6795
      %v6797 = vtanh.pop %v6769
      %v6798 = vtanh.pop %v6770
      %v6799 = vtanh.pop %v6771
      %v6800 = vtanh.pop %v6772
      %v6801 = vmul.f32 %v6790, %v6370
      %v6802 = vmul.f32 %v6792, %v6371
      %v6803 = vmul.f32 %v6794, %v6372
      %v6804 = vmul.f32 %v6796, %v6373
      %6809 = vrot.lane.b32.xlu0 %v6797, 104
      %v6810 = vpop.permute.xlu0 %6809
      %6811 = vrot.lane.b32.xlu0 %v6798, 104
      %v6812 = vpop.permute.xlu0 %6811
      %6813 = vrot.lane.b32.xlu0 %v6799, 104
      %v6814 = vpop.permute.xlu0 %6813
      %6815 = vrot.lane.b32.xlu0 %v6800, 104
      %v6816 = vpop.permute.xlu0 %6815
      %v6821 = vmul.f32 %v6790, %v6810
      %v6822 = vmul.f32 %v6792, %v6812
      %v6823 = vmul.f32 %v6794, %v6814
      %v6824 = vmul.f32 %v6796, %v6816
      %6829 = vrot.lane.b32.xlu0 %v6821, 8
      %v6830 = vpop.permute.xlu0 %6829
      %6831 = vrot.lane.b32.xlu0 %v6822, 8
      %v6832 = vpop.permute.xlu0 %6831
      %6833 = vrot.lane.b32.xlu0 %v6823, 8
      %v6834 = vpop.permute.xlu0 %6833
      %6835 = vrot.lane.b32.xlu0 %v6824, 8
      %v6836 = vpop.permute.xlu0 %6835
      %v6841 = vadd.f32 %v6801, %v6830
      %v6842 = vadd.f32 %v6802, %v6832
      %v6843 = vadd.f32 %v6803, %v6834
      %v6844 = vadd.f32 %v6804, %v6836
      %v6845 = vtanh.pop %v6841
      %v6846 = vtanh.pop %v6842
      %v6847 = vtanh.pop %v6843
      %v6848 = vtanh.pop %v6844
      %6853 = vrot.lane.b32.xlu0 %v6845, 8
      %v6854 = vpop.permute.xlu0 %6853
      %6855 = vrot.lane.b32.xlu0 %v6846, 8
      %v6856 = vpop.permute.xlu0 %6855
      %6857 = vrot.lane.b32.xlu0 %v6847, 8
      %v6858 = vpop.permute.xlu0 %6857
      %6859 = vrot.lane.b32.xlu0 %v6848, 8
      %v6860 = vpop.permute.xlu0 %6859
      %v6865 = vmul.f32 %v6790, %v6854
      %v6866 = vmul.f32 %v6792, %v6856
      %v6867 = vmul.f32 %v6794, %v6858
      %v6868 = vmul.f32 %v6796, %v6860
      %6873 = vrot.lane.b32.xlu0 %v6865, 56
      %v6874 = vpop.permute.xlu0 %6873
      %6875 = vrot.lane.b32.xlu0 %v6866, 56
      %v6876 = vpop.permute.xlu0 %6875
      %6877 = vrot.lane.b32.xlu0 %v6867, 56
      %v6878 = vpop.permute.xlu0 %6877
      %6879 = vrot.lane.b32.xlu0 %v6868, 56
      %v6880 = vpop.permute.xlu0 %6879
      %vm6885 = vcmask 917312
      %6886 = vst.msk [vmem:[#allocation2] sm:$0xff] %vm6885, %v6874
      %6887 = vst.msk [vmem:[#allocation2 + $0x8] sm:$0xff] %vm6885, %v6876
      %6888 = vst.msk [vmem:[#allocation2 + $0x10] sm:$0xff] %vm6885, %v6878
      %6889 = vst.msk [vmem:[#allocation2 + $0x18] sm:$0xff] %vm6885, %v6880
      %6890 = vset.pattern.permute.xlu0 13
      %6891 = vperm.xlu0 %6890, %v418
      %v6892 = vpop.permute.xlu0 %6891
      %6894 = vset.pattern.permute.xlu0 13
      %6895 = vperm.xlu0 %6894, %v419
      %v6896 = vpop.permute.xlu0 %6895
      %6898 = vset.pattern.permute.xlu0 13
      %6899 = vperm.xlu0 %6898, %v420
      %v6900 = vpop.permute.xlu0 %6899
      %6902 = vset.pattern.permute.xlu0 13
      %6903 = vperm.xlu0 %6902, %v421
      %v6904 = vpop.permute.xlu0 %6903
      %v6906 = vmul.f32 %v6892, %v135
      %v6907 = vmul.f32 %v6896, %v135
      %v6908 = vmul.f32 %v6900, %v135
      %v6909 = vmul.f32 %v6904, %v135
      %v6910 = vadd.f32 %v6906, %v142
      %v6911 = vadd.f32 %v6907, %v142
      %v6912 = vadd.f32 %v6908, %v142
      %v6913 = vadd.f32 %v6909, %v142
      %v6914 = vadd.f32 %v6910, %v6630
      %v6915 = vadd.f32 %v6911, %v6635
      %v6916 = vadd.f32 %v6912, %v6640
      %v6917 = vadd.f32 %v6913, %v6645
      %v6918 = vxor.u32 %v6914, 2147483648
      %v6919 = vxor.u32 %v6915, 2147483648
      %v6920 = vxor.u32 %v6916, 2147483648
      %v6921 = vxor.u32 %v6917, 2147483648
      %v6922 = vmul.f32 %v6918, 1.442695
      %v6923 = vpow.pop %v6922
      %v6924 = vmul.f32 %v6919, 1.442695
      %v6925 = vpow.pop %v6924
      %v6926 = vmul.f32 %v6920, 1.442695
      %v6927 = vpow.pop %v6926
      %v6928 = vmul.f32 %v6921, 1.442695
      %v6929 = vpow.pop %v6928
      %v6930 = vadd.f32 %v6923, 1.0
      %v6931 = vadd.f32 %v6925, 1.0
      %v6932 = vadd.f32 %v6927, 1.0
      %v6933 = vadd.f32 %v6929, 1.0
      %v6934 = vrcp.pop %v6930
      %v6935 = vmul.f32 1.0, %v6934
      %v6936 = vrcp.pop %v6931
      %v6937 = vmul.f32 1.0, %v6936
      %v6938 = vrcp.pop %v6932
      %v6939 = vmul.f32 1.0, %v6938
      %v6940 = vrcp.pop %v6933
      %v6941 = vmul.f32 1.0, %v6940
      %v6942 = vtanh.pop %v6914
      %v6943 = vtanh.pop %v6915
      %v6944 = vtanh.pop %v6916
      %v6945 = vtanh.pop %v6917
      %v6946 = vmul.f32 %v6935, %v6515
      %v6947 = vmul.f32 %v6937, %v6516
      %v6948 = vmul.f32 %v6939, %v6517
      %v6949 = vmul.f32 %v6941, %v6518
      %6954 = vrot.lane.b32.xlu0 %v6942, 104
      %v6955 = vpop.permute.xlu0 %6954
      %6956 = vrot.lane.b32.xlu0 %v6943, 104
      %v6957 = vpop.permute.xlu0 %6956
      %6958 = vrot.lane.b32.xlu0 %v6944, 104
      %v6959 = vpop.permute.xlu0 %6958
      %6960 = vrot.lane.b32.xlu0 %v6945, 104
      %v6961 = vpop.permute.xlu0 %6960
      %v6966 = vmul.f32 %v6935, %v6955
      %v6967 = vmul.f32 %v6937, %v6957
      %v6968 = vmul.f32 %v6939, %v6959
      %v6969 = vmul.f32 %v6941, %v6961
      %6974 = vrot.lane.b32.xlu0 %v6966, 8
      %v6975 = vpop.permute.xlu0 %6974
      %6976 = vrot.lane.b32.xlu0 %v6967, 8
      %v6977 = vpop.permute.xlu0 %6976
      %6978 = vrot.lane.b32.xlu0 %v6968, 8
      %v6979 = vpop.permute.xlu0 %6978
      %6980 = vrot.lane.b32.xlu0 %v6969, 8
      %v6981 = vpop.permute.xlu0 %6980
      %v6986 = vadd.f32 %v6946, %v6975
      %v6987 = vadd.f32 %v6947, %v6977
      %v6988 = vadd.f32 %v6948, %v6979
      %v6989 = vadd.f32 %v6949, %v6981
      %v6990 = vtanh.pop %v6986
      %v6991 = vtanh.pop %v6987
      %v6992 = vtanh.pop %v6988
      %v6993 = vtanh.pop %v6989
      %6998 = vrot.lane.b32.xlu0 %v6990, 8
      %v6999 = vpop.permute.xlu0 %6998
      %7000 = vrot.lane.b32.xlu0 %v6991, 8
      %v7001 = vpop.permute.xlu0 %7000
      %7002 = vrot.lane.b32.xlu0 %v6992, 8
      %v7003 = vpop.permute.xlu0 %7002
      %7004 = vrot.lane.b32.xlu0 %v6993, 8
      %v7005 = vpop.permute.xlu0 %7004
      %v7010 = vmul.f32 %v6935, %v6999
      %v7011 = vmul.f32 %v6937, %v7001
      %v7012 = vmul.f32 %v6939, %v7003
      %v7013 = vmul.f32 %v6941, %v7005
      %7018 = vrot.lane.b32.xlu0 %v7010, 112
      %v7019 = vpop.permute.xlu0 %7018
      %7020 = vrot.lane.b32.xlu0 %v7011, 112
      %v7021 = vpop.permute.xlu0 %7020
      %7022 = vrot.lane.b32.xlu0 %v7012, 112
      %v7023 = vpop.permute.xlu0 %7022
      %7024 = vrot.lane.b32.xlu0 %v7013, 112
      %v7025 = vpop.permute.xlu0 %7024
      %v7026 = vsel %vm166, %v7019, 0
      %v7028 = vsel %vm166, %v7021, 0
      %v7030 = vsel %vm166, %v7023, 0
      %v7032 = vsel %vm166, %v7025, 0
      %7034 = vmatprep.subr.mxu0 0.0
      %7035 = vmatpush1.msra.mxu0 %v128
      %7036 = vmatprep.subr.mxu0 0.0
      %7037 = vmatpush1.msra.mxu0 0.0
      %7038 = vmatprep.subr.mxu0 0.0
      %7039 = vmatpush1.msra.mxu0 0.0
      %7040 = vmatprep.subr.mxu0 0.0
      %7041 = vmatpush1.msra.mxu0 0.0
      %7042 = vmatprep.subr.mxu0 0.0
      %7043 = vmatpush1.msra.mxu0 0.0
      %7044 = vmatprep.subr.mxu0 0.0
      %7045 = vmatpush1.msra.mxu0 0.0
      %7046 = vmatprep.subr.mxu0 0.0
      %7047 = vmatpush1.msra.mxu0 0.0
      %7048 = vmatprep.subr.mxu0 0.0
      %7049 = vmatpush1.msra.mxu0 0.0
      %7050 = vmatprep.subr.mxu0 0.0
      %7051 = vmatpush1.msra.mxu0 0.0
      %7052 = vmatprep.subr.mxu0 0.0
      %7053 = vmatpush1.msra.mxu0 0.0
      %7054 = vmatprep.subr.mxu0 0.0
      %7055 = vmatpush1.msra.mxu0 0.0
      %7056 = vmatprep.subr.mxu0 0.0
      %7057 = vmatpush1.msra.mxu0 0.0
      %7058 = vmatprep.subr.mxu0 0.0
      %7059 = vmatpush1.msra.mxu0 0.0
      %7060 = vmatprep.subr.mxu0 0.0
      %7061 = vmatpush1.msra.mxu0 0.0
      %7062 = vmatprep.subr.mxu0 0.0
      %7063 = vmatpush1.msra.mxu0 0.0
      %7064 = vmatprep.subr.mxu0 0.0
      %7065 = vmatpush1.msra.mxu0 0.0
      %7066 = vmatprep.subr.mxu0 0.0
      %7067 = vmatpush1.msra.mxu0 0.0
      %7068 = vmatprep.subr.mxu0 0.0
      %7069 = vmatpush1.msra.mxu0 0.0
      %7070 = vmatprep.subr.mxu0 0.0
      %7071 = vmatpush1.msra.mxu0 0.0
      %7072 = vmatprep.subr.mxu0 0.0
      %7073 = vmatpush1.msra.mxu0 0.0
      %7074 = vmatprep.subr.mxu0 0.0
      %7075 = vmatpush1.msra.mxu0 0.0
      %7076 = vmatprep.subr.mxu0 0.0
      %7077 = vmatpush1.msra.mxu0 0.0
      %7078 = vmatprep.subr.mxu0 0.0
      %7079 = vmatpush1.msra.mxu0 0.0
      %7080 = vmatprep.subr.mxu0 0.0
      %7081 = vmatpush1.msra.mxu0 0.0
      %7082 = vmatprep.subr.mxu0 0.0
      %7083 = vmatpush1.msra.mxu0 0.0
      %7084 = vmatprep.subr.mxu0 0.0
      %7085 = vmatpush1.msra.mxu0 0.0
      %7086 = vmatprep.subr.mxu0 0.0
      %7087 = vmatpush1.msra.mxu0 0.0
      %7088 = vmatprep.subr.mxu0 0.0
      %7089 = vmatpush1.msra.mxu0 0.0
      %7090 = vmatprep.subr.mxu0 0.0
      %7091 = vmatpush1.msra.mxu0 0.0
      %7092 = vmatprep.subr.mxu0 0.0
      %7093 = vmatpush1.msra.mxu0 0.0
      %7094 = vmatprep.subr.mxu0 0.0
      %7095 = vmatpush1.msra.mxu0 0.0
      %7096 = vmatprep.subr.mxu0 0.0
      %7097 = vmatpush1.msra.mxu0 0.0
      %7098 = vmatprep.mubr.f32.mxu0 0.0
      %7099 = vmatmul.mubr.f32.gmra.mrb[0].mxu0 %v7026
      %v7100 = vpop.f32.mrb[0].mxu0
      %v7101 = vadd.f32 0.0, %v7100
      %v7102 = vpop.f32.mrb[0].mxu0
      %7103 = vmatprep.mubr.f32.mxu0 0.0
      %7104 = vmatmul.mubr.f32.gmra.mrb[0].mxu0 %v7028
      %v7105 = vpop.f32.mrb[0].mxu0
      %v7106 = vadd.f32 0.0, %v7105
      %v7107 = vpop.f32.mrb[0].mxu0
      %7108 = vmatprep.mubr.f32.mxu0 0.0
      %7109 = vmatmul.mubr.f32.gmra.mrb[0].mxu0 %v7030
      %v7110 = vpop.f32.mrb[0].mxu0
      %v7111 = vadd.f32 0.0, %v7110
      %v7112 = vpop.f32.mrb[0].mxu0
      %7113 = vmatprep.mubr.f32.mxu0 0.0
      %7114 = vmatmul.mubr.f32.gmra.mrb[0].mxu0 %v7032
      %v7115 = vpop.f32.mrb[0].mxu0
      %v7116 = vadd.f32 0.0, %v7115
      %v7117 = vpop.f32.mrb[0].mxu0
      %7118 = vdwg.mxu0
      %v7119 = vadd.f32 %v7101, %v528
      %v7120 = vadd.f32 %v7106, %v528
      %v7121 = vadd.f32 %v7111, %v528
      %v7122 = vadd.f32 %v7116, %v528
      %7123 = vrot.lane.b32.xlu0 %v6865, 80
      %v7124 = vpop.permute.xlu0 %7123
      %7125 = vrot.lane.b32.xlu0 %v6866, 80
      %v7126 = vpop.permute.xlu0 %7125
      %7127 = vrot.lane.b32.xlu0 %v6867, 80
      %v7128 = vpop.permute.xlu0 %7127
      %7129 = vrot.lane.b32.xlu0 %v6868, 80
      %v7130 = vpop.permute.xlu0 %7129
      %v7131 = vsel %vm166, %v7124, 0
      %v7133 = vsel %vm166, %v7126, 0
      %v7135 = vsel %vm166, %v7128, 0
      %v7137 = vsel %vm166, %v7130, 0
      %7139 = vmatprep.subr.mxu0 0.0
      %7140 = vmatpush1.msra.mxu0 %v129
      %7141 = vmatprep.subr.mxu0 0.0
      %7142 = vmatpush1.msra.mxu0 0.0
      %7143 = vmatprep.subr.mxu0 0.0
      %7144 = vmatpush1.msra.mxu0 0.0
      %7145 = vmatprep.subr.mxu0 0.0
      %7146 = vmatpush1.msra.mxu0 0.0
      %7147 = vmatprep.subr.mxu0 0.0
      %7148 = vmatpush1.msra.mxu0 0.0
      %7149 = vmatprep.subr.mxu0 0.0
      %7150 = vmatpush1.msra.mxu0 0.0
      %7151 = vmatprep.subr.mxu0 0.0
      %7152 = vmatpush1.msra.mxu0 0.0
      %7153 = vmatprep.subr.mxu0 0.0
      %7154 = vmatpush1.msra.mxu0 0.0
      %7155 = vmatprep.subr.mxu0 0.0
      %7156 = vmatpush1.msra.mxu0 0.0
      %7157 = vmatprep.subr.mxu0 0.0
      %7158 = vmatpush1.msra.mxu0 0.0
      %7159 = vmatprep.subr.mxu0 0.0
      %7160 = vmatpush1.msra.mxu0 0.0
      %7161 = vmatprep.subr.mxu0 0.0
      %7162 = vmatpush1.msra.mxu0 0.0
      %7163 = vmatprep.subr.mxu0 0.0
      %7164 = vmatpush1.msra.mxu0 0.0
      %7165 = vmatprep.subr.mxu0 0.0
      %7166 = vmatpush1.msra.mxu0 0.0
      %7167 = vmatprep.subr.mxu0 0.0
      %7168 = vmatpush1.msra.mxu0 0.0
      %7169 = vmatprep.subr.mxu0 0.0
      %7170 = vmatpush1.msra.mxu0 0.0
      %7171 = vmatprep.subr.mxu0 0.0
      %7172 = vmatpush1.msra.mxu0 0.0
      %7173 = vmatprep.subr.mxu0 0.0
      %7174 = vmatpush1.msra.mxu0 0.0
      %7175 = vmatprep.subr.mxu0 0.0
      %7176 = vmatpush1.msra.mxu0 0.0
      %7177 = vmatprep.subr.mxu0 0.0
      %7178 = vmatpush1.msra.mxu0 0.0
      %7179 = vmatprep.subr.mxu0 0.0
      %7180 = vmatpush1.msra.mxu0 0.0
      %7181 = vmatprep.subr.mxu0 0.0
      %7182 = vmatpush1.msra.mxu0 0.0
      %7183 = vmatprep.subr.mxu0 0.0
      %7184 = vmatpush1.msra.mxu0 0.0
      %7185 = vmatprep.subr.mxu0 0.0
      %7186 = vmatpush1.msra.mxu0 0.0
      %7187 = vmatprep.subr.mxu0 0.0
      %7188 = vmatpush1.msra.mxu0 0.0
      %7189 = vmatprep.subr.mxu0 0.0
      %7190 = vmatpush1.msra.mxu0 0.0
      %7191 = vmatprep.subr.mxu0 0.0
      %7192 = vmatpush1.msra.mxu0 0.0
      %7193 = vmatprep.subr.mxu0 0.0
      %7194 = vmatpush1.msra.mxu0 0.0
      %7195 = vmatprep.subr.mxu0 0.0
      %7196 = vmatpush1.msra.mxu0 0.0
      %7197 = vmatprep.subr.mxu0 0.0
      %7198 = vmatpush1.msra.mxu0 0.0
      %7199 = vmatprep.subr.mxu0 0.0
      %7200 = vmatpush1.msra.mxu0 0.0
      %7201 = vmatprep.subr.mxu0 0.0
      %7202 = vmatpush1.msra.mxu0 0.0
      %7203 = vmatprep.mubr.f32.mxu0 0.0
      %7204 = vmatmul.mubr.f32.gmra.mrb[0].mxu0 %v7131
      %v7205 = vpop.f32.mrb[0].mxu0
      %v7206 = vadd.f32 0.0, %v7205
      %v7207 = vpop.f32.mrb[0].mxu0
      %7208 = vmatprep.mubr.f32.mxu0 0.0
      %7209 = vmatmul.mubr.f32.gmra.mrb[0].mxu0 %v7133
      %v7210 = vpop.f32.mrb[0].mxu0
      %v7211 = vadd.f32 0.0, %v7210
      %v7212 = vpop.f32.mrb[0].mxu0
      %7213 = vmatprep.mubr.f32.mxu0 0.0
      %7214 = vmatmul.mubr.f32.gmra.mrb[0].mxu0 %v7135
      %v7215 = vpop.f32.mrb[0].mxu0
      %v7216 = vadd.f32 0.0, %v7215
      %v7217 = vpop.f32.mrb[0].mxu0
      %7218 = vmatprep.mubr.f32.mxu0 0.0
      %7219 = vmatmul.mubr.f32.gmra.mrb[0].mxu0 %v7137
      %v7220 = vpop.f32.mrb[0].mxu0
      %v7221 = vadd.f32 0.0, %v7220
      %v7222 = vpop.f32.mrb[0].mxu0
      %7223 = vdwg.mxu0
      %7228 = vrot.lane.b32.xlu0 %v7206, 32
      %v7229 = vpop.permute.xlu0 %7228
      %7230 = vrot.lane.b32.xlu0 %v7211, 32
      %v7231 = vpop.permute.xlu0 %7230
      %7232 = vrot.lane.b32.xlu0 %v7216, 32
      %v7233 = vpop.permute.xlu0 %7232
      %7234 = vrot.lane.b32.xlu0 %v7221, 32
      %v7235 = vpop.permute.xlu0 %7234
      %v7240 = vadd.f32 %v7119, %v7229
      %v7241 = vadd.f32 %v7120, %v7231
      %v7242 = vadd.f32 %v7121, %v7233
      %v7243 = vadd.f32 %v7122, %v7235
      %v7244 = vxor.u32 %v7240, 2147483648
      %v7245 = vxor.u32 %v7241, 2147483648
      %v7246 = vxor.u32 %v7242, 2147483648
      %v7247 = vxor.u32 %v7243, 2147483648
      %v7248 = vmul.f32 %v7244, 1.442695
      %v7249 = vpow.pop %v7248
      %v7250 = vmul.f32 %v7245, 1.442695
      %v7251 = vpow.pop %v7250
      %v7252 = vmul.f32 %v7246, 1.442695
      %v7253 = vpow.pop %v7252
      %v7254 = vmul.f32 %v7247, 1.442695
      %v7255 = vpow.pop %v7254
      %v7256 = vadd.f32 %v7249, 1.0
      %v7257 = vadd.f32 %v7251, 1.0
      %v7258 = vadd.f32 %v7253, 1.0
      %v7259 = vadd.f32 %v7255, 1.0
      %v7260 = vrcp.pop %v7256
      %v7261 = vmul.f32 1.0, %v7260
      %v7262 = vrcp.pop %v7257
      %v7263 = vmul.f32 1.0, %v7262
      %v7264 = vrcp.pop %v7258
      %v7265 = vmul.f32 1.0, %v7264
      %v7266 = vrcp.pop %v7259
      %v7267 = vmul.f32 1.0, %v7266
      %v7268 = vtanh.pop %v7240
      %v7269 = vtanh.pop %v7241
      %v7270 = vtanh.pop %v7242
      %v7271 = vtanh.pop %v7243
      %v7272 = vmul.f32 %v7261, %v6841
      %v7273 = vmul.f32 %v7263, %v6842
      %v7274 = vmul.f32 %v7265, %v6843
      %v7275 = vmul.f32 %v7267, %v6844
      %7280 = vrot.lane.b32.xlu0 %v7268, 104
      %v7281 = vpop.permute.xlu0 %7280
      %7282 = vrot.lane.b32.xlu0 %v7269, 104
      %v7283 = vpop.permute.xlu0 %7282
      %7284 = vrot.lane.b32.xlu0 %v7270, 104
      %v7285 = vpop.permute.xlu0 %7284
      %7286 = vrot.lane.b32.xlu0 %v7271, 104
      %v7287 = vpop.permute.xlu0 %7286
      %v7292 = vmul.f32 %v7261, %v7281
      %v7293 = vmul.f32 %v7263, %v7283
      %v7294 = vmul.f32 %v7265, %v7285
      %v7295 = vmul.f32 %v7267, %v7287
      %7300 = vrot.lane.b32.xlu0 %v7292, 8
      %v7301 = vpop.permute.xlu0 %7300
      %7302 = vrot.lane.b32.xlu0 %v7293, 8
      %v7303 = vpop.permute.xlu0 %7302
      %7304 = vrot.lane.b32.xlu0 %v7294, 8
      %v7305 = vpop.permute.xlu0 %7304
      %7306 = vrot.lane.b32.xlu0 %v7295, 8
      %v7307 = vpop.permute.xlu0 %7306
      %v7312 = vadd.f32 %v7272, %v7301
      %v7313 = vadd.f32 %v7273, %v7303
      %v7314 = vadd.f32 %v7274, %v7305
      %v7315 = vadd.f32 %v7275, %v7307
      %v7316 = vtanh.pop %v7312
      %v7317 = vtanh.pop %v7313
      %v7318 = vtanh.pop %v7314
      %v7319 = vtanh.pop %v7315
      %7324 = vrot.lane.b32.xlu0 %v7316, 8
      %v7325 = vpop.permute.xlu0 %7324
      %7326 = vrot.lane.b32.xlu0 %v7317, 8
      %v7327 = vpop.permute.xlu0 %7326
      %7328 = vrot.lane.b32.xlu0 %v7318, 8
      %v7329 = vpop.permute.xlu0 %7328
      %7330 = vrot.lane.b32.xlu0 %v7319, 8
      %v7331 = vpop.permute.xlu0 %7330
      %v7336 = vmul.f32 %v7261, %v7325
      %v7337 = vmul.f32 %v7263, %v7327
      %v7338 = vmul.f32 %v7265, %v7329
      %v7339 = vmul.f32 %v7267, %v7331
      %7344 = vrot.lane.b32.xlu0 %v7336, 64
      %v7345 = vpop.permute.xlu0 %7344
      %7346 = vrot.lane.b32.xlu0 %v7337, 64
      %v7347 = vpop.permute.xlu0 %7346
      %7348 = vrot.lane.b32.xlu0 %v7338, 64
      %v7349 = vpop.permute.xlu0 %7348
      %7350 = vrot.lane.b32.xlu0 %v7339, 64
      %v7351 = vpop.permute.xlu0 %7350
      %vm7356 = vcmask 982912
      %7357 = vst.msk [vmem:[#allocation2] sm:$0xff] %vm7356, %v7345
      %7358 = vst.msk [vmem:[#allocation2 + $0x8] sm:$0xff] %vm7356, %v7347
      %7359 = vst.msk [vmem:[#allocation2 + $0x10] sm:$0xff] %vm7356, %v7349
      %7360 = vst.msk [vmem:[#allocation2 + $0x18] sm:$0xff] %vm7356, %v7351
      %7361 = vset.pattern.permute.xlu0 14
      %7362 = vperm.xlu0 %7361, %v418
      %v7363 = vpop.permute.xlu0 %7362
      %7365 = vset.pattern.permute.xlu0 14
      %7366 = vperm.xlu0 %7365, %v419
      %v7367 = vpop.permute.xlu0 %7366
      %7369 = vset.pattern.permute.xlu0 14
      %7370 = vperm.xlu0 %7369, %v420
      %v7371 = vpop.permute.xlu0 %7370
      %7373 = vset.pattern.permute.xlu0 14
      %7374 = vperm.xlu0 %7373, %v421
      %v7375 = vpop.permute.xlu0 %7374
      %v7377 = vmul.f32 %v7363, %v135
      %v7378 = vmul.f32 %v7367, %v135
      %v7379 = vmul.f32 %v7371, %v135
      %v7380 = vmul.f32 %v7375, %v135
      %v7381 = vadd.f32 %v7377, %v142
      %v7382 = vadd.f32 %v7378, %v142
      %v7383 = vadd.f32 %v7379, %v142
      %v7384 = vadd.f32 %v7380, %v142
      %v7385 = vadd.f32 %v7381, %v7101
      %v7386 = vadd.f32 %v7382, %v7106
      %v7387 = vadd.f32 %v7383, %v7111
      %v7388 = vadd.f32 %v7384, %v7116
      %v7389 = vxor.u32 %v7385, 2147483648
      %v7390 = vxor.u32 %v7386, 2147483648
      %v7391 = vxor.u32 %v7387, 2147483648
      %v7392 = vxor.u32 %v7388, 2147483648
      %v7393 = vmul.f32 %v7389, 1.442695
      %v7394 = vpow.pop %v7393
      %v7395 = vmul.f32 %v7390, 1.442695
      %v7396 = vpow.pop %v7395
      %v7397 = vmul.f32 %v7391, 1.442695
      %v7398 = vpow.pop %v7397
      %v7399 = vmul.f32 %v7392, 1.442695
      %v7400 = vpow.pop %v7399
      %v7401 = vadd.f32 %v7394, 1.0
      %v7402 = vadd.f32 %v7396, 1.0
      %v7403 = vadd.f32 %v7398, 1.0
      %v7404 = vadd.f32 %v7400, 1.0
      %v7405 = vrcp.pop %v7401
      %v7406 = vmul.f32 1.0, %v7405
      %v7407 = vrcp.pop %v7402
      %v7408 = vmul.f32 1.0, %v7407
      %v7409 = vrcp.pop %v7403
      %v7410 = vmul.f32 1.0, %v7409
      %v7411 = vrcp.pop %v7404
      %v7412 = vmul.f32 1.0, %v7411
      %v7413 = vtanh.pop %v7385
      %v7414 = vtanh.pop %v7386
      %v7415 = vtanh.pop %v7387
      %v7416 = vtanh.pop %v7388
      %v7417 = vmul.f32 %v7406, %v6986
      %v7418 = vmul.f32 %v7408, %v6987
      %v7419 = vmul.f32 %v7410, %v6988
      %v7420 = vmul.f32 %v7412, %v6989
      %7425 = vrot.lane.b32.xlu0 %v7413, 104
      %v7426 = vpop.permute.xlu0 %7425
      %7427 = vrot.lane.b32.xlu0 %v7414, 104
      %v7428 = vpop.permute.xlu0 %7427
      %7429 = vrot.lane.b32.xlu0 %v7415, 104
      %v7430 = vpop.permute.xlu0 %7429
      %7431 = vrot.lane.b32.xlu0 %v7416, 104
      %v7432 = vpop.permute.xlu0 %7431
      %v7437 = vmul.f32 %v7406, %v7426
      %v7438 = vmul.f32 %v7408, %v7428
      %v7439 = vmul.f32 %v7410, %v7430
      %v7440 = vmul.f32 %v7412, %v7432
      %7445 = vrot.lane.b32.xlu0 %v7437, 8
      %v7446 = vpop.permute.xlu0 %7445
      %7447 = vrot.lane.b32.xlu0 %v7438, 8
      %v7448 = vpop.permute.xlu0 %7447
      %7449 = vrot.lane.b32.xlu0 %v7439, 8
      %v7450 = vpop.permute.xlu0 %7449
      %7451 = vrot.lane.b32.xlu0 %v7440, 8
      %v7452 = vpop.permute.xlu0 %7451
      %v7457 = vadd.f32 %v7417, %v7446
      %v7458 = vadd.f32 %v7418, %v7448
      %v7459 = vadd.f32 %v7419, %v7450
      %v7460 = vadd.f32 %v7420, %v7452
      %v7461 = vtanh.pop %v7457
      %v7462 = vtanh.pop %v7458
      %v7463 = vtanh.pop %v7459
      %v7464 = vtanh.pop %v7460
      %7469 = vrot.lane.b32.xlu0 %v7461, 8
      %v7470 = vpop.permute.xlu0 %7469
      %7471 = vrot.lane.b32.xlu0 %v7462, 8
      %v7472 = vpop.permute.xlu0 %7471
      %7473 = vrot.lane.b32.xlu0 %v7463, 8
      %v7474 = vpop.permute.xlu0 %7473
      %7475 = vrot.lane.b32.xlu0 %v7464, 8
      %v7476 = vpop.permute.xlu0 %7475
      %v7481 = vmul.f32 %v7406, %v7470
      %v7482 = vmul.f32 %v7408, %v7472
      %v7483 = vmul.f32 %v7410, %v7474
      %v7484 = vmul.f32 %v7412, %v7476
      %7489 = vrot.lane.b32.xlu0 %v7481, 112
      %v7490 = vpop.permute.xlu0 %7489
      %7491 = vrot.lane.b32.xlu0 %v7482, 112
      %v7492 = vpop.permute.xlu0 %7491
      %7493 = vrot.lane.b32.xlu0 %v7483, 112
      %v7494 = vpop.permute.xlu0 %7493
      %7495 = vrot.lane.b32.xlu0 %v7484, 112
      %v7496 = vpop.permute.xlu0 %7495
      %v7497 = vsel %vm166, %v7490, 0
      %v7499 = vsel %vm166, %v7492, 0
      %v7501 = vsel %vm166, %v7494, 0
      %v7503 = vsel %vm166, %v7496, 0
      %7505 = vmatprep.subr.mxu0 0.0
      %7506 = vmatpush1.msra.mxu0 %v128
      %7507 = vmatprep.subr.mxu0 0.0
      %7508 = vmatpush1.msra.mxu0 0.0
      %7509 = vmatprep.subr.mxu0 0.0
      %7510 = vmatpush1.msra.mxu0 0.0
      %7511 = vmatprep.subr.mxu0 0.0
      %7512 = vmatpush1.msra.mxu0 0.0
      %7513 = vmatprep.subr.mxu0 0.0
      %7514 = vmatpush1.msra.mxu0 0.0
      %7515 = vmatprep.subr.mxu0 0.0
      %7516 = vmatpush1.msra.mxu0 0.0
      %7517 = vmatprep.subr.mxu0 0.0
      %7518 = vmatpush1.msra.mxu0 0.0
      %7519 = vmatprep.subr.mxu0 0.0
      %7520 = vmatpush1.msra.mxu0 0.0
      %7521 = vmatprep.subr.mxu0 0.0
      %7522 = vmatpush1.msra.mxu0 0.0
      %7523 = vmatprep.subr.mxu0 0.0
      %7524 = vmatpush1.msra.mxu0 0.0
      %7525 = vmatprep.subr.mxu0 0.0
      %7526 = vmatpush1.msra.mxu0 0.0
      %7527 = vmatprep.subr.mxu0 0.0
      %7528 = vmatpush1.msra.mxu0 0.0
      %7529 = vmatprep.subr.mxu0 0.0
      %7530 = vmatpush1.msra.mxu0 0.0
      %7531 = vmatprep.subr.mxu0 0.0
      %7532 = vmatpush1.msra.mxu0 0.0
      %7533 = vmatprep.subr.mxu0 0.0
      %7534 = vmatpush1.msra.mxu0 0.0
      %7535 = vmatprep.subr.mxu0 0.0
      %7536 = vmatpush1.msra.mxu0 0.0
      %7537 = vmatprep.subr.mxu0 0.0
      %7538 = vmatpush1.msra.mxu0 0.0
      %7539 = vmatprep.subr.mxu0 0.0
      %7540 = vmatpush1.msra.mxu0 0.0
      %7541 = vmatprep.subr.mxu0 0.0
      %7542 = vmatpush1.msra.mxu0 0.0
      %7543 = vmatprep.subr.mxu0 0.0
      %7544 = vmatpush1.msra.mxu0 0.0
      %7545 = vmatprep.subr.mxu0 0.0
      %7546 = vmatpush1.msra.mxu0 0.0
      %7547 = vmatprep.subr.mxu0 0.0
      %7548 = vmatpush1.msra.mxu0 0.0
      %7549 = vmatprep.subr.mxu0 0.0
      %7550 = vmatpush1.msra.mxu0 0.0
      %7551 = vmatprep.subr.mxu0 0.0
      %7552 = vmatpush1.msra.mxu0 0.0
      %7553 = vmatprep.subr.mxu0 0.0
      %7554 = vmatpush1.msra.mxu0 0.0
      %7555 = vmatprep.subr.mxu0 0.0
      %7556 = vmatpush1.msra.mxu0 0.0
      %7557 = vmatprep.subr.mxu0 0.0
      %7558 = vmatpush1.msra.mxu0 0.0
      %7559 = vmatprep.subr.mxu0 0.0
      %7560 = vmatpush1.msra.mxu0 0.0
      %7561 = vmatprep.subr.mxu0 0.0
      %7562 = vmatpush1.msra.mxu0 0.0
      %7563 = vmatprep.subr.mxu0 0.0
      %7564 = vmatpush1.msra.mxu0 0.0
      %7565 = vmatprep.subr.mxu0 0.0
      %7566 = vmatpush1.msra.mxu0 0.0
      %7567 = vmatprep.subr.mxu0 0.0
      %7568 = vmatpush1.msra.mxu0 0.0
      %7569 = vmatprep.mubr.f32.mxu0 0.0
      %7570 = vmatmul.mubr.f32.gmra.mrb[0].mxu0 %v7497
      %v7571 = vpop.f32.mrb[0].mxu0
      %v7572 = vadd.f32 0.0, %v7571
      %v7573 = vpop.f32.mrb[0].mxu0
      %7574 = vmatprep.mubr.f32.mxu0 0.0
      %7575 = vmatmul.mubr.f32.gmra.mrb[0].mxu0 %v7499
      %v7576 = vpop.f32.mrb[0].mxu0
      %v7577 = vadd.f32 0.0, %v7576
      %v7578 = vpop.f32.mrb[0].mxu0
      %7579 = vmatprep.mubr.f32.mxu0 0.0
      %7580 = vmatmul.mubr.f32.gmra.mrb[0].mxu0 %v7501
      %v7581 = vpop.f32.mrb[0].mxu0
      %v7582 = vadd.f32 0.0, %v7581
      %v7583 = vpop.f32.mrb[0].mxu0
      %7584 = vmatprep.mubr.f32.mxu0 0.0
      %7585 = vmatmul.mubr.f32.gmra.mrb[0].mxu0 %v7503
      %v7586 = vpop.f32.mrb[0].mxu0
      %v7587 = vadd.f32 0.0, %v7586
      %v7588 = vpop.f32.mrb[0].mxu0
      %7589 = vdwg.mxu0
      %v7590 = vadd.f32 %v7572, %v528
      %v7591 = vadd.f32 %v7577, %v528
      %v7592 = vadd.f32 %v7582, %v528
      %v7593 = vadd.f32 %v7587, %v528
      %7594 = vrot.lane.b32.xlu0 %v7336, 80
      %v7595 = vpop.permute.xlu0 %7594
      %7596 = vrot.lane.b32.xlu0 %v7337, 80
      %v7597 = vpop.permute.xlu0 %7596
      %7598 = vrot.lane.b32.xlu0 %v7338, 80
      %v7599 = vpop.permute.xlu0 %7598
      %7600 = vrot.lane.b32.xlu0 %v7339, 80
      %v7601 = vpop.permute.xlu0 %7600
      %v7602 = vsel %vm166, %v7595, 0
      %v7604 = vsel %vm166, %v7597, 0
      %v7606 = vsel %vm166, %v7599, 0
      %v7608 = vsel %vm166, %v7601, 0
      %7610 = vmatprep.subr.mxu0 0.0
      %7611 = vmatpush1.msra.mxu0 %v129
      %7612 = vmatprep.subr.mxu0 0.0
      %7613 = vmatpush1.msra.mxu0 0.0
      %7614 = vmatprep.subr.mxu0 0.0
      %7615 = vmatpush1.msra.mxu0 0.0
      %7616 = vmatprep.subr.mxu0 0.0
      %7617 = vmatpush1.msra.mxu0 0.0
      %7618 = vmatprep.subr.mxu0 0.0
      %7619 = vmatpush1.msra.mxu0 0.0
      %7620 = vmatprep.subr.mxu0 0.0
      %7621 = vmatpush1.msra.mxu0 0.0
      %7622 = vmatprep.subr.mxu0 0.0
      %7623 = vmatpush1.msra.mxu0 0.0
      %7624 = vmatprep.subr.mxu0 0.0
      %7625 = vmatpush1.msra.mxu0 0.0
      %7626 = vmatprep.subr.mxu0 0.0
      %7627 = vmatpush1.msra.mxu0 0.0
      %7628 = vmatprep.subr.mxu0 0.0
      %7629 = vmatpush1.msra.mxu0 0.0
      %7630 = vmatprep.subr.mxu0 0.0
      %7631 = vmatpush1.msra.mxu0 0.0
      %7632 = vmatprep.subr.mxu0 0.0
      %7633 = vmatpush1.msra.mxu0 0.0
      %7634 = vmatprep.subr.mxu0 0.0
      %7635 = vmatpush1.msra.mxu0 0.0
      %7636 = vmatprep.subr.mxu0 0.0
      %7637 = vmatpush1.msra.mxu0 0.0
      %7638 = vmatprep.subr.mxu0 0.0
      %7639 = vmatpush1.msra.mxu0 0.0
      %7640 = vmatprep.subr.mxu0 0.0
      %7641 = vmatpush1.msra.mxu0 0.0
      %7642 = vmatprep.subr.mxu0 0.0
      %7643 = vmatpush1.msra.mxu0 0.0
      %7644 = vmatprep.subr.mxu0 0.0
      %7645 = vmatpush1.msra.mxu0 0.0
      %7646 = vmatprep.subr.mxu0 0.0
      %7647 = vmatpush1.msra.mxu0 0.0
      %7648 = vmatprep.subr.mxu0 0.0
      %7649 = vmatpush1.msra.mxu0 0.0
      %7650 = vmatprep.subr.mxu0 0.0
      %7651 = vmatpush1.msra.mxu0 0.0
      %7652 = vmatprep.subr.mxu0 0.0
      %7653 = vmatpush1.msra.mxu0 0.0
      %7654 = vmatprep.subr.mxu0 0.0
      %7655 = vmatpush1.msra.mxu0 0.0
      %7656 = vmatprep.subr.mxu0 0.0
      %7657 = vmatpush1.msra.mxu0 0.0
      %7658 = vmatprep.subr.mxu0 0.0
      %7659 = vmatpush1.msra.mxu0 0.0
      %7660 = vmatprep.subr.mxu0 0.0
      %7661 = vmatpush1.msra.mxu0 0.0
      %7662 = vmatprep.subr.mxu0 0.0
      %7663 = vmatpush1.msra.mxu0 0.0
      %7664 = vmatprep.subr.mxu0 0.0
      %7665 = vmatpush1.msra.mxu0 0.0
      %7666 = vmatprep.subr.mxu0 0.0
      %7667 = vmatpush1.msra.mxu0 0.0
      %7668 = vmatprep.subr.mxu0 0.0
      %7669 = vmatpush1.msra.mxu0 0.0
      %7670 = vmatprep.subr.mxu0 0.0
      %7671 = vmatpush1.msra.mxu0 0.0
      %7672 = vmatprep.subr.mxu0 0.0
      %7673 = vmatpush1.msra.mxu0 0.0
      %7674 = vmatprep.mubr.f32.mxu0 0.0
      %7675 = vmatmul.mubr.f32.gmra.mrb[0].mxu0 %v7602
      %v7676 = vpop.f32.mrb[0].mxu0
      %v7677 = vadd.f32 0.0, %v7676
      %v7678 = vpop.f32.mrb[0].mxu0
      %7679 = vmatprep.mubr.f32.mxu0 0.0
      %7680 = vmatmul.mubr.f32.gmra.mrb[0].mxu0 %v7604
      %v7681 = vpop.f32.mrb[0].mxu0
      %v7682 = vadd.f32 0.0, %v7681
      %v7683 = vpop.f32.mrb[0].mxu0
      %7684 = vmatprep.mubr.f32.mxu0 0.0
      %7685 = vmatmul.mubr.f32.gmra.mrb[0].mxu0 %v7606
      %v7686 = vpop.f32.mrb[0].mxu0
      %v7687 = vadd.f32 0.0, %v7686
      %v7688 = vpop.f32.mrb[0].mxu0
      %7689 = vmatprep.mubr.f32.mxu0 0.0
      %7690 = vmatmul.mubr.f32.gmra.mrb[0].mxu0 %v7608
      %v7691 = vpop.f32.mrb[0].mxu0
      %v7692 = vadd.f32 0.0, %v7691
      %v7693 = vpop.f32.mrb[0].mxu0
      %7694 = vdwg.mxu0
      %7699 = vrot.lane.b32.xlu0 %v7677, 32
      %v7700 = vpop.permute.xlu0 %7699
      %7701 = vrot.lane.b32.xlu0 %v7682, 32
      %v7702 = vpop.permute.xlu0 %7701
      %7703 = vrot.lane.b32.xlu0 %v7687, 32
      %v7704 = vpop.permute.xlu0 %7703
      %7705 = vrot.lane.b32.xlu0 %v7692, 32
      %v7706 = vpop.permute.xlu0 %7705
      %v7711 = vadd.f32 %v7590, %v7700
      %v7712 = vadd.f32 %v7591, %v7702
      %v7713 = vadd.f32 %v7592, %v7704
      %v7714 = vadd.f32 %v7593, %v7706
      %v7715 = vxor.u32 %v7711, 2147483648
      %v7716 = vxor.u32 %v7712, 2147483648
      %v7717 = vxor.u32 %v7713, 2147483648
      %v7718 = vxor.u32 %v7714, 2147483648
      %v7719 = vmul.f32 %v7715, 1.442695
      %v7720 = vpow.pop %v7719
      %v7721 = vmul.f32 %v7716, 1.442695
      %v7722 = vpow.pop %v7721
      %v7723 = vmul.f32 %v7717, 1.442695
      %v7724 = vpow.pop %v7723
      %v7725 = vmul.f32 %v7718, 1.442695
      %v7726 = vpow.pop %v7725
      %v7727 = vadd.f32 %v7720, 1.0
      %v7728 = vadd.f32 %v7722, 1.0
      %v7729 = vadd.f32 %v7724, 1.0
      %v7730 = vadd.f32 %v7726, 1.0
      %v7731 = vrcp.pop %v7727
      %v7732 = vmul.f32 1.0, %v7731
      %v7733 = vrcp.pop %v7728
      %v7734 = vmul.f32 1.0, %v7733
      %v7735 = vrcp.pop %v7729
      %v7736 = vmul.f32 1.0, %v7735
      %v7737 = vrcp.pop %v7730
      %v7738 = vmul.f32 1.0, %v7737
      %v7739 = vtanh.pop %v7711
      %v7740 = vtanh.pop %v7712
      %v7741 = vtanh.pop %v7713
      %v7742 = vtanh.pop %v7714
      %v7743 = vmul.f32 %v7732, %v7312
      %v7744 = vmul.f32 %v7734, %v7313
      %v7745 = vmul.f32 %v7736, %v7314
      %v7746 = vmul.f32 %v7738, %v7315
      %7751 = vrot.lane.b32.xlu0 %v7739, 104
      %v7752 = vpop.permute.xlu0 %7751
      %7753 = vrot.lane.b32.xlu0 %v7740, 104
      %v7754 = vpop.permute.xlu0 %7753
      %7755 = vrot.lane.b32.xlu0 %v7741, 104
      %v7756 = vpop.permute.xlu0 %7755
      %7757 = vrot.lane.b32.xlu0 %v7742, 104
      %v7758 = vpop.permute.xlu0 %7757
      %v7763 = vmul.f32 %v7732, %v7752
      %v7764 = vmul.f32 %v7734, %v7754
      %v7765 = vmul.f32 %v7736, %v7756
      %v7766 = vmul.f32 %v7738, %v7758
      %7771 = vrot.lane.b32.xlu0 %v7763, 8
      %v7772 = vpop.permute.xlu0 %7771
      %7773 = vrot.lane.b32.xlu0 %v7764, 8
      %v7774 = vpop.permute.xlu0 %7773
      %7775 = vrot.lane.b32.xlu0 %v7765, 8
      %v7776 = vpop.permute.xlu0 %7775
      %7777 = vrot.lane.b32.xlu0 %v7766, 8
      %v7778 = vpop.permute.xlu0 %7777
      %v7783 = vadd.f32 %v7743, %v7772
      %v7784 = vadd.f32 %v7744, %v7774
      %v7785 = vadd.f32 %v7745, %v7776
      %v7786 = vadd.f32 %v7746, %v7778
      %v7787 = vtanh.pop %v7783
      %v7788 = vtanh.pop %v7784
      %v7789 = vtanh.pop %v7785
      %v7790 = vtanh.pop %v7786
      %7795 = vrot.lane.b32.xlu0 %v7787, 8
      %v7796 = vpop.permute.xlu0 %7795
      %7797 = vrot.lane.b32.xlu0 %v7788, 8
      %v7798 = vpop.permute.xlu0 %7797
      %7799 = vrot.lane.b32.xlu0 %v7789, 8
      %v7800 = vpop.permute.xlu0 %7799
      %7801 = vrot.lane.b32.xlu0 %v7790, 8
      %v7802 = vpop.permute.xlu0 %7801
      %v7807 = vmul.f32 %v7732, %v7796
      %v7808 = vmul.f32 %v7734, %v7798
      %v7809 = vmul.f32 %v7736, %v7800
      %v7810 = vmul.f32 %v7738, %v7802
      %7815 = vrot.lane.b32.xlu0 %v7807, 72
      %v7816 = vpop.permute.xlu0 %7815
      %7817 = vrot.lane.b32.xlu0 %v7808, 72
      %v7818 = vpop.permute.xlu0 %7817
      %7819 = vrot.lane.b32.xlu0 %v7809, 72
      %v7820 = vpop.permute.xlu0 %7819
      %7821 = vrot.lane.b32.xlu0 %v7810, 72
      %v7822 = vpop.permute.xlu0 %7821
      %vm7827 = vcmask 1048512
      %7828 = vst.msk [vmem:[#allocation2] sm:$0xff] %vm7827, %v7816
      %7829 = vst.msk [vmem:[#allocation2 + $0x8] sm:$0xff] %vm7827, %v7818
      %7830 = vst.msk [vmem:[#allocation2 + $0x10] sm:$0xff] %vm7827, %v7820
      %7831 = vst.msk [vmem:[#allocation2 + $0x18] sm:$0xff] %vm7827, %v7822
      %7832 = vset.pattern.permute.xlu0 15
      %7833 = vperm.xlu0 %7832, %v418
      %v7834 = vpop.permute.xlu0 %7833
      %7836 = vset.pattern.permute.xlu0 15
      %7837 = vperm.xlu0 %7836, %v419
      %v7838 = vpop.permute.xlu0 %7837
      %7840 = vset.pattern.permute.xlu0 15
      %7841 = vperm.xlu0 %7840, %v420
      %v7842 = vpop.permute.xlu0 %7841
      %7844 = vset.pattern.permute.xlu0 15
      %7845 = vperm.xlu0 %7844, %v421
      %v7846 = vpop.permute.xlu0 %7845
      %v7848 = vmul.f32 %v7834, %v135
      %v7849 = vmul.f32 %v7838, %v135
      %v7850 = vmul.f32 %v7842, %v135
      %v7851 = vmul.f32 %v7846, %v135
      %v7852 = vadd.f32 %v7848, %v142
      %v7853 = vadd.f32 %v7849, %v142
      %v7854 = vadd.f32 %v7850, %v142
      %v7855 = vadd.f32 %v7851, %v142
      %v7856 = vadd.f32 %v7852, %v7572
      %v7857 = vadd.f32 %v7853, %v7577
      %v7858 = vadd.f32 %v7854, %v7582
      %v7859 = vadd.f32 %v7855, %v7587
      %v7860 = vxor.u32 %v7856, 2147483648
      %v7861 = vxor.u32 %v7857, 2147483648
      %v7862 = vxor.u32 %v7858, 2147483648
      %v7863 = vxor.u32 %v7859, 2147483648
      %v7864 = vmul.f32 %v7860, 1.442695
      %v7865 = vpow.pop %v7864
      %v7866 = vmul.f32 %v7861, 1.442695
      %v7867 = vpow.pop %v7866
      %v7868 = vmul.f32 %v7862, 1.442695
      %v7869 = vpow.pop %v7868
      %v7870 = vmul.f32 %v7863, 1.442695
      %v7871 = vpow.pop %v7870
      %v7872 = vadd.f32 %v7865, 1.0
      %v7873 = vadd.f32 %v7867, 1.0
      %v7874 = vadd.f32 %v7869, 1.0
      %v7875 = vadd.f32 %v7871, 1.0
      %v7876 = vrcp.pop %v7872
      %v7877 = vmul.f32 1.0, %v7876
      %v7878 = vrcp.pop %v7873
      %v7879 = vmul.f32 1.0, %v7878
      %v7880 = vrcp.pop %v7874
      %v7881 = vmul.f32 1.0, %v7880
      %v7882 = vrcp.pop %v7875
      %v7883 = vmul.f32 1.0, %v7882
      %v7884 = vtanh.pop %v7856
      %v7885 = vtanh.pop %v7857
      %v7886 = vtanh.pop %v7858
      %v7887 = vtanh.pop %v7859
      %v7888 = vmul.f32 %v7877, %v7457
      %v7889 = vmul.f32 %v7879, %v7458
      %v7890 = vmul.f32 %v7881, %v7459
      %v7891 = vmul.f32 %v7883, %v7460
      %7896 = vrot.lane.b32.xlu0 %v7884, 104
      %v7897 = vpop.permute.xlu0 %7896
      %7898 = vrot.lane.b32.xlu0 %v7885, 104
      %v7899 = vpop.permute.xlu0 %7898
      %7900 = vrot.lane.b32.xlu0 %v7886, 104
      %v7901 = vpop.permute.xlu0 %7900
      %7902 = vrot.lane.b32.xlu0 %v7887, 104
      %v7903 = vpop.permute.xlu0 %7902
      %v7908 = vmul.f32 %v7877, %v7897
      %v7909 = vmul.f32 %v7879, %v7899
      %v7910 = vmul.f32 %v7881, %v7901
      %v7911 = vmul.f32 %v7883, %v7903
      %7916 = vrot.lane.b32.xlu0 %v7908, 8
      %v7917 = vpop.permute.xlu0 %7916
      %7918 = vrot.lane.b32.xlu0 %v7909, 8
      %v7919 = vpop.permute.xlu0 %7918
      %7920 = vrot.lane.b32.xlu0 %v7910, 8
      %v7921 = vpop.permute.xlu0 %7920
      %7922 = vrot.lane.b32.xlu0 %v7911, 8
      %v7923 = vpop.permute.xlu0 %7922
      %v7928 = vadd.f32 %v7888, %v7917
      %v7929 = vadd.f32 %v7889, %v7919
      %v7930 = vadd.f32 %v7890, %v7921
      %v7931 = vadd.f32 %v7891, %v7923
      %v7932 = vtanh.pop %v7928
      %v7933 = vtanh.pop %v7929
      %v7934 = vtanh.pop %v7930
      %v7935 = vtanh.pop %v7931
      %7940 = vrot.lane.b32.xlu0 %v7932, 8
      %v7941 = vpop.permute.xlu0 %7940
      %7942 = vrot.lane.b32.xlu0 %v7933, 8
      %v7943 = vpop.permute.xlu0 %7942
      %7944 = vrot.lane.b32.xlu0 %v7934, 8
      %v7945 = vpop.permute.xlu0 %7944
      %7946 = vrot.lane.b32.xlu0 %v7935, 8
      %v7947 = vpop.permute.xlu0 %7946
      %v7952 = vmul.f32 %v7877, %v7941
      %v7953 = vmul.f32 %v7879, %v7943
      %v7954 = vmul.f32 %v7881, %v7945
      %v7955 = vmul.f32 %v7883, %v7947
      %s7956 = smul.u32 %s395, 128
      %s7957 = sshra.s32 %s7956, 3
      %s7958 = sand.u32 %s7956, 7
      %s7959 = smul.u32 %s7957, 2
      %s7960 = smul.addr %s7959, 4
      %s7961 = scalar_lea.vmem [#allocation11], %s7960
      %v7962 = vld [vmem:[%s7961] sm:$0xff]
      %v7963 = vld [vmem:[%s7961 + $0x8] sm:$0xff]
      %v7964 = vld [vmem:[%s7961 + $0x10] sm:$0xff]
      %v7965 = vld [vmem:[%s7961 + $0x18] sm:$0xff]
      %v7966 = vld [vmem:[%s7961 + $0x20] sm:$0xff]
      %v7967 = vld [vmem:[%s7961 + $0x28] sm:$0xff]
      %v7968 = vld [vmem:[%s7961 + $0x30] sm:$0xff]
      %v7969 = vld [vmem:[%s7961 + $0x38] sm:$0xff]
      %v7970 = vld [vmem:[%s7961 + $0x40] sm:$0xff]
      %v7971 = vld [vmem:[%s7961 + $0x48] sm:$0xff]
      %v7972 = vld [vmem:[%s7961 + $0x50] sm:$0xff]
      %v7973 = vld [vmem:[%s7961 + $0x58] sm:$0xff]
      %v7974 = vld [vmem:[%s7961 + $0x60] sm:$0xff]
      %v7975 = vld [vmem:[%s7961 + $0x68] sm:$0xff]
      %v7976 = vld [vmem:[%s7961 + $0x70] sm:$0xff]
      %v7977 = vld [vmem:[%s7961 + $0x78] sm:$0xff]
      %v7978 = vld [vmem:[#allocation2] sm:$0xff]
      %v7979 = vld [vmem:[#allocation2 + $0x8] sm:$0xff]
      %v7980 = vld [vmem:[#allocation2 + $0x10] sm:$0xff]
      %v7981 = vld [vmem:[#allocation2 + $0x18] sm:$0xff]
      %v7982 = vpack.c.bf16 %v7979, %v7978
      %v7983 = vpack.c.bf16 %v7981, %v7980
      %v7984 = vld [vmem:[#allocation3] sm:$0xff]
      %v7985 = vld [vmem:[#allocation3 + $0x8] sm:$0xff]
      %v7986 = vld [vmem:[#allocation3 + $0x10] sm:$0xff]
      %v7987 = vld [vmem:[#allocation3 + $0x18] sm:$0xff]
      %v7988 = vld [vmem:[#allocation3 + $0x20] sm:$0xff]
      %v7989 = vld [vmem:[#allocation3 + $0x28] sm:$0xff]
      %v7990 = vld [vmem:[#allocation3 + $0x30] sm:$0xff]
      %v7991 = vld [vmem:[#allocation3 + $0x38] sm:$0xff]
      %v8008 = vunpack.c.l.b16 %v7962
      %v8009 = vunpack.c.h.b16 %v7962
      %v8010 = vunpack.c.l.b16 %v7963
      %v8011 = vunpack.c.h.b16 %v7963
      %v8012 = vunpack.c.l.b16 %v7964
      %v8013 = vunpack.c.h.b16 %v7964
      %v8014 = vunpack.c.l.b16 %v7965
      %v8015 = vunpack.c.h.b16 %v7965
      %v8016 = vunpack.c.l.b16 %v7966
      %v8017 = vunpack.c.h.b16 %v7966
      %v8018 = vunpack.c.l.b16 %v7967
      %v8019 = vunpack.c.h.b16 %v7967
      %v8020 = vunpack.c.l.b16 %v7968
      %v8021 = vunpack.c.h.b16 %v7968
      %v8022 = vunpack.c.l.b16 %v7969
      %v8023 = vunpack.c.h.b16 %v7969
      %v8024 = vunpack.c.l.b16 %v7970
      %v8025 = vunpack.c.h.b16 %v7970
      %v8026 = vunpack.c.l.b16 %v7971
      %v8027 = vunpack.c.h.b16 %v7971
      %v8028 = vunpack.c.l.b16 %v7972
      %v8029 = vunpack.c.h.b16 %v7972
      %v8030 = vunpack.c.l.b16 %v7973
      %v8031 = vunpack.c.h.b16 %v7973
      %v8032 = vunpack.c.l.b16 %v7974
      %v8033 = vunpack.c.h.b16 %v7974
      %v8034 = vunpack.c.l.b16 %v7975
      %v8035 = vunpack.c.h.b16 %v7975
      %v8036 = vunpack.c.l.b16 %v7976
      %v8037 = vunpack.c.h.b16 %v7976
      %v8038 = vunpack.c.l.b16 %v7977
      %v8039 = vunpack.c.h.b16 %v7977
      %v8040 = vpack.c.b16 %v8010, %v8008
      %v8041 = vpack.c.b16 %v8011, %v8009
      %v8042 = vpack.c.b16 %v8014, %v8012
      %v8043 = vpack.c.b16 %v8015, %v8013
      %v8044 = vpack.c.b16 %v8018, %v8016
      %v8045 = vpack.c.b16 %v8019, %v8017
      %v8046 = vpack.c.b16 %v8022, %v8020
      %v8047 = vpack.c.b16 %v8023, %v8021
      %v8048 = vpack.c.b16 %v8026, %v8024
      %v8049 = vpack.c.b16 %v8027, %v8025
      %v8050 = vpack.c.b16 %v8030, %v8028
      %v8051 = vpack.c.b16 %v8031, %v8029
      %v8052 = vpack.c.b16 %v8034, %v8032
      %v8053 = vpack.c.b16 %v8035, %v8033
      %v8054 = vpack.c.b16 %v8038, %v8036
      %v8055 = vpack.c.b16 %v8039, %v8037
      %8072 = vmatprep.subr.bf16.mxu0 %v8041
      %8073 = vmatpush1.bf16.msra.mxu0 %v8040
      %8074 = vmatprep.subr.bf16.mxu0 %v8043
      %8075 = vmatpush1.bf16.msra.mxu0 %v8042
      %8076 = vmatprep.subr.bf16.mxu0 %v8045
      %8077 = vmatpush1.bf16.msra.mxu0 %v8044
      %8078 = vmatprep.subr.bf16.mxu0 %v8047
      %8079 = vmatpush1.bf16.msra.mxu0 %v8046
      %8080 = vmatprep.subr.bf16.mxu0 %v8049
      %8081 = vmatpush1.bf16.msra.mxu0 %v8048
      %8082 = vmatprep.subr.bf16.mxu0 %v8051
      %8083 = vmatpush1.bf16.msra.mxu0 %v8050
      %8084 = vmatprep.subr.bf16.mxu0 %v8053
      %8085 = vmatpush1.bf16.msra.mxu0 %v8052
      %8086 = vmatprep.subr.bf16.mxu0 %v8055
      %8087 = vmatpush1.bf16.msra.mxu0 %v8054
      %8088 = vmatprep.subr.bf16.mxu0 0
      %8089 = vmatpush1.bf16.msra.mxu0 0
      %8090 = vmatprep.subr.bf16.mxu0 0
      %8091 = vmatpush1.bf16.msra.mxu0 0
      %8092 = vmatprep.subr.bf16.mxu0 0
      %8093 = vmatpush1.bf16.msra.mxu0 0
      %8094 = vmatprep.subr.bf16.mxu0 0
      %8095 = vmatpush1.bf16.msra.mxu0 0
      %8096 = vmatprep.subr.bf16.mxu0 0
      %8097 = vmatpush1.bf16.msra.mxu0 0
      %8098 = vmatprep.subr.bf16.mxu0 0
      %8099 = vmatpush1.bf16.msra.mxu0 0
      %8100 = vmatprep.subr.bf16.mxu0 0
      %8101 = vmatpush1.bf16.msra.mxu0 0
      %8102 = vmatprep.subr.bf16.mxu0 0
      %8103 = vmatpush1.bf16.msra.mxu0 0
      %8104 = vmatprep.mubr.bf16.mxu0 0
      %8105 = vmatmul.mubr.bf16.gmra.mrb[0].mxu0 %v7982
      %v8106 = vpop.f32.mrb[0].mxu0
      %v8107 = vadd.f32 0.0, %v8106
      %v8108 = vpop.f32.mrb[0].mxu0
      %v8109 = vadd.f32 0.0, %v8108
      %v8110 = vpop.f32.mrb[0].mxu0
      %v8111 = vadd.f32 0.0, %v8110
      %v8112 = vpop.f32.mrb[0].mxu0
      %v8113 = vadd.f32 0.0, %v8112
      %8114 = vmatprep.mubr.bf16.mxu0 0
      %8115 = vmatmul.mubr.bf16.gmra.mrb[0].mxu0 %v7983
      %v8116 = vpop.f32.mrb[0].mxu0
      %v8117 = vadd.f32 0.0, %v8116
      %v8118 = vpop.f32.mrb[0].mxu0
      %v8119 = vadd.f32 0.0, %v8118
      %v8120 = vpop.f32.mrb[0].mxu0
      %v8121 = vadd.f32 0.0, %v8120
      %v8122 = vpop.f32.mrb[0].mxu0
      %v8123 = vadd.f32 0.0, %v8122
      %8124 = vdwg.mxu0
      %v8125 = vadd.f32 %v7984, %v8107
      %v8126 = vadd.f32 %v7985, %v8109
      %v8127 = vadd.f32 %v7986, %v8111
      %v8128 = vadd.f32 %v7987, %v8113
      %v8129 = vadd.f32 %v7988, %v8117
      %v8130 = vadd.f32 %v7989, %v8119
      %v8131 = vadd.f32 %v7990, %v8121
      %v8132 = vadd.f32 %v7991, %v8123
      %8133 = vst [vmem:[#allocation3] sm:$0xff] %v8125
      %8134 = vst [vmem:[#allocation3 + $0x8] sm:$0xff] %v8126
      %8135 = vst [vmem:[#allocation3 + $0x10] sm:$0xff] %v8127
      %8136 = vst [vmem:[#allocation3 + $0x18] sm:$0xff] %v8128
      %8137 = vst [vmem:[#allocation3 + $0x20] sm:$0xff] %v8129
      %8138 = vst [vmem:[#allocation3 + $0x28] sm:$0xff] %v8130
      %8139 = vst [vmem:[#allocation3 + $0x30] sm:$0xff] %v8131
      %8140 = vst [vmem:[#allocation3 + $0x38] sm:$0xff] %v8132
      %8141 = vrot.lane.b32.xlu0 %v7807, 80
      %v8142 = vpop.permute.xlu0 %8141
      %8143 = vrot.lane.b32.xlu0 %v7808, 80
      %v8144 = vpop.permute.xlu0 %8143
      %8145 = vrot.lane.b32.xlu0 %v7809, 80
      %v8146 = vpop.permute.xlu0 %8145
      %8147 = vrot.lane.b32.xlu0 %v7810, 80
      %v8148 = vpop.permute.xlu0 %8147
      %8157 = vrot.lane.b32.xlu0 %v7783, 88
      %v8158 = vpop.permute.xlu0 %8157
      %8159 = vrot.lane.b32.xlu0 %v7784, 88
      %v8160 = vpop.permute.xlu0 %8159
      %8161 = vrot.lane.b32.xlu0 %v7785, 88
      %v8162 = vpop.permute.xlu0 %8161
      %8163 = vrot.lane.b32.xlu0 %v7786, 88
      %v8164 = vpop.permute.xlu0 %8163
    $region86: #{lstmclf_forward.1} parent=1 // loop_footer
      %s399 = sadd.s32 1, %s395
    $region87: #{lstmclf_forward.1} parent=1 // loop_footer_branch
      %394 = sbr.rel target = $region83
    $region88: #{lstmclf_forward.1} parent=1 // loop_exit
      _
    %v8169 = vld [vmem:[#allocation3] sm:$0xff]
    %v8170 = vld [vmem:[#allocation3 + $0x8] sm:$0xff]
    %v8171 = vld [vmem:[#allocation3 + $0x10] sm:$0xff]
    %v8172 = vld [vmem:[#allocation3 + $0x18] sm:$0xff]
    %v8173 = vld [vmem:[#allocation3 + $0x20] sm:$0xff]
    %v8174 = vld [vmem:[#allocation3 + $0x28] sm:$0xff]
    %v8175 = vld [vmem:[#allocation3 + $0x30] sm:$0xff]
    %v8176 = vld [vmem:[#allocation3 + $0x38] sm:$0xff]
    %v8177 = vld [vmem:[#allocation12] sm:$0x3]
    %v8179 = vlaneseq
    %v8180 = vshrl.u32 %v8179, 7
    %v8181 = vsub.s32 0, %v8180
    %v8182 = vrot.slane %v8177, %v8181
    %v8183 = vlaneseq
    %v8184 = vshrl.u32 %v8183, 7
    %v8185 = vsub.s32 1, %v8184
    %v8186 = vrot.slane %v8177, %v8185
    %v8189 = vadd.f32 %v8169, %v8182
    %v8190 = vadd.f32 %v8170, %v8186
    %v8191 = vadd.f32 %v8171, %v8182
    %v8192 = vadd.f32 %v8172, %v8186
    %v8193 = vadd.f32 %v8173, %v8182
    %v8194 = vadd.f32 %v8174, %v8186
    %v8195 = vadd.f32 %v8175, %v8182
    %v8196 = vadd.f32 %v8176, %v8186
    %v8197 = vmax.f32 %v8189, 0.0
    %v8198 = vmax.f32 %v8190, 0.0
    %v8199 = vmax.f32 %v8191, 0.0
    %v8200 = vmax.f32 %v8192, 0.0
    %v8201 = vmax.f32 %v8193, 0.0
    %v8202 = vmax.f32 %v8194, 0.0
    %v8203 = vmax.f32 %v8195, 0.0
    %v8204 = vmax.f32 %v8196, 0.0
    %v8205 = vld [vmem:[%s9] sm:$0xff]
    %v8206 = vld [vmem:[%s9 + $0x8] sm:$0xff]
    %v8207 = vld [vmem:[%s9 + $0x10] sm:$0xff]
    %v8208 = vld [vmem:[%s9 + $0x18] sm:$0xff]
    %v8209 = vld [vmem:[%s9 + $0x20] sm:$0xff]
    %v8210 = vld [vmem:[%s9 + $0x28] sm:$0xff]
    %v8211 = vld [vmem:[%s9 + $0x30] sm:$0xff]
    %v8212 = vld [vmem:[%s9 + $0x38] sm:$0xff]
    %v8213 = vld [vmem:[%s9 + $0x40] sm:$0xff]
    %v8214 = vld [vmem:[%s9 + $0x48] sm:$0xff]
    %v8215 = vld [vmem:[%s9 + $0x50] sm:$0xff]
    %v8216 = vld [vmem:[%s9 + $0x58] sm:$0xff]
    %v8217 = vld [vmem:[%s9 + $0x60] sm:$0xff]
    %v8218 = vld [vmem:[%s9 + $0x68] sm:$0xff]
    %v8219 = vld [vmem:[%s9 + $0x70] sm:$0xff]
    %v8220 = vld [vmem:[%s9 + $0x78] sm:$0xff]
    %v8221 = vld [vmem:[%s9 + $0x80] sm:$0xff]
    %v8222 = vld [vmem:[%s9 + $0x88] sm:$0xff]
    %v8223 = vld [vmem:[%s9 + $0x90] sm:$0xff]
    %v8224 = vld [vmem:[%s9 + $0x98] sm:$0xff]
    %v8225 = vld [vmem:[%s9 + $0xa0] sm:$0xff]
    %v8226 = vld [vmem:[%s9 + $0xa8] sm:$0xff]
    %v8227 = vld [vmem:[%s9 + $0xb0] sm:$0xff]
    %v8228 = vld [vmem:[%s9 + $0xb8] sm:$0xff]
    %v8229 = vld [vmem:[%s9 + $0xc0] sm:$0xff]
    %v8230 = vld [vmem:[%s9 + $0xc8] sm:$0xff]
    %v8231 = vld [vmem:[%s9 + $0xd0] sm:$0xff]
    %v8232 = vld [vmem:[%s9 + $0xd8] sm:$0xff]
    %v8233 = vld [vmem:[%s9 + $0xe0] sm:$0xff]
    %v8234 = vld [vmem:[%s9 + $0xe8] sm:$0xff]
    %v8235 = vld [vmem:[%s9 + $0xf0] sm:$0xff]
    %v8236 = vld [vmem:[%s9 + $0xf8] sm:$0xff]
    %v8237 = vld [vmem:[#allocation14] sm:$0x1]
    %v8239 = vlaneseq
    %v8240 = vshrl.u32 %v8239, 7
    %v8241 = vsub.s32 0, %v8240
    %v8242 = vrot.slane %v8237, %v8241
    %8244 = vmatprep.subr.mxu0 0.0
    %8245 = vmatpush1.msra.mxu0 %v8205
    %8246 = vmatprep.subr.mxu0 0.0
    %8247 = vmatpush1.msra.mxu0 %v8206
    %8248 = vmatprep.subr.mxu0 0.0
    %8249 = vmatpush1.msra.mxu0 %v8207
    %8250 = vmatprep.subr.mxu0 0.0
    %8251 = vmatpush1.msra.mxu0 %v8208
    %8252 = vmatprep.subr.mxu0 0.0
    %8253 = vmatpush1.msra.mxu0 %v8209
    %8254 = vmatprep.subr.mxu0 0.0
    %8255 = vmatpush1.msra.mxu0 %v8210
    %8256 = vmatprep.subr.mxu0 0.0
    %8257 = vmatpush1.msra.mxu0 %v8211
    %8258 = vmatprep.subr.mxu0 0.0
    %8259 = vmatpush1.msra.mxu0 %v8212
    %8260 = vmatprep.subr.mxu0 0.0
    %8261 = vmatpush1.msra.mxu0 %v8213
    %8262 = vmatprep.subr.mxu0 0.0
    %8263 = vmatpush1.msra.mxu0 %v8214
    %8264 = vmatprep.subr.mxu0 0.0
    %8265 = vmatpush1.msra.mxu0 %v8215
    %8266 = vmatprep.subr.mxu0 0.0
    %8267 = vmatpush1.msra.mxu0 %v8216
    %8268 = vmatprep.subr.mxu0 0.0
    %8269 = vmatpush1.msra.mxu0 %v8217
    %8270 = vmatprep.subr.mxu0 0.0
    %8271 = vmatpush1.msra.mxu0 %v8218
    %8272 = vmatprep.subr.mxu0 0.0
    %8273 = vmatpush1.msra.mxu0 %v8219
    %8274 = vmatprep.subr.mxu0 0.0
    %8275 = vmatpush1.msra.mxu0 %v8220
    %8276 = vmatprep.subr.mxu0 0.0
    %8277 = vmatpush1.msra.mxu0 %v8221
    %8278 = vmatprep.subr.mxu0 0.0
    %8279 = vmatpush1.msra.mxu0 %v8222
    %8280 = vmatprep.subr.mxu0 0.0
    %8281 = vmatpush1.msra.mxu0 %v8223
    %8282 = vmatprep.subr.mxu0 0.0
    %8283 = vmatpush1.msra.mxu0 %v8224
    %8284 = vmatprep.subr.mxu0 0.0
    %8285 = vmatpush1.msra.mxu0 %v8225
    %8286 = vmatprep.subr.mxu0 0.0
    %8287 = vmatpush1.msra.mxu0 %v8226
    %8288 = vmatprep.subr.mxu0 0.0
    %8289 = vmatpush1.msra.mxu0 %v8227
    %8290 = vmatprep.subr.mxu0 0.0
    %8291 = vmatpush1.msra.mxu0 %v8228
    %8292 = vmatprep.subr.mxu0 0.0
    %8293 = vmatpush1.msra.mxu0 %v8229
    %8294 = vmatprep.subr.mxu0 0.0
    %8295 = vmatpush1.msra.mxu0 %v8230
    %8296 = vmatprep.subr.mxu0 0.0
    %8297 = vmatpush1.msra.mxu0 %v8231
    %8298 = vmatprep.subr.mxu0 0.0
    %8299 = vmatpush1.msra.mxu0 %v8232
    %8300 = vmatprep.subr.mxu0 0.0
    %8301 = vmatpush1.msra.mxu0 %v8233
    %8302 = vmatprep.subr.mxu0 0.0
    %8303 = vmatpush1.msra.mxu0 %v8234
    %8304 = vmatprep.subr.mxu0 0.0
    %8305 = vmatpush1.msra.mxu0 %v8235
    %8306 = vmatprep.subr.mxu0 0.0
    %8307 = vmatpush1.msra.mxu0 %v8236
    %8308 = vmatprep.mubr.f32.mxu0 %v8198
    %8309 = vmatmul.mubr.f32.gmra.mrb[0].mxu0 %v8197
    %v8310 = vpop.f32.mrb[0].mxu0
    %v8311 = vadd.f32 %v8242, %v8310
    %v8312 = vpop.f32.mrb[0].mxu0
    %8313 = vmatprep.mubr.f32.mxu0 %v8200
    %8314 = vmatmul.mubr.f32.gmra.mrb[0].mxu0 %v8199
    %v8315 = vpop.f32.mrb[0].mxu0
    %v8316 = vadd.f32 %v8242, %v8315
    %v8317 = vpop.f32.mrb[0].mxu0
    %8318 = vmatprep.mubr.f32.mxu0 %v8202
    %8319 = vmatmul.mubr.f32.gmra.mrb[0].mxu0 %v8201
    %v8320 = vpop.f32.mrb[0].mxu0
    %v8321 = vadd.f32 %v8242, %v8320
    %v8322 = vpop.f32.mrb[0].mxu0
    %8323 = vmatprep.mubr.f32.mxu0 %v8204
    %8324 = vmatmul.mubr.f32.gmra.mrb[0].mxu0 %v8203
    %v8325 = vpop.f32.mrb[0].mxu0
    %v8326 = vadd.f32 %v8242, %v8325
    %v8327 = vpop.f32.mrb[0].mxu0
    %8328 = vdwg.mxu0
    %vm8329 = vcmask 31744
    %8330 = vst.msk [vmem:[%s13] sm:$0xff] %vm8329, %v8311
    %8331 = vst.msk [vmem:[%s13 + $0x8] sm:$0xff] %vm8329, %v8316
    %8332 = vst.msk [vmem:[%s13 + $0x10] sm:$0xff] %vm8329, %v8321
    %8333 = vst.msk [vmem:[%s13 + $0x18] sm:$0xff] %vm8329, %v8326
    // Predicated region
    $region89: #{lstmclf_forward.1} parent=1 // pred_check
      _
    $region90: #{lstmclf_forward.1} parent=1 // pred_check_branch
      %8335 = sbr.rel (0) target = $region92
    $region91: #{lstmclf_forward.1} parent=1 // pred_region
      _
    $region92: #{lstmclf_forward.1} parent=1 // pred_fallthru
      _
    // Predicated region
    $region93: #{lstmclf_forward.1} parent=1 // pred_check
      _
    $region94: #{lstmclf_forward.1} parent=1 // pred_check_branch
      %8337 = sbr.rel (0) target = $region96
    $region95: #{lstmclf_forward.1} parent=1 // pred_region
      _
    $region96: #{lstmclf_forward.1} parent=1 // pred_fallthru
      _
    %8338 = vsyncpa [#allocation5], 1
    %8339 = vsyncpa [#allocation7], 1
    %8340 = vsyncpa [#allocation10], 1
    %8341 = vsyncpa [#allocation13], 1

</llo_original>
